<compile_context>
chip_gen: v6e
topology: v6e:2x2x1
jax: 0.10.0
libtpu: 0.0.40
codegen_flags: <defaults>
</compile_context>

<pallas_src>
import functools

import jax
import jax.numpy as jnp
from jax import lax
from jax.experimental import pallas as pl
from jax.experimental.pallas import tpu as pltpu


# ---------------------------------------------------------------------------
# Fused kernel: (folded norm) -> conv1 -> conv2 -> maxpool -> flatten -> MLP
# ---------------------------------------------------------------------------
def _starnet_kernel(w1_ref, b1_ref, w2_ref, b2_ref,                     # SMEM
                    x_ref, fw1_ref, fb1_ref, fw2_ref, fb2_ref,           # VMEM
                    fw3_ref, fb3_ref,
                    out_ref,                                             # VMEM out
                    slab_ref, *,                                         # VMEM scratch
                    nf0, nf1, fl, pool, g, tc, n_chunks, mxu_dtype):
    win = pool + fl - 1                      # number of phase-shifted tap windows

    # Hoist all conv weights / biases out of the chunk loop (SMEM scalar reads).
    W1 = [w1_ref[i] for i in range(nf0 * fl)]
    B1 = [b1_ref[i] for i in range(nf0)]
    W2 = [w2_ref[i] for i in range(nf1 * nf0 * fl)]
    B2 = [b2_ref[i] for i in range(nf1)]

    def fc1_partial(c):
        # Polyphase input chunk: x_ref[c, p, b, t] == x[b, (c*tc + t)*pool + p]
        xc = x_ref[c]                                         # (pool, TB, tc + 2g)
        # Unit-stride tap windows: Xw[q][b, t] == x[b, (c*tc + t)*pool + q]
        Xw = [xc[q % pool][:, q // pool:q // pool + tc + g] for q in range(win)]

        # conv1 + ReLU phase streams: Y[ch][m][b, t] == y1[b, ch, (c*tc+t)*pool+m]
        Y = [[jnp.maximum(
                  sum(W1[ch * fl + k] * Xw[m + k] for k in range(fl)) + B1[ch],
                  0.0)
              for m in range(pool)]
             for ch in range(nf0)]
        Yw = [[Y[ch][q % pool][:, q // pool:q // pool + tc] for q in range(win)]
              for ch in range(nf0)]

        # conv2 + ReLU + MaxPool1d, staged channel-major into the fc1 slab so
        # torch's flatten + fc1 becomes one long-K MXU matmul per chunk.
        for d in range(nf1):
            pooled_d = None
            for j in range(pool):
                z = sum(W2[(d * nf0 + ch) * fl + k] * Yw[ch][j + k]
                        for ch in range(nf0) for k in range(fl)) + B2[d]
                z = jnp.maximum(z, 0.0)        # == y2[b, d, (c*tc+t)*pool + j]
                pooled_d = z if pooled_d is None else jnp.maximum(pooled_d, z)
            slab_ref[:, d * tc:(d + 1) * tc] = pooled_d.astype(slab_ref.dtype)
        return jnp.dot(slab_ref[...], fw1_ref[c],
                       preferred_element_type=jnp.float32)

    if n_chunks == 1:
        acc = fc1_partial(0)
    else:
        acc = lax.fori_loop(
            0, n_chunks,
            lambda c, a: a + fc1_partial(c),
            jnp.zeros((slab_ref.shape[0], fw1_ref.shape[-1]), jnp.float32))

    h = jnp.maximum(acc + fb1_ref[...], 0.0)                             # (TB, h0)
    h = jnp.maximum(
        jnp.dot(h.astype(mxu_dtype), fw2_ref[...],
                preferred_element_type=jnp.float32) + fb2_ref[...], 0.0)
    out = jnp.dot(h.astype(mxu_dtype), fw3_ref[...],
                  preferred_element_type=jnp.float32) + fb3_ref[...]
    out_ref[...] = out.astype(out_ref.dtype)


# ---------------------------------------------------------------------------
# Wrapper helpers
# ---------------------------------------------------------------------------
def _round_up(v, m):
    return -(-v // m) * m


def _pick_batch_tile(batch, batch_tile):
    """Batch tile: multiple of 8; >= 2 grid steps when the batch allows (v7x)."""
    if batch < 16:
        return batch, 1                      # full dim -> valid block shape
    tb = min(int(batch_tile), -(-batch // 2))
    tb = max(8, (tb // 8) * 8)
    return tb, -(-batch // tb)


def _pick_pos_chunk(pooled_len, pos_chunk):
    """Pooled-position chunk: bounds live conv streams; 128-aligned when large."""
    pos_chunk = int(pos_chunk)
    if pooled_len <= pos_chunk:
        return pooled_len, 1
    tc = (pos_chunk // 128) * 128 if pos_chunk >= 128 else pos_chunk
    return tc, -(-pooled_len // tc)


def _vmem_limit_bytes():
    cap = 64 * 1024 * 1024
    try:
        cap = int(pltpu.get_tpu_info().vmem_capacity_bytes)
    except Exception:
        pass
    return max(32 * 1024 * 1024, cap - 16 * 1024 * 1024)


def _const_index_map(ndim):
    return lambda i: (0,) * ndim


# ---------------------------------------------------------------------------
# StarNet forward
# ---------------------------------------------------------------------------
def starnet_forward(x, params, cfg, norm_in=True, denorm_out=False,
                    batch_tile=256, pos_chunk=512, mxu_dtype=jnp.bfloat16):
    x = jnp.asarray(x, jnp.float32)
    B, P = x.shape
    fl = int(cfg['filter_length'])
    pool = int(cfg['pool_length'])
    nf0, nf1 = (int(v) for v in cfg['num_filters'])
    h0, h1 = (int(v) for v in cfg['num_hidden'])
    num_labels = int(cfg['num_labels'])

    conv1_len = P - fl + 1
    conv2_len = conv1_len - fl + 1
    pooled_len = conv2_len // pool

    # Polyphase (stride = pool) geometry for the pixel axis.
    g = (pool + fl - 2) // pool              # max cross-phase carry of a tap window
    tc, n_chunks = _pick_pos_chunk(pooled_len, pos_chunk)
    lp_pad = tc * n_chunks                   # padded pooled length (zero fc1 rows)
    t0 = lp_pad + 2 * g                      # input phase-stream length
    p_pad = t0 * pool
    lc = tc + 2 * g                          # per-chunk input phase-stream length

    TB, n_tiles = _pick_batch_tile(B, batch_tile)
    Bp = n_tiles * TB
    nl_pad = _round_up(num_labels, 128)      # lane-dense output stores

    # --- one-time layout plumbing outside the kernel (XLA) -----------------
    mean = jnp.asarray(params['spectra_mean'], jnp.float32)
    std = jnp.asarray(params['spectra_std'], jnp.float32)
    w1 = jnp.asarray(params['conv1_w'], jnp.float32)         # (nf0, 1, fl)
    b1 = jnp.asarray(params['conv1_b'], jnp.float32)         # (nf0,)
    if norm_in:
        if mean.ndim == 0 and std.ndim == 0:
            # Fold normalization into conv1 (exact: single input channel).
            b1 = b1 - (mean / std) * jnp.sum(w1, axis=(1, 2))
            w1 = w1 / std
        else:
            # TODO(synk): per-element normalization cannot be folded into conv1;
            # apply it once in XLA before the kernel instead.
            x = (x - mean) / std
    w1 = w1.reshape(-1)
    w2 = jnp.asarray(params['conv2_w'], jnp.float32).reshape(-1)
    b2 = jnp.asarray(params['conv2_b'], jnp.float32).reshape(-1)

    # Polyphase streams, then pre-sliced (halo'ed) position chunks:
    #   xc[c, p, b, t] == x[b, (c*tc + t)*pool + p]
    xp = jnp.pad(x, ((0, Bp - B), (0, max(0, p_pad - P))))[:, :p_pad]
    xph = xp.reshape(Bp, t0, pool).transpose(2, 0, 1)         # (pool, Bp, t0)
    if n_chunks == 1:
        xc = xph[None]                                        # (1, pool, Bp, t0)
    else:
        xc = jnp.stack([xph[:, :, c * tc:c * tc + lc] for c in range(n_chunks)], 0)

    # fc1 weight: torch's channel-major flatten folded into per-chunk slabs:
    #   fw1[c, d*tc + t, o] == fc1_w[o, d*pooled_len + (c*tc + t)]  (0 if padded)
    fw1 = jnp.asarray(params['fc1_w'], jnp.float32).reshape(h0, nf1, pooled_len)
    fw1 = jnp.pad(fw1, ((0, 0), (0, 0), (0, lp_pad - pooled_len)))
    fw1 = fw1.reshape(h0, nf1, n_chunks, tc).transpose(2, 1, 3, 0)
    fw1 = fw1.reshape(n_chunks, nf1 * tc, h0).astype(mxu_dtype)
    fb1 = jnp.asarray(params['fc1_b'], jnp.float32).reshape(1, h0)
    fw2 = jnp.transpose(jnp.asarray(params['fc2_w'], jnp.float32)).astype(mxu_dtype)
    fb2 = jnp.asarray(params['fc2_b'], jnp.float32).reshape(1, h1)
    fw3 = jnp.transpose(jnp.asarray(params['out_w'], jnp.float32))
    fw3 = jnp.pad(fw3, ((0, 0), (0, nl_pad - num_labels))).astype(mxu_dtype)
    fb3 = jnp.pad(jnp.asarray(params['out_b'], jnp.float32),
                  (0, nl_pad - num_labels)).reshape(1, nl_pad)

    kernel = functools.partial(
        _starnet_kernel, nf0=nf0, nf1=nf1, fl=fl, pool=pool, g=g,
        tc=tc, n_chunks=n_chunks, mxu_dtype=mxu_dtype)

    smem = pl.BlockSpec(memory_space=pltpu.MemorySpace.SMEM)

    def run(single_buffer_weights):
        def w_spec(shape):
            kw = {}
            if single_buffer_weights:
                kw['pipeline_mode'] = pl.Buffered(1)   # weights stay VMEM-resident
            return pl.BlockSpec(shape, _const_index_map(len(shape)), **kw)

        in_specs = [
            smem, smem, smem, smem,                                    # conv w/b
            pl.BlockSpec((n_chunks, pool, TB, lc), lambda i: (0, 0, i, 0)),
            w_spec((n_chunks, nf1 * tc, h0)),
            w_spec((1, h0)),
            w_spec((h0, h1)),
            w_spec((1, h1)),
            w_spec((h1, nl_pad)),
            w_spec((1, nl_pad)),
        ]
        out_spec = pl.BlockSpec((TB, nl_pad), lambda i: (i, 0))

        return pl.pallas_call(
            kernel,
            out_shape=jax.ShapeDtypeStruct((Bp, nl_pad), jnp.float32),
            grid=(n_tiles,),
            in_specs=in_specs,
            out_specs=out_spec,
            scratch_shapes=[pltpu.VMEM((TB, nf1 * tc), mxu_dtype)],  # fc1 slab
            compiler_params=pltpu.CompilerParams(
                dimension_semantics=("parallel",),
                vmem_limit_bytes=_vmem_limit_bytes()),
        )(w1, b1, w2, b2, xc, fw1, fb1, fw2, fb2, fw3, fb3)

    try:
        out = run(single_buffer_weights=True)
    except Exception:
        # Older jax without BlockSpec(pipeline_mode=...): default double buffering.
        out = run(single_buffer_weights=False)

    out = out[:B, :num_labels]
    if denorm_out:
        out = (out * jnp.asarray(params['labels_std'], jnp.float32)[None, :]
               + jnp.asarray(params['labels_mean'], jnp.float32)[None, :])
    return out


# ---------------------------------------------------------------------------
# Pure-JAX reference for the correctness check
# ---------------------------------------------------------------------------
def reference_forward(x, p, cfg, norm_in=True, denorm_out=False):
    pool = cfg['pool_length']
    xn = (x - p['spectra_mean']) / p['spectra_std'] if norm_in else x
    y = lax.conv_general_dilated(xn[:, None, :], p['conv1_w'], (1,), 'VALID',
                                 dimension_numbers=('NCH', 'OIH', 'NCH'))
    y = jax.nn.relu(y + p['conv1_b'][None, :, None])
    y = lax.conv_general_dilated(y, p['conv2_w'], (1,), 'VALID',
                                 dimension_numbers=('NCH', 'OIH', 'NCH'))
    y = jax.nn.relu(y + p['conv2_b'][None, :, None])
    B, C, L = y.shape
    Lp = L // pool
    y = y[:, :, :Lp * pool].reshape(B, C, Lp, pool).max(axis=-1)
    y = y.reshape(B, C * Lp)
    y = jax.nn.relu(y @ p['fc1_w'].T + p['fc1_b'])
    y = jax.nn.relu(y @ p['fc2_w'].T + p['fc2_b'])
    y = y @ p['out_w'].T + p['out_b']
    if denorm_out:
        y = y * p['labels_std'][None, :] + p['labels_mean'][None, :]
    return y


if __name__ == "__main__":
    cfg = dict(
        num_pixels=64,
        num_filters=(4, 8),
        filter_length=3,
        pool_length=4,
        num_hidden=(32, 16),
        num_labels=3,
    )
    B = 2
    P = cfg['num_pixels']
    fl = cfg['filter_length']
    nf0, nf1 = cfg['num_filters']
    h0, h1 = cfg['num_hidden']
    nl = cfg['num_labels']
    conv1_len = P - fl + 1
    conv2_len = conv1_len - fl + 1
    pooled_len = conv2_len // cfg['pool_length']
    flat_dim = nf1 * pooled_len

    key = jax.random.PRNGKey(0)
    ks = jax.random.split(key, 12)

    params = dict(
        spectra_mean=jnp.float32(0.5),
        spectra_std=jnp.float32(2.0),
        labels_mean=jnp.asarray([5000.0, 2.5, 0.0], jnp.float32),
        labels_std=jnp.asarray([800.0, 0.6, 0.3], jnp.float32),
        conv1_w=0.2 * jax.random.normal(ks[0], (nf0, 1, fl), jnp.float32),
        conv1_b=0.1 * jax.random.normal(ks[1], (nf0,), jnp.float32),
        conv2_w=0.2 * jax.random.normal(ks[2], (nf1, nf0, fl), jnp.float32),
        conv2_b=0.1 * jax.random.normal(ks[3], (nf1,), jnp.float32),
        fc1_w=0.1 * jax.random.normal(ks[4], (h0, flat_dim), jnp.float32),
        fc1_b=0.1 * jax.random.normal(ks[5], (h0,), jnp.float32),
        fc2_w=0.1 * jax.random.normal(ks[6], (h1, h0), jnp.float32),
        fc2_b=0.1 * jax.random.normal(ks[7], (h1,), jnp.float32),
        out_w=0.1 * jax.random.normal(ks[8], (nl, h1), jnp.float32),
        out_b=0.1 * jax.random.normal(ks[9], (nl,), jnp.float32),
    )

    x = jax.random.normal(ks[10], (B, P), jnp.float32)
    ref = jax.block_until_ready(reference_forward(x, params, cfg))

    # 1) f32 MXU path (tight check).
    out_f32 = jax.block_until_ready(
        starnet_forward(x, params, cfg, mxu_dtype=jnp.float32))
    assert out_f32.shape == (B, nl)
    assert jnp.allclose(out_f32, ref, rtol=1e-2, atol=1e-2), (out_f32, ref)

    # 2) default bf16 MXU path (bf16-appropriate tolerance).
    out_bf16 = jax.block_until_ready(starnet_forward(x, params, cfg))
    assert out_bf16.shape == (B, nl)
    assert jnp.allclose(out_bf16, ref, rtol=2e-2, atol=3e-2), (out_bf16, ref)

    # 3) multi-tile batch grid + chunked pooled-position loop path.
    xb = jax.random.normal(ks[11], (20, P), jnp.float32)
    refb = jax.block_until_ready(reference_forward(xb, params, cfg))
    outb = jax.block_until_ready(
        starnet_forward(xb, params, cfg, mxu_dtype=jnp.float32,
                        batch_tile=8, pos_chunk=8))
    assert outb.shape == (20, nl)
    assert jnp.allclose(outb, refb, rtol=1e-2, atol=1e-2), (outb, refb)

    # 4) denormalized-output path.
    out_dn = jax.block_until_ready(
        starnet_forward(x, params, cfg, denorm_out=True, mxu_dtype=jnp.float32))
    ref_dn = jax.block_until_ready(
        reference_forward(x, params, cfg, denorm_out=True))
    assert jnp.allclose(out_dn, ref_dn, rtol=1e-2, atol=1e-1), (out_dn, ref_dn)

    print("KERNEL_OK")
</pallas_src>

<mosaic_0001>
module attributes {stable_mosaic.version = 11 : i64} {
  func.func @_starnet_kernel(%arg0: i32, %arg1: memref<12xf32, #tpu.memory_space<smem>>, %arg2: memref<4xf32, #tpu.memory_space<smem>>, %arg3: memref<96xf32, #tpu.memory_space<smem>>, %arg4: memref<8xf32, #tpu.memory_space<smem>>, %arg5: memref<1x4x2x17xf32, #tpu.memory_space<vmem>>, %arg6: memref<1x120x32xf32, #tpu.memory_space<vmem>>, %arg7: memref<1x32xf32, #tpu.memory_space<vmem>>, %arg8: memref<32x16xf32, #tpu.memory_space<vmem>>, %arg9: memref<1x16xf32, #tpu.memory_space<vmem>>, %arg10: memref<16x128xf32, #tpu.memory_space<vmem>>, %arg11: memref<1x128xf32, #tpu.memory_space<vmem>>, %arg12: memref<2x128xf32, #tpu.memory_space<vmem>>, %arg13: memref<2x120xf32, #tpu.memory_space<vmem>>) attributes {dimension_semantics = [#tpu.dimension_semantics<parallel>], iteration_bounds = array<i64: 1>, scalar_prefetch = 0 : i64, scratch_operands = 1 : i64, tpu.core_type = #tpu.core_type<tc>, window_params = [{transform_indices = @transform_0, window_bounds = array<i64: 12>}, {transform_indices = @transform_1, window_bounds = array<i64: 4>}, {transform_indices = @transform_2, window_bounds = array<i64: 96>}, {transform_indices = @transform_3, window_bounds = array<i64: 8>}, {transform_indices = @transform_4, window_bounds = array<i64: 1, 4, 2, 17>}, {pipeline_mode = #tpu.pipeline_mode<synchronous>, transform_indices = @transform_5, window_bounds = array<i64: 1, 120, 32>}, {pipeline_mode = #tpu.pipeline_mode<synchronous>, transform_indices = @transform_6, window_bounds = array<i64: 1, 32>}, {pipeline_mode = #tpu.pipeline_mode<synchronous>, transform_indices = @transform_7, window_bounds = array<i64: 32, 16>}, {pipeline_mode = #tpu.pipeline_mode<synchronous>, transform_indices = @transform_8, window_bounds = array<i64: 1, 16>}, {pipeline_mode = #tpu.pipeline_mode<synchronous>, transform_indices = @transform_9, window_bounds = array<i64: 16, 128>}, {pipeline_mode = #tpu.pipeline_mode<synchronous>, transform_indices = @transform_10, window_bounds = array<i64: 1, 128>}, {transform_indices = @transform_11, window_bounds = array<i64: 2, 128>}]} {
    %c0 = arith.constant 0 : index
    %0 = memref.load %arg1[%c0] : memref<12xf32, #tpu.memory_space<smem>>
    %c1 = arith.constant 1 : index
    %1 = memref.load %arg1[%c1] : memref<12xf32, #tpu.memory_space<smem>>
    %c2 = arith.constant 2 : index
    %2 = memref.load %arg1[%c2] : memref<12xf32, #tpu.memory_space<smem>>
    %c3 = arith.constant 3 : index
    %3 = memref.load %arg1[%c3] : memref<12xf32, #tpu.memory_space<smem>>
    %c4 = arith.constant 4 : index
    %4 = memref.load %arg1[%c4] : memref<12xf32, #tpu.memory_space<smem>>
    %c5 = arith.constant 5 : index
    %5 = memref.load %arg1[%c5] : memref<12xf32, #tpu.memory_space<smem>>
    %c6 = arith.constant 6 : index
    %6 = memref.load %arg1[%c6] : memref<12xf32, #tpu.memory_space<smem>>
    %c7 = arith.constant 7 : index
    %7 = memref.load %arg1[%c7] : memref<12xf32, #tpu.memory_space<smem>>
    %c8 = arith.constant 8 : index
    %8 = memref.load %arg1[%c8] : memref<12xf32, #tpu.memory_space<smem>>
    %c9 = arith.constant 9 : index
    %9 = memref.load %arg1[%c9] : memref<12xf32, #tpu.memory_space<smem>>
    %c10 = arith.constant 10 : index
    %10 = memref.load %arg1[%c10] : memref<12xf32, #tpu.memory_space<smem>>
    %c11 = arith.constant 11 : index
    %11 = memref.load %arg1[%c11] : memref<12xf32, #tpu.memory_space<smem>>
    %c0_0 = arith.constant 0 : index
    %12 = memref.load %arg2[%c0_0] : memref<4xf32, #tpu.memory_space<smem>>
    %c1_1 = arith.constant 1 : index
    %13 = memref.load %arg2[%c1_1] : memref<4xf32, #tpu.memory_space<smem>>
    %c2_2 = arith.constant 2 : index
    %14 = memref.load %arg2[%c2_2] : memref<4xf32, #tpu.memory_space<smem>>
    %c3_3 = arith.constant 3 : index
    %15 = memref.load %arg2[%c3_3] : memref<4xf32, #tpu.memory_space<smem>>
    %c0_4 = arith.constant 0 : index
    %16 = memref.load %arg3[%c0_4] : memref<96xf32, #tpu.memory_space<smem>>
    %c1_5 = arith.constant 1 : index
    %17 = memref.load %arg3[%c1_5] : memref<96xf32, #tpu.memory_space<smem>>
    %c2_6 = arith.constant 2 : index
    %18 = memref.load %arg3[%c2_6] : memref<96xf32, #tpu.memory_space<smem>>
    %c3_7 = arith.constant 3 : index
    %19 = memref.load %arg3[%c3_7] : memref<96xf32, #tpu.memory_space<smem>>
    %c4_8 = arith.constant 4 : index
    %20 = memref.load %arg3[%c4_8] : memref<96xf32, #tpu.memory_space<smem>>
    %c5_9 = arith.constant 5 : index
    %21 = memref.load %arg3[%c5_9] : memref<96xf32, #tpu.memory_space<smem>>
    %c6_10 = arith.constant 6 : index
    %22 = memref.load %arg3[%c6_10] : memref<96xf32, #tpu.memory_space<smem>>
    %c7_11 = arith.constant 7 : index
    %23 = memref.load %arg3[%c7_11] : memref<96xf32, #tpu.memory_space<smem>>
    %c8_12 = arith.constant 8 : index
    %24 = memref.load %arg3[%c8_12] : memref<96xf32, #tpu.memory_space<smem>>
    %c9_13 = arith.constant 9 : index
    %25 = memref.load %arg3[%c9_13] : memref<96xf32, #tpu.memory_space<smem>>
    %c10_14 = arith.constant 10 : index
    %26 = memref.load %arg3[%c10_14] : memref<96xf32, #tpu.memory_space<smem>>
    %c11_15 = arith.constant 11 : index
    %27 = memref.load %arg3[%c11_15] : memref<96xf32, #tpu.memory_space<smem>>
    %c12 = arith.constant 12 : index
    %28 = memref.load %arg3[%c12] : memref<96xf32, #tpu.memory_space<smem>>
    %c13 = arith.constant 13 : index
    %29 = memref.load %arg3[%c13] : memref<96xf32, #tpu.memory_space<smem>>
    %c14 = arith.constant 14 : index
    %30 = memref.load %arg3[%c14] : memref<96xf32, #tpu.memory_space<smem>>
    %c15 = arith.constant 15 : index
    %31 = memref.load %arg3[%c15] : memref<96xf32, #tpu.memory_space<smem>>
    %c16 = arith.constant 16 : index
    %32 = memref.load %arg3[%c16] : memref<96xf32, #tpu.memory_space<smem>>
    %c17 = arith.constant 17 : index
    %33 = memref.load %arg3[%c17] : memref<96xf32, #tpu.memory_space<smem>>
    %c18 = arith.constant 18 : index
    %34 = memref.load %arg3[%c18] : memref<96xf32, #tpu.memory_space<smem>>
    %c19 = arith.constant 19 : index
    %35 = memref.load %arg3[%c19] : memref<96xf32, #tpu.memory_space<smem>>
    %c20 = arith.constant 20 : index
    %36 = memref.load %arg3[%c20] : memref<96xf32, #tpu.memory_space<smem>>
    %c21 = arith.constant 21 : index
    %37 = memref.load %arg3[%c21] : memref<96xf32, #tpu.memory_space<smem>>
    %c22 = arith.constant 22 : index
    %38 = memref.load %arg3[%c22] : memref<96xf32, #tpu.memory_space<smem>>
    %c23 = arith.constant 23 : index
    %39 = memref.load %arg3[%c23] : memref<96xf32, #tpu.memory_space<smem>>
    %c24 = arith.constant 24 : index
    %40 = memref.load %arg3[%c24] : memref<96xf32, #tpu.memory_space<smem>>
    %c25 = arith.constant 25 : index
    %41 = memref.load %arg3[%c25] : memref<96xf32, #tpu.memory_space<smem>>
    %c26 = arith.constant 26 : index
    %42 = memref.load %arg3[%c26] : memref<96xf32, #tpu.memory_space<smem>>
    %c27 = arith.constant 27 : index
    %43 = memref.load %arg3[%c27] : memref<96xf32, #tpu.memory_space<smem>>
    %c28 = arith.constant 28 : index
    %44 = memref.load %arg3[%c28] : memref<96xf32, #tpu.memory_space<smem>>
    %c29 = arith.constant 29 : index
    %45 = memref.load %arg3[%c29] : memref<96xf32, #tpu.memory_space<smem>>
    %c30 = arith.constant 30 : index
    %46 = memref.load %arg3[%c30] : memref<96xf32, #tpu.memory_space<smem>>
    %c31 = arith.constant 31 : index
    %47 = memref.load %arg3[%c31] : memref<96xf32, #tpu.memory_space<smem>>
    %c32 = arith.constant 32 : index
    %48 = memref.load %arg3[%c32] : memref<96xf32, #tpu.memory_space<smem>>
    %c33 = arith.constant 33 : index
    %49 = memref.load %arg3[%c33] : memref<96xf32, #tpu.memory_space<smem>>
    %c34 = arith.constant 34 : index
    %50 = memref.load %arg3[%c34] : memref<96xf32, #tpu.memory_space<smem>>
    %c35 = arith.constant 35 : index
    %51 = memref.load %arg3[%c35] : memref<96xf32, #tpu.memory_space<smem>>
    %c36 = arith.constant 36 : index
    %52 = memref.load %arg3[%c36] : memref<96xf32, #tpu.memory_space<smem>>
    %c37 = arith.constant 37 : index
    %53 = memref.load %arg3[%c37] : memref<96xf32, #tpu.memory_space<smem>>
    %c38 = arith.constant 38 : index
    %54 = memref.load %arg3[%c38] : memref<96xf32, #tpu.memory_space<smem>>
    %c39 = arith.constant 39 : index
    %55 = memref.load %arg3[%c39] : memref<96xf32, #tpu.memory_space<smem>>
    %c40 = arith.constant 40 : index
    %56 = memref.load %arg3[%c40] : memref<96xf32, #tpu.memory_space<smem>>
    %c41 = arith.constant 41 : index
    %57 = memref.load %arg3[%c41] : memref<96xf32, #tpu.memory_space<smem>>
    %c42 = arith.constant 42 : index
    %58 = memref.load %arg3[%c42] : memref<96xf32, #tpu.memory_space<smem>>
    %c43 = arith.constant 43 : index
    %59 = memref.load %arg3[%c43] : memref<96xf32, #tpu.memory_space<smem>>
    %c44 = arith.constant 44 : index
    %60 = memref.load %arg3[%c44] : memref<96xf32, #tpu.memory_space<smem>>
    %c45 = arith.constant 45 : index
    %61 = memref.load %arg3[%c45] : memref<96xf32, #tpu.memory_space<smem>>
    %c46 = arith.constant 46 : index
    %62 = memref.load %arg3[%c46] : memref<96xf32, #tpu.memory_space<smem>>
    %c47 = arith.constant 47 : index
    %63 = memref.load %arg3[%c47] : memref<96xf32, #tpu.memory_space<smem>>
    %c48 = arith.constant 48 : index
    %64 = memref.load %arg3[%c48] : memref<96xf32, #tpu.memory_space<smem>>
    %c49 = arith.constant 49 : index
    %65 = memref.load %arg3[%c49] : memref<96xf32, #tpu.memory_space<smem>>
    %c50 = arith.constant 50 : index
    %66 = memref.load %arg3[%c50] : memref<96xf32, #tpu.memory_space<smem>>
    %c51 = arith.constant 51 : index
    %67 = memref.load %arg3[%c51] : memref<96xf32, #tpu.memory_space<smem>>
    %c52 = arith.constant 52 : index
    %68 = memref.load %arg3[%c52] : memref<96xf32, #tpu.memory_space<smem>>
    %c53 = arith.constant 53 : index
    %69 = memref.load %arg3[%c53] : memref<96xf32, #tpu.memory_space<smem>>
    %c54 = arith.constant 54 : index
    %70 = memref.load %arg3[%c54] : memref<96xf32, #tpu.memory_space<smem>>
    %c55 = arith.constant 55 : index
    %71 = memref.load %arg3[%c55] : memref<96xf32, #tpu.memory_space<smem>>
    %c56 = arith.constant 56 : index
    %72 = memref.load %arg3[%c56] : memref<96xf32, #tpu.memory_space<smem>>
    %c57 = arith.constant 57 : index
    %73 = memref.load %arg3[%c57] : memref<96xf32, #tpu.memory_space<smem>>
    %c58 = arith.constant 58 : index
    %74 = memref.load %arg3[%c58] : memref<96xf32, #tpu.memory_space<smem>>
    %c59 = arith.constant 59 : index
    %75 = memref.load %arg3[%c59] : memref<96xf32, #tpu.memory_space<smem>>
    %c60 = arith.constant 60 : index
    %76 = memref.load %arg3[%c60] : memref<96xf32, #tpu.memory_space<smem>>
    %c61 = arith.constant 61 : index
    %77 = memref.load %arg3[%c61] : memref<96xf32, #tpu.memory_space<smem>>
    %c62 = arith.constant 62 : index
    %78 = memref.load %arg3[%c62] : memref<96xf32, #tpu.memory_space<smem>>
    %c63 = arith.constant 63 : index
    %79 = memref.load %arg3[%c63] : memref<96xf32, #tpu.memory_space<smem>>
    %c64 = arith.constant 64 : index
    %80 = memref.load %arg3[%c64] : memref<96xf32, #tpu.memory_space<smem>>
    %c65 = arith.constant 65 : index
    %81 = memref.load %arg3[%c65] : memref<96xf32, #tpu.memory_space<smem>>
    %c66 = arith.constant 66 : index
    %82 = memref.load %arg3[%c66] : memref<96xf32, #tpu.memory_space<smem>>
    %c67 = arith.constant 67 : index
    %83 = memref.load %arg3[%c67] : memref<96xf32, #tpu.memory_space<smem>>
    %c68 = arith.constant 68 : index
    %84 = memref.load %arg3[%c68] : memref<96xf32, #tpu.memory_space<smem>>
    %c69 = arith.constant 69 : index
    %85 = memref.load %arg3[%c69] : memref<96xf32, #tpu.memory_space<smem>>
    %c70 = arith.constant 70 : index
    %86 = memref.load %arg3[%c70] : memref<96xf32, #tpu.memory_space<smem>>
    %c71 = arith.constant 71 : index
    %87 = memref.load %arg3[%c71] : memref<96xf32, #tpu.memory_space<smem>>
    %c72 = arith.constant 72 : index
    %88 = memref.load %arg3[%c72] : memref<96xf32, #tpu.memory_space<smem>>
    %c73 = arith.constant 73 : index
    %89 = memref.load %arg3[%c73] : memref<96xf32, #tpu.memory_space<smem>>
    %c74 = arith.constant 74 : index
    %90 = memref.load %arg3[%c74] : memref<96xf32, #tpu.memory_space<smem>>
    %c75 = arith.constant 75 : index
    %91 = memref.load %arg3[%c75] : memref<96xf32, #tpu.memory_space<smem>>
    %c76 = arith.constant 76 : index
    %92 = memref.load %arg3[%c76] : memref<96xf32, #tpu.memory_space<smem>>
    %c77 = arith.constant 77 : index
    %93 = memref.load %arg3[%c77] : memref<96xf32, #tpu.memory_space<smem>>
    %c78 = arith.constant 78 : index
    %94 = memref.load %arg3[%c78] : memref<96xf32, #tpu.memory_space<smem>>
    %c79 = arith.constant 79 : index
    %95 = memref.load %arg3[%c79] : memref<96xf32, #tpu.memory_space<smem>>
    %c80 = arith.constant 80 : index
    %96 = memref.load %arg3[%c80] : memref<96xf32, #tpu.memory_space<smem>>
    %c81 = arith.constant 81 : index
    %97 = memref.load %arg3[%c81] : memref<96xf32, #tpu.memory_space<smem>>
    %c82 = arith.constant 82 : index
    %98 = memref.load %arg3[%c82] : memref<96xf32, #tpu.memory_space<smem>>
    %c83 = arith.constant 83 : index
    %99 = memref.load %arg3[%c83] : memref<96xf32, #tpu.memory_space<smem>>
    %c84 = arith.constant 84 : index
    %100 = memref.load %arg3[%c84] : memref<96xf32, #tpu.memory_space<smem>>
    %c85 = arith.constant 85 : index
    %101 = memref.load %arg3[%c85] : memref<96xf32, #tpu.memory_space<smem>>
    %c86 = arith.constant 86 : index
    %102 = memref.load %arg3[%c86] : memref<96xf32, #tpu.memory_space<smem>>
    %c87 = arith.constant 87 : index
    %103 = memref.load %arg3[%c87] : memref<96xf32, #tpu.memory_space<smem>>
    %c88 = arith.constant 88 : index
    %104 = memref.load %arg3[%c88] : memref<96xf32, #tpu.memory_space<smem>>
    %c89 = arith.constant 89 : index
    %105 = memref.load %arg3[%c89] : memref<96xf32, #tpu.memory_space<smem>>
    %c90 = arith.constant 90 : index
    %106 = memref.load %arg3[%c90] : memref<96xf32, #tpu.memory_space<smem>>
    %c91 = arith.constant 91 : index
    %107 = memref.load %arg3[%c91] : memref<96xf32, #tpu.memory_space<smem>>
    %c92 = arith.constant 92 : index
    %108 = memref.load %arg3[%c92] : memref<96xf32, #tpu.memory_space<smem>>
    %c93 = arith.constant 93 : index
    %109 = memref.load %arg3[%c93] : memref<96xf32, #tpu.memory_space<smem>>
    %c94 = arith.constant 94 : index
    %110 = memref.load %arg3[%c94] : memref<96xf32, #tpu.memory_space<smem>>
    %c95 = arith.constant 95 : index
    %111 = memref.load %arg3[%c95] : memref<96xf32, #tpu.memory_space<smem>>
    %c0_16 = arith.constant 0 : index
    %112 = memref.load %arg4[%c0_16] : memref<8xf32, #tpu.memory_space<smem>>
    %c1_17 = arith.constant 1 : index
    %113 = memref.load %arg4[%c1_17] : memref<8xf32, #tpu.memory_space<smem>>
    %c2_18 = arith.constant 2 : index
    %114 = memref.load %arg4[%c2_18] : memref<8xf32, #tpu.memory_space<smem>>
    %c3_19 = arith.constant 3 : index
    %115 = memref.load %arg4[%c3_19] : memref<8xf32, #tpu.memory_space<smem>>
    %c4_20 = arith.constant 4 : index
    %116 = memref.load %arg4[%c4_20] : memref<8xf32, #tpu.memory_space<smem>>
    %c5_21 = arith.constant 5 : index
    %117 = memref.load %arg4[%c5_21] : memref<8xf32, #tpu.memory_space<smem>>
    %c6_22 = arith.constant 6 : index
    %118 = memref.load %arg4[%c6_22] : memref<8xf32, #tpu.memory_space<smem>>
    %c7_23 = arith.constant 7 : index
    %119 = memref.load %arg4[%c7_23] : memref<8xf32, #tpu.memory_space<smem>>
    %c0_24 = arith.constant 0 : index
    %c0_25 = arith.constant 0 : index
    %c0_26 = arith.constant 0 : index
    %c0_27 = arith.constant 0 : index
    %120 = vector.load %arg5[%c0_24, %c0_25, %c0_26, %c0_27] : memref<1x4x2x17xf32, #tpu.memory_space<vmem>>, vector<1x4x2x17xf32>
    %121 = vector.shape_cast %120 : vector<1x4x2x17xf32> to vector<4x2x17xf32>
    %122 = vector.extract_strided_slice %121 {offsets = [0, 0, 0], sizes = [1, 2, 17], strides = [1, 1, 1]} : vector<4x2x17xf32> to vector<1x2x17xf32>
    %123 = vector.shape_cast %122 : vector<1x2x17xf32> to vector<2x17xf32>
    %124 = vector.extract_strided_slice %123 {offsets = [0, 0], sizes = [2, 16], strides = [1, 1]} : vector<2x17xf32> to vector<2x16xf32>
    %125 = vector.extract_strided_slice %121 {offsets = [1, 0, 0], sizes = [1, 2, 17], strides = [1, 1, 1]} : vector<4x2x17xf32> to vector<1x2x17xf32>
    %126 = vector.shape_cast %125 : vector<1x2x17xf32> to vector<2x17xf32>
    %127 = vector.extract_strided_slice %126 {offsets = [0, 0], sizes = [2, 16], strides = [1, 1]} : vector<2x17xf32> to vector<2x16xf32>
    %128 = vector.extract_strided_slice %121 {offsets = [2, 0, 0], sizes = [1, 2, 17], strides = [1, 1, 1]} : vector<4x2x17xf32> to vector<1x2x17xf32>
    %129 = vector.shape_cast %128 : vector<1x2x17xf32> to vector<2x17xf32>
    %130 = vector.extract_strided_slice %129 {offsets = [0, 0], sizes = [2, 16], strides = [1, 1]} : vector<2x17xf32> to vector<2x16xf32>
    %131 = vector.extract_strided_slice %121 {offsets = [3, 0, 0], sizes = [1, 2, 17], strides = [1, 1, 1]} : vector<4x2x17xf32> to vector<1x2x17xf32>
    %132 = vector.shape_cast %131 : vector<1x2x17xf32> to vector<2x17xf32>
    %133 = vector.extract_strided_slice %132 {offsets = [0, 0], sizes = [2, 16], strides = [1, 1]} : vector<2x17xf32> to vector<2x16xf32>
    %134 = vector.extract_strided_slice %121 {offsets = [0, 0, 0], sizes = [1, 2, 17], strides = [1, 1, 1]} : vector<4x2x17xf32> to vector<1x2x17xf32>
    %135 = vector.shape_cast %134 : vector<1x2x17xf32> to vector<2x17xf32>
    %136 = vector.extract_strided_slice %135 {offsets = [0, 1], sizes = [2, 16], strides = [1, 1]} : vector<2x17xf32> to vector<2x16xf32>
    %137 = vector.extract_strided_slice %121 {offsets = [1, 0, 0], sizes = [1, 2, 17], strides = [1, 1, 1]} : vector<4x2x17xf32> to vector<1x2x17xf32>
    %138 = vector.shape_cast %137 : vector<1x2x17xf32> to vector<2x17xf32>
    %139 = vector.extract_strided_slice %138 {offsets = [0, 1], sizes = [2, 16], strides = [1, 1]} : vector<2x17xf32> to vector<2x16xf32>
    %140 = vector.broadcast %0 : f32 to vector<2x16xf32>
    %141 = arith.mulf %140, %124 : vector<2x16xf32>
    %cst = arith.constant 0.000000e+00 : f32
    %142 = vector.broadcast %cst : f32 to vector<2x16xf32>
    %143 = arith.addf %142, %141 : vector<2x16xf32>
    %144 = vector.broadcast %1 : f32 to vector<2x16xf32>
    %145 = arith.mulf %144, %127 : vector<2x16xf32>
    %146 = arith.addf %143, %145 : vector<2x16xf32>
    %147 = vector.broadcast %2 : f32 to vector<2x16xf32>
    %148 = arith.mulf %147, %130 : vector<2x16xf32>
    %149 = arith.addf %146, %148 : vector<2x16xf32>
    %150 = vector.broadcast %12 : f32 to vector<2x16xf32>
    %151 = arith.addf %149, %150 : vector<2x16xf32>
    %cst_28 = arith.constant 0.000000e+00 : f32
    %152 = vector.broadcast %cst_28 : f32 to vector<2x16xf32>
    %153 = arith.maximumf %151, %152 : vector<2x16xf32>
    %154 = vector.broadcast %0 : f32 to vector<2x16xf32>
    %155 = arith.mulf %154, %127 : vector<2x16xf32>
    %cst_29 = arith.constant 0.000000e+00 : f32
    %156 = vector.broadcast %cst_29 : f32 to vector<2x16xf32>
    %157 = arith.addf %156, %155 : vector<2x16xf32>
    %158 = vector.broadcast %1 : f32 to vector<2x16xf32>
    %159 = arith.mulf %158, %130 : vector<2x16xf32>
    %160 = arith.addf %157, %159 : vector<2x16xf32>
    %161 = vector.broadcast %2 : f32 to vector<2x16xf32>
    %162 = arith.mulf %161, %133 : vector<2x16xf32>
    %163 = arith.addf %160, %162 : vector<2x16xf32>
    %164 = vector.broadcast %12 : f32 to vector<2x16xf32>
    %165 = arith.addf %163, %164 : vector<2x16xf32>
    %cst_30 = arith.constant 0.000000e+00 : f32
    %166 = vector.broadcast %cst_30 : f32 to vector<2x16xf32>
    %167 = arith.maximumf %165, %166 : vector<2x16xf32>
    %168 = vector.broadcast %0 : f32 to vector<2x16xf32>
    %169 = arith.mulf %168, %130 : vector<2x16xf32>
    %cst_31 = arith.constant 0.000000e+00 : f32
    %170 = vector.broadcast %cst_31 : f32 to vector<2x16xf32>
    %171 = arith.addf %170, %169 : vector<2x16xf32>
    %172 = vector.broadcast %1 : f32 to vector<2x16xf32>
    %173 = arith.mulf %172, %133 : vector<2x16xf32>
    %174 = arith.addf %171, %173 : vector<2x16xf32>
    %175 = vector.broadcast %2 : f32 to vector<2x16xf32>
    %176 = arith.mulf %175, %136 : vector<2x16xf32>
    %177 = arith.addf %174, %176 : vector<2x16xf32>
    %178 = vector.broadcast %12 : f32 to vector<2x16xf32>
    %179 = arith.addf %177, %178 : vector<2x16xf32>
    %cst_32 = arith.constant 0.000000e+00 : f32
    %180 = vector.broadcast %cst_32 : f32 to vector<2x16xf32>
    %181 = arith.maximumf %179, %180 : vector<2x16xf32>
    %182 = vector.broadcast %0 : f32 to vector<2x16xf32>
    %183 = arith.mulf %182, %133 : vector<2x16xf32>
    %cst_33 = arith.constant 0.000000e+00 : f32
    %184 = vector.broadcast %cst_33 : f32 to vector<2x16xf32>
    %185 = arith.addf %184, %183 : vector<2x16xf32>
    %186 = vector.broadcast %1 : f32 to vector<2x16xf32>
    %187 = arith.mulf %186, %136 : vector<2x16xf32>
    %188 = arith.addf %185, %187 : vector<2x16xf32>
    %189 = vector.broadcast %2 : f32 to vector<2x16xf32>
    %190 = arith.mulf %189, %139 : vector<2x16xf32>
    %191 = arith.addf %188, %190 : vector<2x16xf32>
    %192 = vector.broadcast %12 : f32 to vector<2x16xf32>
    %193 = arith.addf %191, %192 : vector<2x16xf32>
    %cst_34 = arith.constant 0.000000e+00 : f32
    %194 = vector.broadcast %cst_34 : f32 to vector<2x16xf32>
    %195 = arith.maximumf %193, %194 : vector<2x16xf32>
    %196 = vector.broadcast %3 : f32 to vector<2x16xf32>
    %197 = arith.mulf %196, %124 : vector<2x16xf32>
    %cst_35 = arith.constant 0.000000e+00 : f32
    %198 = vector.broadcast %cst_35 : f32 to vector<2x16xf32>
    %199 = arith.addf %198, %197 : vector<2x16xf32>
    %200 = vector.broadcast %4 : f32 to vector<2x16xf32>
    %201 = arith.mulf %200, %127 : vector<2x16xf32>
    %202 = arith.addf %199, %201 : vector<2x16xf32>
    %203 = vector.broadcast %5 : f32 to vector<2x16xf32>
    %204 = arith.mulf %203, %130 : vector<2x16xf32>
    %205 = arith.addf %202, %204 : vector<2x16xf32>
    %206 = vector.broadcast %13 : f32 to vector<2x16xf32>
    %207 = arith.addf %205, %206 : vector<2x16xf32>
    %cst_36 = arith.constant 0.000000e+00 : f32
    %208 = vector.broadcast %cst_36 : f32 to vector<2x16xf32>
    %209 = arith.maximumf %207, %208 : vector<2x16xf32>
    %210 = vector.broadcast %3 : f32 to vector<2x16xf32>
    %211 = arith.mulf %210, %127 : vector<2x16xf32>
    %cst_37 = arith.constant 0.000000e+00 : f32
    %212 = vector.broadcast %cst_37 : f32 to vector<2x16xf32>
    %213 = arith.addf %212, %211 : vector<2x16xf32>
    %214 = vector.broadcast %4 : f32 to vector<2x16xf32>
    %215 = arith.mulf %214, %130 : vector<2x16xf32>
    %216 = arith.addf %213, %215 : vector<2x16xf32>
    %217 = vector.broadcast %5 : f32 to vector<2x16xf32>
    %218 = arith.mulf %217, %133 : vector<2x16xf32>
    %219 = arith.addf %216, %218 : vector<2x16xf32>
    %220 = vector.broadcast %13 : f32 to vector<2x16xf32>
    %221 = arith.addf %219, %220 : vector<2x16xf32>
    %cst_38 = arith.constant 0.000000e+00 : f32
    %222 = vector.broadcast %cst_38 : f32 to vector<2x16xf32>
    %223 = arith.maximumf %221, %222 : vector<2x16xf32>
    %224 = vector.broadcast %3 : f32 to vector<2x16xf32>
    %225 = arith.mulf %224, %130 : vector<2x16xf32>
    %cst_39 = arith.constant 0.000000e+00 : f32
    %226 = vector.broadcast %cst_39 : f32 to vector<2x16xf32>
    %227 = arith.addf %226, %225 : vector<2x16xf32>
    %228 = vector.broadcast %4 : f32 to vector<2x16xf32>
    %229 = arith.mulf %228, %133 : vector<2x16xf32>
    %230 = arith.addf %227, %229 : vector<2x16xf32>
    %231 = vector.broadcast %5 : f32 to vector<2x16xf32>
    %232 = arith.mulf %231, %136 : vector<2x16xf32>
    %233 = arith.addf %230, %232 : vector<2x16xf32>
    %234 = vector.broadcast %13 : f32 to vector<2x16xf32>
    %235 = arith.addf %233, %234 : vector<2x16xf32>
    %cst_40 = arith.constant 0.000000e+00 : f32
    %236 = vector.broadcast %cst_40 : f32 to vector<2x16xf32>
    %237 = arith.maximumf %235, %236 : vector<2x16xf32>
    %238 = vector.broadcast %3 : f32 to vector<2x16xf32>
    %239 = arith.mulf %238, %133 : vector<2x16xf32>
    %cst_41 = arith.constant 0.000000e+00 : f32
    %240 = vector.broadcast %cst_41 : f32 to vector<2x16xf32>
    %241 = arith.addf %240, %239 : vector<2x16xf32>
    %242 = vector.broadcast %4 : f32 to vector<2x16xf32>
    %243 = arith.mulf %242, %136 : vector<2x16xf32>
    %244 = arith.addf %241, %243 : vector<2x16xf32>
    %245 = vector.broadcast %5 : f32 to vector<2x16xf32>
    %246 = arith.mulf %245, %139 : vector<2x16xf32>
    %247 = arith.addf %244, %246 : vector<2x16xf32>
    %248 = vector.broadcast %13 : f32 to vector<2x16xf32>
    %249 = arith.addf %247, %248 : vector<2x16xf32>
    %cst_42 = arith.constant 0.000000e+00 : f32
    %250 = vector.broadcast %cst_42 : f32 to vector<2x16xf32>
    %251 = arith.maximumf %249, %250 : vector<2x16xf32>
    %252 = vector.broadcast %6 : f32 to vector<2x16xf32>
    %253 = arith.mulf %252, %124 : vector<2x16xf32>
    %cst_43 = arith.constant 0.000000e+00 : f32
    %254 = vector.broadcast %cst_43 : f32 to vector<2x16xf32>
    %255 = arith.addf %254, %253 : vector<2x16xf32>
    %256 = vector.broadcast %7 : f32 to vector<2x16xf32>
    %257 = arith.mulf %256, %127 : vector<2x16xf32>
    %258 = arith.addf %255, %257 : vector<2x16xf32>
    %259 = vector.broadcast %8 : f32 to vector<2x16xf32>
    %260 = arith.mulf %259, %130 : vector<2x16xf32>
    %261 = arith.addf %258, %260 : vector<2x16xf32>
    %262 = vector.broadcast %14 : f32 to vector<2x16xf32>
    %263 = arith.addf %261, %262 : vector<2x16xf32>
    %cst_44 = arith.constant 0.000000e+00 : f32
    %264 = vector.broadcast %cst_44 : f32 to vector<2x16xf32>
    %265 = arith.maximumf %263, %264 : vector<2x16xf32>
    %266 = vector.broadcast %6 : f32 to vector<2x16xf32>
    %267 = arith.mulf %266, %127 : vector<2x16xf32>
    %cst_45 = arith.constant 0.000000e+00 : f32
    %268 = vector.broadcast %cst_45 : f32 to vector<2x16xf32>
    %269 = arith.addf %268, %267 : vector<2x16xf32>
    %270 = vector.broadcast %7 : f32 to vector<2x16xf32>
    %271 = arith.mulf %270, %130 : vector<2x16xf32>
    %272 = arith.addf %269, %271 : vector<2x16xf32>
    %273 = vector.broadcast %8 : f32 to vector<2x16xf32>
    %274 = arith.mulf %273, %133 : vector<2x16xf32>
    %275 = arith.addf %272, %274 : vector<2x16xf32>
    %276 = vector.broadcast %14 : f32 to vector<2x16xf32>
    %277 = arith.addf %275, %276 : vector<2x16xf32>
    %cst_46 = arith.constant 0.000000e+00 : f32
    %278 = vector.broadcast %cst_46 : f32 to vector<2x16xf32>
    %279 = arith.maximumf %277, %278 : vector<2x16xf32>
    %280 = vector.broadcast %6 : f32 to vector<2x16xf32>
    %281 = arith.mulf %280, %130 : vector<2x16xf32>
    %cst_47 = arith.constant 0.000000e+00 : f32
    %282 = vector.broadcast %cst_47 : f32 to vector<2x16xf32>
    %283 = arith.addf %282, %281 : vector<2x16xf32>
    %284 = vector.broadcast %7 : f32 to vector<2x16xf32>
    %285 = arith.mulf %284, %133 : vector<2x16xf32>
    %286 = arith.addf %283, %285 : vector<2x16xf32>
    %287 = vector.broadcast %8 : f32 to vector<2x16xf32>
    %288 = arith.mulf %287, %136 : vector<2x16xf32>
    %289 = arith.addf %286, %288 : vector<2x16xf32>
    %290 = vector.broadcast %14 : f32 to vector<2x16xf32>
    %291 = arith.addf %289, %290 : vector<2x16xf32>
    %cst_48 = arith.constant 0.000000e+00 : f32
    %292 = vector.broadcast %cst_48 : f32 to vector<2x16xf32>
    %293 = arith.maximumf %291, %292 : vector<2x16xf32>
    %294 = vector.broadcast %6 : f32 to vector<2x16xf32>
    %295 = arith.mulf %294, %133 : vector<2x16xf32>
    %cst_49 = arith.constant 0.000000e+00 : f32
    %296 = vector.broadcast %cst_49 : f32 to vector<2x16xf32>
    %297 = arith.addf %296, %295 : vector<2x16xf32>
    %298 = vector.broadcast %7 : f32 to vector<2x16xf32>
    %299 = arith.mulf %298, %136 : vector<2x16xf32>
    %300 = arith.addf %297, %299 : vector<2x16xf32>
    %301 = vector.broadcast %8 : f32 to vector<2x16xf32>
    %302 = arith.mulf %301, %139 : vector<2x16xf32>
    %303 = arith.addf %300, %302 : vector<2x16xf32>
    %304 = vector.broadcast %14 : f32 to vector<2x16xf32>
    %305 = arith.addf %303, %304 : vector<2x16xf32>
    %cst_50 = arith.constant 0.000000e+00 : f32
    %306 = vector.broadcast %cst_50 : f32 to vector<2x16xf32>
    %307 = arith.maximumf %305, %306 : vector<2x16xf32>
    %308 = vector.broadcast %9 : f32 to vector<2x16xf32>
    %309 = arith.mulf %308, %124 : vector<2x16xf32>
    %cst_51 = arith.constant 0.000000e+00 : f32
    %310 = vector.broadcast %cst_51 : f32 to vector<2x16xf32>
    %311 = arith.addf %310, %309 : vector<2x16xf32>
    %312 = vector.broadcast %10 : f32 to vector<2x16xf32>
    %313 = arith.mulf %312, %127 : vector<2x16xf32>
    %314 = arith.addf %311, %313 : vector<2x16xf32>
    %315 = vector.broadcast %11 : f32 to vector<2x16xf32>
    %316 = arith.mulf %315, %130 : vector<2x16xf32>
    %317 = arith.addf %314, %316 : vector<2x16xf32>
    %318 = vector.broadcast %15 : f32 to vector<2x16xf32>
    %319 = arith.addf %317, %318 : vector<2x16xf32>
    %cst_52 = arith.constant 0.000000e+00 : f32
    %320 = vector.broadcast %cst_52 : f32 to vector<2x16xf32>
    %321 = arith.maximumf %319, %320 : vector<2x16xf32>
    %322 = vector.broadcast %9 : f32 to vector<2x16xf32>
    %323 = arith.mulf %322, %127 : vector<2x16xf32>
    %cst_53 = arith.constant 0.000000e+00 : f32
    %324 = vector.broadcast %cst_53 : f32 to vector<2x16xf32>
    %325 = arith.addf %324, %323 : vector<2x16xf32>
    %326 = vector.broadcast %10 : f32 to vector<2x16xf32>
    %327 = arith.mulf %326, %130 : vector<2x16xf32>
    %328 = arith.addf %325, %327 : vector<2x16xf32>
    %329 = vector.broadcast %11 : f32 to vector<2x16xf32>
    %330 = arith.mulf %329, %133 : vector<2x16xf32>
    %331 = arith.addf %328, %330 : vector<2x16xf32>
    %332 = vector.broadcast %15 : f32 to vector<2x16xf32>
    %333 = arith.addf %331, %332 : vector<2x16xf32>
    %cst_54 = arith.constant 0.000000e+00 : f32
    %334 = vector.broadcast %cst_54 : f32 to vector<2x16xf32>
    %335 = arith.maximumf %333, %334 : vector<2x16xf32>
    %336 = vector.broadcast %9 : f32 to vector<2x16xf32>
    %337 = arith.mulf %336, %130 : vector<2x16xf32>
    %cst_55 = arith.constant 0.000000e+00 : f32
    %338 = vector.broadcast %cst_55 : f32 to vector<2x16xf32>
    %339 = arith.addf %338, %337 : vector<2x16xf32>
    %340 = vector.broadcast %10 : f32 to vector<2x16xf32>
    %341 = arith.mulf %340, %133 : vector<2x16xf32>
    %342 = arith.addf %339, %341 : vector<2x16xf32>
    %343 = vector.broadcast %11 : f32 to vector<2x16xf32>
    %344 = arith.mulf %343, %136 : vector<2x16xf32>
    %345 = arith.addf %342, %344 : vector<2x16xf32>
    %346 = vector.broadcast %15 : f32 to vector<2x16xf32>
    %347 = arith.addf %345, %346 : vector<2x16xf32>
    %cst_56 = arith.constant 0.000000e+00 : f32
    %348 = vector.broadcast %cst_56 : f32 to vector<2x16xf32>
    %349 = arith.maximumf %347, %348 : vector<2x16xf32>
    %350 = vector.broadcast %9 : f32 to vector<2x16xf32>
    %351 = arith.mulf %350, %133 : vector<2x16xf32>
    %cst_57 = arith.constant 0.000000e+00 : f32
    %352 = vector.broadcast %cst_57 : f32 to vector<2x16xf32>
    %353 = arith.addf %352, %351 : vector<2x16xf32>
    %354 = vector.broadcast %10 : f32 to vector<2x16xf32>
    %355 = arith.mulf %354, %136 : vector<2x16xf32>
    %356 = arith.addf %353, %355 : vector<2x16xf32>
    %357 = vector.broadcast %11 : f32 to vector<2x16xf32>
    %358 = arith.mulf %357, %139 : vector<2x16xf32>
    %359 = arith.addf %356, %358 : vector<2x16xf32>
    %360 = vector.broadcast %15 : f32 to vector<2x16xf32>
    %361 = arith.addf %359, %360 : vector<2x16xf32>
    %cst_58 = arith.constant 0.000000e+00 : f32
    %362 = vector.broadcast %cst_58 : f32 to vector<2x16xf32>
    %363 = arith.maximumf %361, %362 : vector<2x16xf32>
    %364 = vector.extract_strided_slice %153 {offsets = [0, 0], sizes = [2, 15], strides = [1, 1]} : vector<2x16xf32> to vector<2x15xf32>
    %365 = vector.extract_strided_slice %167 {offsets = [0, 0], sizes = [2, 15], strides = [1, 1]} : vector<2x16xf32> to vector<2x15xf32>
    %366 = vector.extract_strided_slice %181 {offsets = [0, 0], sizes = [2, 15], strides = [1, 1]} : vector<2x16xf32> to vector<2x15xf32>
    %367 = vector.extract_strided_slice %195 {offsets = [0, 0], sizes = [2, 15], strides = [1, 1]} : vector<2x16xf32> to vector<2x15xf32>
    %368 = vector.extract_strided_slice %153 {offsets = [0, 1], sizes = [2, 15], strides = [1, 1]} : vector<2x16xf32> to vector<2x15xf32>
    %369 = vector.extract_strided_slice %167 {offsets = [0, 1], sizes = [2, 15], strides = [1, 1]} : vector<2x16xf32> to vector<2x15xf32>
    %370 = vector.extract_strided_slice %209 {offsets = [0, 0], sizes = [2, 15], strides = [1, 1]} : vector<2x16xf32> to vector<2x15xf32>
    %371 = vector.extract_strided_slice %223 {offsets = [0, 0], sizes = [2, 15], strides = [1, 1]} : vector<2x16xf32> to vector<2x15xf32>
    %372 = vector.extract_strided_slice %237 {offsets = [0, 0], sizes = [2, 15], strides = [1, 1]} : vector<2x16xf32> to vector<2x15xf32>
    %373 = vector.extract_strided_slice %251 {offsets = [0, 0], sizes = [2, 15], strides = [1, 1]} : vector<2x16xf32> to vector<2x15xf32>
    %374 = vector.extract_strided_slice %209 {offsets = [0, 1], sizes = [2, 15], strides = [1, 1]} : vector<2x16xf32> to vector<2x15xf32>
    %375 = vector.extract_strided_slice %223 {offsets = [0, 1], sizes = [2, 15], strides = [1, 1]} : vector<2x16xf32> to vector<2x15xf32>
    %376 = vector.extract_strided_slice %265 {offsets = [0, 0], sizes = [2, 15], strides = [1, 1]} : vector<2x16xf32> to vector<2x15xf32>
    %377 = vector.extract_strided_slice %279 {offsets = [0, 0], sizes = [2, 15], strides = [1, 1]} : vector<2x16xf32> to vector<2x15xf32>
    %378 = vector.extract_strided_slice %293 {offsets = [0, 0], sizes = [2, 15], strides = [1, 1]} : vector<2x16xf32> to vector<2x15xf32>
    %379 = vector.extract_strided_slice %307 {offsets = [0, 0], sizes = [2, 15], strides = [1, 1]} : vector<2x16xf32> to vector<2x15xf32>
    %380 = vector.extract_strided_slice %265 {offsets = [0, 1], sizes = [2, 15], strides = [1, 1]} : vector<2x16xf32> to vector<2x15xf32>
    %381 = vector.extract_strided_slice %279 {offsets = [0, 1], sizes = [2, 15], strides = [1, 1]} : vector<2x16xf32> to vector<2x15xf32>
    %382 = vector.extract_strided_slice %321 {offsets = [0, 0], sizes = [2, 15], strides = [1, 1]} : vector<2x16xf32> to vector<2x15xf32>
    %383 = vector.extract_strided_slice %335 {offsets = [0, 0], sizes = [2, 15], strides = [1, 1]} : vector<2x16xf32> to vector<2x15xf32>
    %384 = vector.extract_strided_slice %349 {offsets = [0, 0], sizes = [2, 15], strides = [1, 1]} : vector<2x16xf32> to vector<2x15xf32>
    %385 = vector.extract_strided_slice %363 {offsets = [0, 0], sizes = [2, 15], strides = [1, 1]} : vector<2x16xf32> to vector<2x15xf32>
    %386 = vector.extract_strided_slice %321 {offsets = [0, 1], sizes = [2, 15], strides = [1, 1]} : vector<2x16xf32> to vector<2x15xf32>
    %387 = vector.extract_strided_slice %335 {offsets = [0, 1], sizes = [2, 15], strides = [1, 1]} : vector<2x16xf32> to vector<2x15xf32>
    %388 = vector.broadcast %16 : f32 to vector<2x15xf32>
    %389 = arith.mulf %388, %364 : vector<2x15xf32>
    %cst_59 = arith.constant 0.000000e+00 : f32
    %390 = vector.broadcast %cst_59 : f32 to vector<2x15xf32>
    %391 = arith.addf %390, %389 : vector<2x15xf32>
    %392 = vector.broadcast %17 : f32 to vector<2x15xf32>
    %393 = arith.mulf %392, %365 : vector<2x15xf32>
    %394 = arith.addf %391, %393 : vector<2x15xf32>
    %395 = vector.broadcast %18 : f32 to vector<2x15xf32>
    %396 = arith.mulf %395, %366 : vector<2x15xf32>
    %397 = arith.addf %394, %396 : vector<2x15xf32>
    %398 = vector.broadcast %19 : f32 to vector<2x15xf32>
    %399 = arith.mulf %398, %370 : vector<2x15xf32>
    %400 = arith.addf %397, %399 : vector<2x15xf32>
    %401 = vector.broadcast %20 : f32 to vector<2x15xf32>
    %402 = arith.mulf %401, %371 : vector<2x15xf32>
    %403 = arith.addf %400, %402 : vector<2x15xf32>
    %404 = vector.broadcast %21 : f32 to vector<2x15xf32>
    %405 = arith.mulf %404, %372 : vector<2x15xf32>
    %406 = arith.addf %403, %405 : vector<2x15xf32>
    %407 = vector.broadcast %22 : f32 to vector<2x15xf32>
    %408 = arith.mulf %407, %376 : vector<2x15xf32>
    %409 = arith.addf %406, %408 : vector<2x15xf32>
    %410 = vector.broadcast %23 : f32 to vector<2x15xf32>
    %411 = arith.mulf %410, %377 : vector<2x15xf32>
    %412 = arith.addf %409, %411 : vector<2x15xf32>
    %413 = vector.broadcast %24 : f32 to vector<2x15xf32>
    %414 = arith.mulf %413, %378 : vector<2x15xf32>
    %415 = arith.addf %412, %414 : vector<2x15xf32>
    %416 = vector.broadcast %25 : f32 to vector<2x15xf32>
    %417 = arith.mulf %416, %382 : vector<2x15xf32>
    %418 = arith.addf %415, %417 : vector<2x15xf32>
    %419 = vector.broadcast %26 : f32 to vector<2x15xf32>
    %420 = arith.mulf %419, %383 : vector<2x15xf32>
    %421 = arith.addf %418, %420 : vector<2x15xf32>
    %422 = vector.broadcast %27 : f32 to vector<2x15xf32>
    %423 = arith.mulf %422, %384 : vector<2x15xf32>
    %424 = arith.addf %421, %423 : vector<2x15xf32>
    %425 = vector.broadcast %112 : f32 to vector<2x15xf32>
    %426 = arith.addf %424, %425 : vector<2x15xf32>
    %cst_60 = arith.constant 0.000000e+00 : f32
    %427 = vector.broadcast %cst_60 : f32 to vector<2x15xf32>
    %428 = arith.maximumf %426, %427 : vector<2x15xf32>
    %429 = vector.broadcast %16 : f32 to vector<2x15xf32>
    %430 = arith.mulf %429, %365 : vector<2x15xf32>
    %cst_61 = arith.constant 0.000000e+00 : f32
    %431 = vector.broadcast %cst_61 : f32 to vector<2x15xf32>
    %432 = arith.addf %431, %430 : vector<2x15xf32>
    %433 = vector.broadcast %17 : f32 to vector<2x15xf32>
    %434 = arith.mulf %433, %366 : vector<2x15xf32>
    %435 = arith.addf %432, %434 : vector<2x15xf32>
    %436 = vector.broadcast %18 : f32 to vector<2x15xf32>
    %437 = arith.mulf %436, %367 : vector<2x15xf32>
    %438 = arith.addf %435, %437 : vector<2x15xf32>
    %439 = vector.broadcast %19 : f32 to vector<2x15xf32>
    %440 = arith.mulf %439, %371 : vector<2x15xf32>
    %441 = arith.addf %438, %440 : vector<2x15xf32>
    %442 = vector.broadcast %20 : f32 to vector<2x15xf32>
    %443 = arith.mulf %442, %372 : vector<2x15xf32>
    %444 = arith.addf %441, %443 : vector<2x15xf32>
    %445 = vector.broadcast %21 : f32 to vector<2x15xf32>
    %446 = arith.mulf %445, %373 : vector<2x15xf32>
    %447 = arith.addf %444, %446 : vector<2x15xf32>
    %448 = vector.broadcast %22 : f32 to vector<2x15xf32>
    %449 = arith.mulf %448, %377 : vector<2x15xf32>
    %450 = arith.addf %447, %449 : vector<2x15xf32>
    %451 = vector.broadcast %23 : f32 to vector<2x15xf32>
    %452 = arith.mulf %451, %378 : vector<2x15xf32>
    %453 = arith.addf %450, %452 : vector<2x15xf32>
    %454 = vector.broadcast %24 : f32 to vector<2x15xf32>
    %455 = arith.mulf %454, %379 : vector<2x15xf32>
    %456 = arith.addf %453, %455 : vector<2x15xf32>
    %457 = vector.broadcast %25 : f32 to vector<2x15xf32>
    %458 = arith.mulf %457, %383 : vector<2x15xf32>
    %459 = arith.addf %456, %458 : vector<2x15xf32>
    %460 = vector.broadcast %26 : f32 to vector<2x15xf32>
    %461 = arith.mulf %460, %384 : vector<2x15xf32>
    %462 = arith.addf %459, %461 : vector<2x15xf32>
    %463 = vector.broadcast %27 : f32 to vector<2x15xf32>
    %464 = arith.mulf %463, %385 : vector<2x15xf32>
    %465 = arith.addf %462, %464 : vector<2x15xf32>
    %466 = vector.broadcast %112 : f32 to vector<2x15xf32>
    %467 = arith.addf %465, %466 : vector<2x15xf32>
    %cst_62 = arith.constant 0.000000e+00 : f32
    %468 = vector.broadcast %cst_62 : f32 to vector<2x15xf32>
    %469 = arith.maximumf %467, %468 : vector<2x15xf32>
    %470 = arith.maximumf %428, %469 : vector<2x15xf32>
    %471 = vector.broadcast %16 : f32 to vector<2x15xf32>
    %472 = arith.mulf %471, %366 : vector<2x15xf32>
    %cst_63 = arith.constant 0.000000e+00 : f32
    %473 = vector.broadcast %cst_63 : f32 to vector<2x15xf32>
    %474 = arith.addf %473, %472 : vector<2x15xf32>
    %475 = vector.broadcast %17 : f32 to vector<2x15xf32>
    %476 = arith.mulf %475, %367 : vector<2x15xf32>
    %477 = arith.addf %474, %476 : vector<2x15xf32>
    %478 = vector.broadcast %18 : f32 to vector<2x15xf32>
    %479 = arith.mulf %478, %368 : vector<2x15xf32>
    %480 = arith.addf %477, %479 : vector<2x15xf32>
    %481 = vector.broadcast %19 : f32 to vector<2x15xf32>
    %482 = arith.mulf %481, %372 : vector<2x15xf32>
    %483 = arith.addf %480, %482 : vector<2x15xf32>
    %484 = vector.broadcast %20 : f32 to vector<2x15xf32>
    %485 = arith.mulf %484, %373 : vector<2x15xf32>
    %486 = arith.addf %483, %485 : vector<2x15xf32>
    %487 = vector.broadcast %21 : f32 to vector<2x15xf32>
    %488 = arith.mulf %487, %374 : vector<2x15xf32>
    %489 = arith.addf %486, %488 : vector<2x15xf32>
    %490 = vector.broadcast %22 : f32 to vector<2x15xf32>
    %491 = arith.mulf %490, %378 : vector<2x15xf32>
    %492 = arith.addf %489, %491 : vector<2x15xf32>
    %493 = vector.broadcast %23 : f32 to vector<2x15xf32>
    %494 = arith.mulf %493, %379 : vector<2x15xf32>
    %495 = arith.addf %492, %494 : vector<2x15xf32>
    %496 = vector.broadcast %24 : f32 to vector<2x15xf32>
    %497 = arith.mulf %496, %380 : vector<2x15xf32>
    %498 = arith.addf %495, %497 : vector<2x15xf32>
    %499 = vector.broadcast %25 : f32 to vector<2x15xf32>
    %500 = arith.mulf %499, %384 : vector<2x15xf32>
    %501 = arith.addf %498, %500 : vector<2x15xf32>
    %502 = vector.broadcast %26 : f32 to vector<2x15xf32>
    %503 = arith.mulf %502, %385 : vector<2x15xf32>
    %504 = arith.addf %501, %503 : vector<2x15xf32>
    %505 = vector.broadcast %27 : f32 to vector<2x15xf32>
    %506 = arith.mulf %505, %386 : vector<2x15xf32>
    %507 = arith.addf %504, %506 : vector<2x15xf32>
    %508 = vector.broadcast %112 : f32 to vector<2x15xf32>
    %509 = arith.addf %507, %508 : vector<2x15xf32>
    %cst_64 = arith.constant 0.000000e+00 : f32
    %510 = vector.broadcast %cst_64 : f32 to vector<2x15xf32>
    %511 = arith.maximumf %509, %510 : vector<2x15xf32>
    %512 = arith.maximumf %470, %511 : vector<2x15xf32>
    %513 = vector.broadcast %16 : f32 to vector<2x15xf32>
    %514 = arith.mulf %513, %367 : vector<2x15xf32>
    %cst_65 = arith.constant 0.000000e+00 : f32
    %515 = vector.broadcast %cst_65 : f32 to vector<2x15xf32>
    %516 = arith.addf %515, %514 : vector<2x15xf32>
    %517 = vector.broadcast %17 : f32 to vector<2x15xf32>
    %518 = arith.mulf %517, %368 : vector<2x15xf32>
    %519 = arith.addf %516, %518 : vector<2x15xf32>
    %520 = vector.broadcast %18 : f32 to vector<2x15xf32>
    %521 = arith.mulf %520, %369 : vector<2x15xf32>
    %522 = arith.addf %519, %521 : vector<2x15xf32>
    %523 = vector.broadcast %19 : f32 to vector<2x15xf32>
    %524 = arith.mulf %523, %373 : vector<2x15xf32>
    %525 = arith.addf %522, %524 : vector<2x15xf32>
    %526 = vector.broadcast %20 : f32 to vector<2x15xf32>
    %527 = arith.mulf %526, %374 : vector<2x15xf32>
    %528 = arith.addf %525, %527 : vector<2x15xf32>
    %529 = vector.broadcast %21 : f32 to vector<2x15xf32>
    %530 = arith.mulf %529, %375 : vector<2x15xf32>
    %531 = arith.addf %528, %530 : vector<2x15xf32>
    %532 = vector.broadcast %22 : f32 to vector<2x15xf32>
    %533 = arith.mulf %532, %379 : vector<2x15xf32>
    %534 = arith.addf %531, %533 : vector<2x15xf32>
    %535 = vector.broadcast %23 : f32 to vector<2x15xf32>
    %536 = arith.mulf %535, %380 : vector<2x15xf32>
    %537 = arith.addf %534, %536 : vector<2x15xf32>
    %538 = vector.broadcast %24 : f32 to vector<2x15xf32>
    %539 = arith.mulf %538, %381 : vector<2x15xf32>
    %540 = arith.addf %537, %539 : vector<2x15xf32>
    %541 = vector.broadcast %25 : f32 to vector<2x15xf32>
    %542 = arith.mulf %541, %385 : vector<2x15xf32>
    %543 = arith.addf %540, %542 : vector<2x15xf32>
    %544 = vector.broadcast %26 : f32 to vector<2x15xf32>
    %545 = arith.mulf %544, %386 : vector<2x15xf32>
    %546 = arith.addf %543, %545 : vector<2x15xf32>
    %547 = vector.broadcast %27 : f32 to vector<2x15xf32>
    %548 = arith.mulf %547, %387 : vector<2x15xf32>
    %549 = arith.addf %546, %548 : vector<2x15xf32>
    %550 = vector.broadcast %112 : f32 to vector<2x15xf32>
    %551 = arith.addf %549, %550 : vector<2x15xf32>
    %cst_66 = arith.constant 0.000000e+00 : f32
    %552 = vector.broadcast %cst_66 : f32 to vector<2x15xf32>
    %553 = arith.maximumf %551, %552 : vector<2x15xf32>
    %554 = arith.maximumf %512, %553 : vector<2x15xf32>
    %c0_67 = arith.constant 0 : index
    %c0_68 = arith.constant 0 : index
    %555 = vector.load %arg13[%c0_67, %c0_68] : memref<2x120xf32, #tpu.memory_space<vmem>>, vector<2x15xf32>
    tpu.vector_store %arg13[%c0_67, %c0_68], %554 {strides = array<i32>} : memref<2x120xf32, #tpu.memory_space<vmem>>, vector<2x15xf32>,
    %556 = vector.broadcast %28 : f32 to vector<2x15xf32>
    %557 = arith.mulf %556, %364 : vector<2x15xf32>
    %cst_69 = arith.constant 0.000000e+00 : f32
    %558 = vector.broadcast %cst_69 : f32 to vector<2x15xf32>
    %559 = arith.addf %558, %557 : vector<2x15xf32>
    %560 = vector.broadcast %29 : f32 to vector<2x15xf32>
    %561 = arith.mulf %560, %365 : vector<2x15xf32>
    %562 = arith.addf %559, %561 : vector<2x15xf32>
    %563 = vector.broadcast %30 : f32 to vector<2x15xf32>
    %564 = arith.mulf %563, %366 : vector<2x15xf32>
    %565 = arith.addf %562, %564 : vector<2x15xf32>
    %566 = vector.broadcast %31 : f32 to vector<2x15xf32>
    %567 = arith.mulf %566, %370 : vector<2x15xf32>
    %568 = arith.addf %565, %567 : vector<2x15xf32>
    %569 = vector.broadcast %32 : f32 to vector<2x15xf32>
    %570 = arith.mulf %569, %371 : vector<2x15xf32>
    %571 = arith.addf %568, %570 : vector<2x15xf32>
    %572 = vector.broadcast %33 : f32 to vector<2x15xf32>
    %573 = arith.mulf %572, %372 : vector<2x15xf32>
    %574 = arith.addf %571, %573 : vector<2x15xf32>
    %575 = vector.broadcast %34 : f32 to vector<2x15xf32>
    %576 = arith.mulf %575, %376 : vector<2x15xf32>
    %577 = arith.addf %574, %576 : vector<2x15xf32>
    %578 = vector.broadcast %35 : f32 to vector<2x15xf32>
    %579 = arith.mulf %578, %377 : vector<2x15xf32>
    %580 = arith.addf %577, %579 : vector<2x15xf32>
    %581 = vector.broadcast %36 : f32 to vector<2x15xf32>
    %582 = arith.mulf %581, %378 : vector<2x15xf32>
    %583 = arith.addf %580, %582 : vector<2x15xf32>
    %584 = vector.broadcast %37 : f32 to vector<2x15xf32>
    %585 = arith.mulf %584, %382 : vector<2x15xf32>
    %586 = arith.addf %583, %585 : vector<2x15xf32>
    %587 = vector.broadcast %38 : f32 to vector<2x15xf32>
    %588 = arith.mulf %587, %383 : vector<2x15xf32>
    %589 = arith.addf %586, %588 : vector<2x15xf32>
    %590 = vector.broadcast %39 : f32 to vector<2x15xf32>
    %591 = arith.mulf %590, %384 : vector<2x15xf32>
    %592 = arith.addf %589, %591 : vector<2x15xf32>
    %593 = vector.broadcast %113 : f32 to vector<2x15xf32>
    %594 = arith.addf %592, %593 : vector<2x15xf32>
    %cst_70 = arith.constant 0.000000e+00 : f32
    %595 = vector.broadcast %cst_70 : f32 to vector<2x15xf32>
    %596 = arith.maximumf %594, %595 : vector<2x15xf32>
    %597 = vector.broadcast %28 : f32 to vector<2x15xf32>
    %598 = arith.mulf %597, %365 : vector<2x15xf32>
    %cst_71 = arith.constant 0.000000e+00 : f32
    %599 = vector.broadcast %cst_71 : f32 to vector<2x15xf32>
    %600 = arith.addf %599, %598 : vector<2x15xf32>
    %601 = vector.broadcast %29 : f32 to vector<2x15xf32>
    %602 = arith.mulf %601, %366 : vector<2x15xf32>
    %603 = arith.addf %600, %602 : vector<2x15xf32>
    %604 = vector.broadcast %30 : f32 to vector<2x15xf32>
    %605 = arith.mulf %604, %367 : vector<2x15xf32>
    %606 = arith.addf %603, %605 : vector<2x15xf32>
    %607 = vector.broadcast %31 : f32 to vector<2x15xf32>
    %608 = arith.mulf %607, %371 : vector<2x15xf32>
    %609 = arith.addf %606, %608 : vector<2x15xf32>
    %610 = vector.broadcast %32 : f32 to vector<2x15xf32>
    %611 = arith.mulf %610, %372 : vector<2x15xf32>
    %612 = arith.addf %609, %611 : vector<2x15xf32>
    %613 = vector.broadcast %33 : f32 to vector<2x15xf32>
    %614 = arith.mulf %613, %373 : vector<2x15xf32>
    %615 = arith.addf %612, %614 : vector<2x15xf32>
    %616 = vector.broadcast %34 : f32 to vector<2x15xf32>
    %617 = arith.mulf %616, %377 : vector<2x15xf32>
    %618 = arith.addf %615, %617 : vector<2x15xf32>
    %619 = vector.broadcast %35 : f32 to vector<2x15xf32>
    %620 = arith.mulf %619, %378 : vector<2x15xf32>
    %621 = arith.addf %618, %620 : vector<2x15xf32>
    %622 = vector.broadcast %36 : f32 to vector<2x15xf32>
    %623 = arith.mulf %622, %379 : vector<2x15xf32>
    %624 = arith.addf %621, %623 : vector<2x15xf32>
    %625 = vector.broadcast %37 : f32 to vector<2x15xf32>
    %626 = arith.mulf %625, %383 : vector<2x15xf32>
    %627 = arith.addf %624, %626 : vector<2x15xf32>
    %628 = vector.broadcast %38 : f32 to vector<2x15xf32>
    %629 = arith.mulf %628, %384 : vector<2x15xf32>
    %630 = arith.addf %627, %629 : vector<2x15xf32>
    %631 = vector.broadcast %39 : f32 to vector<2x15xf32>
    %632 = arith.mulf %631, %385 : vector<2x15xf32>
    %633 = arith.addf %630, %632 : vector<2x15xf32>
    %634 = vector.broadcast %113 : f32 to vector<2x15xf32>
    %635 = arith.addf %633, %634 : vector<2x15xf32>
    %cst_72 = arith.constant 0.000000e+00 : f32
    %636 = vector.broadcast %cst_72 : f32 to vector<2x15xf32>
    %637 = arith.maximumf %635, %636 : vector<2x15xf32>
    %638 = arith.maximumf %596, %637 : vector<2x15xf32>
    %639 = vector.broadcast %28 : f32 to vector<2x15xf32>
    %640 = arith.mulf %639, %366 : vector<2x15xf32>
    %cst_73 = arith.constant 0.000000e+00 : f32
    %641 = vector.broadcast %cst_73 : f32 to vector<2x15xf32>
    %642 = arith.addf %641, %640 : vector<2x15xf32>
    %643 = vector.broadcast %29 : f32 to vector<2x15xf32>
    %644 = arith.mulf %643, %367 : vector<2x15xf32>
    %645 = arith.addf %642, %644 : vector<2x15xf32>
    %646 = vector.broadcast %30 : f32 to vector<2x15xf32>
    %647 = arith.mulf %646, %368 : vector<2x15xf32>
    %648 = arith.addf %645, %647 : vector<2x15xf32>
    %649 = vector.broadcast %31 : f32 to vector<2x15xf32>
    %650 = arith.mulf %649, %372 : vector<2x15xf32>
    %651 = arith.addf %648, %650 : vector<2x15xf32>
    %652 = vector.broadcast %32 : f32 to vector<2x15xf32>
    %653 = arith.mulf %652, %373 : vector<2x15xf32>
    %654 = arith.addf %651, %653 : vector<2x15xf32>
    %655 = vector.broadcast %33 : f32 to vector<2x15xf32>
    %656 = arith.mulf %655, %374 : vector<2x15xf32>
    %657 = arith.addf %654, %656 : vector<2x15xf32>
    %658 = vector.broadcast %34 : f32 to vector<2x15xf32>
    %659 = arith.mulf %658, %378 : vector<2x15xf32>
    %660 = arith.addf %657, %659 : vector<2x15xf32>
    %661 = vector.broadcast %35 : f32 to vector<2x15xf32>
    %662 = arith.mulf %661, %379 : vector<2x15xf32>
    %663 = arith.addf %660, %662 : vector<2x15xf32>
    %664 = vector.broadcast %36 : f32 to vector<2x15xf32>
    %665 = arith.mulf %664, %380 : vector<2x15xf32>
    %666 = arith.addf %663, %665 : vector<2x15xf32>
    %667 = vector.broadcast %37 : f32 to vector<2x15xf32>
    %668 = arith.mulf %667, %384 : vector<2x15xf32>
    %669 = arith.addf %666, %668 : vector<2x15xf32>
    %670 = vector.broadcast %38 : f32 to vector<2x15xf32>
    %671 = arith.mulf %670, %385 : vector<2x15xf32>
    %672 = arith.addf %669, %671 : vector<2x15xf32>
    %673 = vector.broadcast %39 : f32 to vector<2x15xf32>
    %674 = arith.mulf %673, %386 : vector<2x15xf32>
    %675 = arith.addf %672, %674 : vector<2x15xf32>
    %676 = vector.broadcast %113 : f32 to vector<2x15xf32>
    %677 = arith.addf %675, %676 : vector<2x15xf32>
    %cst_74 = arith.constant 0.000000e+00 : f32
    %678 = vector.broadcast %cst_74 : f32 to vector<2x15xf32>
    %679 = arith.maximumf %677, %678 : vector<2x15xf32>
    %680 = arith.maximumf %638, %679 : vector<2x15xf32>
    %681 = vector.broadcast %28 : f32 to vector<2x15xf32>
    %682 = arith.mulf %681, %367 : vector<2x15xf32>
    %cst_75 = arith.constant 0.000000e+00 : f32
    %683 = vector.broadcast %cst_75 : f32 to vector<2x15xf32>
    %684 = arith.addf %683, %682 : vector<2x15xf32>
    %685 = vector.broadcast %29 : f32 to vector<2x15xf32>
    %686 = arith.mulf %685, %368 : vector<2x15xf32>
    %687 = arith.addf %684, %686 : vector<2x15xf32>
    %688 = vector.broadcast %30 : f32 to vector<2x15xf32>
    %689 = arith.mulf %688, %369 : vector<2x15xf32>
    %690 = arith.addf %687, %689 : vector<2x15xf32>
    %691 = vector.broadcast %31 : f32 to vector<2x15xf32>
    %692 = arith.mulf %691, %373 : vector<2x15xf32>
    %693 = arith.addf %690, %692 : vector<2x15xf32>
    %694 = vector.broadcast %32 : f32 to vector<2x15xf32>
    %695 = arith.mulf %694, %374 : vector<2x15xf32>
    %696 = arith.addf %693, %695 : vector<2x15xf32>
    %697 = vector.broadcast %33 : f32 to vector<2x15xf32>
    %698 = arith.mulf %697, %375 : vector<2x15xf32>
    %699 = arith.addf %696, %698 : vector<2x15xf32>
    %700 = vector.broadcast %34 : f32 to vector<2x15xf32>
    %701 = arith.mulf %700, %379 : vector<2x15xf32>
    %702 = arith.addf %699, %701 : vector<2x15xf32>
    %703 = vector.broadcast %35 : f32 to vector<2x15xf32>
    %704 = arith.mulf %703, %380 : vector<2x15xf32>
    %705 = arith.addf %702, %704 : vector<2x15xf32>
    %706 = vector.broadcast %36 : f32 to vector<2x15xf32>
    %707 = arith.mulf %706, %381 : vector<2x15xf32>
    %708 = arith.addf %705, %707 : vector<2x15xf32>
    %709 = vector.broadcast %37 : f32 to vector<2x15xf32>
    %710 = arith.mulf %709, %385 : vector<2x15xf32>
    %711 = arith.addf %708, %710 : vector<2x15xf32>
    %712 = vector.broadcast %38 : f32 to vector<2x15xf32>
    %713 = arith.mulf %712, %386 : vector<2x15xf32>
    %714 = arith.addf %711, %713 : vector<2x15xf32>
    %715 = vector.broadcast %39 : f32 to vector<2x15xf32>
    %716 = arith.mulf %715, %387 : vector<2x15xf32>
    %717 = arith.addf %714, %716 : vector<2x15xf32>
    %718 = vector.broadcast %113 : f32 to vector<2x15xf32>
    %719 = arith.addf %717, %718 : vector<2x15xf32>
    %cst_76 = arith.constant 0.000000e+00 : f32
    %720 = vector.broadcast %cst_76 : f32 to vector<2x15xf32>
    %721 = arith.maximumf %719, %720 : vector<2x15xf32>
    %722 = arith.maximumf %680, %721 : vector<2x15xf32>
    %c0_77 = arith.constant 0 : index
    %c15_78 = arith.constant 15 : index
    %723 = vector.load %arg13[%c0_77, %c15_78] : memref<2x120xf32, #tpu.memory_space<vmem>>, vector<2x15xf32>
    tpu.vector_store %arg13[%c0_77, %c15_78], %722 {strides = array<i32>} : memref<2x120xf32, #tpu.memory_space<vmem>>, vector<2x15xf32>,
    %724 = vector.broadcast %40 : f32 to vector<2x15xf32>
    %725 = arith.mulf %724, %364 : vector<2x15xf32>
    %cst_79 = arith.constant 0.000000e+00 : f32
    %726 = vector.broadcast %cst_79 : f32 to vector<2x15xf32>
    %727 = arith.addf %726, %725 : vector<2x15xf32>
    %728 = vector.broadcast %41 : f32 to vector<2x15xf32>
    %729 = arith.mulf %728, %365 : vector<2x15xf32>
    %730 = arith.addf %727, %729 : vector<2x15xf32>
    %731 = vector.broadcast %42 : f32 to vector<2x15xf32>
    %732 = arith.mulf %731, %366 : vector<2x15xf32>
    %733 = arith.addf %730, %732 : vector<2x15xf32>
    %734 = vector.broadcast %43 : f32 to vector<2x15xf32>
    %735 = arith.mulf %734, %370 : vector<2x15xf32>
    %736 = arith.addf %733, %735 : vector<2x15xf32>
    %737 = vector.broadcast %44 : f32 to vector<2x15xf32>
    %738 = arith.mulf %737, %371 : vector<2x15xf32>
    %739 = arith.addf %736, %738 : vector<2x15xf32>
    %740 = vector.broadcast %45 : f32 to vector<2x15xf32>
    %741 = arith.mulf %740, %372 : vector<2x15xf32>
    %742 = arith.addf %739, %741 : vector<2x15xf32>
    %743 = vector.broadcast %46 : f32 to vector<2x15xf32>
    %744 = arith.mulf %743, %376 : vector<2x15xf32>
    %745 = arith.addf %742, %744 : vector<2x15xf32>
    %746 = vector.broadcast %47 : f32 to vector<2x15xf32>
    %747 = arith.mulf %746, %377 : vector<2x15xf32>
    %748 = arith.addf %745, %747 : vector<2x15xf32>
    %749 = vector.broadcast %48 : f32 to vector<2x15xf32>
    %750 = arith.mulf %749, %378 : vector<2x15xf32>
    %751 = arith.addf %748, %750 : vector<2x15xf32>
    %752 = vector.broadcast %49 : f32 to vector<2x15xf32>
    %753 = arith.mulf %752, %382 : vector<2x15xf32>
    %754 = arith.addf %751, %753 : vector<2x15xf32>
    %755 = vector.broadcast %50 : f32 to vector<2x15xf32>
    %756 = arith.mulf %755, %383 : vector<2x15xf32>
    %757 = arith.addf %754, %756 : vector<2x15xf32>
    %758 = vector.broadcast %51 : f32 to vector<2x15xf32>
    %759 = arith.mulf %758, %384 : vector<2x15xf32>
    %760 = arith.addf %757, %759 : vector<2x15xf32>
    %761 = vector.broadcast %114 : f32 to vector<2x15xf32>
    %762 = arith.addf %760, %761 : vector<2x15xf32>
    %cst_80 = arith.constant 0.000000e+00 : f32
    %763 = vector.broadcast %cst_80 : f32 to vector<2x15xf32>
    %764 = arith.maximumf %762, %763 : vector<2x15xf32>
    %765 = vector.broadcast %40 : f32 to vector<2x15xf32>
    %766 = arith.mulf %765, %365 : vector<2x15xf32>
    %cst_81 = arith.constant 0.000000e+00 : f32
    %767 = vector.broadcast %cst_81 : f32 to vector<2x15xf32>
    %768 = arith.addf %767, %766 : vector<2x15xf32>
    %769 = vector.broadcast %41 : f32 to vector<2x15xf32>
    %770 = arith.mulf %769, %366 : vector<2x15xf32>
    %771 = arith.addf %768, %770 : vector<2x15xf32>
    %772 = vector.broadcast %42 : f32 to vector<2x15xf32>
    %773 = arith.mulf %772, %367 : vector<2x15xf32>
    %774 = arith.addf %771, %773 : vector<2x15xf32>
    %775 = vector.broadcast %43 : f32 to vector<2x15xf32>
    %776 = arith.mulf %775, %371 : vector<2x15xf32>
    %777 = arith.addf %774, %776 : vector<2x15xf32>
    %778 = vector.broadcast %44 : f32 to vector<2x15xf32>
    %779 = arith.mulf %778, %372 : vector<2x15xf32>
    %780 = arith.addf %777, %779 : vector<2x15xf32>
    %781 = vector.broadcast %45 : f32 to vector<2x15xf32>
    %782 = arith.mulf %781, %373 : vector<2x15xf32>
    %783 = arith.addf %780, %782 : vector<2x15xf32>
    %784 = vector.broadcast %46 : f32 to vector<2x15xf32>
    %785 = arith.mulf %784, %377 : vector<2x15xf32>
    %786 = arith.addf %783, %785 : vector<2x15xf32>
    %787 = vector.broadcast %47 : f32 to vector<2x15xf32>
    %788 = arith.mulf %787, %378 : vector<2x15xf32>
    %789 = arith.addf %786, %788 : vector<2x15xf32>
    %790 = vector.broadcast %48 : f32 to vector<2x15xf32>
    %791 = arith.mulf %790, %379 : vector<2x15xf32>
    %792 = arith.addf %789, %791 : vector<2x15xf32>
    %793 = vector.broadcast %49 : f32 to vector<2x15xf32>
    %794 = arith.mulf %793, %383 : vector<2x15xf32>
    %795 = arith.addf %792, %794 : vector<2x15xf32>
    %796 = vector.broadcast %50 : f32 to vector<2x15xf32>
    %797 = arith.mulf %796, %384 : vector<2x15xf32>
    %798 = arith.addf %795, %797 : vector<2x15xf32>
    %799 = vector.broadcast %51 : f32 to vector<2x15xf32>
    %800 = arith.mulf %799, %385 : vector<2x15xf32>
    %801 = arith.addf %798, %800 : vector<2x15xf32>
    %802 = vector.broadcast %114 : f32 to vector<2x15xf32>
    %803 = arith.addf %801, %802 : vector<2x15xf32>
    %cst_82 = arith.constant 0.000000e+00 : f32
    %804 = vector.broadcast %cst_82 : f32 to vector<2x15xf32>
    %805 = arith.maximumf %803, %804 : vector<2x15xf32>
    %806 = arith.maximumf %764, %805 : vector<2x15xf32>
    %807 = vector.broadcast %40 : f32 to vector<2x15xf32>
    %808 = arith.mulf %807, %366 : vector<2x15xf32>
    %cst_83 = arith.constant 0.000000e+00 : f32
    %809 = vector.broadcast %cst_83 : f32 to vector<2x15xf32>
    %810 = arith.addf %809, %808 : vector<2x15xf32>
    %811 = vector.broadcast %41 : f32 to vector<2x15xf32>
    %812 = arith.mulf %811, %367 : vector<2x15xf32>
    %813 = arith.addf %810, %812 : vector<2x15xf32>
    %814 = vector.broadcast %42 : f32 to vector<2x15xf32>
    %815 = arith.mulf %814, %368 : vector<2x15xf32>
    %816 = arith.addf %813, %815 : vector<2x15xf32>
    %817 = vector.broadcast %43 : f32 to vector<2x15xf32>
    %818 = arith.mulf %817, %372 : vector<2x15xf32>
    %819 = arith.addf %816, %818 : vector<2x15xf32>
    %820 = vector.broadcast %44 : f32 to vector<2x15xf32>
    %821 = arith.mulf %820, %373 : vector<2x15xf32>
    %822 = arith.addf %819, %821 : vector<2x15xf32>
    %823 = vector.broadcast %45 : f32 to vector<2x15xf32>
    %824 = arith.mulf %823, %374 : vector<2x15xf32>
    %825 = arith.addf %822, %824 : vector<2x15xf32>
    %826 = vector.broadcast %46 : f32 to vector<2x15xf32>
    %827 = arith.mulf %826, %378 : vector<2x15xf32>
    %828 = arith.addf %825, %827 : vector<2x15xf32>
    %829 = vector.broadcast %47 : f32 to vector<2x15xf32>
    %830 = arith.mulf %829, %379 : vector<2x15xf32>
    %831 = arith.addf %828, %830 : vector<2x15xf32>
    %832 = vector.broadcast %48 : f32 to vector<2x15xf32>
    %833 = arith.mulf %832, %380 : vector<2x15xf32>
    %834 = arith.addf %831, %833 : vector<2x15xf32>
    %835 = vector.broadcast %49 : f32 to vector<2x15xf32>
    %836 = arith.mulf %835, %384 : vector<2x15xf32>
    %837 = arith.addf %834, %836 : vector<2x15xf32>
    %838 = vector.broadcast %50 : f32 to vector<2x15xf32>
    %839 = arith.mulf %838, %385 : vector<2x15xf32>
    %840 = arith.addf %837, %839 : vector<2x15xf32>
    %841 = vector.broadcast %51 : f32 to vector<2x15xf32>
    %842 = arith.mulf %841, %386 : vector<2x15xf32>
    %843 = arith.addf %840, %842 : vector<2x15xf32>
    %844 = vector.broadcast %114 : f32 to vector<2x15xf32>
    %845 = arith.addf %843, %844 : vector<2x15xf32>
    %cst_84 = arith.constant 0.000000e+00 : f32
    %846 = vector.broadcast %cst_84 : f32 to vector<2x15xf32>
    %847 = arith.maximumf %845, %846 : vector<2x15xf32>
    %848 = arith.maximumf %806, %847 : vector<2x15xf32>
    %849 = vector.broadcast %40 : f32 to vector<2x15xf32>
    %850 = arith.mulf %849, %367 : vector<2x15xf32>
    %cst_85 = arith.constant 0.000000e+00 : f32
    %851 = vector.broadcast %cst_85 : f32 to vector<2x15xf32>
    %852 = arith.addf %851, %850 : vector<2x15xf32>
    %853 = vector.broadcast %41 : f32 to vector<2x15xf32>
    %854 = arith.mulf %853, %368 : vector<2x15xf32>
    %855 = arith.addf %852, %854 : vector<2x15xf32>
    %856 = vector.broadcast %42 : f32 to vector<2x15xf32>
    %857 = arith.mulf %856, %369 : vector<2x15xf32>
    %858 = arith.addf %855, %857 : vector<2x15xf32>
    %859 = vector.broadcast %43 : f32 to vector<2x15xf32>
    %860 = arith.mulf %859, %373 : vector<2x15xf32>
    %861 = arith.addf %858, %860 : vector<2x15xf32>
    %862 = vector.broadcast %44 : f32 to vector<2x15xf32>
    %863 = arith.mulf %862, %374 : vector<2x15xf32>
    %864 = arith.addf %861, %863 : vector<2x15xf32>
    %865 = vector.broadcast %45 : f32 to vector<2x15xf32>
    %866 = arith.mulf %865, %375 : vector<2x15xf32>
    %867 = arith.addf %864, %866 : vector<2x15xf32>
    %868 = vector.broadcast %46 : f32 to vector<2x15xf32>
    %869 = arith.mulf %868, %379 : vector<2x15xf32>
    %870 = arith.addf %867, %869 : vector<2x15xf32>
    %871 = vector.broadcast %47 : f32 to vector<2x15xf32>
    %872 = arith.mulf %871, %380 : vector<2x15xf32>
    %873 = arith.addf %870, %872 : vector<2x15xf32>
    %874 = vector.broadcast %48 : f32 to vector<2x15xf32>
    %875 = arith.mulf %874, %381 : vector<2x15xf32>
    %876 = arith.addf %873, %875 : vector<2x15xf32>
    %877 = vector.broadcast %49 : f32 to vector<2x15xf32>
    %878 = arith.mulf %877, %385 : vector<2x15xf32>
    %879 = arith.addf %876, %878 : vector<2x15xf32>
    %880 = vector.broadcast %50 : f32 to vector<2x15xf32>
    %881 = arith.mulf %880, %386 : vector<2x15xf32>
    %882 = arith.addf %879, %881 : vector<2x15xf32>
    %883 = vector.broadcast %51 : f32 to vector<2x15xf32>
    %884 = arith.mulf %883, %387 : vector<2x15xf32>
    %885 = arith.addf %882, %884 : vector<2x15xf32>
    %886 = vector.broadcast %114 : f32 to vector<2x15xf32>
    %887 = arith.addf %885, %886 : vector<2x15xf32>
    %cst_86 = arith.constant 0.000000e+00 : f32
    %888 = vector.broadcast %cst_86 : f32 to vector<2x15xf32>
    %889 = arith.maximumf %887, %888 : vector<2x15xf32>
    %890 = arith.maximumf %848, %889 : vector<2x15xf32>
    %c0_87 = arith.constant 0 : index
    %c30_88 = arith.constant 30 : index
    %891 = vector.load %arg13[%c0_87, %c30_88] : memref<2x120xf32, #tpu.memory_space<vmem>>, vector<2x15xf32>
    tpu.vector_store %arg13[%c0_87, %c30_88], %890 {strides = array<i32>} : memref<2x120xf32, #tpu.memory_space<vmem>>, vector<2x15xf32>,
    %892 = vector.broadcast %52 : f32 to vector<2x15xf32>
    %893 = arith.mulf %892, %364 : vector<2x15xf32>
    %cst_89 = arith.constant 0.000000e+00 : f32
    %894 = vector.broadcast %cst_89 : f32 to vector<2x15xf32>
    %895 = arith.addf %894, %893 : vector<2x15xf32>
    %896 = vector.broadcast %53 : f32 to vector<2x15xf32>
    %897 = arith.mulf %896, %365 : vector<2x15xf32>
    %898 = arith.addf %895, %897 : vector<2x15xf32>
    %899 = vector.broadcast %54 : f32 to vector<2x15xf32>
    %900 = arith.mulf %899, %366 : vector<2x15xf32>
    %901 = arith.addf %898, %900 : vector<2x15xf32>
    %902 = vector.broadcast %55 : f32 to vector<2x15xf32>
    %903 = arith.mulf %902, %370 : vector<2x15xf32>
    %904 = arith.addf %901, %903 : vector<2x15xf32>
    %905 = vector.broadcast %56 : f32 to vector<2x15xf32>
    %906 = arith.mulf %905, %371 : vector<2x15xf32>
    %907 = arith.addf %904, %906 : vector<2x15xf32>
    %908 = vector.broadcast %57 : f32 to vector<2x15xf32>
    %909 = arith.mulf %908, %372 : vector<2x15xf32>
    %910 = arith.addf %907, %909 : vector<2x15xf32>
    %911 = vector.broadcast %58 : f32 to vector<2x15xf32>
    %912 = arith.mulf %911, %376 : vector<2x15xf32>
    %913 = arith.addf %910, %912 : vector<2x15xf32>
    %914 = vector.broadcast %59 : f32 to vector<2x15xf32>
    %915 = arith.mulf %914, %377 : vector<2x15xf32>
    %916 = arith.addf %913, %915 : vector<2x15xf32>
    %917 = vector.broadcast %60 : f32 to vector<2x15xf32>
    %918 = arith.mulf %917, %378 : vector<2x15xf32>
    %919 = arith.addf %916, %918 : vector<2x15xf32>
    %920 = vector.broadcast %61 : f32 to vector<2x15xf32>
    %921 = arith.mulf %920, %382 : vector<2x15xf32>
    %922 = arith.addf %919, %921 : vector<2x15xf32>
    %923 = vector.broadcast %62 : f32 to vector<2x15xf32>
    %924 = arith.mulf %923, %383 : vector<2x15xf32>
    %925 = arith.addf %922, %924 : vector<2x15xf32>
    %926 = vector.broadcast %63 : f32 to vector<2x15xf32>
    %927 = arith.mulf %926, %384 : vector<2x15xf32>
    %928 = arith.addf %925, %927 : vector<2x15xf32>
    %929 = vector.broadcast %115 : f32 to vector<2x15xf32>
    %930 = arith.addf %928, %929 : vector<2x15xf32>
    %cst_90 = arith.constant 0.000000e+00 : f32
    %931 = vector.broadcast %cst_90 : f32 to vector<2x15xf32>
    %932 = arith.maximumf %930, %931 : vector<2x15xf32>
    %933 = vector.broadcast %52 : f32 to vector<2x15xf32>
    %934 = arith.mulf %933, %365 : vector<2x15xf32>
    %cst_91 = arith.constant 0.000000e+00 : f32
    %935 = vector.broadcast %cst_91 : f32 to vector<2x15xf32>
    %936 = arith.addf %935, %934 : vector<2x15xf32>
    %937 = vector.broadcast %53 : f32 to vector<2x15xf32>
    %938 = arith.mulf %937, %366 : vector<2x15xf32>
    %939 = arith.addf %936, %938 : vector<2x15xf32>
    %940 = vector.broadcast %54 : f32 to vector<2x15xf32>
    %941 = arith.mulf %940, %367 : vector<2x15xf32>
    %942 = arith.addf %939, %941 : vector<2x15xf32>
    %943 = vector.broadcast %55 : f32 to vector<2x15xf32>
    %944 = arith.mulf %943, %371 : vector<2x15xf32>
    %945 = arith.addf %942, %944 : vector<2x15xf32>
    %946 = vector.broadcast %56 : f32 to vector<2x15xf32>
    %947 = arith.mulf %946, %372 : vector<2x15xf32>
    %948 = arith.addf %945, %947 : vector<2x15xf32>
    %949 = vector.broadcast %57 : f32 to vector<2x15xf32>
    %950 = arith.mulf %949, %373 : vector<2x15xf32>
    %951 = arith.addf %948, %950 : vector<2x15xf32>
    %952 = vector.broadcast %58 : f32 to vector<2x15xf32>
    %953 = arith.mulf %952, %377 : vector<2x15xf32>
    %954 = arith.addf %951, %953 : vector<2x15xf32>
    %955 = vector.broadcast %59 : f32 to vector<2x15xf32>
    %956 = arith.mulf %955, %378 : vector<2x15xf32>
    %957 = arith.addf %954, %956 : vector<2x15xf32>
    %958 = vector.broadcast %60 : f32 to vector<2x15xf32>
    %959 = arith.mulf %958, %379 : vector<2x15xf32>
    %960 = arith.addf %957, %959 : vector<2x15xf32>
    %961 = vector.broadcast %61 : f32 to vector<2x15xf32>
    %962 = arith.mulf %961, %383 : vector<2x15xf32>
    %963 = arith.addf %960, %962 : vector<2x15xf32>
    %964 = vector.broadcast %62 : f32 to vector<2x15xf32>
    %965 = arith.mulf %964, %384 : vector<2x15xf32>
    %966 = arith.addf %963, %965 : vector<2x15xf32>
    %967 = vector.broadcast %63 : f32 to vector<2x15xf32>
    %968 = arith.mulf %967, %385 : vector<2x15xf32>
    %969 = arith.addf %966, %968 : vector<2x15xf32>
    %970 = vector.broadcast %115 : f32 to vector<2x15xf32>
    %971 = arith.addf %969, %970 : vector<2x15xf32>
    %cst_92 = arith.constant 0.000000e+00 : f32
    %972 = vector.broadcast %cst_92 : f32 to vector<2x15xf32>
    %973 = arith.maximumf %971, %972 : vector<2x15xf32>
    %974 = arith.maximumf %932, %973 : vector<2x15xf32>
    %975 = vector.broadcast %52 : f32 to vector<2x15xf32>
    %976 = arith.mulf %975, %366 : vector<2x15xf32>
    %cst_93 = arith.constant 0.000000e+00 : f32
    %977 = vector.broadcast %cst_93 : f32 to vector<2x15xf32>
    %978 = arith.addf %977, %976 : vector<2x15xf32>
    %979 = vector.broadcast %53 : f32 to vector<2x15xf32>
    %980 = arith.mulf %979, %367 : vector<2x15xf32>
    %981 = arith.addf %978, %980 : vector<2x15xf32>
    %982 = vector.broadcast %54 : f32 to vector<2x15xf32>
    %983 = arith.mulf %982, %368 : vector<2x15xf32>
    %984 = arith.addf %981, %983 : vector<2x15xf32>
    %985 = vector.broadcast %55 : f32 to vector<2x15xf32>
    %986 = arith.mulf %985, %372 : vector<2x15xf32>
    %987 = arith.addf %984, %986 : vector<2x15xf32>
    %988 = vector.broadcast %56 : f32 to vector<2x15xf32>
    %989 = arith.mulf %988, %373 : vector<2x15xf32>
    %990 = arith.addf %987, %989 : vector<2x15xf32>
    %991 = vector.broadcast %57 : f32 to vector<2x15xf32>
    %992 = arith.mulf %991, %374 : vector<2x15xf32>
    %993 = arith.addf %990, %992 : vector<2x15xf32>
    %994 = vector.broadcast %58 : f32 to vector<2x15xf32>
    %995 = arith.mulf %994, %378 : vector<2x15xf32>
    %996 = arith.addf %993, %995 : vector<2x15xf32>
    %997 = vector.broadcast %59 : f32 to vector<2x15xf32>
    %998 = arith.mulf %997, %379 : vector<2x15xf32>
    %999 = arith.addf %996, %998 : vector<2x15xf32>
    %1000 = vector.broadcast %60 : f32 to vector<2x15xf32>
    %1001 = arith.mulf %1000, %380 : vector<2x15xf32>
    %1002 = arith.addf %999, %1001 : vector<2x15xf32>
    %1003 = vector.broadcast %61 : f32 to vector<2x15xf32>
    %1004 = arith.mulf %1003, %384 : vector<2x15xf32>
    %1005 = arith.addf %1002, %1004 : vector<2x15xf32>
    %1006 = vector.broadcast %62 : f32 to vector<2x15xf32>
    %1007 = arith.mulf %1006, %385 : vector<2x15xf32>
    %1008 = arith.addf %1005, %1007 : vector<2x15xf32>
    %1009 = vector.broadcast %63 : f32 to vector<2x15xf32>
    %1010 = arith.mulf %1009, %386 : vector<2x15xf32>
    %1011 = arith.addf %1008, %1010 : vector<2x15xf32>
    %1012 = vector.broadcast %115 : f32 to vector<2x15xf32>
    %1013 = arith.addf %1011, %1012 : vector<2x15xf32>
    %cst_94 = arith.constant 0.000000e+00 : f32
    %1014 = vector.broadcast %cst_94 : f32 to vector<2x15xf32>
    %1015 = arith.maximumf %1013, %1014 : vector<2x15xf32>
    %1016 = arith.maximumf %974, %1015 : vector<2x15xf32>
    %1017 = vector.broadcast %52 : f32 to vector<2x15xf32>
    %1018 = arith.mulf %1017, %367 : vector<2x15xf32>
    %cst_95 = arith.constant 0.000000e+00 : f32
    %1019 = vector.broadcast %cst_95 : f32 to vector<2x15xf32>
    %1020 = arith.addf %1019, %1018 : vector<2x15xf32>
    %1021 = vector.broadcast %53 : f32 to vector<2x15xf32>
    %1022 = arith.mulf %1021, %368 : vector<2x15xf32>
    %1023 = arith.addf %1020, %1022 : vector<2x15xf32>
    %1024 = vector.broadcast %54 : f32 to vector<2x15xf32>
    %1025 = arith.mulf %1024, %369 : vector<2x15xf32>
    %1026 = arith.addf %1023, %1025 : vector<2x15xf32>
    %1027 = vector.broadcast %55 : f32 to vector<2x15xf32>
    %1028 = arith.mulf %1027, %373 : vector<2x15xf32>
    %1029 = arith.addf %1026, %1028 : vector<2x15xf32>
    %1030 = vector.broadcast %56 : f32 to vector<2x15xf32>
    %1031 = arith.mulf %1030, %374 : vector<2x15xf32>
    %1032 = arith.addf %1029, %1031 : vector<2x15xf32>
    %1033 = vector.broadcast %57 : f32 to vector<2x15xf32>
    %1034 = arith.mulf %1033, %375 : vector<2x15xf32>
    %1035 = arith.addf %1032, %1034 : vector<2x15xf32>
    %1036 = vector.broadcast %58 : f32 to vector<2x15xf32>
    %1037 = arith.mulf %1036, %379 : vector<2x15xf32>
    %1038 = arith.addf %1035, %1037 : vector<2x15xf32>
    %1039 = vector.broadcast %59 : f32 to vector<2x15xf32>
    %1040 = arith.mulf %1039, %380 : vector<2x15xf32>
    %1041 = arith.addf %1038, %1040 : vector<2x15xf32>
    %1042 = vector.broadcast %60 : f32 to vector<2x15xf32>
    %1043 = arith.mulf %1042, %381 : vector<2x15xf32>
    %1044 = arith.addf %1041, %1043 : vector<2x15xf32>
    %1045 = vector.broadcast %61 : f32 to vector<2x15xf32>
    %1046 = arith.mulf %1045, %385 : vector<2x15xf32>
    %1047 = arith.addf %1044, %1046 : vector<2x15xf32>
    %1048 = vector.broadcast %62 : f32 to vector<2x15xf32>
    %1049 = arith.mulf %1048, %386 : vector<2x15xf32>
    %1050 = arith.addf %1047, %1049 : vector<2x15xf32>
    %1051 = vector.broadcast %63 : f32 to vector<2x15xf32>
    %1052 = arith.mulf %1051, %387 : vector<2x15xf32>
    %1053 = arith.addf %1050, %1052 : vector<2x15xf32>
    %1054 = vector.broadcast %115 : f32 to vector<2x15xf32>
    %1055 = arith.addf %1053, %1054 : vector<2x15xf32>
    %cst_96 = arith.constant 0.000000e+00 : f32
    %1056 = vector.broadcast %cst_96 : f32 to vector<2x15xf32>
    %1057 = arith.maximumf %1055, %1056 : vector<2x15xf32>
    %1058 = arith.maximumf %1016, %1057 : vector<2x15xf32>
    %c0_97 = arith.constant 0 : index
    %c45_98 = arith.constant 45 : index
    %1059 = vector.load %arg13[%c0_97, %c45_98] : memref<2x120xf32, #tpu.memory_space<vmem>>, vector<2x15xf32>
    tpu.vector_store %arg13[%c0_97, %c45_98], %1058 {strides = array<i32>} : memref<2x120xf32, #tpu.memory_space<vmem>>, vector<2x15xf32>,
    %1060 = vector.broadcast %64 : f32 to vector<2x15xf32>
    %1061 = arith.mulf %1060, %364 : vector<2x15xf32>
    %cst_99 = arith.constant 0.000000e+00 : f32
    %1062 = vector.broadcast %cst_99 : f32 to vector<2x15xf32>
    %1063 = arith.addf %1062, %1061 : vector<2x15xf32>
    %1064 = vector.broadcast %65 : f32 to vector<2x15xf32>
    %1065 = arith.mulf %1064, %365 : vector<2x15xf32>
    %1066 = arith.addf %1063, %1065 : vector<2x15xf32>
    %1067 = vector.broadcast %66 : f32 to vector<2x15xf32>
    %1068 = arith.mulf %1067, %366 : vector<2x15xf32>
    %1069 = arith.addf %1066, %1068 : vector<2x15xf32>
    %1070 = vector.broadcast %67 : f32 to vector<2x15xf32>
    %1071 = arith.mulf %1070, %370 : vector<2x15xf32>
    %1072 = arith.addf %1069, %1071 : vector<2x15xf32>
    %1073 = vector.broadcast %68 : f32 to vector<2x15xf32>
    %1074 = arith.mulf %1073, %371 : vector<2x15xf32>
    %1075 = arith.addf %1072, %1074 : vector<2x15xf32>
    %1076 = vector.broadcast %69 : f32 to vector<2x15xf32>
    %1077 = arith.mulf %1076, %372 : vector<2x15xf32>
    %1078 = arith.addf %1075, %1077 : vector<2x15xf32>
    %1079 = vector.broadcast %70 : f32 to vector<2x15xf32>
    %1080 = arith.mulf %1079, %376 : vector<2x15xf32>
    %1081 = arith.addf %1078, %1080 : vector<2x15xf32>
    %1082 = vector.broadcast %71 : f32 to vector<2x15xf32>
    %1083 = arith.mulf %1082, %377 : vector<2x15xf32>
    %1084 = arith.addf %1081, %1083 : vector<2x15xf32>
    %1085 = vector.broadcast %72 : f32 to vector<2x15xf32>
    %1086 = arith.mulf %1085, %378 : vector<2x15xf32>
    %1087 = arith.addf %1084, %1086 : vector<2x15xf32>
    %1088 = vector.broadcast %73 : f32 to vector<2x15xf32>
    %1089 = arith.mulf %1088, %382 : vector<2x15xf32>
    %1090 = arith.addf %1087, %1089 : vector<2x15xf32>
    %1091 = vector.broadcast %74 : f32 to vector<2x15xf32>
    %1092 = arith.mulf %1091, %383 : vector<2x15xf32>
    %1093 = arith.addf %1090, %1092 : vector<2x15xf32>
    %1094 = vector.broadcast %75 : f32 to vector<2x15xf32>
    %1095 = arith.mulf %1094, %384 : vector<2x15xf32>
    %1096 = arith.addf %1093, %1095 : vector<2x15xf32>
    %1097 = vector.broadcast %116 : f32 to vector<2x15xf32>
    %1098 = arith.addf %1096, %1097 : vector<2x15xf32>
    %cst_100 = arith.constant 0.000000e+00 : f32
    %1099 = vector.broadcast %cst_100 : f32 to vector<2x15xf32>
    %1100 = arith.maximumf %1098, %1099 : vector<2x15xf32>
    %1101 = vector.broadcast %64 : f32 to vector<2x15xf32>
    %1102 = arith.mulf %1101, %365 : vector<2x15xf32>
    %cst_101 = arith.constant 0.000000e+00 : f32
    %1103 = vector.broadcast %cst_101 : f32 to vector<2x15xf32>
    %1104 = arith.addf %1103, %1102 : vector<2x15xf32>
    %1105 = vector.broadcast %65 : f32 to vector<2x15xf32>
    %1106 = arith.mulf %1105, %366 : vector<2x15xf32>
    %1107 = arith.addf %1104, %1106 : vector<2x15xf32>
    %1108 = vector.broadcast %66 : f32 to vector<2x15xf32>
    %1109 = arith.mulf %1108, %367 : vector<2x15xf32>
    %1110 = arith.addf %1107, %1109 : vector<2x15xf32>
    %1111 = vector.broadcast %67 : f32 to vector<2x15xf32>
    %1112 = arith.mulf %1111, %371 : vector<2x15xf32>
    %1113 = arith.addf %1110, %1112 : vector<2x15xf32>
    %1114 = vector.broadcast %68 : f32 to vector<2x15xf32>
    %1115 = arith.mulf %1114, %372 : vector<2x15xf32>
    %1116 = arith.addf %1113, %1115 : vector<2x15xf32>
    %1117 = vector.broadcast %69 : f32 to vector<2x15xf32>
    %1118 = arith.mulf %1117, %373 : vector<2x15xf32>
    %1119 = arith.addf %1116, %1118 : vector<2x15xf32>
    %1120 = vector.broadcast %70 : f32 to vector<2x15xf32>
    %1121 = arith.mulf %1120, %377 : vector<2x15xf32>
    %1122 = arith.addf %1119, %1121 : vector<2x15xf32>
    %1123 = vector.broadcast %71 : f32 to vector<2x15xf32>
    %1124 = arith.mulf %1123, %378 : vector<2x15xf32>
    %1125 = arith.addf %1122, %1124 : vector<2x15xf32>
    %1126 = vector.broadcast %72 : f32 to vector<2x15xf32>
    %1127 = arith.mulf %1126, %379 : vector<2x15xf32>
    %1128 = arith.addf %1125, %1127 : vector<2x15xf32>
    %1129 = vector.broadcast %73 : f32 to vector<2x15xf32>
    %1130 = arith.mulf %1129, %383 : vector<2x15xf32>
    %1131 = arith.addf %1128, %1130 : vector<2x15xf32>
    %1132 = vector.broadcast %74 : f32 to vector<2x15xf32>
    %1133 = arith.mulf %1132, %384 : vector<2x15xf32>
    %1134 = arith.addf %1131, %1133 : vector<2x15xf32>
    %1135 = vector.broadcast %75 : f32 to vector<2x15xf32>
    %1136 = arith.mulf %1135, %385 : vector<2x15xf32>
    %1137 = arith.addf %1134, %1136 : vector<2x15xf32>
    %1138 = vector.broadcast %116 : f32 to vector<2x15xf32>
    %1139 = arith.addf %1137, %1138 : vector<2x15xf32>
    %cst_102 = arith.constant 0.000000e+00 : f32
    %1140 = vector.broadcast %cst_102 : f32 to vector<2x15xf32>
    %1141 = arith.maximumf %1139, %1140 : vector<2x15xf32>
    %1142 = arith.maximumf %1100, %1141 : vector<2x15xf32>
    %1143 = vector.broadcast %64 : f32 to vector<2x15xf32>
    %1144 = arith.mulf %1143, %366 : vector<2x15xf32>
    %cst_103 = arith.constant 0.000000e+00 : f32
    %1145 = vector.broadcast %cst_103 : f32 to vector<2x15xf32>
    %1146 = arith.addf %1145, %1144 : vector<2x15xf32>
    %1147 = vector.broadcast %65 : f32 to vector<2x15xf32>
    %1148 = arith.mulf %1147, %367 : vector<2x15xf32>
    %1149 = arith.addf %1146, %1148 : vector<2x15xf32>
    %1150 = vector.broadcast %66 : f32 to vector<2x15xf32>
    %1151 = arith.mulf %1150, %368 : vector<2x15xf32>
    %1152 = arith.addf %1149, %1151 : vector<2x15xf32>
    %1153 = vector.broadcast %67 : f32 to vector<2x15xf32>
    %1154 = arith.mulf %1153, %372 : vector<2x15xf32>
    %1155 = arith.addf %1152, %1154 : vector<2x15xf32>
    %1156 = vector.broadcast %68 : f32 to vector<2x15xf32>
    %1157 = arith.mulf %1156, %373 : vector<2x15xf32>
    %1158 = arith.addf %1155, %1157 : vector<2x15xf32>
    %1159 = vector.broadcast %69 : f32 to vector<2x15xf32>
    %1160 = arith.mulf %1159, %374 : vector<2x15xf32>
    %1161 = arith.addf %1158, %1160 : vector<2x15xf32>
    %1162 = vector.broadcast %70 : f32 to vector<2x15xf32>
    %1163 = arith.mulf %1162, %378 : vector<2x15xf32>
    %1164 = arith.addf %1161, %1163 : vector<2x15xf32>
    %1165 = vector.broadcast %71 : f32 to vector<2x15xf32>
    %1166 = arith.mulf %1165, %379 : vector<2x15xf32>
    %1167 = arith.addf %1164, %1166 : vector<2x15xf32>
    %1168 = vector.broadcast %72 : f32 to vector<2x15xf32>
    %1169 = arith.mulf %1168, %380 : vector<2x15xf32>
    %1170 = arith.addf %1167, %1169 : vector<2x15xf32>
    %1171 = vector.broadcast %73 : f32 to vector<2x15xf32>
    %1172 = arith.mulf %1171, %384 : vector<2x15xf32>
    %1173 = arith.addf %1170, %1172 : vector<2x15xf32>
    %1174 = vector.broadcast %74 : f32 to vector<2x15xf32>
    %1175 = arith.mulf %1174, %385 : vector<2x15xf32>
    %1176 = arith.addf %1173, %1175 : vector<2x15xf32>
    %1177 = vector.broadcast %75 : f32 to vector<2x15xf32>
    %1178 = arith.mulf %1177, %386 : vector<2x15xf32>
    %1179 = arith.addf %1176, %1178 : vector<2x15xf32>
    %1180 = vector.broadcast %116 : f32 to vector<2x15xf32>
    %1181 = arith.addf %1179, %1180 : vector<2x15xf32>
    %cst_104 = arith.constant 0.000000e+00 : f32
    %1182 = vector.broadcast %cst_104 : f32 to vector<2x15xf32>
    %1183 = arith.maximumf %1181, %1182 : vector<2x15xf32>
    %1184 = arith.maximumf %1142, %1183 : vector<2x15xf32>
    %1185 = vector.broadcast %64 : f32 to vector<2x15xf32>
    %1186 = arith.mulf %1185, %367 : vector<2x15xf32>
    %cst_105 = arith.constant 0.000000e+00 : f32
    %1187 = vector.broadcast %cst_105 : f32 to vector<2x15xf32>
    %1188 = arith.addf %1187, %1186 : vector<2x15xf32>
    %1189 = vector.broadcast %65 : f32 to vector<2x15xf32>
    %1190 = arith.mulf %1189, %368 : vector<2x15xf32>
    %1191 = arith.addf %1188, %1190 : vector<2x15xf32>
    %1192 = vector.broadcast %66 : f32 to vector<2x15xf32>
    %1193 = arith.mulf %1192, %369 : vector<2x15xf32>
    %1194 = arith.addf %1191, %1193 : vector<2x15xf32>
    %1195 = vector.broadcast %67 : f32 to vector<2x15xf32>
    %1196 = arith.mulf %1195, %373 : vector<2x15xf32>
    %1197 = arith.addf %1194, %1196 : vector<2x15xf32>
    %1198 = vector.broadcast %68 : f32 to vector<2x15xf32>
    %1199 = arith.mulf %1198, %374 : vector<2x15xf32>
    %1200 = arith.addf %1197, %1199 : vector<2x15xf32>
    %1201 = vector.broadcast %69 : f32 to vector<2x15xf32>
    %1202 = arith.mulf %1201, %375 : vector<2x15xf32>
    %1203 = arith.addf %1200, %1202 : vector<2x15xf32>
    %1204 = vector.broadcast %70 : f32 to vector<2x15xf32>
    %1205 = arith.mulf %1204, %379 : vector<2x15xf32>
    %1206 = arith.addf %1203, %1205 : vector<2x15xf32>
    %1207 = vector.broadcast %71 : f32 to vector<2x15xf32>
    %1208 = arith.mulf %1207, %380 : vector<2x15xf32>
    %1209 = arith.addf %1206, %1208 : vector<2x15xf32>
    %1210 = vector.broadcast %72 : f32 to vector<2x15xf32>
    %1211 = arith.mulf %1210, %381 : vector<2x15xf32>
    %1212 = arith.addf %1209, %1211 : vector<2x15xf32>
    %1213 = vector.broadcast %73 : f32 to vector<2x15xf32>
    %1214 = arith.mulf %1213, %385 : vector<2x15xf32>
    %1215 = arith.addf %1212, %1214 : vector<2x15xf32>
    %1216 = vector.broadcast %74 : f32 to vector<2x15xf32>
    %1217 = arith.mulf %1216, %386 : vector<2x15xf32>
    %1218 = arith.addf %1215, %1217 : vector<2x15xf32>
    %1219 = vector.broadcast %75 : f32 to vector<2x15xf32>
    %1220 = arith.mulf %1219, %387 : vector<2x15xf32>
    %1221 = arith.addf %1218, %1220 : vector<2x15xf32>
    %1222 = vector.broadcast %116 : f32 to vector<2x15xf32>
    %1223 = arith.addf %1221, %1222 : vector<2x15xf32>
    %cst_106 = arith.constant 0.000000e+00 : f32
    %1224 = vector.broadcast %cst_106 : f32 to vector<2x15xf32>
    %1225 = arith.maximumf %1223, %1224 : vector<2x15xf32>
    %1226 = arith.maximumf %1184, %1225 : vector<2x15xf32>
    %c0_107 = arith.constant 0 : index
    %c60_108 = arith.constant 60 : index
    %1227 = vector.load %arg13[%c0_107, %c60_108] : memref<2x120xf32, #tpu.memory_space<vmem>>, vector<2x15xf32>
    tpu.vector_store %arg13[%c0_107, %c60_108], %1226 {strides = array<i32>} : memref<2x120xf32, #tpu.memory_space<vmem>>, vector<2x15xf32>,
    %1228 = vector.broadcast %76 : f32 to vector<2x15xf32>
    %1229 = arith.mulf %1228, %364 : vector<2x15xf32>
    %cst_109 = arith.constant 0.000000e+00 : f32
    %1230 = vector.broadcast %cst_109 : f32 to vector<2x15xf32>
    %1231 = arith.addf %1230, %1229 : vector<2x15xf32>
    %1232 = vector.broadcast %77 : f32 to vector<2x15xf32>
    %1233 = arith.mulf %1232, %365 : vector<2x15xf32>
    %1234 = arith.addf %1231, %1233 : vector<2x15xf32>
    %1235 = vector.broadcast %78 : f32 to vector<2x15xf32>
    %1236 = arith.mulf %1235, %366 : vector<2x15xf32>
    %1237 = arith.addf %1234, %1236 : vector<2x15xf32>
    %1238 = vector.broadcast %79 : f32 to vector<2x15xf32>
    %1239 = arith.mulf %1238, %370 : vector<2x15xf32>
    %1240 = arith.addf %1237, %1239 : vector<2x15xf32>
    %1241 = vector.broadcast %80 : f32 to vector<2x15xf32>
    %1242 = arith.mulf %1241, %371 : vector<2x15xf32>
    %1243 = arith.addf %1240, %1242 : vector<2x15xf32>
    %1244 = vector.broadcast %81 : f32 to vector<2x15xf32>
    %1245 = arith.mulf %1244, %372 : vector<2x15xf32>
    %1246 = arith.addf %1243, %1245 : vector<2x15xf32>
    %1247 = vector.broadcast %82 : f32 to vector<2x15xf32>
    %1248 = arith.mulf %1247, %376 : vector<2x15xf32>
    %1249 = arith.addf %1246, %1248 : vector<2x15xf32>
    %1250 = vector.broadcast %83 : f32 to vector<2x15xf32>
    %1251 = arith.mulf %1250, %377 : vector<2x15xf32>
    %1252 = arith.addf %1249, %1251 : vector<2x15xf32>
    %1253 = vector.broadcast %84 : f32 to vector<2x15xf32>
    %1254 = arith.mulf %1253, %378 : vector<2x15xf32>
    %1255 = arith.addf %1252, %1254 : vector<2x15xf32>
    %1256 = vector.broadcast %85 : f32 to vector<2x15xf32>
    %1257 = arith.mulf %1256, %382 : vector<2x15xf32>
    %1258 = arith.addf %1255, %1257 : vector<2x15xf32>
    %1259 = vector.broadcast %86 : f32 to vector<2x15xf32>
    %1260 = arith.mulf %1259, %383 : vector<2x15xf32>
    %1261 = arith.addf %1258, %1260 : vector<2x15xf32>
    %1262 = vector.broadcast %87 : f32 to vector<2x15xf32>
    %1263 = arith.mulf %1262, %384 : vector<2x15xf32>
    %1264 = arith.addf %1261, %1263 : vector<2x15xf32>
    %1265 = vector.broadcast %117 : f32 to vector<2x15xf32>
    %1266 = arith.addf %1264, %1265 : vector<2x15xf32>
    %cst_110 = arith.constant 0.000000e+00 : f32
    %1267 = vector.broadcast %cst_110 : f32 to vector<2x15xf32>
    %1268 = arith.maximumf %1266, %1267 : vector<2x15xf32>
    %1269 = vector.broadcast %76 : f32 to vector<2x15xf32>
    %1270 = arith.mulf %1269, %365 : vector<2x15xf32>
    %cst_111 = arith.constant 0.000000e+00 : f32
    %1271 = vector.broadcast %cst_111 : f32 to vector<2x15xf32>
    %1272 = arith.addf %1271, %1270 : vector<2x15xf32>
    %1273 = vector.broadcast %77 : f32 to vector<2x15xf32>
    %1274 = arith.mulf %1273, %366 : vector<2x15xf32>
    %1275 = arith.addf %1272, %1274 : vector<2x15xf32>
    %1276 = vector.broadcast %78 : f32 to vector<2x15xf32>
    %1277 = arith.mulf %1276, %367 : vector<2x15xf32>
    %1278 = arith.addf %1275, %1277 : vector<2x15xf32>
    %1279 = vector.broadcast %79 : f32 to vector<2x15xf32>
    %1280 = arith.mulf %1279, %371 : vector<2x15xf32>
    %1281 = arith.addf %1278, %1280 : vector<2x15xf32>
    %1282 = vector.broadcast %80 : f32 to vector<2x15xf32>
    %1283 = arith.mulf %1282, %372 : vector<2x15xf32>
    %1284 = arith.addf %1281, %1283 : vector<2x15xf32>
    %1285 = vector.broadcast %81 : f32 to vector<2x15xf32>
    %1286 = arith.mulf %1285, %373 : vector<2x15xf32>
    %1287 = arith.addf %1284, %1286 : vector<2x15xf32>
    %1288 = vector.broadcast %82 : f32 to vector<2x15xf32>
    %1289 = arith.mulf %1288, %377 : vector<2x15xf32>
    %1290 = arith.addf %1287, %1289 : vector<2x15xf32>
    %1291 = vector.broadcast %83 : f32 to vector<2x15xf32>
    %1292 = arith.mulf %1291, %378 : vector<2x15xf32>
    %1293 = arith.addf %1290, %1292 : vector<2x15xf32>
    %1294 = vector.broadcast %84 : f32 to vector<2x15xf32>
    %1295 = arith.mulf %1294, %379 : vector<2x15xf32>
    %1296 = arith.addf %1293, %1295 : vector<2x15xf32>
    %1297 = vector.broadcast %85 : f32 to vector<2x15xf32>
    %1298 = arith.mulf %1297, %383 : vector<2x15xf32>
    %1299 = arith.addf %1296, %1298 : vector<2x15xf32>
    %1300 = vector.broadcast %86 : f32 to vector<2x15xf32>
    %1301 = arith.mulf %1300, %384 : vector<2x15xf32>
    %1302 = arith.addf %1299, %1301 : vector<2x15xf32>
    %1303 = vector.broadcast %87 : f32 to vector<2x15xf32>
    %1304 = arith.mulf %1303, %385 : vector<2x15xf32>
    %1305 = arith.addf %1302, %1304 : vector<2x15xf32>
    %1306 = vector.broadcast %117 : f32 to vector<2x15xf32>
    %1307 = arith.addf %1305, %1306 : vector<2x15xf32>
    %cst_112 = arith.constant 0.000000e+00 : f32
    %1308 = vector.broadcast %cst_112 : f32 to vector<2x15xf32>
    %1309 = arith.maximumf %1307, %1308 : vector<2x15xf32>
    %1310 = arith.maximumf %1268, %1309 : vector<2x15xf32>
    %1311 = vector.broadcast %76 : f32 to vector<2x15xf32>
    %1312 = arith.mulf %1311, %366 : vector<2x15xf32>
    %cst_113 = arith.constant 0.000000e+00 : f32
    %1313 = vector.broadcast %cst_113 : f32 to vector<2x15xf32>
    %1314 = arith.addf %1313, %1312 : vector<2x15xf32>
    %1315 = vector.broadcast %77 : f32 to vector<2x15xf32>
    %1316 = arith.mulf %1315, %367 : vector<2x15xf32>
    %1317 = arith.addf %1314, %1316 : vector<2x15xf32>
    %1318 = vector.broadcast %78 : f32 to vector<2x15xf32>
    %1319 = arith.mulf %1318, %368 : vector<2x15xf32>
    %1320 = arith.addf %1317, %1319 : vector<2x15xf32>
    %1321 = vector.broadcast %79 : f32 to vector<2x15xf32>
    %1322 = arith.mulf %1321, %372 : vector<2x15xf32>
    %1323 = arith.addf %1320, %1322 : vector<2x15xf32>
    %1324 = vector.broadcast %80 : f32 to vector<2x15xf32>
    %1325 = arith.mulf %1324, %373 : vector<2x15xf32>
    %1326 = arith.addf %1323, %1325 : vector<2x15xf32>
    %1327 = vector.broadcast %81 : f32 to vector<2x15xf32>
    %1328 = arith.mulf %1327, %374 : vector<2x15xf32>
    %1329 = arith.addf %1326, %1328 : vector<2x15xf32>
    %1330 = vector.broadcast %82 : f32 to vector<2x15xf32>
    %1331 = arith.mulf %1330, %378 : vector<2x15xf32>
    %1332 = arith.addf %1329, %1331 : vector<2x15xf32>
    %1333 = vector.broadcast %83 : f32 to vector<2x15xf32>
    %1334 = arith.mulf %1333, %379 : vector<2x15xf32>
    %1335 = arith.addf %1332, %1334 : vector<2x15xf32>
    %1336 = vector.broadcast %84 : f32 to vector<2x15xf32>
    %1337 = arith.mulf %1336, %380 : vector<2x15xf32>
    %1338 = arith.addf %1335, %1337 : vector<2x15xf32>
    %1339 = vector.broadcast %85 : f32 to vector<2x15xf32>
    %1340 = arith.mulf %1339, %384 : vector<2x15xf32>
    %1341 = arith.addf %1338, %1340 : vector<2x15xf32>
    %1342 = vector.broadcast %86 : f32 to vector<2x15xf32>
    %1343 = arith.mulf %1342, %385 : vector<2x15xf32>
    %1344 = arith.addf %1341, %1343 : vector<2x15xf32>
    %1345 = vector.broadcast %87 : f32 to vector<2x15xf32>
    %1346 = arith.mulf %1345, %386 : vector<2x15xf32>
    %1347 = arith.addf %1344, %1346 : vector<2x15xf32>
    %1348 = vector.broadcast %117 : f32 to vector<2x15xf32>
    %1349 = arith.addf %1347, %1348 : vector<2x15xf32>
    %cst_114 = arith.constant 0.000000e+00 : f32
    %1350 = vector.broadcast %cst_114 : f32 to vector<2x15xf32>
    %1351 = arith.maximumf %1349, %1350 : vector<2x15xf32>
    %1352 = arith.maximumf %1310, %1351 : vector<2x15xf32>
    %1353 = vector.broadcast %76 : f32 to vector<2x15xf32>
    %1354 = arith.mulf %1353, %367 : vector<2x15xf32>
    %cst_115 = arith.constant 0.000000e+00 : f32
    %1355 = vector.broadcast %cst_115 : f32 to vector<2x15xf32>
    %1356 = arith.addf %1355, %1354 : vector<2x15xf32>
    %1357 = vector.broadcast %77 : f32 to vector<2x15xf32>
    %1358 = arith.mulf %1357, %368 : vector<2x15xf32>
    %1359 = arith.addf %1356, %1358 : vector<2x15xf32>
    %1360 = vector.broadcast %78 : f32 to vector<2x15xf32>
    %1361 = arith.mulf %1360, %369 : vector<2x15xf32>
    %1362 = arith.addf %1359, %1361 : vector<2x15xf32>
    %1363 = vector.broadcast %79 : f32 to vector<2x15xf32>
    %1364 = arith.mulf %1363, %373 : vector<2x15xf32>
    %1365 = arith.addf %1362, %1364 : vector<2x15xf32>
    %1366 = vector.broadcast %80 : f32 to vector<2x15xf32>
    %1367 = arith.mulf %1366, %374 : vector<2x15xf32>
    %1368 = arith.addf %1365, %1367 : vector<2x15xf32>
    %1369 = vector.broadcast %81 : f32 to vector<2x15xf32>
    %1370 = arith.mulf %1369, %375 : vector<2x15xf32>
    %1371 = arith.addf %1368, %1370 : vector<2x15xf32>
    %1372 = vector.broadcast %82 : f32 to vector<2x15xf32>
    %1373 = arith.mulf %1372, %379 : vector<2x15xf32>
    %1374 = arith.addf %1371, %1373 : vector<2x15xf32>
    %1375 = vector.broadcast %83 : f32 to vector<2x15xf32>
    %1376 = arith.mulf %1375, %380 : vector<2x15xf32>
    %1377 = arith.addf %1374, %1376 : vector<2x15xf32>
    %1378 = vector.broadcast %84 : f32 to vector<2x15xf32>
    %1379 = arith.mulf %1378, %381 : vector<2x15xf32>
    %1380 = arith.addf %1377, %1379 : vector<2x15xf32>
    %1381 = vector.broadcast %85 : f32 to vector<2x15xf32>
    %1382 = arith.mulf %1381, %385 : vector<2x15xf32>
    %1383 = arith.addf %1380, %1382 : vector<2x15xf32>
    %1384 = vector.broadcast %86 : f32 to vector<2x15xf32>
    %1385 = arith.mulf %1384, %386 : vector<2x15xf32>
    %1386 = arith.addf %1383, %1385 : vector<2x15xf32>
    %1387 = vector.broadcast %87 : f32 to vector<2x15xf32>
    %1388 = arith.mulf %1387, %387 : vector<2x15xf32>
    %1389 = arith.addf %1386, %1388 : vector<2x15xf32>
    %1390 = vector.broadcast %117 : f32 to vector<2x15xf32>
    %1391 = arith.addf %1389, %1390 : vector<2x15xf32>
    %cst_116 = arith.constant 0.000000e+00 : f32
    %1392 = vector.broadcast %cst_116 : f32 to vector<2x15xf32>
    %1393 = arith.maximumf %1391, %1392 : vector<2x15xf32>
    %1394 = arith.maximumf %1352, %1393 : vector<2x15xf32>
    %c0_117 = arith.constant 0 : index
    %c75_118 = arith.constant 75 : index
    %1395 = vector.load %arg13[%c0_117, %c75_118] : memref<2x120xf32, #tpu.memory_space<vmem>>, vector<2x15xf32>
    tpu.vector_store %arg13[%c0_117, %c75_118], %1394 {strides = array<i32>} : memref<2x120xf32, #tpu.memory_space<vmem>>, vector<2x15xf32>,
    %1396 = vector.broadcast %88 : f32 to vector<2x15xf32>
    %1397 = arith.mulf %1396, %364 : vector<2x15xf32>
    %cst_119 = arith.constant 0.000000e+00 : f32
    %1398 = vector.broadcast %cst_119 : f32 to vector<2x15xf32>
    %1399 = arith.addf %1398, %1397 : vector<2x15xf32>
    %1400 = vector.broadcast %89 : f32 to vector<2x15xf32>
    %1401 = arith.mulf %1400, %365 : vector<2x15xf32>
    %1402 = arith.addf %1399, %1401 : vector<2x15xf32>
    %1403 = vector.broadcast %90 : f32 to vector<2x15xf32>
    %1404 = arith.mulf %1403, %366 : vector<2x15xf32>
    %1405 = arith.addf %1402, %1404 : vector<2x15xf32>
    %1406 = vector.broadcast %91 : f32 to vector<2x15xf32>
    %1407 = arith.mulf %1406, %370 : vector<2x15xf32>
    %1408 = arith.addf %1405, %1407 : vector<2x15xf32>
    %1409 = vector.broadcast %92 : f32 to vector<2x15xf32>
    %1410 = arith.mulf %1409, %371 : vector<2x15xf32>
    %1411 = arith.addf %1408, %1410 : vector<2x15xf32>
    %1412 = vector.broadcast %93 : f32 to vector<2x15xf32>
    %1413 = arith.mulf %1412, %372 : vector<2x15xf32>
    %1414 = arith.addf %1411, %1413 : vector<2x15xf32>
    %1415 = vector.broadcast %94 : f32 to vector<2x15xf32>
    %1416 = arith.mulf %1415, %376 : vector<2x15xf32>
    %1417 = arith.addf %1414, %1416 : vector<2x15xf32>
    %1418 = vector.broadcast %95 : f32 to vector<2x15xf32>
    %1419 = arith.mulf %1418, %377 : vector<2x15xf32>
    %1420 = arith.addf %1417, %1419 : vector<2x15xf32>
    %1421 = vector.broadcast %96 : f32 to vector<2x15xf32>
    %1422 = arith.mulf %1421, %378 : vector<2x15xf32>
    %1423 = arith.addf %1420, %1422 : vector<2x15xf32>
    %1424 = vector.broadcast %97 : f32 to vector<2x15xf32>
    %1425 = arith.mulf %1424, %382 : vector<2x15xf32>
    %1426 = arith.addf %1423, %1425 : vector<2x15xf32>
    %1427 = vector.broadcast %98 : f32 to vector<2x15xf32>
    %1428 = arith.mulf %1427, %383 : vector<2x15xf32>
    %1429 = arith.addf %1426, %1428 : vector<2x15xf32>
    %1430 = vector.broadcast %99 : f32 to vector<2x15xf32>
    %1431 = arith.mulf %1430, %384 : vector<2x15xf32>
    %1432 = arith.addf %1429, %1431 : vector<2x15xf32>
    %1433 = vector.broadcast %118 : f32 to vector<2x15xf32>
    %1434 = arith.addf %1432, %1433 : vector<2x15xf32>
    %cst_120 = arith.constant 0.000000e+00 : f32
    %1435 = vector.broadcast %cst_120 : f32 to vector<2x15xf32>
    %1436 = arith.maximumf %1434, %1435 : vector<2x15xf32>
    %1437 = vector.broadcast %88 : f32 to vector<2x15xf32>
    %1438 = arith.mulf %1437, %365 : vector<2x15xf32>
    %cst_121 = arith.constant 0.000000e+00 : f32
    %1439 = vector.broadcast %cst_121 : f32 to vector<2x15xf32>
    %1440 = arith.addf %1439, %1438 : vector<2x15xf32>
    %1441 = vector.broadcast %89 : f32 to vector<2x15xf32>
    %1442 = arith.mulf %1441, %366 : vector<2x15xf32>
    %1443 = arith.addf %1440, %1442 : vector<2x15xf32>
    %1444 = vector.broadcast %90 : f32 to vector<2x15xf32>
    %1445 = arith.mulf %1444, %367 : vector<2x15xf32>
    %1446 = arith.addf %1443, %1445 : vector<2x15xf32>
    %1447 = vector.broadcast %91 : f32 to vector<2x15xf32>
    %1448 = arith.mulf %1447, %371 : vector<2x15xf32>
    %1449 = arith.addf %1446, %1448 : vector<2x15xf32>
    %1450 = vector.broadcast %92 : f32 to vector<2x15xf32>
    %1451 = arith.mulf %1450, %372 : vector<2x15xf32>
    %1452 = arith.addf %1449, %1451 : vector<2x15xf32>
    %1453 = vector.broadcast %93 : f32 to vector<2x15xf32>
    %1454 = arith.mulf %1453, %373 : vector<2x15xf32>
    %1455 = arith.addf %1452, %1454 : vector<2x15xf32>
    %1456 = vector.broadcast %94 : f32 to vector<2x15xf32>
    %1457 = arith.mulf %1456, %377 : vector<2x15xf32>
    %1458 = arith.addf %1455, %1457 : vector<2x15xf32>
    %1459 = vector.broadcast %95 : f32 to vector<2x15xf32>
    %1460 = arith.mulf %1459, %378 : vector<2x15xf32>
    %1461 = arith.addf %1458, %1460 : vector<2x15xf32>
    %1462 = vector.broadcast %96 : f32 to vector<2x15xf32>
    %1463 = arith.mulf %1462, %379 : vector<2x15xf32>
    %1464 = arith.addf %1461, %1463 : vector<2x15xf32>
    %1465 = vector.broadcast %97 : f32 to vector<2x15xf32>
    %1466 = arith.mulf %1465, %383 : vector<2x15xf32>
    %1467 = arith.addf %1464, %1466 : vector<2x15xf32>
    %1468 = vector.broadcast %98 : f32 to vector<2x15xf32>
    %1469 = arith.mulf %1468, %384 : vector<2x15xf32>
    %1470 = arith.addf %1467, %1469 : vector<2x15xf32>
    %1471 = vector.broadcast %99 : f32 to vector<2x15xf32>
    %1472 = arith.mulf %1471, %385 : vector<2x15xf32>
    %1473 = arith.addf %1470, %1472 : vector<2x15xf32>
    %1474 = vector.broadcast %118 : f32 to vector<2x15xf32>
    %1475 = arith.addf %1473, %1474 : vector<2x15xf32>
    %cst_122 = arith.constant 0.000000e+00 : f32
    %1476 = vector.broadcast %cst_122 : f32 to vector<2x15xf32>
    %1477 = arith.maximumf %1475, %1476 : vector<2x15xf32>
    %1478 = arith.maximumf %1436, %1477 : vector<2x15xf32>
    %1479 = vector.broadcast %88 : f32 to vector<2x15xf32>
    %1480 = arith.mulf %1479, %366 : vector<2x15xf32>
    %cst_123 = arith.constant 0.000000e+00 : f32
    %1481 = vector.broadcast %cst_123 : f32 to vector<2x15xf32>
    %1482 = arith.addf %1481, %1480 : vector<2x15xf32>
    %1483 = vector.broadcast %89 : f32 to vector<2x15xf32>
    %1484 = arith.mulf %1483, %367 : vector<2x15xf32>
    %1485 = arith.addf %1482, %1484 : vector<2x15xf32>
    %1486 = vector.broadcast %90 : f32 to vector<2x15xf32>
    %1487 = arith.mulf %1486, %368 : vector<2x15xf32>
    %1488 = arith.addf %1485, %1487 : vector<2x15xf32>
    %1489 = vector.broadcast %91 : f32 to vector<2x15xf32>
    %1490 = arith.mulf %1489, %372 : vector<2x15xf32>
    %1491 = arith.addf %1488, %1490 : vector<2x15xf32>
    %1492 = vector.broadcast %92 : f32 to vector<2x15xf32>
    %1493 = arith.mulf %1492, %373 : vector<2x15xf32>
    %1494 = arith.addf %1491, %1493 : vector<2x15xf32>
    %1495 = vector.broadcast %93 : f32 to vector<2x15xf32>
    %1496 = arith.mulf %1495, %374 : vector<2x15xf32>
    %1497 = arith.addf %1494, %1496 : vector<2x15xf32>
    %1498 = vector.broadcast %94 : f32 to vector<2x15xf32>
    %1499 = arith.mulf %1498, %378 : vector<2x15xf32>
    %1500 = arith.addf %1497, %1499 : vector<2x15xf32>
    %1501 = vector.broadcast %95 : f32 to vector<2x15xf32>
    %1502 = arith.mulf %1501, %379 : vector<2x15xf32>
    %1503 = arith.addf %1500, %1502 : vector<2x15xf32>
    %1504 = vector.broadcast %96 : f32 to vector<2x15xf32>
    %1505 = arith.mulf %1504, %380 : vector<2x15xf32>
    %1506 = arith.addf %1503, %1505 : vector<2x15xf32>
    %1507 = vector.broadcast %97 : f32 to vector<2x15xf32>
    %1508 = arith.mulf %1507, %384 : vector<2x15xf32>
    %1509 = arith.addf %1506, %1508 : vector<2x15xf32>
    %1510 = vector.broadcast %98 : f32 to vector<2x15xf32>
    %1511 = arith.mulf %1510, %385 : vector<2x15xf32>
    %1512 = arith.addf %1509, %1511 : vector<2x15xf32>
    %1513 = vector.broadcast %99 : f32 to vector<2x15xf32>
    %1514 = arith.mulf %1513, %386 : vector<2x15xf32>
    %1515 = arith.addf %1512, %1514 : vector<2x15xf32>
    %1516 = vector.broadcast %118 : f32 to vector<2x15xf32>
    %1517 = arith.addf %1515, %1516 : vector<2x15xf32>
    %cst_124 = arith.constant 0.000000e+00 : f32
    %1518 = vector.broadcast %cst_124 : f32 to vector<2x15xf32>
    %1519 = arith.maximumf %1517, %1518 : vector<2x15xf32>
    %1520 = arith.maximumf %1478, %1519 : vector<2x15xf32>
    %1521 = vector.broadcast %88 : f32 to vector<2x15xf32>
    %1522 = arith.mulf %1521, %367 : vector<2x15xf32>
    %cst_125 = arith.constant 0.000000e+00 : f32
    %1523 = vector.broadcast %cst_125 : f32 to vector<2x15xf32>
    %1524 = arith.addf %1523, %1522 : vector<2x15xf32>
    %1525 = vector.broadcast %89 : f32 to vector<2x15xf32>
    %1526 = arith.mulf %1525, %368 : vector<2x15xf32>
    %1527 = arith.addf %1524, %1526 : vector<2x15xf32>
    %1528 = vector.broadcast %90 : f32 to vector<2x15xf32>
    %1529 = arith.mulf %1528, %369 : vector<2x15xf32>
    %1530 = arith.addf %1527, %1529 : vector<2x15xf32>
    %1531 = vector.broadcast %91 : f32 to vector<2x15xf32>
    %1532 = arith.mulf %1531, %373 : vector<2x15xf32>
    %1533 = arith.addf %1530, %1532 : vector<2x15xf32>
    %1534 = vector.broadcast %92 : f32 to vector<2x15xf32>
    %1535 = arith.mulf %1534, %374 : vector<2x15xf32>
    %1536 = arith.addf %1533, %1535 : vector<2x15xf32>
    %1537 = vector.broadcast %93 : f32 to vector<2x15xf32>
    %1538 = arith.mulf %1537, %375 : vector<2x15xf32>
    %1539 = arith.addf %1536, %1538 : vector<2x15xf32>
    %1540 = vector.broadcast %94 : f32 to vector<2x15xf32>
    %1541 = arith.mulf %1540, %379 : vector<2x15xf32>
    %1542 = arith.addf %1539, %1541 : vector<2x15xf32>
    %1543 = vector.broadcast %95 : f32 to vector<2x15xf32>
    %1544 = arith.mulf %1543, %380 : vector<2x15xf32>
    %1545 = arith.addf %1542, %1544 : vector<2x15xf32>
    %1546 = vector.broadcast %96 : f32 to vector<2x15xf32>
    %1547 = arith.mulf %1546, %381 : vector<2x15xf32>
    %1548 = arith.addf %1545, %1547 : vector<2x15xf32>
    %1549 = vector.broadcast %97 : f32 to vector<2x15xf32>
    %1550 = arith.mulf %1549, %385 : vector<2x15xf32>
    %1551 = arith.addf %1548, %1550 : vector<2x15xf32>
    %1552 = vector.broadcast %98 : f32 to vector<2x15xf32>
    %1553 = arith.mulf %1552, %386 : vector<2x15xf32>
    %1554 = arith.addf %1551, %1553 : vector<2x15xf32>
    %1555 = vector.broadcast %99 : f32 to vector<2x15xf32>
    %1556 = arith.mulf %1555, %387 : vector<2x15xf32>
    %1557 = arith.addf %1554, %1556 : vector<2x15xf32>
    %1558 = vector.broadcast %118 : f32 to vector<2x15xf32>
    %1559 = arith.addf %1557, %1558 : vector<2x15xf32>
    %cst_126 = arith.constant 0.000000e+00 : f32
    %1560 = vector.broadcast %cst_126 : f32 to vector<2x15xf32>
    %1561 = arith.maximumf %1559, %1560 : vector<2x15xf32>
    %1562 = arith.maximumf %1520, %1561 : vector<2x15xf32>
    %c0_127 = arith.constant 0 : index
    %c90_128 = arith.constant 90 : index
    %1563 = vector.load %arg13[%c0_127, %c90_128] : memref<2x120xf32, #tpu.memory_space<vmem>>, vector<2x15xf32>
    tpu.vector_store %arg13[%c0_127, %c90_128], %1562 {strides = array<i32>} : memref<2x120xf32, #tpu.memory_space<vmem>>, vector<2x15xf32>,
    %1564 = vector.broadcast %100 : f32 to vector<2x15xf32>
    %1565 = arith.mulf %1564, %364 : vector<2x15xf32>
    %cst_129 = arith.constant 0.000000e+00 : f32
    %1566 = vector.broadcast %cst_129 : f32 to vector<2x15xf32>
    %1567 = arith.addf %1566, %1565 : vector<2x15xf32>
    %1568 = vector.broadcast %101 : f32 to vector<2x15xf32>
    %1569 = arith.mulf %1568, %365 : vector<2x15xf32>
    %1570 = arith.addf %1567, %1569 : vector<2x15xf32>
    %1571 = vector.broadcast %102 : f32 to vector<2x15xf32>
    %1572 = arith.mulf %1571, %366 : vector<2x15xf32>
    %1573 = arith.addf %1570, %1572 : vector<2x15xf32>
    %1574 = vector.broadcast %103 : f32 to vector<2x15xf32>
    %1575 = arith.mulf %1574, %370 : vector<2x15xf32>
    %1576 = arith.addf %1573, %1575 : vector<2x15xf32>
    %1577 = vector.broadcast %104 : f32 to vector<2x15xf32>
    %1578 = arith.mulf %1577, %371 : vector<2x15xf32>
    %1579 = arith.addf %1576, %1578 : vector<2x15xf32>
    %1580 = vector.broadcast %105 : f32 to vector<2x15xf32>
    %1581 = arith.mulf %1580, %372 : vector<2x15xf32>
    %1582 = arith.addf %1579, %1581 : vector<2x15xf32>
    %1583 = vector.broadcast %106 : f32 to vector<2x15xf32>
    %1584 = arith.mulf %1583, %376 : vector<2x15xf32>
    %1585 = arith.addf %1582, %1584 : vector<2x15xf32>
    %1586 = vector.broadcast %107 : f32 to vector<2x15xf32>
    %1587 = arith.mulf %1586, %377 : vector<2x15xf32>
    %1588 = arith.addf %1585, %1587 : vector<2x15xf32>
    %1589 = vector.broadcast %108 : f32 to vector<2x15xf32>
    %1590 = arith.mulf %1589, %378 : vector<2x15xf32>
    %1591 = arith.addf %1588, %1590 : vector<2x15xf32>
    %1592 = vector.broadcast %109 : f32 to vector<2x15xf32>
    %1593 = arith.mulf %1592, %382 : vector<2x15xf32>
    %1594 = arith.addf %1591, %1593 : vector<2x15xf32>
    %1595 = vector.broadcast %110 : f32 to vector<2x15xf32>
    %1596 = arith.mulf %1595, %383 : vector<2x15xf32>
    %1597 = arith.addf %1594, %1596 : vector<2x15xf32>
    %1598 = vector.broadcast %111 : f32 to vector<2x15xf32>
    %1599 = arith.mulf %1598, %384 : vector<2x15xf32>
    %1600 = arith.addf %1597, %1599 : vector<2x15xf32>
    %1601 = vector.broadcast %119 : f32 to vector<2x15xf32>
    %1602 = arith.addf %1600, %1601 : vector<2x15xf32>
    %cst_130 = arith.constant 0.000000e+00 : f32
    %1603 = vector.broadcast %cst_130 : f32 to vector<2x15xf32>
    %1604 = arith.maximumf %1602, %1603 : vector<2x15xf32>
    %1605 = vector.broadcast %100 : f32 to vector<2x15xf32>
    %1606 = arith.mulf %1605, %365 : vector<2x15xf32>
    %cst_131 = arith.constant 0.000000e+00 : f32
    %1607 = vector.broadcast %cst_131 : f32 to vector<2x15xf32>
    %1608 = arith.addf %1607, %1606 : vector<2x15xf32>
    %1609 = vector.broadcast %101 : f32 to vector<2x15xf32>
    %1610 = arith.mulf %1609, %366 : vector<2x15xf32>
    %1611 = arith.addf %1608, %1610 : vector<2x15xf32>
    %1612 = vector.broadcast %102 : f32 to vector<2x15xf32>
    %1613 = arith.mulf %1612, %367 : vector<2x15xf32>
    %1614 = arith.addf %1611, %1613 : vector<2x15xf32>
    %1615 = vector.broadcast %103 : f32 to vector<2x15xf32>
    %1616 = arith.mulf %1615, %371 : vector<2x15xf32>
    %1617 = arith.addf %1614, %1616 : vector<2x15xf32>
    %1618 = vector.broadcast %104 : f32 to vector<2x15xf32>
    %1619 = arith.mulf %1618, %372 : vector<2x15xf32>
    %1620 = arith.addf %1617, %1619 : vector<2x15xf32>
    %1621 = vector.broadcast %105 : f32 to vector<2x15xf32>
    %1622 = arith.mulf %1621, %373 : vector<2x15xf32>
    %1623 = arith.addf %1620, %1622 : vector<2x15xf32>
    %1624 = vector.broadcast %106 : f32 to vector<2x15xf32>
    %1625 = arith.mulf %1624, %377 : vector<2x15xf32>
    %1626 = arith.addf %1623, %1625 : vector<2x15xf32>
    %1627 = vector.broadcast %107 : f32 to vector<2x15xf32>
    %1628 = arith.mulf %1627, %378 : vector<2x15xf32>
    %1629 = arith.addf %1626, %1628 : vector<2x15xf32>
    %1630 = vector.broadcast %108 : f32 to vector<2x15xf32>
    %1631 = arith.mulf %1630, %379 : vector<2x15xf32>
    %1632 = arith.addf %1629, %1631 : vector<2x15xf32>
    %1633 = vector.broadcast %109 : f32 to vector<2x15xf32>
    %1634 = arith.mulf %1633, %383 : vector<2x15xf32>
    %1635 = arith.addf %1632, %1634 : vector<2x15xf32>
    %1636 = vector.broadcast %110 : f32 to vector<2x15xf32>
    %1637 = arith.mulf %1636, %384 : vector<2x15xf32>
    %1638 = arith.addf %1635, %1637 : vector<2x15xf32>
    %1639 = vector.broadcast %111 : f32 to vector<2x15xf32>
    %1640 = arith.mulf %1639, %385 : vector<2x15xf32>
    %1641 = arith.addf %1638, %1640 : vector<2x15xf32>
    %1642 = vector.broadcast %119 : f32 to vector<2x15xf32>
    %1643 = arith.addf %1641, %1642 : vector<2x15xf32>
    %cst_132 = arith.constant 0.000000e+00 : f32
    %1644 = vector.broadcast %cst_132 : f32 to vector<2x15xf32>
    %1645 = arith.maximumf %1643, %1644 : vector<2x15xf32>
    %1646 = arith.maximumf %1604, %1645 : vector<2x15xf32>
    %1647 = vector.broadcast %100 : f32 to vector<2x15xf32>
    %1648 = arith.mulf %1647, %366 : vector<2x15xf32>
    %cst_133 = arith.constant 0.000000e+00 : f32
    %1649 = vector.broadcast %cst_133 : f32 to vector<2x15xf32>
    %1650 = arith.addf %1649, %1648 : vector<2x15xf32>
    %1651 = vector.broadcast %101 : f32 to vector<2x15xf32>
    %1652 = arith.mulf %1651, %367 : vector<2x15xf32>
    %1653 = arith.addf %1650, %1652 : vector<2x15xf32>
    %1654 = vector.broadcast %102 : f32 to vector<2x15xf32>
    %1655 = arith.mulf %1654, %368 : vector<2x15xf32>
    %1656 = arith.addf %1653, %1655 : vector<2x15xf32>
    %1657 = vector.broadcast %103 : f32 to vector<2x15xf32>
    %1658 = arith.mulf %1657, %372 : vector<2x15xf32>
    %1659 = arith.addf %1656, %1658 : vector<2x15xf32>
    %1660 = vector.broadcast %104 : f32 to vector<2x15xf32>
    %1661 = arith.mulf %1660, %373 : vector<2x15xf32>
    %1662 = arith.addf %1659, %1661 : vector<2x15xf32>
    %1663 = vector.broadcast %105 : f32 to vector<2x15xf32>
    %1664 = arith.mulf %1663, %374 : vector<2x15xf32>
    %1665 = arith.addf %1662, %1664 : vector<2x15xf32>
    %1666 = vector.broadcast %106 : f32 to vector<2x15xf32>
    %1667 = arith.mulf %1666, %378 : vector<2x15xf32>
    %1668 = arith.addf %1665, %1667 : vector<2x15xf32>
    %1669 = vector.broadcast %107 : f32 to vector<2x15xf32>
    %1670 = arith.mulf %1669, %379 : vector<2x15xf32>
    %1671 = arith.addf %1668, %1670 : vector<2x15xf32>
    %1672 = vector.broadcast %108 : f32 to vector<2x15xf32>
    %1673 = arith.mulf %1672, %380 : vector<2x15xf32>
    %1674 = arith.addf %1671, %1673 : vector<2x15xf32>
    %1675 = vector.broadcast %109 : f32 to vector<2x15xf32>
    %1676 = arith.mulf %1675, %384 : vector<2x15xf32>
    %1677 = arith.addf %1674, %1676 : vector<2x15xf32>
    %1678 = vector.broadcast %110 : f32 to vector<2x15xf32>
    %1679 = arith.mulf %1678, %385 : vector<2x15xf32>
    %1680 = arith.addf %1677, %1679 : vector<2x15xf32>
    %1681 = vector.broadcast %111 : f32 to vector<2x15xf32>
    %1682 = arith.mulf %1681, %386 : vector<2x15xf32>
    %1683 = arith.addf %1680, %1682 : vector<2x15xf32>
    %1684 = vector.broadcast %119 : f32 to vector<2x15xf32>
    %1685 = arith.addf %1683, %1684 : vector<2x15xf32>
    %cst_134 = arith.constant 0.000000e+00 : f32
    %1686 = vector.broadcast %cst_134 : f32 to vector<2x15xf32>
    %1687 = arith.maximumf %1685, %1686 : vector<2x15xf32>
    %1688 = arith.maximumf %1646, %1687 : vector<2x15xf32>
    %1689 = vector.broadcast %100 : f32 to vector<2x15xf32>
    %1690 = arith.mulf %1689, %367 : vector<2x15xf32>
    %cst_135 = arith.constant 0.000000e+00 : f32
    %1691 = vector.broadcast %cst_135 : f32 to vector<2x15xf32>
    %1692 = arith.addf %1691, %1690 : vector<2x15xf32>
    %1693 = vector.broadcast %101 : f32 to vector<2x15xf32>
    %1694 = arith.mulf %1693, %368 : vector<2x15xf32>
    %1695 = arith.addf %1692, %1694 : vector<2x15xf32>
    %1696 = vector.broadcast %102 : f32 to vector<2x15xf32>
    %1697 = arith.mulf %1696, %369 : vector<2x15xf32>
    %1698 = arith.addf %1695, %1697 : vector<2x15xf32>
    %1699 = vector.broadcast %103 : f32 to vector<2x15xf32>
    %1700 = arith.mulf %1699, %373 : vector<2x15xf32>
    %1701 = arith.addf %1698, %1700 : vector<2x15xf32>
    %1702 = vector.broadcast %104 : f32 to vector<2x15xf32>
    %1703 = arith.mulf %1702, %374 : vector<2x15xf32>
    %1704 = arith.addf %1701, %1703 : vector<2x15xf32>
    %1705 = vector.broadcast %105 : f32 to vector<2x15xf32>
    %1706 = arith.mulf %1705, %375 : vector<2x15xf32>
    %1707 = arith.addf %1704, %1706 : vector<2x15xf32>
    %1708 = vector.broadcast %106 : f32 to vector<2x15xf32>
    %1709 = arith.mulf %1708, %379 : vector<2x15xf32>
    %1710 = arith.addf %1707, %1709 : vector<2x15xf32>
    %1711 = vector.broadcast %107 : f32 to vector<2x15xf32>
    %1712 = arith.mulf %1711, %380 : vector<2x15xf32>
    %1713 = arith.addf %1710, %1712 : vector<2x15xf32>
    %1714 = vector.broadcast %108 : f32 to vector<2x15xf32>
    %1715 = arith.mulf %1714, %381 : vector<2x15xf32>
    %1716 = arith.addf %1713, %1715 : vector<2x15xf32>
    %1717 = vector.broadcast %109 : f32 to vector<2x15xf32>
    %1718 = arith.mulf %1717, %385 : vector<2x15xf32>
    %1719 = arith.addf %1716, %1718 : vector<2x15xf32>
    %1720 = vector.broadcast %110 : f32 to vector<2x15xf32>
    %1721 = arith.mulf %1720, %386 : vector<2x15xf32>
    %1722 = arith.addf %1719, %1721 : vector<2x15xf32>
    %1723 = vector.broadcast %111 : f32 to vector<2x15xf32>
    %1724 = arith.mulf %1723, %387 : vector<2x15xf32>
    %1725 = arith.addf %1722, %1724 : vector<2x15xf32>
    %1726 = vector.broadcast %119 : f32 to vector<2x15xf32>
    %1727 = arith.addf %1725, %1726 : vector<2x15xf32>
    %cst_136 = arith.constant 0.000000e+00 : f32
    %1728 = vector.broadcast %cst_136 : f32 to vector<2x15xf32>
    %1729 = arith.maximumf %1727, %1728 : vector<2x15xf32>
    %1730 = arith.maximumf %1688, %1729 : vector<2x15xf32>
    %c0_137 = arith.constant 0 : index
    %c105 = arith.constant 105 : index
    %1731 = vector.load %arg13[%c0_137, %c105] : memref<2x120xf32, #tpu.memory_space<vmem>>, vector<2x15xf32>
    tpu.vector_store %arg13[%c0_137, %c105], %1730 {strides = array<i32>} : memref<2x120xf32, #tpu.memory_space<vmem>>, vector<2x15xf32>,
    %c0_138 = arith.constant 0 : index
    %c0_139 = arith.constant 0 : index
    %1732 = vector.load %arg13[%c0_138, %c0_139] : memref<2x120xf32, #tpu.memory_space<vmem>>, vector<2x120xf32>
    %c0_140 = arith.constant 0 : index
    %c0_141 = arith.constant 0 : index
    %c0_142 = arith.constant 0 : index
    %1733 = vector.load %arg6[%c0_140, %c0_141, %c0_142] : memref<1x120x32xf32, #tpu.memory_space<vmem>>, vector<1x120x32xf32>
    %1734 = vector.shape_cast %1733 : vector<1x120x32xf32> to vector<120x32xf32>
    %cst_143 = arith.constant dense<0.000000e+00> : vector<2x32xf32>
    %1735 = tpu.matmul %1732, %1734, %cst_143 {dimension_numbers = #tpu.dot_dimension_numbers<[1], [0], [0], [1], [0, 0, 1, 1], [], []>} : vector<2x120xf32>, vector<120x32xf32>, vector<2x32xf32> -> vector<2x32xf32>
    %c0_144 = arith.constant 0 : index
    %c0_145 = arith.constant 0 : index
    %1736 = vector.load %arg7[%c0_144, %c0_145] : memref<1x32xf32, #tpu.memory_space<vmem>>, vector<1x32xf32>
    %1737 = vector.broadcast %1736 : vector<1x32xf32> to vector<2x32xf32>
    %1738 = arith.addf %1735, %1737 : vector<2x32xf32>
    %cst_146 = arith.constant 0.000000e+00 : f32
    %1739 = vector.broadcast %cst_146 : f32 to vector<2x32xf32>
    %1740 = arith.maximumf %1738, %1739 : vector<2x32xf32>
    %c0_147 = arith.constant 0 : index
    %c0_148 = arith.constant 0 : index
    %1741 = vector.load %arg8[%c0_147, %c0_148] : memref<32x16xf32, #tpu.memory_space<vmem>>, vector<32x16xf32>
    %cst_149 = arith.constant dense<0.000000e+00> : vector<2x16xf32>
    %1742 = tpu.matmul %1740, %1741, %cst_149 {dimension_numbers = #tpu.dot_dimension_numbers<[1], [0], [0], [1], [0, 0, 1, 1], [], []>} : vector<2x32xf32>, vector<32x16xf32>, vector<2x16xf32> -> vector<2x16xf32>
    %c0_150 = arith.constant 0 : index
    %c0_151 = arith.constant 0 : index
    %1743 = vector.load %arg9[%c0_150, %c0_151] : memref<1x16xf32, #tpu.memory_space<vmem>>, vector<1x16xf32>
    %1744 = vector.broadcast %1743 : vector<1x16xf32> to vector<2x16xf32>
    %1745 = arith.addf %1742, %1744 : vector<2x16xf32>
    %cst_152 = arith.constant 0.000000e+00 : f32
    %1746 = vector.broadcast %cst_152 : f32 to vector<2x16xf32>
    %1747 = arith.maximumf %1745, %1746 : vector<2x16xf32>
    %c0_153 = arith.constant 0 : index
    %c0_154 = arith.constant 0 : index
    %1748 = vector.load %arg10[%c0_153, %c0_154] : memref<16x128xf32, #tpu.memory_space<vmem>>, vector<16x128xf32>
    %cst_155 = arith.constant dense<0.000000e+00> : vector<2x128xf32>
    %1749 = tpu.matmul %1747, %1748, %cst_155 {dimension_numbers = #tpu.dot_dimension_numbers<[1], [0], [0], [1], [0, 0, 1, 1], [], []>} : vector<2x16xf32>, vector<16x128xf32>, vector<2x128xf32> -> vector<2x128xf32>
    %c0_156 = arith.constant 0 : index
    %c0_157 = arith.constant 0 : index
    %1750 = vector.load %arg11[%c0_156, %c0_157] : memref<1x128xf32, #tpu.memory_space<vmem>>, vector<1x128xf32>
    %1751 = vector.broadcast %1750 : vector<1x128xf32> to vector<2x128xf32>
    %1752 = arith.addf %1749, %1751 : vector<2x128xf32>
    %c0_158 = arith.constant 0 : index
    %c0_159 = arith.constant 0 : index
    %1753 = vector.load %arg12[%c0_158, %c0_159] : memref<2x128xf32, #tpu.memory_space<vmem>>, vector<2x128xf32>
    tpu.vector_store %arg12[%c0_158, %c0_159], %1752 {strides = array<i32>} : memref<2x128xf32, #tpu.memory_space<vmem>>, vector<2x128xf32>,
    return
  }
  func.func @transform_0(%arg0: i32) -> i32 {
    %c0_i32 = arith.constant 0 : i32
    %c0_i32_0 = arith.constant 0 : i32
    return %c0_i32 : i32
  }
  func.func @transform_1(%arg0: i32) -> i32 {
    %c0_i32 = arith.constant 0 : i32
    %c0_i32_0 = arith.constant 0 : i32
    return %c0_i32 : i32
  }
  func.func @transform_2(%arg0: i32) -> i32 {
    %c0_i32 = arith.constant 0 : i32
    %c0_i32_0 = arith.constant 0 : i32
    return %c0_i32 : i32
  }
  func.func @transform_3(%arg0: i32) -> i32 {
    %c0_i32 = arith.constant 0 : i32
    %c0_i32_0 = arith.constant 0 : i32
    return %c0_i32 : i32
  }
  func.func @transform_4(%arg0: i32) -> (i32, i32, i32, i32) {
    %c0_i32 = arith.constant 0 : i32
    %c0_i32_0 = arith.constant 0 : i32
    %c0_i32_1 = arith.constant 0 : i32
    %c0_i32_2 = arith.constant 0 : i32
    return %c0_i32, %c0_i32_0, %arg0, %c0_i32_1 : i32, i32, i32, i32
  }
  func.func @transform_5(%arg0: i32) -> (i32, i32, i32) {
    %c0_i32 = arith.constant 0 : i32
    %c0_i32_0 = arith.constant 0 : i32
    %c0_i32_1 = arith.constant 0 : i32
    %c0_i32_2 = arith.constant 0 : i32
    return %c0_i32, %c0_i32_0, %c0_i32_1 : i32, i32, i32
  }
  func.func @transform_6(%arg0: i32) -> (i32, i32) {
    %c0_i32 = arith.constant 0 : i32
    %c0_i32_0 = arith.constant 0 : i32
    %c0_i32_1 = arith.constant 0 : i32
    return %c0_i32, %c0_i32_0 : i32, i32
  }
  func.func @transform_7(%arg0: i32) -> (i32, i32) {
    %c0_i32 = arith.constant 0 : i32
    %c0_i32_0 = arith.constant 0 : i32
    %c0_i32_1 = arith.constant 0 : i32
    return %c0_i32, %c0_i32_0 : i32, i32
  }
  func.func @transform_8(%arg0: i32) -> (i32, i32) {
    %c0_i32 = arith.constant 0 : i32
    %c0_i32_0 = arith.constant 0 : i32
    %c0_i32_1 = arith.constant 0 : i32
    return %c0_i32, %c0_i32_0 : i32, i32
  }
  func.func @transform_9(%arg0: i32) -> (i32, i32) {
    %c0_i32 = arith.constant 0 : i32
    %c0_i32_0 = arith.constant 0 : i32
    %c0_i32_1 = arith.constant 0 : i32
    return %c0_i32, %c0_i32_0 : i32, i32
  }
  func.func @transform_10(%arg0: i32) -> (i32, i32) {
    %c0_i32 = arith.constant 0 : i32
    %c0_i32_0 = arith.constant 0 : i32
    %c0_i32_1 = arith.constant 0 : i32
    return %c0_i32, %c0_i32_0 : i32, i32
  }
  func.func @transform_11(%arg0: i32) -> (i32, i32) {
    %c0_i32 = arith.constant 0 : i32
    %c0_i32_0 = arith.constant 0 : i32
    return %arg0, %c0_i32 : i32, i32
  }
}

module attributes {stable_mosaic.version = 11 : i64} {
  func.func @_starnet_kernel(%arg0: i32, %arg1: memref<12xf32, #tpu.memory_space<smem>>, %arg2: memref<4xf32, #tpu.memory_space<smem>>, %arg3: memref<96xf32, #tpu.memory_space<smem>>, %arg4: memref<8xf32, #tpu.memory_space<smem>>, %arg5: memref<1x4x2x17xf32, #tpu.memory_space<vmem>>, %arg6: memref<1x120x32xf32, #tpu.memory_space<vmem>>, %arg7: memref<1x32xf32, #tpu.memory_space<vmem>>, %arg8: memref<32x16xf32, #tpu.memory_space<vmem>>, %arg9: memref<1x16xf32, #tpu.memory_space<vmem>>, %arg10: memref<16x128xf32, #tpu.memory_space<vmem>>, %arg11: memref<1x128xf32, #tpu.memory_space<vmem>>, %arg12: memref<2x128xf32, #tpu.memory_space<vmem>>, %arg13: memref<2x120xf32, #tpu.memory_space<vmem>>) attributes {dimension_semantics = [#tpu.dimension_semantics<parallel>], iteration_bounds = array<i64: 1>, scalar_prefetch = 0 : i64, scratch_operands = 1 : i64, tpu.core_type = #tpu.core_type<tc>, window_params = [{transform_indices = @transform_0, window_bounds = array<i64: 12>}, {transform_indices = @transform_1, window_bounds = array<i64: 4>}, {transform_indices = @transform_2, window_bounds = array<i64: 96>}, {transform_indices = @transform_3, window_bounds = array<i64: 8>}, {transform_indices = @transform_4, window_bounds = array<i64: 1, 4, 2, 17>}, {pipeline_mode = #tpu.pipeline_mode<synchronous>, transform_indices = @transform_5, window_bounds = array<i64: 1, 120, 32>}, {pipeline_mode = #tpu.pipeline_mode<synchronous>, transform_indices = @transform_6, window_bounds = array<i64: 1, 32>}, {pipeline_mode = #tpu.pipeline_mode<synchronous>, transform_indices = @transform_7, window_bounds = array<i64: 32, 16>}, {pipeline_mode = #tpu.pipeline_mode<synchronous>, transform_indices = @transform_8, window_bounds = array<i64: 1, 16>}, {pipeline_mode = #tpu.pipeline_mode<synchronous>, transform_indices = @transform_9, window_bounds = array<i64: 16, 128>}, {pipeline_mode = #tpu.pipeline_mode<synchronous>, transform_indices = @transform_10, window_bounds = array<i64: 1, 128>}, {transform_indices = @transform_11, window_bounds = array<i64: 2, 128>}]} {
    %c0 = arith.constant 0 : index
    %0 = memref.load %arg1[%c0] : memref<12xf32, #tpu.memory_space<smem>>
    %c1 = arith.constant 1 : index
    %1 = memref.load %arg1[%c1] : memref<12xf32, #tpu.memory_space<smem>>
    %c2 = arith.constant 2 : index
    %2 = memref.load %arg1[%c2] : memref<12xf32, #tpu.memory_space<smem>>
    %c3 = arith.constant 3 : index
    %3 = memref.load %arg1[%c3] : memref<12xf32, #tpu.memory_space<smem>>
    %c4 = arith.constant 4 : index
    %4 = memref.load %arg1[%c4] : memref<12xf32, #tpu.memory_space<smem>>
    %c5 = arith.constant 5 : index
    %5 = memref.load %arg1[%c5] : memref<12xf32, #tpu.memory_space<smem>>
    %c6 = arith.constant 6 : index
    %6 = memref.load %arg1[%c6] : memref<12xf32, #tpu.memory_space<smem>>
    %c7 = arith.constant 7 : index
    %7 = memref.load %arg1[%c7] : memref<12xf32, #tpu.memory_space<smem>>
    %c8 = arith.constant 8 : index
    %8 = memref.load %arg1[%c8] : memref<12xf32, #tpu.memory_space<smem>>
    %c9 = arith.constant 9 : index
    %9 = memref.load %arg1[%c9] : memref<12xf32, #tpu.memory_space<smem>>
    %c10 = arith.constant 10 : index
    %10 = memref.load %arg1[%c10] : memref<12xf32, #tpu.memory_space<smem>>
    %c11 = arith.constant 11 : index
    %11 = memref.load %arg1[%c11] : memref<12xf32, #tpu.memory_space<smem>>
    %c0_0 = arith.constant 0 : index
    %12 = memref.load %arg2[%c0_0] : memref<4xf32, #tpu.memory_space<smem>>
    %c1_1 = arith.constant 1 : index
    %13 = memref.load %arg2[%c1_1] : memref<4xf32, #tpu.memory_space<smem>>
    %c2_2 = arith.constant 2 : index
    %14 = memref.load %arg2[%c2_2] : memref<4xf32, #tpu.memory_space<smem>>
    %c3_3 = arith.constant 3 : index
    %15 = memref.load %arg2[%c3_3] : memref<4xf32, #tpu.memory_space<smem>>
    %c0_4 = arith.constant 0 : index
    %16 = memref.load %arg3[%c0_4] : memref<96xf32, #tpu.memory_space<smem>>
    %c1_5 = arith.constant 1 : index
    %17 = memref.load %arg3[%c1_5] : memref<96xf32, #tpu.memory_space<smem>>
    %c2_6 = arith.constant 2 : index
    %18 = memref.load %arg3[%c2_6] : memref<96xf32, #tpu.memory_space<smem>>
    %c3_7 = arith.constant 3 : index
    %19 = memref.load %arg3[%c3_7] : memref<96xf32, #tpu.memory_space<smem>>
    %c4_8 = arith.constant 4 : index
    %20 = memref.load %arg3[%c4_8] : memref<96xf32, #tpu.memory_space<smem>>
    %c5_9 = arith.constant 5 : index
    %21 = memref.load %arg3[%c5_9] : memref<96xf32, #tpu.memory_space<smem>>
    %c6_10 = arith.constant 6 : index
    %22 = memref.load %arg3[%c6_10] : memref<96xf32, #tpu.memory_space<smem>>
    %c7_11 = arith.constant 7 : index
    %23 = memref.load %arg3[%c7_11] : memref<96xf32, #tpu.memory_space<smem>>
    %c8_12 = arith.constant 8 : index
    %24 = memref.load %arg3[%c8_12] : memref<96xf32, #tpu.memory_space<smem>>
    %c9_13 = arith.constant 9 : index
    %25 = memref.load %arg3[%c9_13] : memref<96xf32, #tpu.memory_space<smem>>
    %c10_14 = arith.constant 10 : index
    %26 = memref.load %arg3[%c10_14] : memref<96xf32, #tpu.memory_space<smem>>
    %c11_15 = arith.constant 11 : index
    %27 = memref.load %arg3[%c11_15] : memref<96xf32, #tpu.memory_space<smem>>
    %c12 = arith.constant 12 : index
    %28 = memref.load %arg3[%c12] : memref<96xf32, #tpu.memory_space<smem>>
    %c13 = arith.constant 13 : index
    %29 = memref.load %arg3[%c13] : memref<96xf32, #tpu.memory_space<smem>>
    %c14 = arith.constant 14 : index
    %30 = memref.load %arg3[%c14] : memref<96xf32, #tpu.memory_space<smem>>
    %c15 = arith.constant 15 : index
    %31 = memref.load %arg3[%c15] : memref<96xf32, #tpu.memory_space<smem>>
    %c16 = arith.constant 16 : index
    %32 = memref.load %arg3[%c16] : memref<96xf32, #tpu.memory_space<smem>>
    %c17 = arith.constant 17 : index
    %33 = memref.load %arg3[%c17] : memref<96xf32, #tpu.memory_space<smem>>
    %c18 = arith.constant 18 : index
    %34 = memref.load %arg3[%c18] : memref<96xf32, #tpu.memory_space<smem>>
    %c19 = arith.constant 19 : index
    %35 = memref.load %arg3[%c19] : memref<96xf32, #tpu.memory_space<smem>>
    %c20 = arith.constant 20 : index
    %36 = memref.load %arg3[%c20] : memref<96xf32, #tpu.memory_space<smem>>
    %c21 = arith.constant 21 : index
    %37 = memref.load %arg3[%c21] : memref<96xf32, #tpu.memory_space<smem>>
    %c22 = arith.constant 22 : index
    %38 = memref.load %arg3[%c22] : memref<96xf32, #tpu.memory_space<smem>>
    %c23 = arith.constant 23 : index
    %39 = memref.load %arg3[%c23] : memref<96xf32, #tpu.memory_space<smem>>
    %c24 = arith.constant 24 : index
    %40 = memref.load %arg3[%c24] : memref<96xf32, #tpu.memory_space<smem>>
    %c25 = arith.constant 25 : index
    %41 = memref.load %arg3[%c25] : memref<96xf32, #tpu.memory_space<smem>>
    %c26 = arith.constant 26 : index
    %42 = memref.load %arg3[%c26] : memref<96xf32, #tpu.memory_space<smem>>
    %c27 = arith.constant 27 : index
    %43 = memref.load %arg3[%c27] : memref<96xf32, #tpu.memory_space<smem>>
    %c28 = arith.constant 28 : index
    %44 = memref.load %arg3[%c28] : memref<96xf32, #tpu.memory_space<smem>>
    %c29 = arith.constant 29 : index
    %45 = memref.load %arg3[%c29] : memref<96xf32, #tpu.memory_space<smem>>
    %c30 = arith.constant 30 : index
    %46 = memref.load %arg3[%c30] : memref<96xf32, #tpu.memory_space<smem>>
    %c31 = arith.constant 31 : index
    %47 = memref.load %arg3[%c31] : memref<96xf32, #tpu.memory_space<smem>>
    %c32 = arith.constant 32 : index
    %48 = memref.load %arg3[%c32] : memref<96xf32, #tpu.memory_space<smem>>
    %c33 = arith.constant 33 : index
    %49 = memref.load %arg3[%c33] : memref<96xf32, #tpu.memory_space<smem>>
    %c34 = arith.constant 34 : index
    %50 = memref.load %arg3[%c34] : memref<96xf32, #tpu.memory_space<smem>>
    %c35 = arith.constant 35 : index
    %51 = memref.load %arg3[%c35] : memref<96xf32, #tpu.memory_space<smem>>
    %c36 = arith.constant 36 : index
    %52 = memref.load %arg3[%c36] : memref<96xf32, #tpu.memory_space<smem>>
    %c37 = arith.constant 37 : index
    %53 = memref.load %arg3[%c37] : memref<96xf32, #tpu.memory_space<smem>>
    %c38 = arith.constant 38 : index
    %54 = memref.load %arg3[%c38] : memref<96xf32, #tpu.memory_space<smem>>
    %c39 = arith.constant 39 : index
    %55 = memref.load %arg3[%c39] : memref<96xf32, #tpu.memory_space<smem>>
    %c40 = arith.constant 40 : index
    %56 = memref.load %arg3[%c40] : memref<96xf32, #tpu.memory_space<smem>>
    %c41 = arith.constant 41 : index
    %57 = memref.load %arg3[%c41] : memref<96xf32, #tpu.memory_space<smem>>
    %c42 = arith.constant 42 : index
    %58 = memref.load %arg3[%c42] : memref<96xf32, #tpu.memory_space<smem>>
    %c43 = arith.constant 43 : index
    %59 = memref.load %arg3[%c43] : memref<96xf32, #tpu.memory_space<smem>>
    %c44 = arith.constant 44 : index
    %60 = memref.load %arg3[%c44] : memref<96xf32, #tpu.memory_space<smem>>
    %c45 = arith.constant 45 : index
    %61 = memref.load %arg3[%c45] : memref<96xf32, #tpu.memory_space<smem>>
    %c46 = arith.constant 46 : index
    %62 = memref.load %arg3[%c46] : memref<96xf32, #tpu.memory_space<smem>>
    %c47 = arith.constant 47 : index
    %63 = memref.load %arg3[%c47] : memref<96xf32, #tpu.memory_space<smem>>
    %c48 = arith.constant 48 : index
    %64 = memref.load %arg3[%c48] : memref<96xf32, #tpu.memory_space<smem>>
    %c49 = arith.constant 49 : index
    %65 = memref.load %arg3[%c49] : memref<96xf32, #tpu.memory_space<smem>>
    %c50 = arith.constant 50 : index
    %66 = memref.load %arg3[%c50] : memref<96xf32, #tpu.memory_space<smem>>
    %c51 = arith.constant 51 : index
    %67 = memref.load %arg3[%c51] : memref<96xf32, #tpu.memory_space<smem>>
    %c52 = arith.constant 52 : index
    %68 = memref.load %arg3[%c52] : memref<96xf32, #tpu.memory_space<smem>>
    %c53 = arith.constant 53 : index
    %69 = memref.load %arg3[%c53] : memref<96xf32, #tpu.memory_space<smem>>
    %c54 = arith.constant 54 : index
    %70 = memref.load %arg3[%c54] : memref<96xf32, #tpu.memory_space<smem>>
    %c55 = arith.constant 55 : index
    %71 = memref.load %arg3[%c55] : memref<96xf32, #tpu.memory_space<smem>>
    %c56 = arith.constant 56 : index
    %72 = memref.load %arg3[%c56] : memref<96xf32, #tpu.memory_space<smem>>
    %c57 = arith.constant 57 : index
    %73 = memref.load %arg3[%c57] : memref<96xf32, #tpu.memory_space<smem>>
    %c58 = arith.constant 58 : index
    %74 = memref.load %arg3[%c58] : memref<96xf32, #tpu.memory_space<smem>>
    %c59 = arith.constant 59 : index
    %75 = memref.load %arg3[%c59] : memref<96xf32, #tpu.memory_space<smem>>
    %c60 = arith.constant 60 : index
    %76 = memref.load %arg3[%c60] : memref<96xf32, #tpu.memory_space<smem>>
    %c61 = arith.constant 61 : index
    %77 = memref.load %arg3[%c61] : memref<96xf32, #tpu.memory_space<smem>>
    %c62 = arith.constant 62 : index
    %78 = memref.load %arg3[%c62] : memref<96xf32, #tpu.memory_space<smem>>
    %c63 = arith.constant 63 : index
    %79 = memref.load %arg3[%c63] : memref<96xf32, #tpu.memory_space<smem>>
    %c64 = arith.constant 64 : index
    %80 = memref.load %arg3[%c64] : memref<96xf32, #tpu.memory_space<smem>>
    %c65 = arith.constant 65 : index
    %81 = memref.load %arg3[%c65] : memref<96xf32, #tpu.memory_space<smem>>
    %c66 = arith.constant 66 : index
    %82 = memref.load %arg3[%c66] : memref<96xf32, #tpu.memory_space<smem>>
    %c67 = arith.constant 67 : index
    %83 = memref.load %arg3[%c67] : memref<96xf32, #tpu.memory_space<smem>>
    %c68 = arith.constant 68 : index
    %84 = memref.load %arg3[%c68] : memref<96xf32, #tpu.memory_space<smem>>
    %c69 = arith.constant 69 : index
    %85 = memref.load %arg3[%c69] : memref<96xf32, #tpu.memory_space<smem>>
    %c70 = arith.constant 70 : index
    %86 = memref.load %arg3[%c70] : memref<96xf32, #tpu.memory_space<smem>>
    %c71 = arith.constant 71 : index
    %87 = memref.load %arg3[%c71] : memref<96xf32, #tpu.memory_space<smem>>
    %c72 = arith.constant 72 : index
    %88 = memref.load %arg3[%c72] : memref<96xf32, #tpu.memory_space<smem>>
    %c73 = arith.constant 73 : index
    %89 = memref.load %arg3[%c73] : memref<96xf32, #tpu.memory_space<smem>>
    %c74 = arith.constant 74 : index
    %90 = memref.load %arg3[%c74] : memref<96xf32, #tpu.memory_space<smem>>
    %c75 = arith.constant 75 : index
    %91 = memref.load %arg3[%c75] : memref<96xf32, #tpu.memory_space<smem>>
    %c76 = arith.constant 76 : index
    %92 = memref.load %arg3[%c76] : memref<96xf32, #tpu.memory_space<smem>>
    %c77 = arith.constant 77 : index
    %93 = memref.load %arg3[%c77] : memref<96xf32, #tpu.memory_space<smem>>
    %c78 = arith.constant 78 : index
    %94 = memref.load %arg3[%c78] : memref<96xf32, #tpu.memory_space<smem>>
    %c79 = arith.constant 79 : index
    %95 = memref.load %arg3[%c79] : memref<96xf32, #tpu.memory_space<smem>>
    %c80 = arith.constant 80 : index
    %96 = memref.load %arg3[%c80] : memref<96xf32, #tpu.memory_space<smem>>
    %c81 = arith.constant 81 : index
    %97 = memref.load %arg3[%c81] : memref<96xf32, #tpu.memory_space<smem>>
    %c82 = arith.constant 82 : index
    %98 = memref.load %arg3[%c82] : memref<96xf32, #tpu.memory_space<smem>>
    %c83 = arith.constant 83 : index
    %99 = memref.load %arg3[%c83] : memref<96xf32, #tpu.memory_space<smem>>
    %c84 = arith.constant 84 : index
    %100 = memref.load %arg3[%c84] : memref<96xf32, #tpu.memory_space<smem>>
    %c85 = arith.constant 85 : index
    %101 = memref.load %arg3[%c85] : memref<96xf32, #tpu.memory_space<smem>>
    %c86 = arith.constant 86 : index
    %102 = memref.load %arg3[%c86] : memref<96xf32, #tpu.memory_space<smem>>
    %c87 = arith.constant 87 : index
    %103 = memref.load %arg3[%c87] : memref<96xf32, #tpu.memory_space<smem>>
    %c88 = arith.constant 88 : index
    %104 = memref.load %arg3[%c88] : memref<96xf32, #tpu.memory_space<smem>>
    %c89 = arith.constant 89 : index
    %105 = memref.load %arg3[%c89] : memref<96xf32, #tpu.memory_space<smem>>
    %c90 = arith.constant 90 : index
    %106 = memref.load %arg3[%c90] : memref<96xf32, #tpu.memory_space<smem>>
    %c91 = arith.constant 91 : index
    %107 = memref.load %arg3[%c91] : memref<96xf32, #tpu.memory_space<smem>>
    %c92 = arith.constant 92 : index
    %108 = memref.load %arg3[%c92] : memref<96xf32, #tpu.memory_space<smem>>
    %c93 = arith.constant 93 : index
    %109 = memref.load %arg3[%c93] : memref<96xf32, #tpu.memory_space<smem>>
    %c94 = arith.constant 94 : index
    %110 = memref.load %arg3[%c94] : memref<96xf32, #tpu.memory_space<smem>>
    %c95 = arith.constant 95 : index
    %111 = memref.load %arg3[%c95] : memref<96xf32, #tpu.memory_space<smem>>
    %c0_16 = arith.constant 0 : index
    %112 = memref.load %arg4[%c0_16] : memref<8xf32, #tpu.memory_space<smem>>
    %c1_17 = arith.constant 1 : index
    %113 = memref.load %arg4[%c1_17] : memref<8xf32, #tpu.memory_space<smem>>
    %c2_18 = arith.constant 2 : index
    %114 = memref.load %arg4[%c2_18] : memref<8xf32, #tpu.memory_space<smem>>
    %c3_19 = arith.constant 3 : index
    %115 = memref.load %arg4[%c3_19] : memref<8xf32, #tpu.memory_space<smem>>
    %c4_20 = arith.constant 4 : index
    %116 = memref.load %arg4[%c4_20] : memref<8xf32, #tpu.memory_space<smem>>
    %c5_21 = arith.constant 5 : index
    %117 = memref.load %arg4[%c5_21] : memref<8xf32, #tpu.memory_space<smem>>
    %c6_22 = arith.constant 6 : index
    %118 = memref.load %arg4[%c6_22] : memref<8xf32, #tpu.memory_space<smem>>
    %c7_23 = arith.constant 7 : index
    %119 = memref.load %arg4[%c7_23] : memref<8xf32, #tpu.memory_space<smem>>
    %c0_24 = arith.constant 0 : index
    %c0_25 = arith.constant 0 : index
    %c0_26 = arith.constant 0 : index
    %c0_27 = arith.constant 0 : index
    %120 = vector.load %arg5[%c0_24, %c0_25, %c0_26, %c0_27] : memref<1x4x2x17xf32, #tpu.memory_space<vmem>>, vector<1x4x2x17xf32>
    %121 = vector.shape_cast %120 : vector<1x4x2x17xf32> to vector<4x2x17xf32>
    %122 = vector.extract_strided_slice %121 {offsets = [0, 0, 0], sizes = [1, 2, 17], strides = [1, 1, 1]} : vector<4x2x17xf32> to vector<1x2x17xf32>
    %123 = vector.shape_cast %122 : vector<1x2x17xf32> to vector<2x17xf32>
    %124 = vector.extract_strided_slice %123 {offsets = [0, 0], sizes = [2, 16], strides = [1, 1]} : vector<2x17xf32> to vector<2x16xf32>
    %125 = vector.extract_strided_slice %121 {offsets = [1, 0, 0], sizes = [1, 2, 17], strides = [1, 1, 1]} : vector<4x2x17xf32> to vector<1x2x17xf32>
    %126 = vector.shape_cast %125 : vector<1x2x17xf32> to vector<2x17xf32>
    %127 = vector.extract_strided_slice %126 {offsets = [0, 0], sizes = [2, 16], strides = [1, 1]} : vector<2x17xf32> to vector<2x16xf32>
    %128 = vector.extract_strided_slice %121 {offsets = [2, 0, 0], sizes = [1, 2, 17], strides = [1, 1, 1]} : vector<4x2x17xf32> to vector<1x2x17xf32>
    %129 = vector.shape_cast %128 : vector<1x2x17xf32> to vector<2x17xf32>
    %130 = vector.extract_strided_slice %129 {offsets = [0, 0], sizes = [2, 16], strides = [1, 1]} : vector<2x17xf32> to vector<2x16xf32>
    %131 = vector.extract_strided_slice %121 {offsets = [3, 0, 0], sizes = [1, 2, 17], strides = [1, 1, 1]} : vector<4x2x17xf32> to vector<1x2x17xf32>
    %132 = vector.shape_cast %131 : vector<1x2x17xf32> to vector<2x17xf32>
    %133 = vector.extract_strided_slice %132 {offsets = [0, 0], sizes = [2, 16], strides = [1, 1]} : vector<2x17xf32> to vector<2x16xf32>
    %134 = vector.extract_strided_slice %121 {offsets = [0, 0, 0], sizes = [1, 2, 17], strides = [1, 1, 1]} : vector<4x2x17xf32> to vector<1x2x17xf32>
    %135 = vector.shape_cast %134 : vector<1x2x17xf32> to vector<2x17xf32>
    %136 = vector.extract_strided_slice %135 {offsets = [0, 1], sizes = [2, 16], strides = [1, 1]} : vector<2x17xf32> to vector<2x16xf32>
    %137 = vector.extract_strided_slice %121 {offsets = [1, 0, 0], sizes = [1, 2, 17], strides = [1, 1, 1]} : vector<4x2x17xf32> to vector<1x2x17xf32>
    %138 = vector.shape_cast %137 : vector<1x2x17xf32> to vector<2x17xf32>
    %139 = vector.extract_strided_slice %138 {offsets = [0, 1], sizes = [2, 16], strides = [1, 1]} : vector<2x17xf32> to vector<2x16xf32>
    %140 = vector.broadcast %0 : f32 to vector<2x16xf32>
    %141 = arith.mulf %140, %124 : vector<2x16xf32>
    %cst = arith.constant 0.000000e+00 : f32
    %142 = vector.broadcast %cst : f32 to vector<2x16xf32>
    %143 = arith.addf %142, %141 : vector<2x16xf32>
    %144 = vector.broadcast %1 : f32 to vector<2x16xf32>
    %145 = arith.mulf %144, %127 : vector<2x16xf32>
    %146 = arith.addf %143, %145 : vector<2x16xf32>
    %147 = vector.broadcast %2 : f32 to vector<2x16xf32>
    %148 = arith.mulf %147, %130 : vector<2x16xf32>
    %149 = arith.addf %146, %148 : vector<2x16xf32>
    %150 = vector.broadcast %12 : f32 to vector<2x16xf32>
    %151 = arith.addf %149, %150 : vector<2x16xf32>
    %cst_28 = arith.constant 0.000000e+00 : f32
    %152 = vector.broadcast %cst_28 : f32 to vector<2x16xf32>
    %153 = arith.maximumf %151, %152 : vector<2x16xf32>
    %154 = vector.broadcast %0 : f32 to vector<2x16xf32>
    %155 = arith.mulf %154, %127 : vector<2x16xf32>
    %cst_29 = arith.constant 0.000000e+00 : f32
    %156 = vector.broadcast %cst_29 : f32 to vector<2x16xf32>
    %157 = arith.addf %156, %155 : vector<2x16xf32>
    %158 = vector.broadcast %1 : f32 to vector<2x16xf32>
    %159 = arith.mulf %158, %130 : vector<2x16xf32>
    %160 = arith.addf %157, %159 : vector<2x16xf32>
    %161 = vector.broadcast %2 : f32 to vector<2x16xf32>
    %162 = arith.mulf %161, %133 : vector<2x16xf32>
    %163 = arith.addf %160, %162 : vector<2x16xf32>
    %164 = vector.broadcast %12 : f32 to vector<2x16xf32>
    %165 = arith.addf %163, %164 : vector<2x16xf32>
    %cst_30 = arith.constant 0.000000e+00 : f32
    %166 = vector.broadcast %cst_30 : f32 to vector<2x16xf32>
    %167 = arith.maximumf %165, %166 : vector<2x16xf32>
    %168 = vector.broadcast %0 : f32 to vector<2x16xf32>
    %169 = arith.mulf %168, %130 : vector<2x16xf32>
    %cst_31 = arith.constant 0.000000e+00 : f32
    %170 = vector.broadcast %cst_31 : f32 to vector<2x16xf32>
    %171 = arith.addf %170, %169 : vector<2x16xf32>
    %172 = vector.broadcast %1 : f32 to vector<2x16xf32>
    %173 = arith.mulf %172, %133 : vector<2x16xf32>
    %174 = arith.addf %171, %173 : vector<2x16xf32>
    %175 = vector.broadcast %2 : f32 to vector<2x16xf32>
    %176 = arith.mulf %175, %136 : vector<2x16xf32>
    %177 = arith.addf %174, %176 : vector<2x16xf32>
    %178 = vector.broadcast %12 : f32 to vector<2x16xf32>
    %179 = arith.addf %177, %178 : vector<2x16xf32>
    %cst_32 = arith.constant 0.000000e+00 : f32
    %180 = vector.broadcast %cst_32 : f32 to vector<2x16xf32>
    %181 = arith.maximumf %179, %180 : vector<2x16xf32>
    %182 = vector.broadcast %0 : f32 to vector<2x16xf32>
    %183 = arith.mulf %182, %133 : vector<2x16xf32>
    %cst_33 = arith.constant 0.000000e+00 : f32
    %184 = vector.broadcast %cst_33 : f32 to vector<2x16xf32>
    %185 = arith.addf %184, %183 : vector<2x16xf32>
    %186 = vector.broadcast %1 : f32 to vector<2x16xf32>
    %187 = arith.mulf %186, %136 : vector<2x16xf32>
    %188 = arith.addf %185, %187 : vector<2x16xf32>
    %189 = vector.broadcast %2 : f32 to vector<2x16xf32>
    %190 = arith.mulf %189, %139 : vector<2x16xf32>
    %191 = arith.addf %188, %190 : vector<2x16xf32>
    %192 = vector.broadcast %12 : f32 to vector<2x16xf32>
    %193 = arith.addf %191, %192 : vector<2x16xf32>
    %cst_34 = arith.constant 0.000000e+00 : f32
    %194 = vector.broadcast %cst_34 : f32 to vector<2x16xf32>
    %195 = arith.maximumf %193, %194 : vector<2x16xf32>
    %196 = vector.broadcast %3 : f32 to vector<2x16xf32>
    %197 = arith.mulf %196, %124 : vector<2x16xf32>
    %cst_35 = arith.constant 0.000000e+00 : f32
    %198 = vector.broadcast %cst_35 : f32 to vector<2x16xf32>
    %199 = arith.addf %198, %197 : vector<2x16xf32>
    %200 = vector.broadcast %4 : f32 to vector<2x16xf32>
    %201 = arith.mulf %200, %127 : vector<2x16xf32>
    %202 = arith.addf %199, %201 : vector<2x16xf32>
    %203 = vector.broadcast %5 : f32 to vector<2x16xf32>
    %204 = arith.mulf %203, %130 : vector<2x16xf32>
    %205 = arith.addf %202, %204 : vector<2x16xf32>
    %206 = vector.broadcast %13 : f32 to vector<2x16xf32>
    %207 = arith.addf %205, %206 : vector<2x16xf32>
    %cst_36 = arith.constant 0.000000e+00 : f32
    %208 = vector.broadcast %cst_36 : f32 to vector<2x16xf32>
    %209 = arith.maximumf %207, %208 : vector<2x16xf32>
    %210 = vector.broadcast %3 : f32 to vector<2x16xf32>
    %211 = arith.mulf %210, %127 : vector<2x16xf32>
    %cst_37 = arith.constant 0.000000e+00 : f32
    %212 = vector.broadcast %cst_37 : f32 to vector<2x16xf32>
    %213 = arith.addf %212, %211 : vector<2x16xf32>
    %214 = vector.broadcast %4 : f32 to vector<2x16xf32>
    %215 = arith.mulf %214, %130 : vector<2x16xf32>
    %216 = arith.addf %213, %215 : vector<2x16xf32>
    %217 = vector.broadcast %5 : f32 to vector<2x16xf32>
    %218 = arith.mulf %217, %133 : vector<2x16xf32>
    %219 = arith.addf %216, %218 : vector<2x16xf32>
    %220 = vector.broadcast %13 : f32 to vector<2x16xf32>
    %221 = arith.addf %219, %220 : vector<2x16xf32>
    %cst_38 = arith.constant 0.000000e+00 : f32
    %222 = vector.broadcast %cst_38 : f32 to vector<2x16xf32>
    %223 = arith.maximumf %221, %222 : vector<2x16xf32>
    %224 = vector.broadcast %3 : f32 to vector<2x16xf32>
    %225 = arith.mulf %224, %130 : vector<2x16xf32>
    %cst_39 = arith.constant 0.000000e+00 : f32
    %226 = vector.broadcast %cst_39 : f32 to vector<2x16xf32>
    %227 = arith.addf %226, %225 : vector<2x16xf32>
    %228 = vector.broadcast %4 : f32 to vector<2x16xf32>
    %229 = arith.mulf %228, %133 : vector<2x16xf32>
    %230 = arith.addf %227, %229 : vector<2x16xf32>
    %231 = vector.broadcast %5 : f32 to vector<2x16xf32>
    %232 = arith.mulf %231, %136 : vector<2x16xf32>
    %233 = arith.addf %230, %232 : vector<2x16xf32>
    %234 = vector.broadcast %13 : f32 to vector<2x16xf32>
    %235 = arith.addf %233, %234 : vector<2x16xf32>
    %cst_40 = arith.constant 0.000000e+00 : f32
    %236 = vector.broadcast %cst_40 : f32 to vector<2x16xf32>
    %237 = arith.maximumf %235, %236 : vector<2x16xf32>
    %238 = vector.broadcast %3 : f32 to vector<2x16xf32>
    %239 = arith.mulf %238, %133 : vector<2x16xf32>
    %cst_41 = arith.constant 0.000000e+00 : f32
    %240 = vector.broadcast %cst_41 : f32 to vector<2x16xf32>
    %241 = arith.addf %240, %239 : vector<2x16xf32>
    %242 = vector.broadcast %4 : f32 to vector<2x16xf32>
    %243 = arith.mulf %242, %136 : vector<2x16xf32>
    %244 = arith.addf %241, %243 : vector<2x16xf32>
    %245 = vector.broadcast %5 : f32 to vector<2x16xf32>
    %246 = arith.mulf %245, %139 : vector<2x16xf32>
    %247 = arith.addf %244, %246 : vector<2x16xf32>
    %248 = vector.broadcast %13 : f32 to vector<2x16xf32>
    %249 = arith.addf %247, %248 : vector<2x16xf32>
    %cst_42 = arith.constant 0.000000e+00 : f32
    %250 = vector.broadcast %cst_42 : f32 to vector<2x16xf32>
    %251 = arith.maximumf %249, %250 : vector<2x16xf32>
    %252 = vector.broadcast %6 : f32 to vector<2x16xf32>
    %253 = arith.mulf %252, %124 : vector<2x16xf32>
    %cst_43 = arith.constant 0.000000e+00 : f32
    %254 = vector.broadcast %cst_43 : f32 to vector<2x16xf32>
    %255 = arith.addf %254, %253 : vector<2x16xf32>
    %256 = vector.broadcast %7 : f32 to vector<2x16xf32>
    %257 = arith.mulf %256, %127 : vector<2x16xf32>
    %258 = arith.addf %255, %257 : vector<2x16xf32>
    %259 = vector.broadcast %8 : f32 to vector<2x16xf32>
    %260 = arith.mulf %259, %130 : vector<2x16xf32>
    %261 = arith.addf %258, %260 : vector<2x16xf32>
    %262 = vector.broadcast %14 : f32 to vector<2x16xf32>
    %263 = arith.addf %261, %262 : vector<2x16xf32>
    %cst_44 = arith.constant 0.000000e+00 : f32
    %264 = vector.broadcast %cst_44 : f32 to vector<2x16xf32>
    %265 = arith.maximumf %263, %264 : vector<2x16xf32>
    %266 = vector.broadcast %6 : f32 to vector<2x16xf32>
    %267 = arith.mulf %266, %127 : vector<2x16xf32>
    %cst_45 = arith.constant 0.000000e+00 : f32
    %268 = vector.broadcast %cst_45 : f32 to vector<2x16xf32>
    %269 = arith.addf %268, %267 : vector<2x16xf32>
    %270 = vector.broadcast %7 : f32 to vector<2x16xf32>
    %271 = arith.mulf %270, %130 : vector<2x16xf32>
    %272 = arith.addf %269, %271 : vector<2x16xf32>
    %273 = vector.broadcast %8 : f32 to vector<2x16xf32>
    %274 = arith.mulf %273, %133 : vector<2x16xf32>
    %275 = arith.addf %272, %274 : vector<2x16xf32>
    %276 = vector.broadcast %14 : f32 to vector<2x16xf32>
    %277 = arith.addf %275, %276 : vector<2x16xf32>
    %cst_46 = arith.constant 0.000000e+00 : f32
    %278 = vector.broadcast %cst_46 : f32 to vector<2x16xf32>
    %279 = arith.maximumf %277, %278 : vector<2x16xf32>
    %280 = vector.broadcast %6 : f32 to vector<2x16xf32>
    %281 = arith.mulf %280, %130 : vector<2x16xf32>
    %cst_47 = arith.constant 0.000000e+00 : f32
    %282 = vector.broadcast %cst_47 : f32 to vector<2x16xf32>
    %283 = arith.addf %282, %281 : vector<2x16xf32>
    %284 = vector.broadcast %7 : f32 to vector<2x16xf32>
    %285 = arith.mulf %284, %133 : vector<2x16xf32>
    %286 = arith.addf %283, %285 : vector<2x16xf32>
    %287 = vector.broadcast %8 : f32 to vector<2x16xf32>
    %288 = arith.mulf %287, %136 : vector<2x16xf32>
    %289 = arith.addf %286, %288 : vector<2x16xf32>
    %290 = vector.broadcast %14 : f32 to vector<2x16xf32>
    %291 = arith.addf %289, %290 : vector<2x16xf32>
    %cst_48 = arith.constant 0.000000e+00 : f32
    %292 = vector.broadcast %cst_48 : f32 to vector<2x16xf32>
    %293 = arith.maximumf %291, %292 : vector<2x16xf32>
    %294 = vector.broadcast %6 : f32 to vector<2x16xf32>
    %295 = arith.mulf %294, %133 : vector<2x16xf32>
    %cst_49 = arith.constant 0.000000e+00 : f32
    %296 = vector.broadcast %cst_49 : f32 to vector<2x16xf32>
    %297 = arith.addf %296, %295 : vector<2x16xf32>
    %298 = vector.broadcast %7 : f32 to vector<2x16xf32>
    %299 = arith.mulf %298, %136 : vector<2x16xf32>
    %300 = arith.addf %297, %299 : vector<2x16xf32>
    %301 = vector.broadcast %8 : f32 to vector<2x16xf32>
    %302 = arith.mulf %301, %139 : vector<2x16xf32>
    %303 = arith.addf %300, %302 : vector<2x16xf32>
    %304 = vector.broadcast %14 : f32 to vector<2x16xf32>
    %305 = arith.addf %303, %304 : vector<2x16xf32>
    %cst_50 = arith.constant 0.000000e+00 : f32
    %306 = vector.broadcast %cst_50 : f32 to vector<2x16xf32>
    %307 = arith.maximumf %305, %306 : vector<2x16xf32>
    %308 = vector.broadcast %9 : f32 to vector<2x16xf32>
    %309 = arith.mulf %308, %124 : vector<2x16xf32>
    %cst_51 = arith.constant 0.000000e+00 : f32
    %310 = vector.broadcast %cst_51 : f32 to vector<2x16xf32>
    %311 = arith.addf %310, %309 : vector<2x16xf32>
    %312 = vector.broadcast %10 : f32 to vector<2x16xf32>
    %313 = arith.mulf %312, %127 : vector<2x16xf32>
    %314 = arith.addf %311, %313 : vector<2x16xf32>
    %315 = vector.broadcast %11 : f32 to vector<2x16xf32>
    %316 = arith.mulf %315, %130 : vector<2x16xf32>
    %317 = arith.addf %314, %316 : vector<2x16xf32>
    %318 = vector.broadcast %15 : f32 to vector<2x16xf32>
    %319 = arith.addf %317, %318 : vector<2x16xf32>
    %cst_52 = arith.constant 0.000000e+00 : f32
    %320 = vector.broadcast %cst_52 : f32 to vector<2x16xf32>
    %321 = arith.maximumf %319, %320 : vector<2x16xf32>
    %322 = vector.broadcast %9 : f32 to vector<2x16xf32>
    %323 = arith.mulf %322, %127 : vector<2x16xf32>
    %cst_53 = arith.constant 0.000000e+00 : f32
    %324 = vector.broadcast %cst_53 : f32 to vector<2x16xf32>
    %325 = arith.addf %324, %323 : vector<2x16xf32>
    %326 = vector.broadcast %10 : f32 to vector<2x16xf32>
    %327 = arith.mulf %326, %130 : vector<2x16xf32>
    %328 = arith.addf %325, %327 : vector<2x16xf32>
    %329 = vector.broadcast %11 : f32 to vector<2x16xf32>
    %330 = arith.mulf %329, %133 : vector<2x16xf32>
    %331 = arith.addf %328, %330 : vector<2x16xf32>
    %332 = vector.broadcast %15 : f32 to vector<2x16xf32>
    %333 = arith.addf %331, %332 : vector<2x16xf32>
    %cst_54 = arith.constant 0.000000e+00 : f32
    %334 = vector.broadcast %cst_54 : f32 to vector<2x16xf32>
    %335 = arith.maximumf %333, %334 : vector<2x16xf32>
    %336 = vector.broadcast %9 : f32 to vector<2x16xf32>
    %337 = arith.mulf %336, %130 : vector<2x16xf32>
    %cst_55 = arith.constant 0.000000e+00 : f32
    %338 = vector.broadcast %cst_55 : f32 to vector<2x16xf32>
    %339 = arith.addf %338, %337 : vector<2x16xf32>
    %340 = vector.broadcast %10 : f32 to vector<2x16xf32>
    %341 = arith.mulf %340, %133 : vector<2x16xf32>
    %342 = arith.addf %339, %341 : vector<2x16xf32>
    %343 = vector.broadcast %11 : f32 to vector<2x16xf32>
    %344 = arith.mulf %343, %136 : vector<2x16xf32>
    %345 = arith.addf %342, %344 : vector<2x16xf32>
    %346 = vector.broadcast %15 : f32 to vector<2x16xf32>
    %347 = arith.addf %345, %346 : vector<2x16xf32>
    %cst_56 = arith.constant 0.000000e+00 : f32
    %348 = vector.broadcast %cst_56 : f32 to vector<2x16xf32>
    %349 = arith.maximumf %347, %348 : vector<2x16xf32>
    %350 = vector.broadcast %9 : f32 to vector<2x16xf32>
    %351 = arith.mulf %350, %133 : vector<2x16xf32>
    %cst_57 = arith.constant 0.000000e+00 : f32
    %352 = vector.broadcast %cst_57 : f32 to vector<2x16xf32>
    %353 = arith.addf %352, %351 : vector<2x16xf32>
    %354 = vector.broadcast %10 : f32 to vector<2x16xf32>
    %355 = arith.mulf %354, %136 : vector<2x16xf32>
    %356 = arith.addf %353, %355 : vector<2x16xf32>
    %357 = vector.broadcast %11 : f32 to vector<2x16xf32>
    %358 = arith.mulf %357, %139 : vector<2x16xf32>
    %359 = arith.addf %356, %358 : vector<2x16xf32>
    %360 = vector.broadcast %15 : f32 to vector<2x16xf32>
    %361 = arith.addf %359, %360 : vector<2x16xf32>
    %cst_58 = arith.constant 0.000000e+00 : f32
    %362 = vector.broadcast %cst_58 : f32 to vector<2x16xf32>
    %363 = arith.maximumf %361, %362 : vector<2x16xf32>
    %364 = vector.extract_strided_slice %153 {offsets = [0, 0], sizes = [2, 15], strides = [1, 1]} : vector<2x16xf32> to vector<2x15xf32>
    %365 = vector.extract_strided_slice %167 {offsets = [0, 0], sizes = [2, 15], strides = [1, 1]} : vector<2x16xf32> to vector<2x15xf32>
    %366 = vector.extract_strided_slice %181 {offsets = [0, 0], sizes = [2, 15], strides = [1, 1]} : vector<2x16xf32> to vector<2x15xf32>
    %367 = vector.extract_strided_slice %195 {offsets = [0, 0], sizes = [2, 15], strides = [1, 1]} : vector<2x16xf32> to vector<2x15xf32>
    %368 = vector.extract_strided_slice %153 {offsets = [0, 1], sizes = [2, 15], strides = [1, 1]} : vector<2x16xf32> to vector<2x15xf32>
    %369 = vector.extract_strided_slice %167 {offsets = [0, 1], sizes = [2, 15], strides = [1, 1]} : vector<2x16xf32> to vector<2x15xf32>
    %370 = vector.extract_strided_slice %209 {offsets = [0, 0], sizes = [2, 15], strides = [1, 1]} : vector<2x16xf32> to vector<2x15xf32>
    %371 = vector.extract_strided_slice %223 {offsets = [0, 0], sizes = [2, 15], strides = [1, 1]} : vector<2x16xf32> to vector<2x15xf32>
    %372 = vector.extract_strided_slice %237 {offsets = [0, 0], sizes = [2, 15], strides = [1, 1]} : vector<2x16xf32> to vector<2x15xf32>
    %373 = vector.extract_strided_slice %251 {offsets = [0, 0], sizes = [2, 15], strides = [1, 1]} : vector<2x16xf32> to vector<2x15xf32>
    %374 = vector.extract_strided_slice %209 {offsets = [0, 1], sizes = [2, 15], strides = [1, 1]} : vector<2x16xf32> to vector<2x15xf32>
    %375 = vector.extract_strided_slice %223 {offsets = [0, 1], sizes = [2, 15], strides = [1, 1]} : vector<2x16xf32> to vector<2x15xf32>
    %376 = vector.extract_strided_slice %265 {offsets = [0, 0], sizes = [2, 15], strides = [1, 1]} : vector<2x16xf32> to vector<2x15xf32>
    %377 = vector.extract_strided_slice %279 {offsets = [0, 0], sizes = [2, 15], strides = [1, 1]} : vector<2x16xf32> to vector<2x15xf32>
    %378 = vector.extract_strided_slice %293 {offsets = [0, 0], sizes = [2, 15], strides = [1, 1]} : vector<2x16xf32> to vector<2x15xf32>
    %379 = vector.extract_strided_slice %307 {offsets = [0, 0], sizes = [2, 15], strides = [1, 1]} : vector<2x16xf32> to vector<2x15xf32>
    %380 = vector.extract_strided_slice %265 {offsets = [0, 1], sizes = [2, 15], strides = [1, 1]} : vector<2x16xf32> to vector<2x15xf32>
    %381 = vector.extract_strided_slice %279 {offsets = [0, 1], sizes = [2, 15], strides = [1, 1]} : vector<2x16xf32> to vector<2x15xf32>
    %382 = vector.extract_strided_slice %321 {offsets = [0, 0], sizes = [2, 15], strides = [1, 1]} : vector<2x16xf32> to vector<2x15xf32>
    %383 = vector.extract_strided_slice %335 {offsets = [0, 0], sizes = [2, 15], strides = [1, 1]} : vector<2x16xf32> to vector<2x15xf32>
    %384 = vector.extract_strided_slice %349 {offsets = [0, 0], sizes = [2, 15], strides = [1, 1]} : vector<2x16xf32> to vector<2x15xf32>
    %385 = vector.extract_strided_slice %363 {offsets = [0, 0], sizes = [2, 15], strides = [1, 1]} : vector<2x16xf32> to vector<2x15xf32>
    %386 = vector.extract_strided_slice %321 {offsets = [0, 1], sizes = [2, 15], strides = [1, 1]} : vector<2x16xf32> to vector<2x15xf32>
    %387 = vector.extract_strided_slice %335 {offsets = [0, 1], sizes = [2, 15], strides = [1, 1]} : vector<2x16xf32> to vector<2x15xf32>
    %388 = vector.broadcast %16 : f32 to vector<2x15xf32>
    %389 = arith.mulf %388, %364 : vector<2x15xf32>
    %cst_59 = arith.constant 0.000000e+00 : f32
    %390 = vector.broadcast %cst_59 : f32 to vector<2x15xf32>
    %391 = arith.addf %390, %389 : vector<2x15xf32>
    %392 = vector.broadcast %17 : f32 to vector<2x15xf32>
    %393 = arith.mulf %392, %365 : vector<2x15xf32>
    %394 = arith.addf %391, %393 : vector<2x15xf32>
    %395 = vector.broadcast %18 : f32 to vector<2x15xf32>
    %396 = arith.mulf %395, %366 : vector<2x15xf32>
    %397 = arith.addf %394, %396 : vector<2x15xf32>
    %398 = vector.broadcast %19 : f32 to vector<2x15xf32>
    %399 = arith.mulf %398, %370 : vector<2x15xf32>
    %400 = arith.addf %397, %399 : vector<2x15xf32>
    %401 = vector.broadcast %20 : f32 to vector<2x15xf32>
    %402 = arith.mulf %401, %371 : vector<2x15xf32>
    %403 = arith.addf %400, %402 : vector<2x15xf32>
    %404 = vector.broadcast %21 : f32 to vector<2x15xf32>
    %405 = arith.mulf %404, %372 : vector<2x15xf32>
    %406 = arith.addf %403, %405 : vector<2x15xf32>
    %407 = vector.broadcast %22 : f32 to vector<2x15xf32>
    %408 = arith.mulf %407, %376 : vector<2x15xf32>
    %409 = arith.addf %406, %408 : vector<2x15xf32>
    %410 = vector.broadcast %23 : f32 to vector<2x15xf32>
    %411 = arith.mulf %410, %377 : vector<2x15xf32>
    %412 = arith.addf %409, %411 : vector<2x15xf32>
    %413 = vector.broadcast %24 : f32 to vector<2x15xf32>
    %414 = arith.mulf %413, %378 : vector<2x15xf32>
    %415 = arith.addf %412, %414 : vector<2x15xf32>
    %416 = vector.broadcast %25 : f32 to vector<2x15xf32>
    %417 = arith.mulf %416, %382 : vector<2x15xf32>
    %418 = arith.addf %415, %417 : vector<2x15xf32>
    %419 = vector.broadcast %26 : f32 to vector<2x15xf32>
    %420 = arith.mulf %419, %383 : vector<2x15xf32>
    %421 = arith.addf %418, %420 : vector<2x15xf32>
    %422 = vector.broadcast %27 : f32 to vector<2x15xf32>
    %423 = arith.mulf %422, %384 : vector<2x15xf32>
    %424 = arith.addf %421, %423 : vector<2x15xf32>
    %425 = vector.broadcast %112 : f32 to vector<2x15xf32>
    %426 = arith.addf %424, %425 : vector<2x15xf32>
    %cst_60 = arith.constant 0.000000e+00 : f32
    %427 = vector.broadcast %cst_60 : f32 to vector<2x15xf32>
    %428 = arith.maximumf %426, %427 : vector<2x15xf32>
    %429 = vector.broadcast %16 : f32 to vector<2x15xf32>
    %430 = arith.mulf %429, %365 : vector<2x15xf32>
    %cst_61 = arith.constant 0.000000e+00 : f32
    %431 = vector.broadcast %cst_61 : f32 to vector<2x15xf32>
    %432 = arith.addf %431, %430 : vector<2x15xf32>
    %433 = vector.broadcast %17 : f32 to vector<2x15xf32>
    %434 = arith.mulf %433, %366 : vector<2x15xf32>
    %435 = arith.addf %432, %434 : vector<2x15xf32>
    %436 = vector.broadcast %18 : f32 to vector<2x15xf32>
    %437 = arith.mulf %436, %367 : vector<2x15xf32>
    %438 = arith.addf %435, %437 : vector<2x15xf32>
    %439 = vector.broadcast %19 : f32 to vector<2x15xf32>
    %440 = arith.mulf %439, %371 : vector<2x15xf32>
    %441 = arith.addf %438, %440 : vector<2x15xf32>
    %442 = vector.broadcast %20 : f32 to vector<2x15xf32>
    %443 = arith.mulf %442, %372 : vector<2x15xf32>
    %444 = arith.addf %441, %443 : vector<2x15xf32>
    %445 = vector.broadcast %21 : f32 to vector<2x15xf32>
    %446 = arith.mulf %445, %373 : vector<2x15xf32>
    %447 = arith.addf %444, %446 : vector<2x15xf32>
    %448 = vector.broadcast %22 : f32 to vector<2x15xf32>
    %449 = arith.mulf %448, %377 : vector<2x15xf32>
    %450 = arith.addf %447, %449 : vector<2x15xf32>
    %451 = vector.broadcast %23 : f32 to vector<2x15xf32>
    %452 = arith.mulf %451, %378 : vector<2x15xf32>
    %453 = arith.addf %450, %452 : vector<2x15xf32>
    %454 = vector.broadcast %24 : f32 to vector<2x15xf32>
    %455 = arith.mulf %454, %379 : vector<2x15xf32>
    %456 = arith.addf %453, %455 : vector<2x15xf32>
    %457 = vector.broadcast %25 : f32 to vector<2x15xf32>
    %458 = arith.mulf %457, %383 : vector<2x15xf32>
    %459 = arith.addf %456, %458 : vector<2x15xf32>
    %460 = vector.broadcast %26 : f32 to vector<2x15xf32>
    %461 = arith.mulf %460, %384 : vector<2x15xf32>
    %462 = arith.addf %459, %461 : vector<2x15xf32>
    %463 = vector.broadcast %27 : f32 to vector<2x15xf32>
    %464 = arith.mulf %463, %385 : vector<2x15xf32>
    %465 = arith.addf %462, %464 : vector<2x15xf32>
    %466 = vector.broadcast %112 : f32 to vector<2x15xf32>
    %467 = arith.addf %465, %466 : vector<2x15xf32>
    %cst_62 = arith.constant 0.000000e+00 : f32
    %468 = vector.broadcast %cst_62 : f32 to vector<2x15xf32>
    %469 = arith.maximumf %467, %468 : vector<2x15xf32>
    %470 = arith.maximumf %428, %469 : vector<2x15xf32>
    %471 = vector.broadcast %16 : f32 to vector<2x15xf32>
    %472 = arith.mulf %471, %366 : vector<2x15xf32>
    %cst_63 = arith.constant 0.000000e+00 : f32
    %473 = vector.broadcast %cst_63 : f32 to vector<2x15xf32>
    %474 = arith.addf %473, %472 : vector<2x15xf32>
    %475 = vector.broadcast %17 : f32 to vector<2x15xf32>
    %476 = arith.mulf %475, %367 : vector<2x15xf32>
    %477 = arith.addf %474, %476 : vector<2x15xf32>
    %478 = vector.broadcast %18 : f32 to vector<2x15xf32>
    %479 = arith.mulf %478, %368 : vector<2x15xf32>
    %480 = arith.addf %477, %479 : vector<2x15xf32>
    %481 = vector.broadcast %19 : f32 to vector<2x15xf32>
    %482 = arith.mulf %481, %372 : vector<2x15xf32>
    %483 = arith.addf %480, %482 : vector<2x15xf32>
    %484 = vector.broadcast %20 : f32 to vector<2x15xf32>
    %485 = arith.mulf %484, %373 : vector<2x15xf32>
    %486 = arith.addf %483, %485 : vector<2x15xf32>
    %487 = vector.broadcast %21 : f32 to vector<2x15xf32>
    %488 = arith.mulf %487, %374 : vector<2x15xf32>
    %489 = arith.addf %486, %488 : vector<2x15xf32>
    %490 = vector.broadcast %22 : f32 to vector<2x15xf32>
    %491 = arith.mulf %490, %378 : vector<2x15xf32>
    %492 = arith.addf %489, %491 : vector<2x15xf32>
    %493 = vector.broadcast %23 : f32 to vector<2x15xf32>
    %494 = arith.mulf %493, %379 : vector<2x15xf32>
    %495 = arith.addf %492, %494 : vector<2x15xf32>
    %496 = vector.broadcast %24 : f32 to vector<2x15xf32>
    %497 = arith.mulf %496, %380 : vector<2x15xf32>
    %498 = arith.addf %495, %497 : vector<2x15xf32>
    %499 = vector.broadcast %25 : f32 to vector<2x15xf32>
    %500 = arith.mulf %499, %384 : vector<2x15xf32>
    %501 = arith.addf %498, %500 : vector<2x15xf32>
    %502 = vector.broadcast %26 : f32 to vector<2x15xf32>
    %503 = arith.mulf %502, %385 : vector<2x15xf32>
    %504 = arith.addf %501, %503 : vector<2x15xf32>
    %505 = vector.broadcast %27 : f32 to vector<2x15xf32>
    %506 = arith.mulf %505, %386 : vector<2x15xf32>
    %507 = arith.addf %504, %506 : vector<2x15xf32>
    %508 = vector.broadcast %112 : f32 to vector<2x15xf32>
    %509 = arith.addf %507, %508 : vector<2x15xf32>
    %cst_64 = arith.constant 0.000000e+00 : f32
    %510 = vector.broadcast %cst_64 : f32 to vector<2x15xf32>
    %511 = arith.maximumf %509, %510 : vector<2x15xf32>
    %512 = arith.maximumf %470, %511 : vector<2x15xf32>
    %513 = vector.broadcast %16 : f32 to vector<2x15xf32>
    %514 = arith.mulf %513, %367 : vector<2x15xf32>
    %cst_65 = arith.constant 0.000000e+00 : f32
    %515 = vector.broadcast %cst_65 : f32 to vector<2x15xf32>
    %516 = arith.addf %515, %514 : vector<2x15xf32>
    %517 = vector.broadcast %17 : f32 to vector<2x15xf32>
    %518 = arith.mulf %517, %368 : vector<2x15xf32>
    %519 = arith.addf %516, %518 : vector<2x15xf32>
    %520 = vector.broadcast %18 : f32 to vector<2x15xf32>
    %521 = arith.mulf %520, %369 : vector<2x15xf32>
    %522 = arith.addf %519, %521 : vector<2x15xf32>
    %523 = vector.broadcast %19 : f32 to vector<2x15xf32>
    %524 = arith.mulf %523, %373 : vector<2x15xf32>
    %525 = arith.addf %522, %524 : vector<2x15xf32>
    %526 = vector.broadcast %20 : f32 to vector<2x15xf32>
    %527 = arith.mulf %526, %374 : vector<2x15xf32>
    %528 = arith.addf %525, %527 : vector<2x15xf32>
    %529 = vector.broadcast %21 : f32 to vector<2x15xf32>
    %530 = arith.mulf %529, %375 : vector<2x15xf32>
    %531 = arith.addf %528, %530 : vector<2x15xf32>
    %532 = vector.broadcast %22 : f32 to vector<2x15xf32>
    %533 = arith.mulf %532, %379 : vector<2x15xf32>
    %534 = arith.addf %531, %533 : vector<2x15xf32>
    %535 = vector.broadcast %23 : f32 to vector<2x15xf32>
    %536 = arith.mulf %535, %380 : vector<2x15xf32>
    %537 = arith.addf %534, %536 : vector<2x15xf32>
    %538 = vector.broadcast %24 : f32 to vector<2x15xf32>
    %539 = arith.mulf %538, %381 : vector<2x15xf32>
    %540 = arith.addf %537, %539 : vector<2x15xf32>
    %541 = vector.broadcast %25 : f32 to vector<2x15xf32>
    %542 = arith.mulf %541, %385 : vector<2x15xf32>
    %543 = arith.addf %540, %542 : vector<2x15xf32>
    %544 = vector.broadcast %26 : f32 to vector<2x15xf32>
    %545 = arith.mulf %544, %386 : vector<2x15xf32>
    %546 = arith.addf %543, %545 : vector<2x15xf32>
    %547 = vector.broadcast %27 : f32 to vector<2x15xf32>
    %548 = arith.mulf %547, %387 : vector<2x15xf32>
    %549 = arith.addf %546, %548 : vector<2x15xf32>
    %550 = vector.broadcast %112 : f32 to vector<2x15xf32>
    %551 = arith.addf %549, %550 : vector<2x15xf32>
    %cst_66 = arith.constant 0.000000e+00 : f32
    %552 = vector.broadcast %cst_66 : f32 to vector<2x15xf32>
    %553 = arith.maximumf %551, %552 : vector<2x15xf32>
    %554 = arith.maximumf %512, %553 : vector<2x15xf32>
    %c0_67 = arith.constant 0 : index
    %c0_68 = arith.constant 0 : index
    %555 = vector.load %arg13[%c0_67, %c0_68] : memref<2x120xf32, #tpu.memory_space<vmem>>, vector<2x15xf32>
    tpu.vector_store %arg13[%c0_67, %c0_68], %554 {strides = array<i32>} : memref<2x120xf32, #tpu.memory_space<vmem>>, vector<2x15xf32>,
    %556 = vector.broadcast %28 : f32 to vector<2x15xf32>
    %557 = arith.mulf %556, %364 : vector<2x15xf32>
    %cst_69 = arith.constant 0.000000e+00 : f32
    %558 = vector.broadcast %cst_69 : f32 to vector<2x15xf32>
    %559 = arith.addf %558, %557 : vector<2x15xf32>
    %560 = vector.broadcast %29 : f32 to vector<2x15xf32>
    %561 = arith.mulf %560, %365 : vector<2x15xf32>
    %562 = arith.addf %559, %561 : vector<2x15xf32>
    %563 = vector.broadcast %30 : f32 to vector<2x15xf32>
    %564 = arith.mulf %563, %366 : vector<2x15xf32>
    %565 = arith.addf %562, %564 : vector<2x15xf32>
    %566 = vector.broadcast %31 : f32 to vector<2x15xf32>
    %567 = arith.mulf %566, %370 : vector<2x15xf32>
    %568 = arith.addf %565, %567 : vector<2x15xf32>
    %569 = vector.broadcast %32 : f32 to vector<2x15xf32>
    %570 = arith.mulf %569, %371 : vector<2x15xf32>
    %571 = arith.addf %568, %570 : vector<2x15xf32>
    %572 = vector.broadcast %33 : f32 to vector<2x15xf32>
    %573 = arith.mulf %572, %372 : vector<2x15xf32>
    %574 = arith.addf %571, %573 : vector<2x15xf32>
    %575 = vector.broadcast %34 : f32 to vector<2x15xf32>
    %576 = arith.mulf %575, %376 : vector<2x15xf32>
    %577 = arith.addf %574, %576 : vector<2x15xf32>
    %578 = vector.broadcast %35 : f32 to vector<2x15xf32>
    %579 = arith.mulf %578, %377 : vector<2x15xf32>
    %580 = arith.addf %577, %579 : vector<2x15xf32>
    %581 = vector.broadcast %36 : f32 to vector<2x15xf32>
    %582 = arith.mulf %581, %378 : vector<2x15xf32>
    %583 = arith.addf %580, %582 : vector<2x15xf32>
    %584 = vector.broadcast %37 : f32 to vector<2x15xf32>
    %585 = arith.mulf %584, %382 : vector<2x15xf32>
    %586 = arith.addf %583, %585 : vector<2x15xf32>
    %587 = vector.broadcast %38 : f32 to vector<2x15xf32>
    %588 = arith.mulf %587, %383 : vector<2x15xf32>
    %589 = arith.addf %586, %588 : vector<2x15xf32>
    %590 = vector.broadcast %39 : f32 to vector<2x15xf32>
    %591 = arith.mulf %590, %384 : vector<2x15xf32>
    %592 = arith.addf %589, %591 : vector<2x15xf32>
    %593 = vector.broadcast %113 : f32 to vector<2x15xf32>
    %594 = arith.addf %592, %593 : vector<2x15xf32>
    %cst_70 = arith.constant 0.000000e+00 : f32
    %595 = vector.broadcast %cst_70 : f32 to vector<2x15xf32>
    %596 = arith.maximumf %594, %595 : vector<2x15xf32>
    %597 = vector.broadcast %28 : f32 to vector<2x15xf32>
    %598 = arith.mulf %597, %365 : vector<2x15xf32>
    %cst_71 = arith.constant 0.000000e+00 : f32
    %599 = vector.broadcast %cst_71 : f32 to vector<2x15xf32>
    %600 = arith.addf %599, %598 : vector<2x15xf32>
    %601 = vector.broadcast %29 : f32 to vector<2x15xf32>
    %602 = arith.mulf %601, %366 : vector<2x15xf32>
    %603 = arith.addf %600, %602 : vector<2x15xf32>
    %604 = vector.broadcast %30 : f32 to vector<2x15xf32>
    %605 = arith.mulf %604, %367 : vector<2x15xf32>
    %606 = arith.addf %603, %605 : vector<2x15xf32>
    %607 = vector.broadcast %31 : f32 to vector<2x15xf32>
    %608 = arith.mulf %607, %371 : vector<2x15xf32>
    %609 = arith.addf %606, %608 : vector<2x15xf32>
    %610 = vector.broadcast %32 : f32 to vector<2x15xf32>
    %611 = arith.mulf %610, %372 : vector<2x15xf32>
    %612 = arith.addf %609, %611 : vector<2x15xf32>
    %613 = vector.broadcast %33 : f32 to vector<2x15xf32>
    %614 = arith.mulf %613, %373 : vector<2x15xf32>
    %615 = arith.addf %612, %614 : vector<2x15xf32>
    %616 = vector.broadcast %34 : f32 to vector<2x15xf32>
    %617 = arith.mulf %616, %377 : vector<2x15xf32>
    %618 = arith.addf %615, %617 : vector<2x15xf32>
    %619 = vector.broadcast %35 : f32 to vector<2x15xf32>
    %620 = arith.mulf %619, %378 : vector<2x15xf32>
    %621 = arith.addf %618, %620 : vector<2x15xf32>
    %622 = vector.broadcast %36 : f32 to vector<2x15xf32>
    %623 = arith.mulf %622, %379 : vector<2x15xf32>
    %624 = arith.addf %621, %623 : vector<2x15xf32>
    %625 = vector.broadcast %37 : f32 to vector<2x15xf32>
    %626 = arith.mulf %625, %383 : vector<2x15xf32>
    %627 = arith.addf %624, %626 : vector<2x15xf32>
    %628 = vector.broadcast %38 : f32 to vector<2x15xf32>
    %629 = arith.mulf %628, %384 : vector<2x15xf32>
    %630 = arith.addf %627, %629 : vector<2x15xf32>
    %631 = vector.broadcast %39 : f32 to vector<2x15xf32>
    %632 = arith.mulf %631, %385 : vector<2x15xf32>
    %633 = arith.addf %630, %632 : vector<2x15xf32>
    %634 = vector.broadcast %113 : f32 to vector<2x15xf32>
    %635 = arith.addf %633, %634 : vector<2x15xf32>
    %cst_72 = arith.constant 0.000000e+00 : f32
    %636 = vector.broadcast %cst_72 : f32 to vector<2x15xf32>
    %637 = arith.maximumf %635, %636 : vector<2x15xf32>
    %638 = arith.maximumf %596, %637 : vector<2x15xf32>
    %639 = vector.broadcast %28 : f32 to vector<2x15xf32>
    %640 = arith.mulf %639, %366 : vector<2x15xf32>
    %cst_73 = arith.constant 0.000000e+00 : f32
    %641 = vector.broadcast %cst_73 : f32 to vector<2x15xf32>
    %642 = arith.addf %641, %640 : vector<2x15xf32>
    %643 = vector.broadcast %29 : f32 to vector<2x15xf32>
    %644 = arith.mulf %643, %367 : vector<2x15xf32>
    %645 = arith.addf %642, %644 : vector<2x15xf32>
    %646 = vector.broadcast %30 : f32 to vector<2x15xf32>
    %647 = arith.mulf %646, %368 : vector<2x15xf32>
    %648 = arith.addf %645, %647 : vector<2x15xf32>
    %649 = vector.broadcast %31 : f32 to vector<2x15xf32>
    %650 = arith.mulf %649, %372 : vector<2x15xf32>
    %651 = arith.addf %648, %650 : vector<2x15xf32>
    %652 = vector.broadcast %32 : f32 to vector<2x15xf32>
    %653 = arith.mulf %652, %373 : vector<2x15xf32>
    %654 = arith.addf %651, %653 : vector<2x15xf32>
    %655 = vector.broadcast %33 : f32 to vector<2x15xf32>
    %656 = arith.mulf %655, %374 : vector<2x15xf32>
    %657 = arith.addf %654, %656 : vector<2x15xf32>
    %658 = vector.broadcast %34 : f32 to vector<2x15xf32>
    %659 = arith.mulf %658, %378 : vector<2x15xf32>
    %660 = arith.addf %657, %659 : vector<2x15xf32>
    %661 = vector.broadcast %35 : f32 to vector<2x15xf32>
    %662 = arith.mulf %661, %379 : vector<2x15xf32>
    %663 = arith.addf %660, %662 : vector<2x15xf32>
    %664 = vector.broadcast %36 : f32 to vector<2x15xf32>
    %665 = arith.mulf %664, %380 : vector<2x15xf32>
    %666 = arith.addf %663, %665 : vector<2x15xf32>
    %667 = vector.broadcast %37 : f32 to vector<2x15xf32>
    %668 = arith.mulf %667, %384 : vector<2x15xf32>
    %669 = arith.addf %666, %668 : vector<2x15xf32>
    %670 = vector.broadcast %38 : f32 to vector<2x15xf32>
    %671 = arith.mulf %670, %385 : vector<2x15xf32>
    %672 = arith.addf %669, %671 : vector<2x15xf32>
    %673 = vector.broadcast %39 : f32 to vector<2x15xf32>
    %674 = arith.mulf %673, %386 : vector<2x15xf32>
    %675 = arith.addf %672, %674 : vector<2x15xf32>
    %676 = vector.broadcast %113 : f32 to vector<2x15xf32>
    %677 = arith.addf %675, %676 : vector<2x15xf32>
    %cst_74 = arith.constant 0.000000e+00 : f32
    %678 = vector.broadcast %cst_74 : f32 to vector<2x15xf32>
    %679 = arith.maximumf %677, %678 : vector<2x15xf32>
    %680 = arith.maximumf %638, %679 : vector<2x15xf32>
    %681 = vector.broadcast %28 : f32 to vector<2x15xf32>
    %682 = arith.mulf %681, %367 : vector<2x15xf32>
    %cst_75 = arith.constant 0.000000e+00 : f32
    %683 = vector.broadcast %cst_75 : f32 to vector<2x15xf32>
    %684 = arith.addf %683, %682 : vector<2x15xf32>
    %685 = vector.broadcast %29 : f32 to vector<2x15xf32>
    %686 = arith.mulf %685, %368 : vector<2x15xf32>
    %687 = arith.addf %684, %686 : vector<2x15xf32>
    %688 = vector.broadcast %30 : f32 to vector<2x15xf32>
    %689 = arith.mulf %688, %369 : vector<2x15xf32>
    %690 = arith.addf %687, %689 : vector<2x15xf32>
    %691 = vector.broadcast %31 : f32 to vector<2x15xf32>
    %692 = arith.mulf %691, %373 : vector<2x15xf32>
    %693 = arith.addf %690, %692 : vector<2x15xf32>
    %694 = vector.broadcast %32 : f32 to vector<2x15xf32>
    %695 = arith.mulf %694, %374 : vector<2x15xf32>
    %696 = arith.addf %693, %695 : vector<2x15xf32>
    %697 = vector.broadcast %33 : f32 to vector<2x15xf32>
    %698 = arith.mulf %697, %375 : vector<2x15xf32>
    %699 = arith.addf %696, %698 : vector<2x15xf32>
    %700 = vector.broadcast %34 : f32 to vector<2x15xf32>
    %701 = arith.mulf %700, %379 : vector<2x15xf32>
    %702 = arith.addf %699, %701 : vector<2x15xf32>
    %703 = vector.broadcast %35 : f32 to vector<2x15xf32>
    %704 = arith.mulf %703, %380 : vector<2x15xf32>
    %705 = arith.addf %702, %704 : vector<2x15xf32>
    %706 = vector.broadcast %36 : f32 to vector<2x15xf32>
    %707 = arith.mulf %706, %381 : vector<2x15xf32>
    %708 = arith.addf %705, %707 : vector<2x15xf32>
    %709 = vector.broadcast %37 : f32 to vector<2x15xf32>
    %710 = arith.mulf %709, %385 : vector<2x15xf32>
    %711 = arith.addf %708, %710 : vector<2x15xf32>
    %712 = vector.broadcast %38 : f32 to vector<2x15xf32>
    %713 = arith.mulf %712, %386 : vector<2x15xf32>
    %714 = arith.addf %711, %713 : vector<2x15xf32>
    %715 = vector.broadcast %39 : f32 to vector<2x15xf32>
    %716 = arith.mulf %715, %387 : vector<2x15xf32>
    %717 = arith.addf %714, %716 : vector<2x15xf32>
    %718 = vector.broadcast %113 : f32 to vector<2x15xf32>
    %719 = arith.addf %717, %718 : vector<2x15xf32>
    %cst_76 = arith.constant 0.000000e+00 : f32
    %720 = vector.broadcast %cst_76 : f32 to vector<2x15xf32>
    %721 = arith.maximumf %719, %720 : vector<2x15xf32>
    %722 = arith.maximumf %680, %721 : vector<2x15xf32>
    %c0_77 = arith.constant 0 : index
    %c15_78 = arith.constant 15 : index
    %723 = vector.load %arg13[%c0_77, %c15_78] : memref<2x120xf32, #tpu.memory_space<vmem>>, vector<2x15xf32>
    tpu.vector_store %arg13[%c0_77, %c15_78], %722 {strides = array<i32>} : memref<2x120xf32, #tpu.memory_space<vmem>>, vector<2x15xf32>,
    %724 = vector.broadcast %40 : f32 to vector<2x15xf32>
    %725 = arith.mulf %724, %364 : vector<2x15xf32>
    %cst_79 = arith.constant 0.000000e+00 : f32
    %726 = vector.broadcast %cst_79 : f32 to vector<2x15xf32>
    %727 = arith.addf %726, %725 : vector<2x15xf32>
    %728 = vector.broadcast %41 : f32 to vector<2x15xf32>
    %729 = arith.mulf %728, %365 : vector<2x15xf32>
    %730 = arith.addf %727, %729 : vector<2x15xf32>
    %731 = vector.broadcast %42 : f32 to vector<2x15xf32>
    %732 = arith.mulf %731, %366 : vector<2x15xf32>
    %733 = arith.addf %730, %732 : vector<2x15xf32>
    %734 = vector.broadcast %43 : f32 to vector<2x15xf32>
    %735 = arith.mulf %734, %370 : vector<2x15xf32>
    %736 = arith.addf %733, %735 : vector<2x15xf32>
    %737 = vector.broadcast %44 : f32 to vector<2x15xf32>
    %738 = arith.mulf %737, %371 : vector<2x15xf32>
    %739 = arith.addf %736, %738 : vector<2x15xf32>
    %740 = vector.broadcast %45 : f32 to vector<2x15xf32>
    %741 = arith.mulf %740, %372 : vector<2x15xf32>
    %742 = arith.addf %739, %741 : vector<2x15xf32>
    %743 = vector.broadcast %46 : f32 to vector<2x15xf32>
    %744 = arith.mulf %743, %376 : vector<2x15xf32>
    %745 = arith.addf %742, %744 : vector<2x15xf32>
    %746 = vector.broadcast %47 : f32 to vector<2x15xf32>
    %747 = arith.mulf %746, %377 : vector<2x15xf32>
    %748 = arith.addf %745, %747 : vector<2x15xf32>
    %749 = vector.broadcast %48 : f32 to vector<2x15xf32>
    %750 = arith.mulf %749, %378 : vector<2x15xf32>
    %751 = arith.addf %748, %750 : vector<2x15xf32>
    %752 = vector.broadcast %49 : f32 to vector<2x15xf32>
    %753 = arith.mulf %752, %382 : vector<2x15xf32>
    %754 = arith.addf %751, %753 : vector<2x15xf32>
    %755 = vector.broadcast %50 : f32 to vector<2x15xf32>
    %756 = arith.mulf %755, %383 : vector<2x15xf32>
    %757 = arith.addf %754, %756 : vector<2x15xf32>
    %758 = vector.broadcast %51 : f32 to vector<2x15xf32>
    %759 = arith.mulf %758, %384 : vector<2x15xf32>
    %760 = arith.addf %757, %759 : vector<2x15xf32>
    %761 = vector.broadcast %114 : f32 to vector<2x15xf32>
    %762 = arith.addf %760, %761 : vector<2x15xf32>
    %cst_80 = arith.constant 0.000000e+00 : f32
    %763 = vector.broadcast %cst_80 : f32 to vector<2x15xf32>
    %764 = arith.maximumf %762, %763 : vector<2x15xf32>
    %765 = vector.broadcast %40 : f32 to vector<2x15xf32>
    %766 = arith.mulf %765, %365 : vector<2x15xf32>
    %cst_81 = arith.constant 0.000000e+00 : f32
    %767 = vector.broadcast %cst_81 : f32 to vector<2x15xf32>
    %768 = arith.addf %767, %766 : vector<2x15xf32>
    %769 = vector.broadcast %41 : f32 to vector<2x15xf32>
    %770 = arith.mulf %769, %366 : vector<2x15xf32>
    %771 = arith.addf %768, %770 : vector<2x15xf32>
    %772 = vector.broadcast %42 : f32 to vector<2x15xf32>
    %773 = arith.mulf %772, %367 : vector<2x15xf32>
    %774 = arith.addf %771, %773 : vector<2x15xf32>
    %775 = vector.broadcast %43 : f32 to vector<2x15xf32>
    %776 = arith.mulf %775, %371 : vector<2x15xf32>
    %777 = arith.addf %774, %776 : vector<2x15xf32>
    %778 = vector.broadcast %44 : f32 to vector<2x15xf32>
    %779 = arith.mulf %778, %372 : vector<2x15xf32>
    %780 = arith.addf %777, %779 : vector<2x15xf32>
    %781 = vector.broadcast %45 : f32 to vector<2x15xf32>
    %782 = arith.mulf %781, %373 : vector<2x15xf32>
    %783 = arith.addf %780, %782 : vector<2x15xf32>
    %784 = vector.broadcast %46 : f32 to vector<2x15xf32>
    %785 = arith.mulf %784, %377 : vector<2x15xf32>
    %786 = arith.addf %783, %785 : vector<2x15xf32>
    %787 = vector.broadcast %47 : f32 to vector<2x15xf32>
    %788 = arith.mulf %787, %378 : vector<2x15xf32>
    %789 = arith.addf %786, %788 : vector<2x15xf32>
    %790 = vector.broadcast %48 : f32 to vector<2x15xf32>
    %791 = arith.mulf %790, %379 : vector<2x15xf32>
    %792 = arith.addf %789, %791 : vector<2x15xf32>
    %793 = vector.broadcast %49 : f32 to vector<2x15xf32>
    %794 = arith.mulf %793, %383 : vector<2x15xf32>
    %795 = arith.addf %792, %794 : vector<2x15xf32>
    %796 = vector.broadcast %50 : f32 to vector<2x15xf32>
    %797 = arith.mulf %796, %384 : vector<2x15xf32>
    %798 = arith.addf %795, %797 : vector<2x15xf32>
    %799 = vector.broadcast %51 : f32 to vector<2x15xf32>
    %800 = arith.mulf %799, %385 : vector<2x15xf32>
    %801 = arith.addf %798, %800 : vector<2x15xf32>
    %802 = vector.broadcast %114 : f32 to vector<2x15xf32>
    %803 = arith.addf %801, %802 : vector<2x15xf32>
    %cst_82 = arith.constant 0.000000e+00 : f32
    %804 = vector.broadcast %cst_82 : f32 to vector<2x15xf32>
    %805 = arith.maximumf %803, %804 : vector<2x15xf32>
    %806 = arith.maximumf %764, %805 : vector<2x15xf32>
    %807 = vector.broadcast %40 : f32 to vector<2x15xf32>
    %808 = arith.mulf %807, %366 : vector<2x15xf32>
    %cst_83 = arith.constant 0.000000e+00 : f32
    %809 = vector.broadcast %cst_83 : f32 to vector<2x15xf32>
    %810 = arith.addf %809, %808 : vector<2x15xf32>
    %811 = vector.broadcast %41 : f32 to vector<2x15xf32>
    %812 = arith.mulf %811, %367 : vector<2x15xf32>
    %813 = arith.addf %810, %812 : vector<2x15xf32>
    %814 = vector.broadcast %42 : f32 to vector<2x15xf32>
    %815 = arith.mulf %814, %368 : vector<2x15xf32>
    %816 = arith.addf %813, %815 : vector<2x15xf32>
    %817 = vector.broadcast %43 : f32 to vector<2x15xf32>
    %818 = arith.mulf %817, %372 : vector<2x15xf32>
    %819 = arith.addf %816, %818 : vector<2x15xf32>
    %820 = vector.broadcast %44 : f32 to vector<2x15xf32>
    %821 = arith.mulf %820, %373 : vector<2x15xf32>
    %822 = arith.addf %819, %821 : vector<2x15xf32>
    %823 = vector.broadcast %45 : f32 to vector<2x15xf32>
    %824 = arith.mulf %823, %374 : vector<2x15xf32>
    %825 = arith.addf %822, %824 : vector<2x15xf32>
    %826 = vector.broadcast %46 : f32 to vector<2x15xf32>
    %827 = arith.mulf %826, %378 : vector<2x15xf32>
    %828 = arith.addf %825, %827 : vector<2x15xf32>
    %829 = vector.broadcast %47 : f32 to vector<2x15xf32>
    %830 = arith.mulf %829, %379 : vector<2x15xf32>
    %831 = arith.addf %828, %830 : vector<2x15xf32>
    %832 = vector.broadcast %48 : f32 to vector<2x15xf32>
    %833 = arith.mulf %832, %380 : vector<2x15xf32>
    %834 = arith.addf %831, %833 : vector<2x15xf32>
    %835 = vector.broadcast %49 : f32 to vector<2x15xf32>
    %836 = arith.mulf %835, %384 : vector<2x15xf32>
    %837 = arith.addf %834, %836 : vector<2x15xf32>
    %838 = vector.broadcast %50 : f32 to vector<2x15xf32>
    %839 = arith.mulf %838, %385 : vector<2x15xf32>
    %840 = arith.addf %837, %839 : vector<2x15xf32>
    %841 = vector.broadcast %51 : f32 to vector<2x15xf32>
    %842 = arith.mulf %841, %386 : vector<2x15xf32>
    %843 = arith.addf %840, %842 : vector<2x15xf32>
    %844 = vector.broadcast %114 : f32 to vector<2x15xf32>
    %845 = arith.addf %843, %844 : vector<2x15xf32>
    %cst_84 = arith.constant 0.000000e+00 : f32
    %846 = vector.broadcast %cst_84 : f32 to vector<2x15xf32>
    %847 = arith.maximumf %845, %846 : vector<2x15xf32>
    %848 = arith.maximumf %806, %847 : vector<2x15xf32>
    %849 = vector.broadcast %40 : f32 to vector<2x15xf32>
    %850 = arith.mulf %849, %367 : vector<2x15xf32>
    %cst_85 = arith.constant 0.000000e+00 : f32
    %851 = vector.broadcast %cst_85 : f32 to vector<2x15xf32>
    %852 = arith.addf %851, %850 : vector<2x15xf32>
    %853 = vector.broadcast %41 : f32 to vector<2x15xf32>
    %854 = arith.mulf %853, %368 : vector<2x15xf32>
    %855 = arith.addf %852, %854 : vector<2x15xf32>
    %856 = vector.broadcast %42 : f32 to vector<2x15xf32>
    %857 = arith.mulf %856, %369 : vector<2x15xf32>
    %858 = arith.addf %855, %857 : vector<2x15xf32>
    %859 = vector.broadcast %43 : f32 to vector<2x15xf32>
    %860 = arith.mulf %859, %373 : vector<2x15xf32>
    %861 = arith.addf %858, %860 : vector<2x15xf32>
    %862 = vector.broadcast %44 : f32 to vector<2x15xf32>
    %863 = arith.mulf %862, %374 : vector<2x15xf32>
    %864 = arith.addf %861, %863 : vector<2x15xf32>
    %865 = vector.broadcast %45 : f32 to vector<2x15xf32>
    %866 = arith.mulf %865, %375 : vector<2x15xf32>
    %867 = arith.addf %864, %866 : vector<2x15xf32>
    %868 = vector.broadcast %46 : f32 to vector<2x15xf32>
    %869 = arith.mulf %868, %379 : vector<2x15xf32>
    %870 = arith.addf %867, %869 : vector<2x15xf32>
    %871 = vector.broadcast %47 : f32 to vector<2x15xf32>
    %872 = arith.mulf %871, %380 : vector<2x15xf32>
    %873 = arith.addf %870, %872 : vector<2x15xf32>
    %874 = vector.broadcast %48 : f32 to vector<2x15xf32>
    %875 = arith.mulf %874, %381 : vector<2x15xf32>
    %876 = arith.addf %873, %875 : vector<2x15xf32>
    %877 = vector.broadcast %49 : f32 to vector<2x15xf32>
    %878 = arith.mulf %877, %385 : vector<2x15xf32>
    %879 = arith.addf %876, %878 : vector<2x15xf32>
    %880 = vector.broadcast %50 : f32 to vector<2x15xf32>
    %881 = arith.mulf %880, %386 : vector<2x15xf32>
    %882 = arith.addf %879, %881 : vector<2x15xf32>
    %883 = vector.broadcast %51 : f32 to vector<2x15xf32>
    %884 = arith.mulf %883, %387 : vector<2x15xf32>
    %885 = arith.addf %882, %884 : vector<2x15xf32>
    %886 = vector.broadcast %114 : f32 to vector<2x15xf32>
    %887 = arith.addf %885, %886 : vector<2x15xf32>
    %cst_86 = arith.constant 0.000000e+00 : f32
    %888 = vector.broadcast %cst_86 : f32 to vector<2x15xf32>
    %889 = arith.maximumf %887, %888 : vector<2x15xf32>
    %890 = arith.maximumf %848, %889 : vector<2x15xf32>
    %c0_87 = arith.constant 0 : index
    %c30_88 = arith.constant 30 : index
    %891 = vector.load %arg13[%c0_87, %c30_88] : memref<2x120xf32, #tpu.memory_space<vmem>>, vector<2x15xf32>
    tpu.vector_store %arg13[%c0_87, %c30_88], %890 {strides = array<i32>} : memref<2x120xf32, #tpu.memory_space<vmem>>, vector<2x15xf32>,
    %892 = vector.broadcast %52 : f32 to vector<2x15xf32>
    %893 = arith.mulf %892, %364 : vector<2x15xf32>
    %cst_89 = arith.constant 0.000000e+00 : f32
    %894 = vector.broadcast %cst_89 : f32 to vector<2x15xf32>
    %895 = arith.addf %894, %893 : vector<2x15xf32>
    %896 = vector.broadcast %53 : f32 to vector<2x15xf32>
    %897 = arith.mulf %896, %365 : vector<2x15xf32>
    %898 = arith.addf %895, %897 : vector<2x15xf32>
    %899 = vector.broadcast %54 : f32 to vector<2x15xf32>
    %900 = arith.mulf %899, %366 : vector<2x15xf32>
    %901 = arith.addf %898, %900 : vector<2x15xf32>
    %902 = vector.broadcast %55 : f32 to vector<2x15xf32>
    %903 = arith.mulf %902, %370 : vector<2x15xf32>
    %904 = arith.addf %901, %903 : vector<2x15xf32>
    %905 = vector.broadcast %56 : f32 to vector<2x15xf32>
    %906 = arith.mulf %905, %371 : vector<2x15xf32>
    %907 = arith.addf %904, %906 : vector<2x15xf32>
    %908 = vector.broadcast %57 : f32 to vector<2x15xf32>
    %909 = arith.mulf %908, %372 : vector<2x15xf32>
    %910 = arith.addf %907, %909 : vector<2x15xf32>
    %911 = vector.broadcast %58 : f32 to vector<2x15xf32>
    %912 = arith.mulf %911, %376 : vector<2x15xf32>
    %913 = arith.addf %910, %912 : vector<2x15xf32>
    %914 = vector.broadcast %59 : f32 to vector<2x15xf32>
    %915 = arith.mulf %914, %377 : vector<2x15xf32>
    %916 = arith.addf %913, %915 : vector<2x15xf32>
    %917 = vector.broadcast %60 : f32 to vector<2x15xf32>
    %918 = arith.mulf %917, %378 : vector<2x15xf32>
    %919 = arith.addf %916, %918 : vector<2x15xf32>
    %920 = vector.broadcast %61 : f32 to vector<2x15xf32>
    %921 = arith.mulf %920, %382 : vector<2x15xf32>
    %922 = arith.addf %919, %921 : vector<2x15xf32>
    %923 = vector.broadcast %62 : f32 to vector<2x15xf32>
    %924 = arith.mulf %923, %383 : vector<2x15xf32>
    %925 = arith.addf %922, %924 : vector<2x15xf32>
    %926 = vector.broadcast %63 : f32 to vector<2x15xf32>
    %927 = arith.mulf %926, %384 : vector<2x15xf32>
    %928 = arith.addf %925, %927 : vector<2x15xf32>
    %929 = vector.broadcast %115 : f32 to vector<2x15xf32>
    %930 = arith.addf %928, %929 : vector<2x15xf32>
    %cst_90 = arith.constant 0.000000e+00 : f32
    %931 = vector.broadcast %cst_90 : f32 to vector<2x15xf32>
    %932 = arith.maximumf %930, %931 : vector<2x15xf32>
    %933 = vector.broadcast %52 : f32 to vector<2x15xf32>
    %934 = arith.mulf %933, %365 : vector<2x15xf32>
    %cst_91 = arith.constant 0.000000e+00 : f32
    %935 = vector.broadcast %cst_91 : f32 to vector<2x15xf32>
    %936 = arith.addf %935, %934 : vector<2x15xf32>
    %937 = vector.broadcast %53 : f32 to vector<2x15xf32>
    %938 = arith.mulf %937, %366 : vector<2x15xf32>
    %939 = arith.addf %936, %938 : vector<2x15xf32>
    %940 = vector.broadcast %54 : f32 to vector<2x15xf32>
    %941 = arith.mulf %940, %367 : vector<2x15xf32>
    %942 = arith.addf %939, %941 : vector<2x15xf32>
    %943 = vector.broadcast %55 : f32 to vector<2x15xf32>
    %944 = arith.mulf %943, %371 : vector<2x15xf32>
    %945 = arith.addf %942, %944 : vector<2x15xf32>
    %946 = vector.broadcast %56 : f32 to vector<2x15xf32>
    %947 = arith.mulf %946, %372 : vector<2x15xf32>
    %948 = arith.addf %945, %947 : vector<2x15xf32>
    %949 = vector.broadcast %57 : f32 to vector<2x15xf32>
    %950 = arith.mulf %949, %373 : vector<2x15xf32>
    %951 = arith.addf %948, %950 : vector<2x15xf32>
    %952 = vector.broadcast %58 : f32 to vector<2x15xf32>
    %953 = arith.mulf %952, %377 : vector<2x15xf32>
    %954 = arith.addf %951, %953 : vector<2x15xf32>
    %955 = vector.broadcast %59 : f32 to vector<2x15xf32>
    %956 = arith.mulf %955, %378 : vector<2x15xf32>
    %957 = arith.addf %954, %956 : vector<2x15xf32>
    %958 = vector.broadcast %60 : f32 to vector<2x15xf32>
    %959 = arith.mulf %958, %379 : vector<2x15xf32>
    %960 = arith.addf %957, %959 : vector<2x15xf32>
    %961 = vector.broadcast %61 : f32 to vector<2x15xf32>
    %962 = arith.mulf %961, %383 : vector<2x15xf32>
    %963 = arith.addf %960, %962 : vector<2x15xf32>
    %964 = vector.broadcast %62 : f32 to vector<2x15xf32>
    %965 = arith.mulf %964, %384 : vector<2x15xf32>
    %966 = arith.addf %963, %965 : vector<2x15xf32>
    %967 = vector.broadcast %63 : f32 to vector<2x15xf32>
    %968 = arith.mulf %967, %385 : vector<2x15xf32>
    %969 = arith.addf %966, %968 : vector<2x15xf32>
    %970 = vector.broadcast %115 : f32 to vector<2x15xf32>
    %971 = arith.addf %969, %970 : vector<2x15xf32>
    %cst_92 = arith.constant 0.000000e+00 : f32
    %972 = vector.broadcast %cst_92 : f32 to vector<2x15xf32>
    %973 = arith.maximumf %971, %972 : vector<2x15xf32>
    %974 = arith.maximumf %932, %973 : vector<2x15xf32>
    %975 = vector.broadcast %52 : f32 to vector<2x15xf32>
    %976 = arith.mulf %975, %366 : vector<2x15xf32>
    %cst_93 = arith.constant 0.000000e+00 : f32
    %977 = vector.broadcast %cst_93 : f32 to vector<2x15xf32>
    %978 = arith.addf %977, %976 : vector<2x15xf32>
    %979 = vector.broadcast %53 : f32 to vector<2x15xf32>
    %980 = arith.mulf %979, %367 : vector<2x15xf32>
    %981 = arith.addf %978, %980 : vector<2x15xf32>
    %982 = vector.broadcast %54 : f32 to vector<2x15xf32>
    %983 = arith.mulf %982, %368 : vector<2x15xf32>
    %984 = arith.addf %981, %983 : vector<2x15xf32>
    %985 = vector.broadcast %55 : f32 to vector<2x15xf32>
    %986 = arith.mulf %985, %372 : vector<2x15xf32>
    %987 = arith.addf %984, %986 : vector<2x15xf32>
    %988 = vector.broadcast %56 : f32 to vector<2x15xf32>
    %989 = arith.mulf %988, %373 : vector<2x15xf32>
    %990 = arith.addf %987, %989 : vector<2x15xf32>
    %991 = vector.broadcast %57 : f32 to vector<2x15xf32>
    %992 = arith.mulf %991, %374 : vector<2x15xf32>
    %993 = arith.addf %990, %992 : vector<2x15xf32>
    %994 = vector.broadcast %58 : f32 to vector<2x15xf32>
    %995 = arith.mulf %994, %378 : vector<2x15xf32>
    %996 = arith.addf %993, %995 : vector<2x15xf32>
    %997 = vector.broadcast %59 : f32 to vector<2x15xf32>
    %998 = arith.mulf %997, %379 : vector<2x15xf32>
    %999 = arith.addf %996, %998 : vector<2x15xf32>
    %1000 = vector.broadcast %60 : f32 to vector<2x15xf32>
    %1001 = arith.mulf %1000, %380 : vector<2x15xf32>
    %1002 = arith.addf %999, %1001 : vector<2x15xf32>
    %1003 = vector.broadcast %61 : f32 to vector<2x15xf32>
    %1004 = arith.mulf %1003, %384 : vector<2x15xf32>
    %1005 = arith.addf %1002, %1004 : vector<2x15xf32>
    %1006 = vector.broadcast %62 : f32 to vector<2x15xf32>
    %1007 = arith.mulf %1006, %385 : vector<2x15xf32>
    %1008 = arith.addf %1005, %1007 : vector<2x15xf32>
    %1009 = vector.broadcast %63 : f32 to vector<2x15xf32>
    %1010 = arith.mulf %1009, %386 : vector<2x15xf32>
    %1011 = arith.addf %1008, %1010 : vector<2x15xf32>
    %1012 = vector.broadcast %115 : f32 to vector<2x15xf32>
    %1013 = arith.addf %1011, %1012 : vector<2x15xf32>
    %cst_94 = arith.constant 0.000000e+00 : f32
    %1014 = vector.broadcast %cst_94 : f32 to vector<2x15xf32>
    %1015 = arith.maximumf %1013, %1014 : vector<2x15xf32>
    %1016 = arith.maximumf %974, %1015 : vector<2x15xf32>
    %1017 = vector.broadcast %52 : f32 to vector<2x15xf32>
    %1018 = arith.mulf %1017, %367 : vector<2x15xf32>
    %cst_95 = arith.constant 0.000000e+00 : f32
    %1019 = vector.broadcast %cst_95 : f32 to vector<2x15xf32>
    %1020 = arith.addf %1019, %1018 : vector<2x15xf32>
    %1021 = vector.broadcast %53 : f32 to vector<2x15xf32>
    %1022 = arith.mulf %1021, %368 : vector<2x15xf32>
    %1023 = arith.addf %1020, %1022 : vector<2x15xf32>
    %1024 = vector.broadcast %54 : f32 to vector<2x15xf32>
    %1025 = arith.mulf %1024, %369 : vector<2x15xf32>
    %1026 = arith.addf %1023, %1025 : vector<2x15xf32>
    %1027 = vector.broadcast %55 : f32 to vector<2x15xf32>
    %1028 = arith.mulf %1027, %373 : vector<2x15xf32>
    %1029 = arith.addf %1026, %1028 : vector<2x15xf32>
    %1030 = vector.broadcast %56 : f32 to vector<2x15xf32>
    %1031 = arith.mulf %1030, %374 : vector<2x15xf32>
    %1032 = arith.addf %1029, %1031 : vector<2x15xf32>
    %1033 = vector.broadcast %57 : f32 to vector<2x15xf32>
    %1034 = arith.mulf %1033, %375 : vector<2x15xf32>
    %1035 = arith.addf %1032, %1034 : vector<2x15xf32>
    %1036 = vector.broadcast %58 : f32 to vector<2x15xf32>
    %1037 = arith.mulf %1036, %379 : vector<2x15xf32>
    %1038 = arith.addf %1035, %1037 : vector<2x15xf32>
    %1039 = vector.broadcast %59 : f32 to vector<2x15xf32>
    %1040 = arith.mulf %1039, %380 : vector<2x15xf32>
    %1041 = arith.addf %1038, %1040 : vector<2x15xf32>
    %1042 = vector.broadcast %60 : f32 to vector<2x15xf32>
    %1043 = arith.mulf %1042, %381 : vector<2x15xf32>
    %1044 = arith.addf %1041, %1043 : vector<2x15xf32>
    %1045 = vector.broadcast %61 : f32 to vector<2x15xf32>
    %1046 = arith.mulf %1045, %385 : vector<2x15xf32>
    %1047 = arith.addf %1044, %1046 : vector<2x15xf32>
    %1048 = vector.broadcast %62 : f32 to vector<2x15xf32>
    %1049 = arith.mulf %1048, %386 : vector<2x15xf32>
    %1050 = arith.addf %1047, %1049 : vector<2x15xf32>
    %1051 = vector.broadcast %63 : f32 to vector<2x15xf32>
    %1052 = arith.mulf %1051, %387 : vector<2x15xf32>
    %1053 = arith.addf %1050, %1052 : vector<2x15xf32>
    %1054 = vector.broadcast %115 : f32 to vector<2x15xf32>
    %1055 = arith.addf %1053, %1054 : vector<2x15xf32>
    %cst_96 = arith.constant 0.000000e+00 : f32
    %1056 = vector.broadcast %cst_96 : f32 to vector<2x15xf32>
    %1057 = arith.maximumf %1055, %1056 : vector<2x15xf32>
    %1058 = arith.maximumf %1016, %1057 : vector<2x15xf32>
    %c0_97 = arith.constant 0 : index
    %c45_98 = arith.constant 45 : index
    %1059 = vector.load %arg13[%c0_97, %c45_98] : memref<2x120xf32, #tpu.memory_space<vmem>>, vector<2x15xf32>
    tpu.vector_store %arg13[%c0_97, %c45_98], %1058 {strides = array<i32>} : memref<2x120xf32, #tpu.memory_space<vmem>>, vector<2x15xf32>,
    %1060 = vector.broadcast %64 : f32 to vector<2x15xf32>
    %1061 = arith.mulf %1060, %364 : vector<2x15xf32>
    %cst_99 = arith.constant 0.000000e+00 : f32
    %1062 = vector.broadcast %cst_99 : f32 to vector<2x15xf32>
    %1063 = arith.addf %1062, %1061 : vector<2x15xf32>
    %1064 = vector.broadcast %65 : f32 to vector<2x15xf32>
    %1065 = arith.mulf %1064, %365 : vector<2x15xf32>
    %1066 = arith.addf %1063, %1065 : vector<2x15xf32>
    %1067 = vector.broadcast %66 : f32 to vector<2x15xf32>
    %1068 = arith.mulf %1067, %366 : vector<2x15xf32>
    %1069 = arith.addf %1066, %1068 : vector<2x15xf32>
    %1070 = vector.broadcast %67 : f32 to vector<2x15xf32>
    %1071 = arith.mulf %1070, %370 : vector<2x15xf32>
    %1072 = arith.addf %1069, %1071 : vector<2x15xf32>
    %1073 = vector.broadcast %68 : f32 to vector<2x15xf32>
    %1074 = arith.mulf %1073, %371 : vector<2x15xf32>
    %1075 = arith.addf %1072, %1074 : vector<2x15xf32>
    %1076 = vector.broadcast %69 : f32 to vector<2x15xf32>
    %1077 = arith.mulf %1076, %372 : vector<2x15xf32>
    %1078 = arith.addf %1075, %1077 : vector<2x15xf32>
    %1079 = vector.broadcast %70 : f32 to vector<2x15xf32>
    %1080 = arith.mulf %1079, %376 : vector<2x15xf32>
    %1081 = arith.addf %1078, %1080 : vector<2x15xf32>
    %1082 = vector.broadcast %71 : f32 to vector<2x15xf32>
    %1083 = arith.mulf %1082, %377 : vector<2x15xf32>
    %1084 = arith.addf %1081, %1083 : vector<2x15xf32>
    %1085 = vector.broadcast %72 : f32 to vector<2x15xf32>
    %1086 = arith.mulf %1085, %378 : vector<2x15xf32>
    %1087 = arith.addf %1084, %1086 : vector<2x15xf32>
    %1088 = vector.broadcast %73 : f32 to vector<2x15xf32>
    %1089 = arith.mulf %1088, %382 : vector<2x15xf32>
    %1090 = arith.addf %1087, %1089 : vector<2x15xf32>
    %1091 = vector.broadcast %74 : f32 to vector<2x15xf32>
    %1092 = arith.mulf %1091, %383 : vector<2x15xf32>
    %1093 = arith.addf %1090, %1092 : vector<2x15xf32>
    %1094 = vector.broadcast %75 : f32 to vector<2x15xf32>
    %1095 = arith.mulf %1094, %384 : vector<2x15xf32>
    %1096 = arith.addf %1093, %1095 : vector<2x15xf32>
    %1097 = vector.broadcast %116 : f32 to vector<2x15xf32>
    %1098 = arith.addf %1096, %1097 : vector<2x15xf32>
    %cst_100 = arith.constant 0.000000e+00 : f32
    %1099 = vector.broadcast %cst_100 : f32 to vector<2x15xf32>
    %1100 = arith.maximumf %1098, %1099 : vector<2x15xf32>
    %1101 = vector.broadcast %64 : f32 to vector<2x15xf32>
    %1102 = arith.mulf %1101, %365 : vector<2x15xf32>
    %cst_101 = arith.constant 0.000000e+00 : f32
    %1103 = vector.broadcast %cst_101 : f32 to vector<2x15xf32>
    %1104 = arith.addf %1103, %1102 : vector<2x15xf32>
    %1105 = vector.broadcast %65 : f32 to vector<2x15xf32>
    %1106 = arith.mulf %1105, %366 : vector<2x15xf32>
    %1107 = arith.addf %1104, %1106 : vector<2x15xf32>
    %1108 = vector.broadcast %66 : f32 to vector<2x15xf32>
    %1109 = arith.mulf %1108, %367 : vector<2x15xf32>
    %1110 = arith.addf %1107, %1109 : vector<2x15xf32>
    %1111 = vector.broadcast %67 : f32 to vector<2x15xf32>
    %1112 = arith.mulf %1111, %371 : vector<2x15xf32>
    %1113 = arith.addf %1110, %1112 : vector<2x15xf32>
    %1114 = vector.broadcast %68 : f32 to vector<2x15xf32>
    %1115 = arith.mulf %1114, %372 : vector<2x15xf32>
    %1116 = arith.addf %1113, %1115 : vector<2x15xf32>
    %1117 = vector.broadcast %69 : f32 to vector<2x15xf32>
    %1118 = arith.mulf %1117, %373 : vector<2x15xf32>
    %1119 = arith.addf %1116, %1118 : vector<2x15xf32>
    %1120 = vector.broadcast %70 : f32 to vector<2x15xf32>
    %1121 = arith.mulf %1120, %377 : vector<2x15xf32>
    %1122 = arith.addf %1119, %1121 : vector<2x15xf32>
    %1123 = vector.broadcast %71 : f32 to vector<2x15xf32>
    %1124 = arith.mulf %1123, %378 : vector<2x15xf32>
    %1125 = arith.addf %1122, %1124 : vector<2x15xf32>
    %1126 = vector.broadcast %72 : f32 to vector<2x15xf32>
    %1127 = arith.mulf %1126, %379 : vector<2x15xf32>
    %1128 = arith.addf %1125, %1127 : vector<2x15xf32>
    %1129 = vector.broadcast %73 : f32 to vector<2x15xf32>
    %1130 = arith.mulf %1129, %383 : vector<2x15xf32>
    %1131 = arith.addf %1128, %1130 : vector<2x15xf32>
    %1132 = vector.broadcast %74 : f32 to vector<2x15xf32>
    %1133 = arith.mulf %1132, %384 : vector<2x15xf32>
    %1134 = arith.addf %1131, %1133 : vector<2x15xf32>
    %1135 = vector.broadcast %75 : f32 to vector<2x15xf32>
    %1136 = arith.mulf %1135, %385 : vector<2x15xf32>
    %1137 = arith.addf %1134, %1136 : vector<2x15xf32>
    %1138 = vector.broadcast %116 : f32 to vector<2x15xf32>
    %1139 = arith.addf %1137, %1138 : vector<2x15xf32>
    %cst_102 = arith.constant 0.000000e+00 : f32
    %1140 = vector.broadcast %cst_102 : f32 to vector<2x15xf32>
    %1141 = arith.maximumf %1139, %1140 : vector<2x15xf32>
    %1142 = arith.maximumf %1100, %1141 : vector<2x15xf32>
    %1143 = vector.broadcast %64 : f32 to vector<2x15xf32>
    %1144 = arith.mulf %1143, %366 : vector<2x15xf32>
    %cst_103 = arith.constant 0.000000e+00 : f32
    %1145 = vector.broadcast %cst_103 : f32 to vector<2x15xf32>
    %1146 = arith.addf %1145, %1144 : vector<2x15xf32>
    %1147 = vector.broadcast %65 : f32 to vector<2x15xf32>
    %1148 = arith.mulf %1147, %367 : vector<2x15xf32>
    %1149 = arith.addf %1146, %1148 : vector<2x15xf32>
    %1150 = vector.broadcast %66 : f32 to vector<2x15xf32>
    %1151 = arith.mulf %1150, %368 : vector<2x15xf32>
    %1152 = arith.addf %1149, %1151 : vector<2x15xf32>
    %1153 = vector.broadcast %67 : f32 to vector<2x15xf32>
    %1154 = arith.mulf %1153, %372 : vector<2x15xf32>
    %1155 = arith.addf %1152, %1154 : vector<2x15xf32>
    %1156 = vector.broadcast %68 : f32 to vector<2x15xf32>
    %1157 = arith.mulf %1156, %373 : vector<2x15xf32>
    %1158 = arith.addf %1155, %1157 : vector<2x15xf32>
    %1159 = vector.broadcast %69 : f32 to vector<2x15xf32>
    %1160 = arith.mulf %1159, %374 : vector<2x15xf32>
    %1161 = arith.addf %1158, %1160 : vector<2x15xf32>
    %1162 = vector.broadcast %70 : f32 to vector<2x15xf32>
    %1163 = arith.mulf %1162, %378 : vector<2x15xf32>
    %1164 = arith.addf %1161, %1163 : vector<2x15xf32>
    %1165 = vector.broadcast %71 : f32 to vector<2x15xf32>
    %1166 = arith.mulf %1165, %379 : vector<2x15xf32>
    %1167 = arith.addf %1164, %1166 : vector<2x15xf32>
    %1168 = vector.broadcast %72 : f32 to vector<2x15xf32>
    %1169 = arith.mulf %1168, %380 : vector<2x15xf32>
    %1170 = arith.addf %1167, %1169 : vector<2x15xf32>
    %1171 = vector.broadcast %73 : f32 to vector<2x15xf32>
    %1172 = arith.mulf %1171, %384 : vector<2x15xf32>
    %1173 = arith.addf %1170, %1172 : vector<2x15xf32>
    %1174 = vector.broadcast %74 : f32 to vector<2x15xf32>
    %1175 = arith.mulf %1174, %385 : vector<2x15xf32>
    %1176 = arith.addf %1173, %1175 : vector<2x15xf32>
    %1177 = vector.broadcast %75 : f32 to vector<2x15xf32>
    %1178 = arith.mulf %1177, %386 : vector<2x15xf32>
    %1179 = arith.addf %1176, %1178 : vector<2x15xf32>
    %1180 = vector.broadcast %116 : f32 to vector<2x15xf32>
    %1181 = arith.addf %1179, %1180 : vector<2x15xf32>
    %cst_104 = arith.constant 0.000000e+00 : f32
    %1182 = vector.broadcast %cst_104 : f32 to vector<2x15xf32>
    %1183 = arith.maximumf %1181, %1182 : vector<2x15xf32>
    %1184 = arith.maximumf %1142, %1183 : vector<2x15xf32>
    %1185 = vector.broadcast %64 : f32 to vector<2x15xf32>
    %1186 = arith.mulf %1185, %367 : vector<2x15xf32>
    %cst_105 = arith.constant 0.000000e+00 : f32
    %1187 = vector.broadcast %cst_105 : f32 to vector<2x15xf32>
    %1188 = arith.addf %1187, %1186 : vector<2x15xf32>
    %1189 = vector.broadcast %65 : f32 to vector<2x15xf32>
    %1190 = arith.mulf %1189, %368 : vector<2x15xf32>
    %1191 = arith.addf %1188, %1190 : vector<2x15xf32>
    %1192 = vector.broadcast %66 : f32 to vector<2x15xf32>
    %1193 = arith.mulf %1192, %369 : vector<2x15xf32>
    %1194 = arith.addf %1191, %1193 : vector<2x15xf32>
    %1195 = vector.broadcast %67 : f32 to vector<2x15xf32>
    %1196 = arith.mulf %1195, %373 : vector<2x15xf32>
    %1197 = arith.addf %1194, %1196 : vector<2x15xf32>
    %1198 = vector.broadcast %68 : f32 to vector<2x15xf32>
    %1199 = arith.mulf %1198, %374 : vector<2x15xf32>
    %1200 = arith.addf %1197, %1199 : vector<2x15xf32>
    %1201 = vector.broadcast %69 : f32 to vector<2x15xf32>
    %1202 = arith.mulf %1201, %375 : vector<2x15xf32>
    %1203 = arith.addf %1200, %1202 : vector<2x15xf32>
    %1204 = vector.broadcast %70 : f32 to vector<2x15xf32>
    %1205 = arith.mulf %1204, %379 : vector<2x15xf32>
    %1206 = arith.addf %1203, %1205 : vector<2x15xf32>
    %1207 = vector.broadcast %71 : f32 to vector<2x15xf32>
    %1208 = arith.mulf %1207, %380 : vector<2x15xf32>
    %1209 = arith.addf %1206, %1208 : vector<2x15xf32>
    %1210 = vector.broadcast %72 : f32 to vector<2x15xf32>
    %1211 = arith.mulf %1210, %381 : vector<2x15xf32>
    %1212 = arith.addf %1209, %1211 : vector<2x15xf32>
    %1213 = vector.broadcast %73 : f32 to vector<2x15xf32>
    %1214 = arith.mulf %1213, %385 : vector<2x15xf32>
    %1215 = arith.addf %1212, %1214 : vector<2x15xf32>
    %1216 = vector.broadcast %74 : f32 to vector<2x15xf32>
    %1217 = arith.mulf %1216, %386 : vector<2x15xf32>
    %1218 = arith.addf %1215, %1217 : vector<2x15xf32>
    %1219 = vector.broadcast %75 : f32 to vector<2x15xf32>
    %1220 = arith.mulf %1219, %387 : vector<2x15xf32>
    %1221 = arith.addf %1218, %1220 : vector<2x15xf32>
    %1222 = vector.broadcast %116 : f32 to vector<2x15xf32>
    %1223 = arith.addf %1221, %1222 : vector<2x15xf32>
    %cst_106 = arith.constant 0.000000e+00 : f32
    %1224 = vector.broadcast %cst_106 : f32 to vector<2x15xf32>
    %1225 = arith.maximumf %1223, %1224 : vector<2x15xf32>
    %1226 = arith.maximumf %1184, %1225 : vector<2x15xf32>
    %c0_107 = arith.constant 0 : index
    %c60_108 = arith.constant 60 : index
    %1227 = vector.load %arg13[%c0_107, %c60_108] : memref<2x120xf32, #tpu.memory_space<vmem>>, vector<2x15xf32>
    tpu.vector_store %arg13[%c0_107, %c60_108], %1226 {strides = array<i32>} : memref<2x120xf32, #tpu.memory_space<vmem>>, vector<2x15xf32>,
    %1228 = vector.broadcast %76 : f32 to vector<2x15xf32>
    %1229 = arith.mulf %1228, %364 : vector<2x15xf32>
    %cst_109 = arith.constant 0.000000e+00 : f32
    %1230 = vector.broadcast %cst_109 : f32 to vector<2x15xf32>
    %1231 = arith.addf %1230, %1229 : vector<2x15xf32>
    %1232 = vector.broadcast %77 : f32 to vector<2x15xf32>
    %1233 = arith.mulf %1232, %365 : vector<2x15xf32>
    %1234 = arith.addf %1231, %1233 : vector<2x15xf32>
    %1235 = vector.broadcast %78 : f32 to vector<2x15xf32>
    %1236 = arith.mulf %1235, %366 : vector<2x15xf32>
    %1237 = arith.addf %1234, %1236 : vector<2x15xf32>
    %1238 = vector.broadcast %79 : f32 to vector<2x15xf32>
    %1239 = arith.mulf %1238, %370 : vector<2x15xf32>
    %1240 = arith.addf %1237, %1239 : vector<2x15xf32>
    %1241 = vector.broadcast %80 : f32 to vector<2x15xf32>
    %1242 = arith.mulf %1241, %371 : vector<2x15xf32>
    %1243 = arith.addf %1240, %1242 : vector<2x15xf32>
    %1244 = vector.broadcast %81 : f32 to vector<2x15xf32>
    %1245 = arith.mulf %1244, %372 : vector<2x15xf32>
    %1246 = arith.addf %1243, %1245 : vector<2x15xf32>
    %1247 = vector.broadcast %82 : f32 to vector<2x15xf32>
    %1248 = arith.mulf %1247, %376 : vector<2x15xf32>
    %1249 = arith.addf %1246, %1248 : vector<2x15xf32>
    %1250 = vector.broadcast %83 : f32 to vector<2x15xf32>
    %1251 = arith.mulf %1250, %377 : vector<2x15xf32>
    %1252 = arith.addf %1249, %1251 : vector<2x15xf32>
    %1253 = vector.broadcast %84 : f32 to vector<2x15xf32>
    %1254 = arith.mulf %1253, %378 : vector<2x15xf32>
    %1255 = arith.addf %1252, %1254 : vector<2x15xf32>
    %1256 = vector.broadcast %85 : f32 to vector<2x15xf32>
    %1257 = arith.mulf %1256, %382 : vector<2x15xf32>
    %1258 = arith.addf %1255, %1257 : vector<2x15xf32>
    %1259 = vector.broadcast %86 : f32 to vector<2x15xf32>
    %1260 = arith.mulf %1259, %383 : vector<2x15xf32>
    %1261 = arith.addf %1258, %1260 : vector<2x15xf32>
    %1262 = vector.broadcast %87 : f32 to vector<2x15xf32>
    %1263 = arith.mulf %1262, %384 : vector<2x15xf32>
    %1264 = arith.addf %1261, %1263 : vector<2x15xf32>
    %1265 = vector.broadcast %117 : f32 to vector<2x15xf32>
    %1266 = arith.addf %1264, %1265 : vector<2x15xf32>
    %cst_110 = arith.constant 0.000000e+00 : f32
    %1267 = vector.broadcast %cst_110 : f32 to vector<2x15xf32>
    %1268 = arith.maximumf %1266, %1267 : vector<2x15xf32>
    %1269 = vector.broadcast %76 : f32 to vector<2x15xf32>
    %1270 = arith.mulf %1269, %365 : vector<2x15xf32>
    %cst_111 = arith.constant 0.000000e+00 : f32
    %1271 = vector.broadcast %cst_111 : f32 to vector<2x15xf32>
    %1272 = arith.addf %1271, %1270 : vector<2x15xf32>
    %1273 = vector.broadcast %77 : f32 to vector<2x15xf32>
    %1274 = arith.mulf %1273, %366 : vector<2x15xf32>
    %1275 = arith.addf %1272, %1274 : vector<2x15xf32>
    %1276 = vector.broadcast %78 : f32 to vector<2x15xf32>
    %1277 = arith.mulf %1276, %367 : vector<2x15xf32>
    %1278 = arith.addf %1275, %1277 : vector<2x15xf32>
    %1279 = vector.broadcast %79 : f32 to vector<2x15xf32>
    %1280 = arith.mulf %1279, %371 : vector<2x15xf32>
    %1281 = arith.addf %1278, %1280 : vector<2x15xf32>
    %1282 = vector.broadcast %80 : f32 to vector<2x15xf32>
    %1283 = arith.mulf %1282, %372 : vector<2x15xf32>
    %1284 = arith.addf %1281, %1283 : vector<2x15xf32>
    %1285 = vector.broadcast %81 : f32 to vector<2x15xf32>
    %1286 = arith.mulf %1285, %373 : vector<2x15xf32>
    %1287 = arith.addf %1284, %1286 : vector<2x15xf32>
    %1288 = vector.broadcast %82 : f32 to vector<2x15xf32>
    %1289 = arith.mulf %1288, %377 : vector<2x15xf32>
    %1290 = arith.addf %1287, %1289 : vector<2x15xf32>
    %1291 = vector.broadcast %83 : f32 to vector<2x15xf32>
    %1292 = arith.mulf %1291, %378 : vector<2x15xf32>
    %1293 = arith.addf %1290, %1292 : vector<2x15xf32>
    %1294 = vector.broadcast %84 : f32 to vector<2x15xf32>
    %1295 = arith.mulf %1294, %379 : vector<2x15xf32>
    %1296 = arith.addf %1293, %1295 : vector<2x15xf32>
    %1297 = vector.broadcast %85 : f32 to vector<2x15xf32>
    %1298 = arith.mulf %1297, %383 : vector<2x15xf32>
    %1299 = arith.addf %1296, %1298 : vector<2x15xf32>
    %1300 = vector.broadcast %86 : f32 to vector<2x15xf32>
    %1301 = arith.mulf %1300, %384 : vector<2x15xf32>
    %1302 = arith.addf %1299, %1301 : vector<2x15xf32>
    %1303 = vector.broadcast %87 : f32 to vector<2x15xf32>
    %1304 = arith.mulf %1303, %385 : vector<2x15xf32>
    %1305 = arith.addf %1302, %1304 : vector<2x15xf32>
    %1306 = vector.broadcast %117 : f32 to vector<2x15xf32>
    %1307 = arith.addf %1305, %1306 : vector<2x15xf32>
    %cst_112 = arith.constant 0.000000e+00 : f32
    %1308 = vector.broadcast %cst_112 : f32 to vector<2x15xf32>
    %1309 = arith.maximumf %1307, %1308 : vector<2x15xf32>
    %1310 = arith.maximumf %1268, %1309 : vector<2x15xf32>
    %1311 = vector.broadcast %76 : f32 to vector<2x15xf32>
    %1312 = arith.mulf %1311, %366 : vector<2x15xf32>
    %cst_113 = arith.constant 0.000000e+00 : f32
    %1313 = vector.broadcast %cst_113 : f32 to vector<2x15xf32>
    %1314 = arith.addf %1313, %1312 : vector<2x15xf32>
    %1315 = vector.broadcast %77 : f32 to vector<2x15xf32>
    %1316 = arith.mulf %1315, %367 : vector<2x15xf32>
    %1317 = arith.addf %1314, %1316 : vector<2x15xf32>
    %1318 = vector.broadcast %78 : f32 to vector<2x15xf32>
    %1319 = arith.mulf %1318, %368 : vector<2x15xf32>
    %1320 = arith.addf %1317, %1319 : vector<2x15xf32>
    %1321 = vector.broadcast %79 : f32 to vector<2x15xf32>
    %1322 = arith.mulf %1321, %372 : vector<2x15xf32>
    %1323 = arith.addf %1320, %1322 : vector<2x15xf32>
    %1324 = vector.broadcast %80 : f32 to vector<2x15xf32>
    %1325 = arith.mulf %1324, %373 : vector<2x15xf32>
    %1326 = arith.addf %1323, %1325 : vector<2x15xf32>
    %1327 = vector.broadcast %81 : f32 to vector<2x15xf32>
    %1328 = arith.mulf %1327, %374 : vector<2x15xf32>
    %1329 = arith.addf %1326, %1328 : vector<2x15xf32>
    %1330 = vector.broadcast %82 : f32 to vector<2x15xf32>
    %1331 = arith.mulf %1330, %378 : vector<2x15xf32>
    %1332 = arith.addf %1329, %1331 : vector<2x15xf32>
    %1333 = vector.broadcast %83 : f32 to vector<2x15xf32>
    %1334 = arith.mulf %1333, %379 : vector<2x15xf32>
    %1335 = arith.addf %1332, %1334 : vector<2x15xf32>
    %1336 = vector.broadcast %84 : f32 to vector<2x15xf32>
    %1337 = arith.mulf %1336, %380 : vector<2x15xf32>
    %1338 = arith.addf %1335, %1337 : vector<2x15xf32>
    %1339 = vector.broadcast %85 : f32 to vector<2x15xf32>
    %1340 = arith.mulf %1339, %384 : vector<2x15xf32>
    %1341 = arith.addf %1338, %1340 : vector<2x15xf32>
    %1342 = vector.broadcast %86 : f32 to vector<2x15xf32>
    %1343 = arith.mulf %1342, %385 : vector<2x15xf32>
    %1344 = arith.addf %1341, %1343 : vector<2x15xf32>
    %1345 = vector.broadcast %87 : f32 to vector<2x15xf32>
    %1346 = arith.mulf %1345, %386 : vector<2x15xf32>
    %1347 = arith.addf %1344, %1346 : vector<2x15xf32>
    %1348 = vector.broadcast %117 : f32 to vector<2x15xf32>
    %1349 = arith.addf %1347, %1348 : vector<2x15xf32>
    %cst_114 = arith.constant 0.000000e+00 : f32
    %1350 = vector.broadcast %cst_114 : f32 to vector<2x15xf32>
    %1351 = arith.maximumf %1349, %1350 : vector<2x15xf32>
    %1352 = arith.maximumf %1310, %1351 : vector<2x15xf32>
    %1353 = vector.broadcast %76 : f32 to vector<2x15xf32>
    %1354 = arith.mulf %1353, %367 : vector<2x15xf32>
    %cst_115 = arith.constant 0.000000e+00 : f32
    %1355 = vector.broadcast %cst_115 : f32 to vector<2x15xf32>
    %1356 = arith.addf %1355, %1354 : vector<2x15xf32>
    %1357 = vector.broadcast %77 : f32 to vector<2x15xf32>
    %1358 = arith.mulf %1357, %368 : vector<2x15xf32>
    %1359 = arith.addf %1356, %1358 : vector<2x15xf32>
    %1360 = vector.broadcast %78 : f32 to vector<2x15xf32>
    %1361 = arith.mulf %1360, %369 : vector<2x15xf32>
    %1362 = arith.addf %1359, %1361 : vector<2x15xf32>
    %1363 = vector.broadcast %79 : f32 to vector<2x15xf32>
    %1364 = arith.mulf %1363, %373 : vector<2x15xf32>
    %1365 = arith.addf %1362, %1364 : vector<2x15xf32>
    %1366 = vector.broadcast %80 : f32 to vector<2x15xf32>
    %1367 = arith.mulf %1366, %374 : vector<2x15xf32>
    %1368 = arith.addf %1365, %1367 : vector<2x15xf32>
    %1369 = vector.broadcast %81 : f32 to vector<2x15xf32>
    %1370 = arith.mulf %1369, %375 : vector<2x15xf32>
    %1371 = arith.addf %1368, %1370 : vector<2x15xf32>
    %1372 = vector.broadcast %82 : f32 to vector<2x15xf32>
    %1373 = arith.mulf %1372, %379 : vector<2x15xf32>
    %1374 = arith.addf %1371, %1373 : vector<2x15xf32>
    %1375 = vector.broadcast %83 : f32 to vector<2x15xf32>
    %1376 = arith.mulf %1375, %380 : vector<2x15xf32>
    %1377 = arith.addf %1374, %1376 : vector<2x15xf32>
    %1378 = vector.broadcast %84 : f32 to vector<2x15xf32>
    %1379 = arith.mulf %1378, %381 : vector<2x15xf32>
    %1380 = arith.addf %1377, %1379 : vector<2x15xf32>
    %1381 = vector.broadcast %85 : f32 to vector<2x15xf32>
    %1382 = arith.mulf %1381, %385 : vector<2x15xf32>
    %1383 = arith.addf %1380, %1382 : vector<2x15xf32>
    %1384 = vector.broadcast %86 : f32 to vector<2x15xf32>
    %1385 = arith.mulf %1384, %386 : vector<2x15xf32>
    %1386 = arith.addf %1383, %1385 : vector<2x15xf32>
    %1387 = vector.broadcast %87 : f32 to vector<2x15xf32>
    %1388 = arith.mulf %1387, %387 : vector<2x15xf32>
    %1389 = arith.addf %1386, %1388 : vector<2x15xf32>
    %1390 = vector.broadcast %117 : f32 to vector<2x15xf32>
    %1391 = arith.addf %1389, %1390 : vector<2x15xf32>
    %cst_116 = arith.constant 0.000000e+00 : f32
    %1392 = vector.broadcast %cst_116 : f32 to vector<2x15xf32>
    %1393 = arith.maximumf %1391, %1392 : vector<2x15xf32>
    %1394 = arith.maximumf %1352, %1393 : vector<2x15xf32>
    %c0_117 = arith.constant 0 : index
    %c75_118 = arith.constant 75 : index
    %1395 = vector.load %arg13[%c0_117, %c75_118] : memref<2x120xf32, #tpu.memory_space<vmem>>, vector<2x15xf32>
    tpu.vector_store %arg13[%c0_117, %c75_118], %1394 {strides = array<i32>} : memref<2x120xf32, #tpu.memory_space<vmem>>, vector<2x15xf32>,
    %1396 = vector.broadcast %88 : f32 to vector<2x15xf32>
    %1397 = arith.mulf %1396, %364 : vector<2x15xf32>
    %cst_119 = arith.constant 0.000000e+00 : f32
    %1398 = vector.broadcast %cst_119 : f32 to vector<2x15xf32>
    %1399 = arith.addf %1398, %1397 : vector<2x15xf32>
    %1400 = vector.broadcast %89 : f32 to vector<2x15xf32>
    %1401 = arith.mulf %1400, %365 : vector<2x15xf32>
    %1402 = arith.addf %1399, %1401 : vector<2x15xf32>
    %1403 = vector.broadcast %90 : f32 to vector<2x15xf32>
    %1404 = arith.mulf %1403, %366 : vector<2x15xf32>
    %1405 = arith.addf %1402, %1404 : vector<2x15xf32>
    %1406 = vector.broadcast %91 : f32 to vector<2x15xf32>
    %1407 = arith.mulf %1406, %370 : vector<2x15xf32>
    %1408 = arith.addf %1405, %1407 : vector<2x15xf32>
    %1409 = vector.broadcast %92 : f32 to vector<2x15xf32>
    %1410 = arith.mulf %1409, %371 : vector<2x15xf32>
    %1411 = arith.addf %1408, %1410 : vector<2x15xf32>
    %1412 = vector.broadcast %93 : f32 to vector<2x15xf32>
    %1413 = arith.mulf %1412, %372 : vector<2x15xf32>
    %1414 = arith.addf %1411, %1413 : vector<2x15xf32>
    %1415 = vector.broadcast %94 : f32 to vector<2x15xf32>
    %1416 = arith.mulf %1415, %376 : vector<2x15xf32>
    %1417 = arith.addf %1414, %1416 : vector<2x15xf32>
    %1418 = vector.broadcast %95 : f32 to vector<2x15xf32>
    %1419 = arith.mulf %1418, %377 : vector<2x15xf32>
    %1420 = arith.addf %1417, %1419 : vector<2x15xf32>
    %1421 = vector.broadcast %96 : f32 to vector<2x15xf32>
    %1422 = arith.mulf %1421, %378 : vector<2x15xf32>
    %1423 = arith.addf %1420, %1422 : vector<2x15xf32>
    %1424 = vector.broadcast %97 : f32 to vector<2x15xf32>
    %1425 = arith.mulf %1424, %382 : vector<2x15xf32>
    %1426 = arith.addf %1423, %1425 : vector<2x15xf32>
    %1427 = vector.broadcast %98 : f32 to vector<2x15xf32>
    %1428 = arith.mulf %1427, %383 : vector<2x15xf32>
    %1429 = arith.addf %1426, %1428 : vector<2x15xf32>
    %1430 = vector.broadcast %99 : f32 to vector<2x15xf32>
    %1431 = arith.mulf %1430, %384 : vector<2x15xf32>
    %1432 = arith.addf %1429, %1431 : vector<2x15xf32>
    %1433 = vector.broadcast %118 : f32 to vector<2x15xf32>
    %1434 = arith.addf %1432, %1433 : vector<2x15xf32>
    %cst_120 = arith.constant 0.000000e+00 : f32
    %1435 = vector.broadcast %cst_120 : f32 to vector<2x15xf32>
    %1436 = arith.maximumf %1434, %1435 : vector<2x15xf32>
    %1437 = vector.broadcast %88 : f32 to vector<2x15xf32>
    %1438 = arith.mulf %1437, %365 : vector<2x15xf32>
    %cst_121 = arith.constant 0.000000e+00 : f32
    %1439 = vector.broadcast %cst_121 : f32 to vector<2x15xf32>
    %1440 = arith.addf %1439, %1438 : vector<2x15xf32>
    %1441 = vector.broadcast %89 : f32 to vector<2x15xf32>
    %1442 = arith.mulf %1441, %366 : vector<2x15xf32>
    %1443 = arith.addf %1440, %1442 : vector<2x15xf32>
    %1444 = vector.broadcast %90 : f32 to vector<2x15xf32>
    %1445 = arith.mulf %1444, %367 : vector<2x15xf32>
    %1446 = arith.addf %1443, %1445 : vector<2x15xf32>
    %1447 = vector.broadcast %91 : f32 to vector<2x15xf32>
    %1448 = arith.mulf %1447, %371 : vector<2x15xf32>
    %1449 = arith.addf %1446, %1448 : vector<2x15xf32>
    %1450 = vector.broadcast %92 : f32 to vector<2x15xf32>
    %1451 = arith.mulf %1450, %372 : vector<2x15xf32>
    %1452 = arith.addf %1449, %1451 : vector<2x15xf32>
    %1453 = vector.broadcast %93 : f32 to vector<2x15xf32>
    %1454 = arith.mulf %1453, %373 : vector<2x15xf32>
    %1455 = arith.addf %1452, %1454 : vector<2x15xf32>
    %1456 = vector.broadcast %94 : f32 to vector<2x15xf32>
    %1457 = arith.mulf %1456, %377 : vector<2x15xf32>
    %1458 = arith.addf %1455, %1457 : vector<2x15xf32>
    %1459 = vector.broadcast %95 : f32 to vector<2x15xf32>
    %1460 = arith.mulf %1459, %378 : vector<2x15xf32>
    %1461 = arith.addf %1458, %1460 : vector<2x15xf32>
    %1462 = vector.broadcast %96 : f32 to vector<2x15xf32>
    %1463 = arith.mulf %1462, %379 : vector<2x15xf32>
    %1464 = arith.addf %1461, %1463 : vector<2x15xf32>
    %1465 = vector.broadcast %97 : f32 to vector<2x15xf32>
    %1466 = arith.mulf %1465, %383 : vector<2x15xf32>
    %1467 = arith.addf %1464, %1466 : vector<2x15xf32>
    %1468 = vector.broadcast %98 : f32 to vector<2x15xf32>
    %1469 = arith.mulf %1468, %384 : vector<2x15xf32>
    %1470 = arith.addf %1467, %1469 : vector<2x15xf32>
    %1471 = vector.broadcast %99 : f32 to vector<2x15xf32>
    %1472 = arith.mulf %1471, %385 : vector<2x15xf32>
    %1473 = arith.addf %1470, %1472 : vector<2x15xf32>
    %1474 = vector.broadcast %118 : f32 to vector<2x15xf32>
    %1475 = arith.addf %1473, %1474 : vector<2x15xf32>
    %cst_122 = arith.constant 0.000000e+00 : f32
    %1476 = vector.broadcast %cst_122 : f32 to vector<2x15xf32>
    %1477 = arith.maximumf %1475, %1476 : vector<2x15xf32>
    %1478 = arith.maximumf %1436, %1477 : vector<2x15xf32>
    %1479 = vector.broadcast %88 : f32 to vector<2x15xf32>
    %1480 = arith.mulf %1479, %366 : vector<2x15xf32>
    %cst_123 = arith.constant 0.000000e+00 : f32
    %1481 = vector.broadcast %cst_123 : f32 to vector<2x15xf32>
    %1482 = arith.addf %1481, %1480 : vector<2x15xf32>
    %1483 = vector.broadcast %89 : f32 to vector<2x15xf32>
    %1484 = arith.mulf %1483, %367 : vector<2x15xf32>
    %1485 = arith.addf %1482, %1484 : vector<2x15xf32>
    %1486 = vector.broadcast %90 : f32 to vector<2x15xf32>
    %1487 = arith.mulf %1486, %368 : vector<2x15xf32>
    %1488 = arith.addf %1485, %1487 : vector<2x15xf32>
    %1489 = vector.broadcast %91 : f32 to vector<2x15xf32>
    %1490 = arith.mulf %1489, %372 : vector<2x15xf32>
    %1491 = arith.addf %1488, %1490 : vector<2x15xf32>
    %1492 = vector.broadcast %92 : f32 to vector<2x15xf32>
    %1493 = arith.mulf %1492, %373 : vector<2x15xf32>
    %1494 = arith.addf %1491, %1493 : vector<2x15xf32>
    %1495 = vector.broadcast %93 : f32 to vector<2x15xf32>
    %1496 = arith.mulf %1495, %374 : vector<2x15xf32>
    %1497 = arith.addf %1494, %1496 : vector<2x15xf32>
    %1498 = vector.broadcast %94 : f32 to vector<2x15xf32>
    %1499 = arith.mulf %1498, %378 : vector<2x15xf32>
    %1500 = arith.addf %1497, %1499 : vector<2x15xf32>
    %1501 = vector.broadcast %95 : f32 to vector<2x15xf32>
    %1502 = arith.mulf %1501, %379 : vector<2x15xf32>
    %1503 = arith.addf %1500, %1502 : vector<2x15xf32>
    %1504 = vector.broadcast %96 : f32 to vector<2x15xf32>
    %1505 = arith.mulf %1504, %380 : vector<2x15xf32>
    %1506 = arith.addf %1503, %1505 : vector<2x15xf32>
    %1507 = vector.broadcast %97 : f32 to vector<2x15xf32>
    %1508 = arith.mulf %1507, %384 : vector<2x15xf32>
    %1509 = arith.addf %1506, %1508 : vector<2x15xf32>
    %1510 = vector.broadcast %98 : f32 to vector<2x15xf32>
    %1511 = arith.mulf %1510, %385 : vector<2x15xf32>
    %1512 = arith.addf %1509, %1511 : vector<2x15xf32>
    %1513 = vector.broadcast %99 : f32 to vector<2x15xf32>
    %1514 = arith.mulf %1513, %386 : vector<2x15xf32>
    %1515 = arith.addf %1512, %1514 : vector<2x15xf32>
    %1516 = vector.broadcast %118 : f32 to vector<2x15xf32>
    %1517 = arith.addf %1515, %1516 : vector<2x15xf32>
    %cst_124 = arith.constant 0.000000e+00 : f32
    %1518 = vector.broadcast %cst_124 : f32 to vector<2x15xf32>
    %1519 = arith.maximumf %1517, %1518 : vector<2x15xf32>
    %1520 = arith.maximumf %1478, %1519 : vector<2x15xf32>
    %1521 = vector.broadcast %88 : f32 to vector<2x15xf32>
    %1522 = arith.mulf %1521, %367 : vector<2x15xf32>
    %cst_125 = arith.constant 0.000000e+00 : f32
    %1523 = vector.broadcast %cst_125 : f32 to vector<2x15xf32>
    %1524 = arith.addf %1523, %1522 : vector<2x15xf32>
    %1525 = vector.broadcast %89 : f32 to vector<2x15xf32>
    %1526 = arith.mulf %1525, %368 : vector<2x15xf32>
    %1527 = arith.addf %1524, %1526 : vector<2x15xf32>
    %1528 = vector.broadcast %90 : f32 to vector<2x15xf32>
    %1529 = arith.mulf %1528, %369 : vector<2x15xf32>
    %1530 = arith.addf %1527, %1529 : vector<2x15xf32>
    %1531 = vector.broadcast %91 : f32 to vector<2x15xf32>
    %1532 = arith.mulf %1531, %373 : vector<2x15xf32>
    %1533 = arith.addf %1530, %1532 : vector<2x15xf32>
    %1534 = vector.broadcast %92 : f32 to vector<2x15xf32>
    %1535 = arith.mulf %1534, %374 : vector<2x15xf32>
    %1536 = arith.addf %1533, %1535 : vector<2x15xf32>
    %1537 = vector.broadcast %93 : f32 to vector<2x15xf32>
    %1538 = arith.mulf %1537, %375 : vector<2x15xf32>
    %1539 = arith.addf %1536, %1538 : vector<2x15xf32>
    %1540 = vector.broadcast %94 : f32 to vector<2x15xf32>
    %1541 = arith.mulf %1540, %379 : vector<2x15xf32>
    %1542 = arith.addf %1539, %1541 : vector<2x15xf32>
    %1543 = vector.broadcast %95 : f32 to vector<2x15xf32>
    %1544 = arith.mulf %1543, %380 : vector<2x15xf32>
    %1545 = arith.addf %1542, %1544 : vector<2x15xf32>
    %1546 = vector.broadcast %96 : f32 to vector<2x15xf32>
    %1547 = arith.mulf %1546, %381 : vector<2x15xf32>
    %1548 = arith.addf %1545, %1547 : vector<2x15xf32>
    %1549 = vector.broadcast %97 : f32 to vector<2x15xf32>
    %1550 = arith.mulf %1549, %385 : vector<2x15xf32>
    %1551 = arith.addf %1548, %1550 : vector<2x15xf32>
    %1552 = vector.broadcast %98 : f32 to vector<2x15xf32>
    %1553 = arith.mulf %1552, %386 : vector<2x15xf32>
    %1554 = arith.addf %1551, %1553 : vector<2x15xf32>
    %1555 = vector.broadcast %99 : f32 to vector<2x15xf32>
    %1556 = arith.mulf %1555, %387 : vector<2x15xf32>
    %1557 = arith.addf %1554, %1556 : vector<2x15xf32>
    %1558 = vector.broadcast %118 : f32 to vector<2x15xf32>
    %1559 = arith.addf %1557, %1558 : vector<2x15xf32>
    %cst_126 = arith.constant 0.000000e+00 : f32
    %1560 = vector.broadcast %cst_126 : f32 to vector<2x15xf32>
    %1561 = arith.maximumf %1559, %1560 : vector<2x15xf32>
    %1562 = arith.maximumf %1520, %1561 : vector<2x15xf32>
    %c0_127 = arith.constant 0 : index
    %c90_128 = arith.constant 90 : index
    %1563 = vector.load %arg13[%c0_127, %c90_128] : memref<2x120xf32, #tpu.memory_space<vmem>>, vector<2x15xf32>
    tpu.vector_store %arg13[%c0_127, %c90_128], %1562 {strides = array<i32>} : memref<2x120xf32, #tpu.memory_space<vmem>>, vector<2x15xf32>,
    %1564 = vector.broadcast %100 : f32 to vector<2x15xf32>
    %1565 = arith.mulf %1564, %364 : vector<2x15xf32>
    %cst_129 = arith.constant 0.000000e+00 : f32
    %1566 = vector.broadcast %cst_129 : f32 to vector<2x15xf32>
    %1567 = arith.addf %1566, %1565 : vector<2x15xf32>
    %1568 = vector.broadcast %101 : f32 to vector<2x15xf32>
    %1569 = arith.mulf %1568, %365 : vector<2x15xf32>
    %1570 = arith.addf %1567, %1569 : vector<2x15xf32>
    %1571 = vector.broadcast %102 : f32 to vector<2x15xf32>
    %1572 = arith.mulf %1571, %366 : vector<2x15xf32>
    %1573 = arith.addf %1570, %1572 : vector<2x15xf32>
    %1574 = vector.broadcast %103 : f32 to vector<2x15xf32>
    %1575 = arith.mulf %1574, %370 : vector<2x15xf32>
    %1576 = arith.addf %1573, %1575 : vector<2x15xf32>
    %1577 = vector.broadcast %104 : f32 to vector<2x15xf32>
    %1578 = arith.mulf %1577, %371 : vector<2x15xf32>
    %1579 = arith.addf %1576, %1578 : vector<2x15xf32>
    %1580 = vector.broadcast %105 : f32 to vector<2x15xf32>
    %1581 = arith.mulf %1580, %372 : vector<2x15xf32>
    %1582 = arith.addf %1579, %1581 : vector<2x15xf32>
    %1583 = vector.broadcast %106 : f32 to vector<2x15xf32>
    %1584 = arith.mulf %1583, %376 : vector<2x15xf32>
    %1585 = arith.addf %1582, %1584 : vector<2x15xf32>
    %1586 = vector.broadcast %107 : f32 to vector<2x15xf32>
    %1587 = arith.mulf %1586, %377 : vector<2x15xf32>
    %1588 = arith.addf %1585, %1587 : vector<2x15xf32>
    %1589 = vector.broadcast %108 : f32 to vector<2x15xf32>
    %1590 = arith.mulf %1589, %378 : vector<2x15xf32>
    %1591 = arith.addf %1588, %1590 : vector<2x15xf32>
    %1592 = vector.broadcast %109 : f32 to vector<2x15xf32>
    %1593 = arith.mulf %1592, %382 : vector<2x15xf32>
    %1594 = arith.addf %1591, %1593 : vector<2x15xf32>
    %1595 = vector.broadcast %110 : f32 to vector<2x15xf32>
    %1596 = arith.mulf %1595, %383 : vector<2x15xf32>
    %1597 = arith.addf %1594, %1596 : vector<2x15xf32>
    %1598 = vector.broadcast %111 : f32 to vector<2x15xf32>
    %1599 = arith.mulf %1598, %384 : vector<2x15xf32>
    %1600 = arith.addf %1597, %1599 : vector<2x15xf32>
    %1601 = vector.broadcast %119 : f32 to vector<2x15xf32>
    %1602 = arith.addf %1600, %1601 : vector<2x15xf32>
    %cst_130 = arith.constant 0.000000e+00 : f32
    %1603 = vector.broadcast %cst_130 : f32 to vector<2x15xf32>
    %1604 = arith.maximumf %1602, %1603 : vector<2x15xf32>
    %1605 = vector.broadcast %100 : f32 to vector<2x15xf32>
    %1606 = arith.mulf %1605, %365 : vector<2x15xf32>
    %cst_131 = arith.constant 0.000000e+00 : f32
    %1607 = vector.broadcast %cst_131 : f32 to vector<2x15xf32>
    %1608 = arith.addf %1607, %1606 : vector<2x15xf32>
    %1609 = vector.broadcast %101 : f32 to vector<2x15xf32>
    %1610 = arith.mulf %1609, %366 : vector<2x15xf32>
    %1611 = arith.addf %1608, %1610 : vector<2x15xf32>
    %1612 = vector.broadcast %102 : f32 to vector<2x15xf32>
    %1613 = arith.mulf %1612, %367 : vector<2x15xf32>
    %1614 = arith.addf %1611, %1613 : vector<2x15xf32>
    %1615 = vector.broadcast %103 : f32 to vector<2x15xf32>
    %1616 = arith.mulf %1615, %371 : vector<2x15xf32>
    %1617 = arith.addf %1614, %1616 : vector<2x15xf32>
    %1618 = vector.broadcast %104 : f32 to vector<2x15xf32>
    %1619 = arith.mulf %1618, %372 : vector<2x15xf32>
    %1620 = arith.addf %1617, %1619 : vector<2x15xf32>
    %1621 = vector.broadcast %105 : f32 to vector<2x15xf32>
    %1622 = arith.mulf %1621, %373 : vector<2x15xf32>
    %1623 = arith.addf %1620, %1622 : vector<2x15xf32>
    %1624 = vector.broadcast %106 : f32 to vector<2x15xf32>
    %1625 = arith.mulf %1624, %377 : vector<2x15xf32>
    %1626 = arith.addf %1623, %1625 : vector<2x15xf32>
    %1627 = vector.broadcast %107 : f32 to vector<2x15xf32>
    %1628 = arith.mulf %1627, %378 : vector<2x15xf32>
    %1629 = arith.addf %1626, %1628 : vector<2x15xf32>
    %1630 = vector.broadcast %108 : f32 to vector<2x15xf32>
    %1631 = arith.mulf %1630, %379 : vector<2x15xf32>
    %1632 = arith.addf %1629, %1631 : vector<2x15xf32>
    %1633 = vector.broadcast %109 : f32 to vector<2x15xf32>
    %1634 = arith.mulf %1633, %383 : vector<2x15xf32>
    %1635 = arith.addf %1632, %1634 : vector<2x15xf32>
    %1636 = vector.broadcast %110 : f32 to vector<2x15xf32>
    %1637 = arith.mulf %1636, %384 : vector<2x15xf32>
    %1638 = arith.addf %1635, %1637 : vector<2x15xf32>
    %1639 = vector.broadcast %111 : f32 to vector<2x15xf32>
    %1640 = arith.mulf %1639, %385 : vector<2x15xf32>
    %1641 = arith.addf %1638, %1640 : vector<2x15xf32>
    %1642 = vector.broadcast %119 : f32 to vector<2x15xf32>
    %1643 = arith.addf %1641, %1642 : vector<2x15xf32>
    %cst_132 = arith.constant 0.000000e+00 : f32
    %1644 = vector.broadcast %cst_132 : f32 to vector<2x15xf32>
    %1645 = arith.maximumf %1643, %1644 : vector<2x15xf32>
    %1646 = arith.maximumf %1604, %1645 : vector<2x15xf32>
    %1647 = vector.broadcast %100 : f32 to vector<2x15xf32>
    %1648 = arith.mulf %1647, %366 : vector<2x15xf32>
    %cst_133 = arith.constant 0.000000e+00 : f32
    %1649 = vector.broadcast %cst_133 : f32 to vector<2x15xf32>
    %1650 = arith.addf %1649, %1648 : vector<2x15xf32>
    %1651 = vector.broadcast %101 : f32 to vector<2x15xf32>
    %1652 = arith.mulf %1651, %367 : vector<2x15xf32>
    %1653 = arith.addf %1650, %1652 : vector<2x15xf32>
    %1654 = vector.broadcast %102 : f32 to vector<2x15xf32>
    %1655 = arith.mulf %1654, %368 : vector<2x15xf32>
    %1656 = arith.addf %1653, %1655 : vector<2x15xf32>
    %1657 = vector.broadcast %103 : f32 to vector<2x15xf32>
    %1658 = arith.mulf %1657, %372 : vector<2x15xf32>
    %1659 = arith.addf %1656, %1658 : vector<2x15xf32>
    %1660 = vector.broadcast %104 : f32 to vector<2x15xf32>
    %1661 = arith.mulf %1660, %373 : vector<2x15xf32>
    %1662 = arith.addf %1659, %1661 : vector<2x15xf32>
    %1663 = vector.broadcast %105 : f32 to vector<2x15xf32>
    %1664 = arith.mulf %1663, %374 : vector<2x15xf32>
    %1665 = arith.addf %1662, %1664 : vector<2x15xf32>
    %1666 = vector.broadcast %106 : f32 to vector<2x15xf32>
    %1667 = arith.mulf %1666, %378 : vector<2x15xf32>
    %1668 = arith.addf %1665, %1667 : vector<2x15xf32>
    %1669 = vector.broadcast %107 : f32 to vector<2x15xf32>
    %1670 = arith.mulf %1669, %379 : vector<2x15xf32>
    %1671 = arith.addf %1668, %1670 : vector<2x15xf32>
    %1672 = vector.broadcast %108 : f32 to vector<2x15xf32>
    %1673 = arith.mulf %1672, %380 : vector<2x15xf32>
    %1674 = arith.addf %1671, %1673 : vector<2x15xf32>
    %1675 = vector.broadcast %109 : f32 to vector<2x15xf32>
    %1676 = arith.mulf %1675, %384 : vector<2x15xf32>
    %1677 = arith.addf %1674, %1676 : vector<2x15xf32>
    %1678 = vector.broadcast %110 : f32 to vector<2x15xf32>
    %1679 = arith.mulf %1678, %385 : vector<2x15xf32>
    %1680 = arith.addf %1677, %1679 : vector<2x15xf32>
    %1681 = vector.broadcast %111 : f32 to vector<2x15xf32>
    %1682 = arith.mulf %1681, %386 : vector<2x15xf32>
    %1683 = arith.addf %1680, %1682 : vector<2x15xf32>
    %1684 = vector.broadcast %119 : f32 to vector<2x15xf32>
    %1685 = arith.addf %1683, %1684 : vector<2x15xf32>
    %cst_134 = arith.constant 0.000000e+00 : f32
    %1686 = vector.broadcast %cst_134 : f32 to vector<2x15xf32>
    %1687 = arith.maximumf %1685, %1686 : vector<2x15xf32>
    %1688 = arith.maximumf %1646, %1687 : vector<2x15xf32>
    %1689 = vector.broadcast %100 : f32 to vector<2x15xf32>
    %1690 = arith.mulf %1689, %367 : vector<2x15xf32>
    %cst_135 = arith.constant 0.000000e+00 : f32
    %1691 = vector.broadcast %cst_135 : f32 to vector<2x15xf32>
    %1692 = arith.addf %1691, %1690 : vector<2x15xf32>
    %1693 = vector.broadcast %101 : f32 to vector<2x15xf32>
    %1694 = arith.mulf %1693, %368 : vector<2x15xf32>
    %1695 = arith.addf %1692, %1694 : vector<2x15xf32>
    %1696 = vector.broadcast %102 : f32 to vector<2x15xf32>
    %1697 = arith.mulf %1696, %369 : vector<2x15xf32>
    %1698 = arith.addf %1695, %1697 : vector<2x15xf32>
    %1699 = vector.broadcast %103 : f32 to vector<2x15xf32>
    %1700 = arith.mulf %1699, %373 : vector<2x15xf32>
    %1701 = arith.addf %1698, %1700 : vector<2x15xf32>
    %1702 = vector.broadcast %104 : f32 to vector<2x15xf32>
    %1703 = arith.mulf %1702, %374 : vector<2x15xf32>
    %1704 = arith.addf %1701, %1703 : vector<2x15xf32>
    %1705 = vector.broadcast %105 : f32 to vector<2x15xf32>
    %1706 = arith.mulf %1705, %375 : vector<2x15xf32>
    %1707 = arith.addf %1704, %1706 : vector<2x15xf32>
    %1708 = vector.broadcast %106 : f32 to vector<2x15xf32>
    %1709 = arith.mulf %1708, %379 : vector<2x15xf32>
    %1710 = arith.addf %1707, %1709 : vector<2x15xf32>
    %1711 = vector.broadcast %107 : f32 to vector<2x15xf32>
    %1712 = arith.mulf %1711, %380 : vector<2x15xf32>
    %1713 = arith.addf %1710, %1712 : vector<2x15xf32>
    %1714 = vector.broadcast %108 : f32 to vector<2x15xf32>
    %1715 = arith.mulf %1714, %381 : vector<2x15xf32>
    %1716 = arith.addf %1713, %1715 : vector<2x15xf32>
    %1717 = vector.broadcast %109 : f32 to vector<2x15xf32>
    %1718 = arith.mulf %1717, %385 : vector<2x15xf32>
    %1719 = arith.addf %1716, %1718 : vector<2x15xf32>
    %1720 = vector.broadcast %110 : f32 to vector<2x15xf32>
    %1721 = arith.mulf %1720, %386 : vector<2x15xf32>
    %1722 = arith.addf %1719, %1721 : vector<2x15xf32>
    %1723 = vector.broadcast %111 : f32 to vector<2x15xf32>
    %1724 = arith.mulf %1723, %387 : vector<2x15xf32>
    %1725 = arith.addf %1722, %1724 : vector<2x15xf32>
    %1726 = vector.broadcast %119 : f32 to vector<2x15xf32>
    %1727 = arith.addf %1725, %1726 : vector<2x15xf32>
    %cst_136 = arith.constant 0.000000e+00 : f32
    %1728 = vector.broadcast %cst_136 : f32 to vector<2x15xf32>
    %1729 = arith.maximumf %1727, %1728 : vector<2x15xf32>
    %1730 = arith.maximumf %1688, %1729 : vector<2x15xf32>
    %c0_137 = arith.constant 0 : index
    %c105 = arith.constant 105 : index
    %1731 = vector.load %arg13[%c0_137, %c105] : memref<2x120xf32, #tpu.memory_space<vmem>>, vector<2x15xf32>
    tpu.vector_store %arg13[%c0_137, %c105], %1730 {strides = array<i32>} : memref<2x120xf32, #tpu.memory_space<vmem>>, vector<2x15xf32>,
    %c0_138 = arith.constant 0 : index
    %c0_139 = arith.constant 0 : index
    %1732 = vector.load %arg13[%c0_138, %c0_139] : memref<2x120xf32, #tpu.memory_space<vmem>>, vector<2x120xf32>
    %c0_140 = arith.constant 0 : index
    %c0_141 = arith.constant 0 : index
    %c0_142 = arith.constant 0 : index
    %1733 = vector.load %arg6[%c0_140, %c0_141, %c0_142] : memref<1x120x32xf32, #tpu.memory_space<vmem>>, vector<1x120x32xf32>
    %1734 = vector.shape_cast %1733 : vector<1x120x32xf32> to vector<120x32xf32>
    %cst_143 = arith.constant dense<0.000000e+00> : vector<2x32xf32>
    %1735 = tpu.matmul %1732, %1734, %cst_143 {dimension_numbers = #tpu.dot_dimension_numbers<[1], [0], [0], [1], [0, 0, 1, 1], [], []>} : vector<2x120xf32>, vector<120x32xf32>, vector<2x32xf32> -> vector<2x32xf32>
    %c0_144 = arith.constant 0 : index
    %c0_145 = arith.constant 0 : index
    %1736 = vector.load %arg7[%c0_144, %c0_145] : memref<1x32xf32, #tpu.memory_space<vmem>>, vector<1x32xf32>
    %1737 = vector.broadcast %1736 : vector<1x32xf32> to vector<2x32xf32>
    %1738 = arith.addf %1735, %1737 : vector<2x32xf32>
    %cst_146 = arith.constant 0.000000e+00 : f32
    %1739 = vector.broadcast %cst_146 : f32 to vector<2x32xf32>
    %1740 = arith.maximumf %1738, %1739 : vector<2x32xf32>
    %c0_147 = arith.constant 0 : index
    %c0_148 = arith.constant 0 : index
    %1741 = vector.load %arg8[%c0_147, %c0_148] : memref<32x16xf32, #tpu.memory_space<vmem>>, vector<32x16xf32>
    %cst_149 = arith.constant dense<0.000000e+00> : vector<2x16xf32>
    %1742 = tpu.matmul %1740, %1741, %cst_149 {dimension_numbers = #tpu.dot_dimension_numbers<[1], [0], [0], [1], [0, 0, 1, 1], [], []>} : vector<2x32xf32>, vector<32x16xf32>, vector<2x16xf32> -> vector<2x16xf32>
    %c0_150 = arith.constant 0 : index
    %c0_151 = arith.constant 0 : index
    %1743 = vector.load %arg9[%c0_150, %c0_151] : memref<1x16xf32, #tpu.memory_space<vmem>>, vector<1x16xf32>
    %1744 = vector.broadcast %1743 : vector<1x16xf32> to vector<2x16xf32>
    %1745 = arith.addf %1742, %1744 : vector<2x16xf32>
    %cst_152 = arith.constant 0.000000e+00 : f32
    %1746 = vector.broadcast %cst_152 : f32 to vector<2x16xf32>
    %1747 = arith.maximumf %1745, %1746 : vector<2x16xf32>
    %c0_153 = arith.constant 0 : index
    %c0_154 = arith.constant 0 : index
    %1748 = vector.load %arg10[%c0_153, %c0_154] : memref<16x128xf32, #tpu.memory_space<vmem>>, vector<16x128xf32>
    %cst_155 = arith.constant dense<0.000000e+00> : vector<2x128xf32>
    %1749 = tpu.matmul %1747, %1748, %cst_155 {dimension_numbers = #tpu.dot_dimension_numbers<[1], [0], [0], [1], [0, 0, 1, 1], [], []>} : vector<2x16xf32>, vector<16x128xf32>, vector<2x128xf32> -> vector<2x128xf32>
    %c0_156 = arith.constant 0 : index
    %c0_157 = arith.constant 0 : index
    %1750 = vector.load %arg11[%c0_156, %c0_157] : memref<1x128xf32, #tpu.memory_space<vmem>>, vector<1x128xf32>
    %1751 = vector.broadcast %1750 : vector<1x128xf32> to vector<2x128xf32>
    %1752 = arith.addf %1749, %1751 : vector<2x128xf32>
    %c0_158 = arith.constant 0 : index
    %c0_159 = arith.constant 0 : index
    %1753 = vector.load %arg12[%c0_158, %c0_159] : memref<2x128xf32, #tpu.memory_space<vmem>>, vector<2x128xf32>
    tpu.vector_store %arg12[%c0_158, %c0_159], %1752 {strides = array<i32>} : memref<2x128xf32, #tpu.memory_space<vmem>>, vector<2x128xf32>,
    return
  }
  func.func @transform_0(%arg0: i32) -> i32 {
    %c0_i32 = arith.constant 0 : i32
    %c0_i32_0 = arith.constant 0 : i32
    return %c0_i32 : i32
  }
  func.func @transform_1(%arg0: i32) -> i32 {
    %c0_i32 = arith.constant 0 : i32
    %c0_i32_0 = arith.constant 0 : i32
    return %c0_i32 : i32
  }
  func.func @transform_2(%arg0: i32) -> i32 {
    %c0_i32 = arith.constant 0 : i32
    %c0_i32_0 = arith.constant 0 : i32
    return %c0_i32 : i32
  }
  func.func @transform_3(%arg0: i32) -> i32 {
    %c0_i32 = arith.constant 0 : i32
    %c0_i32_0 = arith.constant 0 : i32
    return %c0_i32 : i32
  }
  func.func @transform_4(%arg0: i32) -> (i32, i32, i32, i32) {
    %c0_i32 = arith.constant 0 : i32
    %c0_i32_0 = arith.constant 0 : i32
    %c0_i32_1 = arith.constant 0 : i32
    %c0_i32_2 = arith.constant 0 : i32
    return %c0_i32, %c0_i32_0, %arg0, %c0_i32_1 : i32, i32, i32, i32
  }
  func.func @transform_5(%arg0: i32) -> (i32, i32, i32) {
    %c0_i32 = arith.constant 0 : i32
    %c0_i32_0 = arith.constant 0 : i32
    %c0_i32_1 = arith.constant 0 : i32
    %c0_i32_2 = arith.constant 0 : i32
    return %c0_i32, %c0_i32_0, %c0_i32_1 : i32, i32, i32
  }
  func.func @transform_6(%arg0: i32) -> (i32, i32) {
    %c0_i32 = arith.constant 0 : i32
    %c0_i32_0 = arith.constant 0 : i32
    %c0_i32_1 = arith.constant 0 : i32
    return %c0_i32, %c0_i32_0 : i32, i32
  }
  func.func @transform_7(%arg0: i32) -> (i32, i32) {
    %c0_i32 = arith.constant 0 : i32
    %c0_i32_0 = arith.constant 0 : i32
    %c0_i32_1 = arith.constant 0 : i32
    return %c0_i32, %c0_i32_0 : i32, i32
  }
  func.func @transform_8(%arg0: i32) -> (i32, i32) {
    %c0_i32 = arith.constant 0 : i32
    %c0_i32_0 = arith.constant 0 : i32
    %c0_i32_1 = arith.constant 0 : i32
    return %c0_i32, %c0_i32_0 : i32, i32
  }
  func.func @transform_9(%arg0: i32) -> (i32, i32) {
    %c0_i32 = arith.constant 0 : i32
    %c0_i32_0 = arith.constant 0 : i32
    %c0_i32_1 = arith.constant 0 : i32
    return %c0_i32, %c0_i32_0 : i32, i32
  }
  func.func @transform_10(%arg0: i32) -> (i32, i32) {
    %c0_i32 = arith.constant 0 : i32
    %c0_i32_0 = arith.constant 0 : i32
    %c0_i32_1 = arith.constant 0 : i32
    return %c0_i32, %c0_i32_0 : i32, i32
  }
  func.func @transform_11(%arg0: i32) -> (i32, i32) {
    %c0_i32 = arith.constant 0 : i32
    %c0_i32_0 = arith.constant 0 : i32
    return %arg0, %c0_i32 : i32, i32
  }
}

</mosaic_0001>

<llo_original>
// kernel: tpu_custom_call.1
$region0: #{tpu_custom_call.1}
  #allocation0 [shape = 'u32[]', space=smem, size = 0x4, offset = 0x4, fixed_abs, tag = 'smem constant byte address 0x4 - core index']
  #allocation1 [shape = 'u32[144,128]{1,0:T(1,128)}', space=vmem, size = 0x12000, scoped, tag = 'internal scratch']
  #allocation2 [shape = 'f32[2,120]{1,0:T(2,128)}', space=vmem, size = 0x400, scoped, tag = 'scratch operand']
  %s0 = inlined_call_operand.vmem [shape: f32[12], index: 0, kind: input, shape index: {}]
  %s1 = inlined_call_operand.vmem [shape: f32[4], index: 1, kind: input, shape index: {}]
  %s2 = inlined_call_operand.vmem [shape: f32[96], index: 2, kind: input, shape index: {}]
  %s3 = inlined_call_operand.vmem [shape: f32[8], index: 3, kind: input, shape index: {}]
  %s4 = inlined_call_operand.vmem [shape: f32[1,4,2,17], index: 4, kind: input, shape index: {}]
  %s5 = inlined_call_operand.vmem [shape: f32[1,120,32], index: 5, kind: input, shape index: {}]
  %s6 = inlined_call_operand.vmem [shape: f32[1,32], index: 6, kind: input, shape index: {}]
  %s7 = inlined_call_operand.vmem [shape: f32[32,16], index: 7, kind: input, shape index: {}]
  %s8 = inlined_call_operand.vmem [shape: f32[1,16], index: 8, kind: input, shape index: {}]
  %s9 = inlined_call_operand.vmem [shape: f32[16,128], index: 9, kind: input, shape index: {}]
  %s10 = inlined_call_operand.vmem [shape: f32[1,128], index: 10, kind: input, shape index: {}]
  %s11 = inlined_call_operand.hbm [shape: f32[2,128], index: 11, kind: output, shape index: {}]
  %s12 = sld [smem:[#allocation0]]
  $region70: #{tpu_custom_call.1} parent=0
    _
  %s14 = ssub.s32 1, %s12
  %s15 = scalar_select 0, %s14, %s12
  $region1: #{tpu_custom_call.1} parent=0
    #allocation3 [shape = 'u8[512]{0}', space=smem, size = 0x200, scoped, tag = 'input window, operand 0, single buffered']
    #allocation4 [shape = 's32[1]{0}', space=sflag, size = 0x4, scoped, tag = 'scoped memory for tpu_custom_call.1']
    #allocation5 [shape = 's32[1]{0}', space=sflag, size = 0x4, scoped, tag = 'scoped memory for tpu_custom_call.1']
    #allocation6 [shape = 'u8[512]{0}', space=smem, size = 0x200, scoped, tag = 'input window, operand 1, single buffered']
    #allocation7 [shape = 's32[1]{0}', space=sflag, size = 0x4, scoped, tag = 'scoped memory for tpu_custom_call.1']
    #allocation8 [shape = 'u8[512]{0}', space=smem, size = 0x200, scoped, tag = 'input window, operand 2, single buffered']
    #allocation9 [shape = 'u8[512]{0}', space=smem, size = 0x200, scoped, tag = 'input window, operand 3, single buffered']
    #allocation10 [shape = 's32[1]{0}', space=sflag, size = 0x4, scoped, tag = 'scoped memory for tpu_custom_call.1']
    #allocation11 [shape = 'u8[1024]{0}', space=vmem, size = 0x400, scoped, tag = 'output window, operand 0, single buffered']
    %16 = vsyncpa [#allocation5], 0
    %17 = vsyncpa [#allocation7], 0
    %18 = vsyncpa [#allocation10], 0
    %19 = vsyncpa [#allocation4], 0
    // Predicated region
    $region2: #{tpu_custom_call.1} parent=1 // pred_check
      _
    $region3: #{tpu_custom_call.1} parent=1 // pred_check_branch
      %21 = sbr.rel (0) target = $region5
    $region4: #{tpu_custom_call.1} parent=1 // pred_region
      %s23 = ssub.s32 16, 16
      %24 = vsyncadd [#allocation5], %s23
      %s26 = sshll.u32 %s0, 4
      %s27 = int_to_ptr.vmem [resolvable:$true] %s26
      %29 = dma.vmem_to_smem %s27, 16, [#allocation3], [#allocation5]
    $region5: #{tpu_custom_call.1} parent=1 // pred_fallthru
      _
    // Predicated region
    $region6: #{tpu_custom_call.1} parent=1 // pred_check
      _
    $region7: #{tpu_custom_call.1} parent=1 // pred_check_branch
      %31 = sbr.rel (0) target = $region9
    $region8: #{tpu_custom_call.1} parent=1 // pred_region
      %s33 = ssub.s32 16, 16
      %34 = vsyncadd [#allocation7], %s33
      %s36 = sshll.u32 %s1, 4
      %s37 = int_to_ptr.vmem [resolvable:$true] %s36
      %39 = dma.vmem_to_smem %s37, 16, [#allocation6], [#allocation7]
    $region9: #{tpu_custom_call.1} parent=1 // pred_fallthru
      _
    // Predicated region
    $region10: #{tpu_custom_call.1} parent=1 // pred_check
      _
    $region11: #{tpu_custom_call.1} parent=1 // pred_check_branch
      %41 = sbr.rel (0) target = $region13
    $region12: #{tpu_custom_call.1} parent=1 // pred_region
      %s43 = ssub.s32 16, 16
      %44 = vsyncadd [#allocation7], %s43
      %s46 = sshll.u32 %s2, 4
      %s47 = int_to_ptr.vmem [resolvable:$true] %s46
      %49 = dma.vmem_to_smem %s47, 16, [#allocation8], [#allocation7]
    $region13: #{tpu_custom_call.1} parent=1 // pred_fallthru
      _
    // Predicated region
    $region14: #{tpu_custom_call.1} parent=1 // pred_check
      _
    $region15: #{tpu_custom_call.1} parent=1 // pred_check_branch
      %51 = sbr.rel (0) target = $region17
    $region16: #{tpu_custom_call.1} parent=1 // pred_region
      %s53 = ssub.s32 16, 16
      %54 = vsyncadd [#allocation10], %s53
      %s56 = sshll.u32 %s3, 4
      %s57 = int_to_ptr.vmem [resolvable:$true] %s56
      %59 = dma.vmem_to_smem %s57, 16, [#allocation9], [#allocation10]
    $region17: #{tpu_custom_call.1} parent=1 // pred_fallthru
      _
    // Predicated region
    $region18: #{tpu_custom_call.1} parent=1 // pred_check
      _
    $region19: #{tpu_custom_call.1} parent=1 // pred_check_branch
      %61 = sbr.rel (0) target = $region21
    $region20: #{tpu_custom_call.1} parent=1 // pred_region
      _
    $region21: #{tpu_custom_call.1} parent=1 // pred_fallthru
      _
    // Predicated region
    $region22: #{tpu_custom_call.1} parent=1 // pred_check
      _
    $region23: #{tpu_custom_call.1} parent=1 // pred_check_branch
      %63 = sbr.rel (0) target = $region25
    $region24: #{tpu_custom_call.1} parent=1 // pred_region
      _
    $region25: #{tpu_custom_call.1} parent=1 // pred_fallthru
      _
    // Predicated region
    $region26: #{tpu_custom_call.1} parent=1 // pred_check
      _
    $region27: #{tpu_custom_call.1} parent=1 // pred_check_branch
      %65 = sbr.rel (0) target = $region29
    $region28: #{tpu_custom_call.1} parent=1 // pred_region
      _
    $region29: #{tpu_custom_call.1} parent=1 // pred_fallthru
      _
    // Predicated region
    $region30: #{tpu_custom_call.1} parent=1 // pred_check
      _
    $region31: #{tpu_custom_call.1} parent=1 // pred_check_branch
      %67 = sbr.rel (0) target = $region33
    $region32: #{tpu_custom_call.1} parent=1 // pred_region
      _
    $region33: #{tpu_custom_call.1} parent=1 // pred_fallthru
      _
    // Predicated region
    $region34: #{tpu_custom_call.1} parent=1 // pred_check
      _
    $region35: #{tpu_custom_call.1} parent=1 // pred_check_branch
      %69 = sbr.rel (0) target = $region37
    $region36: #{tpu_custom_call.1} parent=1 // pred_region
      _
    $region37: #{tpu_custom_call.1} parent=1 // pred_fallthru
      _
    // Predicated region
    $region38: #{tpu_custom_call.1} parent=1 // pred_check
      _
    $region39: #{tpu_custom_call.1} parent=1 // pred_check_branch
      %71 = sbr.rel (0) target = $region41
    $region40: #{tpu_custom_call.1} parent=1 // pred_region
      _
    $region41: #{tpu_custom_call.1} parent=1 // pred_fallthru
      _
    // Predicated region
    $region42: #{tpu_custom_call.1} parent=1 // pred_check
      _
    $region43: #{tpu_custom_call.1} parent=1 // pred_check_branch
      %73 = sbr.rel (0) target = $region45
    $region44: #{tpu_custom_call.1} parent=1 // pred_region
      _
    $region45: #{tpu_custom_call.1} parent=1 // pred_fallthru
      _
    // Predicated region
    $region46: #{tpu_custom_call.1} parent=1 // pred_check
      _
    $region47: #{tpu_custom_call.1} parent=1 // pred_check_branch
      %75 = sbr.rel (0) target = $region49
    $region48: #{tpu_custom_call.1} parent=1 // pred_region
      %76 = dma.done [#allocation5], 16
    $region49: #{tpu_custom_call.1} parent=1 // pred_fallthru
      _
    // Predicated region
    $region50: #{tpu_custom_call.1} parent=1 // pred_check
      _
    $region51: #{tpu_custom_call.1} parent=1 // pred_check_branch
      %78 = sbr.rel (0) target = $region53
    $region52: #{tpu_custom_call.1} parent=1 // pred_region
      %79 = dma.done [#allocation7], 16
    $region53: #{tpu_custom_call.1} parent=1 // pred_fallthru
      _
    // Predicated region
    $region54: #{tpu_custom_call.1} parent=1 // pred_check
      _
    $region55: #{tpu_custom_call.1} parent=1 // pred_check_branch
      %81 = sbr.rel (0) target = $region57
    $region56: #{tpu_custom_call.1} parent=1 // pred_region
      %82 = dma.done [#allocation7], 16
    $region57: #{tpu_custom_call.1} parent=1 // pred_fallthru
      _
    // Predicated region
    $region58: #{tpu_custom_call.1} parent=1 // pred_check
      _
    $region59: #{tpu_custom_call.1} parent=1 // pred_check_branch
      %84 = sbr.rel (0) target = $region61
    $region60: #{tpu_custom_call.1} parent=1 // pred_region
      %85 = dma.done [#allocation10], 16
    $region61: #{tpu_custom_call.1} parent=1 // pred_fallthru
      _
    %86 = sfence
    %s87 = sld [smem:[#allocation3]]
    %s88 = sld [smem:[#allocation3 + $0x1]]
    %s89 = sld [smem:[#allocation3 + $0x2]]
    %s90 = sld [smem:[#allocation3 + $0x3]]
    %s91 = sld [smem:[#allocation3 + $0x4]]
    %s92 = sld [smem:[#allocation3 + $0x5]]
    %s93 = sld [smem:[#allocation3 + $0x6]]
    %s94 = sld [smem:[#allocation3 + $0x7]]
    %s95 = sld [smem:[#allocation3 + $0x8]]
    %s96 = sld [smem:[#allocation3 + $0x9]]
    %s97 = sld [smem:[#allocation3 + $0xa]]
    %s98 = sld [smem:[#allocation3 + $0xb]]
    %s99 = sld [smem:[#allocation6]]
    %s100 = sld [smem:[#allocation6 + $0x1]]
    %s101 = sld [smem:[#allocation6 + $0x2]]
    %s102 = sld [smem:[#allocation6 + $0x3]]
    %s103 = sld [smem:[#allocation8]]
    %s104 = sld [smem:[#allocation8 + $0x1]]
    %s105 = sld [smem:[#allocation8 + $0x2]]
    %s106 = sld [smem:[#allocation8 + $0x3]]
    %s107 = sld [smem:[#allocation8 + $0x4]]
    %s108 = sld [smem:[#allocation8 + $0x5]]
    %s109 = sld [smem:[#allocation8 + $0x6]]
    %s110 = sld [smem:[#allocation8 + $0x7]]
    %s111 = sld [smem:[#allocation8 + $0x8]]
    %s112 = sld [smem:[#allocation8 + $0x9]]
    %s113 = sld [smem:[#allocation8 + $0xa]]
    %s114 = sld [smem:[#allocation8 + $0xb]]
    %s115 = sld [smem:[#allocation8 + $0xc]]
    %s116 = sld [smem:[#allocation8 + $0xd]]
    %s117 = sld [smem:[#allocation8 + $0xe]]
    %s118 = sld [smem:[#allocation8 + $0xf]]
    %s119 = sld [smem:[#allocation8 + $0x10]]
    %s120 = sld [smem:[#allocation8 + $0x11]]
    %s121 = sld [smem:[#allocation8 + $0x12]]
    %s122 = sld [smem:[#allocation8 + $0x13]]
    %s123 = sld [smem:[#allocation8 + $0x14]]
    %s124 = sld [smem:[#allocation8 + $0x15]]
    %s125 = sld [smem:[#allocation8 + $0x16]]
    %s126 = sld [smem:[#allocation8 + $0x17]]
    %s127 = sld [smem:[#allocation8 + $0x18]]
    %s128 = sld [smem:[#allocation8 + $0x19]]
    %s129 = sld [smem:[#allocation8 + $0x1a]]
    %s130 = sld [smem:[#allocation8 + $0x1b]]
    %s131 = sld [smem:[#allocation8 + $0x1c]]
    %s132 = sld [smem:[#allocation8 + $0x1d]]
    %s133 = sld [smem:[#allocation8 + $0x1e]]
    %s134 = sld [smem:[#allocation8 + $0x1f]]
    %s135 = sld [smem:[#allocation8 + $0x20]]
    %s136 = sld [smem:[#allocation8 + $0x21]]
    %s137 = sld [smem:[#allocation8 + $0x22]]
    %s138 = sld [smem:[#allocation8 + $0x23]]
    %s139 = sld [smem:[#allocation8 + $0x24]]
    %s140 = sld [smem:[#allocation8 + $0x25]]
    %s141 = sld [smem:[#allocation8 + $0x26]]
    %s142 = sld [smem:[#allocation8 + $0x27]]
    %s143 = sld [smem:[#allocation8 + $0x28]]
    %s144 = sld [smem:[#allocation8 + $0x29]]
    %s145 = sld [smem:[#allocation8 + $0x2a]]
    %s146 = sld [smem:[#allocation8 + $0x2b]]
    %s147 = sld [smem:[#allocation8 + $0x2c]]
    %s148 = sld [smem:[#allocation8 + $0x2d]]
    %s149 = sld [smem:[#allocation8 + $0x2e]]
    %s150 = sld [smem:[#allocation8 + $0x2f]]
    %s151 = sld [smem:[#allocation8 + $0x30]]
    %s152 = sld [smem:[#allocation8 + $0x31]]
    %s153 = sld [smem:[#allocation8 + $0x32]]
    %s154 = sld [smem:[#allocation8 + $0x33]]
    %s155 = sld [smem:[#allocation8 + $0x34]]
    %s156 = sld [smem:[#allocation8 + $0x35]]
    %s157 = sld [smem:[#allocation8 + $0x36]]
    %s158 = sld [smem:[#allocation8 + $0x37]]
    %s159 = sld [smem:[#allocation8 + $0x38]]
    %s160 = sld [smem:[#allocation8 + $0x39]]
    %s161 = sld [smem:[#allocation8 + $0x3a]]
    %s162 = sld [smem:[#allocation8 + $0x3b]]
    %s163 = sld [smem:[#allocation8 + $0x3c]]
    %s164 = sld [smem:[#allocation8 + $0x3d]]
    %s165 = sld [smem:[#allocation8 + $0x3e]]
    %s166 = sld [smem:[#allocation8 + $0x3f]]
    %s167 = sld [smem:[#allocation8 + $0x40]]
    %s168 = sld [smem:[#allocation8 + $0x41]]
    %s169 = sld [smem:[#allocation8 + $0x42]]
    %s170 = sld [smem:[#allocation8 + $0x43]]
    %s171 = sld [smem:[#allocation8 + $0x44]]
    %s172 = sld [smem:[#allocation8 + $0x45]]
    %s173 = sld [smem:[#allocation8 + $0x46]]
    %s174 = sld [smem:[#allocation8 + $0x47]]
    %s175 = sld [smem:[#allocation8 + $0x48]]
    %s176 = sld [smem:[#allocation8 + $0x49]]
    %s177 = sld [smem:[#allocation8 + $0x4a]]
    %s178 = sld [smem:[#allocation8 + $0x4b]]
    %s179 = sld [smem:[#allocation8 + $0x4c]]
    %s180 = sld [smem:[#allocation8 + $0x4d]]
    %s181 = sld [smem:[#allocation8 + $0x4e]]
    %s182 = sld [smem:[#allocation8 + $0x4f]]
    %s183 = sld [smem:[#allocation8 + $0x50]]
    %s184 = sld [smem:[#allocation8 + $0x51]]
    %s185 = sld [smem:[#allocation8 + $0x52]]
    %s186 = sld [smem:[#allocation8 + $0x53]]
    %s187 = sld [smem:[#allocation8 + $0x54]]
    %s188 = sld [smem:[#allocation8 + $0x55]]
    %s189 = sld [smem:[#allocation8 + $0x56]]
    %s190 = sld [smem:[#allocation8 + $0x57]]
    %s191 = sld [smem:[#allocation8 + $0x58]]
    %s192 = sld [smem:[#allocation8 + $0x59]]
    %s193 = sld [smem:[#allocation8 + $0x5a]]
    %s194 = sld [smem:[#allocation8 + $0x5b]]
    %s195 = sld [smem:[#allocation8 + $0x5c]]
    %s196 = sld [smem:[#allocation8 + $0x5d]]
    %s197 = sld [smem:[#allocation8 + $0x5e]]
    %s198 = sld [smem:[#allocation8 + $0x5f]]
    %s199 = sld [smem:[#allocation9]]
    %s200 = sld [smem:[#allocation9 + $0x1]]
    %s201 = sld [smem:[#allocation9 + $0x2]]
    %s202 = sld [smem:[#allocation9 + $0x3]]
    %s203 = sld [smem:[#allocation9 + $0x4]]
    %s204 = sld [smem:[#allocation9 + $0x5]]
    %s205 = sld [smem:[#allocation9 + $0x6]]
    %s206 = sld [smem:[#allocation9 + $0x7]]
    %v207 = vld [vmem:[%s4] sm:$0x3]
    %v208 = vld [vmem:[%s4 + $0x2] sm:$0x3]
    %v209 = vld [vmem:[%s4 + $0x4] sm:$0x3]
    %v210 = vld [vmem:[%s4 + $0x6] sm:$0x3]
    %v211 = vstv %s87
    %v212 = vmul.f32 %v211, %v207
    %v213 = vadd.f32 %v212, 0.0
    %v214 = vstv %s88
    %v215 = vmul.f32 %v214, %v208
    %v216 = vadd.f32 %v213, %v215
    %v217 = vstv %s89
    %v218 = vmul.f32 %v217, %v209
    %v219 = vadd.f32 %v216, %v218
    %v220 = vstv %s99
    %v221 = vadd.f32 %v219, %v220
    %v222 = vmax.f32 %v221, 0.0
    %v223 = vmul.f32 %v211, %v208
    %v224 = vadd.f32 %v223, 0.0
    %v225 = vmul.f32 %v214, %v209
    %v226 = vadd.f32 %v224, %v225
    %v227 = vmul.f32 %v217, %v210
    %v228 = vadd.f32 %v226, %v227
    %v229 = vadd.f32 %v228, %v220
    %v230 = vmax.f32 %v229, 0.0
    %v231 = vmul.f32 %v211, %v209
    %v232 = vadd.f32 %v231, 0.0
    %v233 = vmul.f32 %v214, %v210
    %v234 = vadd.f32 %v232, %v233
    %v235 = vmul.f32 %v217, %v207
    %237 = vrot.lane.b32.xlu0 %v235, 127
    %v238 = vpop.permute.xlu0 %237
    %v240 = vadd.f32 %v234, %v238
    %v241 = vadd.f32 %v240, %v220
    %v242 = vmax.f32 %v241, 0.0
    %v243 = vmul.f32 %v211, %v210
    %v244 = vadd.f32 %v243, 0.0
    %v245 = vmul.f32 %v214, %v207
    %247 = vrot.lane.b32.xlu0 %v245, 127
    %v248 = vpop.permute.xlu0 %247
    %v250 = vadd.f32 %v244, %v248
    %v251 = vmul.f32 %v217, %v208
    %253 = vrot.lane.b32.xlu0 %v251, 127
    %v254 = vpop.permute.xlu0 %253
    %v256 = vadd.f32 %v250, %v254
    %v257 = vadd.f32 %v256, %v220
    %v258 = vmax.f32 %v257, 0.0
    %v259 = vstv %s90
    %v260 = vmul.f32 %v259, %v207
    %v261 = vadd.f32 %v260, 0.0
    %v262 = vstv %s91
    %v263 = vmul.f32 %v262, %v208
    %v264 = vadd.f32 %v261, %v263
    %v265 = vstv %s92
    %v266 = vmul.f32 %v265, %v209
    %v267 = vadd.f32 %v264, %v266
    %v268 = vstv %s100
    %v269 = vadd.f32 %v267, %v268
    %v270 = vmax.f32 %v269, 0.0
    %v271 = vmul.f32 %v259, %v208
    %v272 = vadd.f32 %v271, 0.0
    %v273 = vmul.f32 %v262, %v209
    %v274 = vadd.f32 %v272, %v273
    %v275 = vmul.f32 %v265, %v210
    %v276 = vadd.f32 %v274, %v275
    %v277 = vadd.f32 %v276, %v268
    %v278 = vmax.f32 %v277, 0.0
    %v279 = vmul.f32 %v259, %v209
    %v280 = vadd.f32 %v279, 0.0
    %v281 = vmul.f32 %v262, %v210
    %v282 = vadd.f32 %v280, %v281
    %v283 = vmul.f32 %v265, %v207
    %285 = vrot.lane.b32.xlu0 %v283, 127
    %v286 = vpop.permute.xlu0 %285
    %v288 = vadd.f32 %v282, %v286
    %v289 = vadd.f32 %v288, %v268
    %v290 = vmax.f32 %v289, 0.0
    %v291 = vmul.f32 %v259, %v210
    %v292 = vadd.f32 %v291, 0.0
    %v293 = vmul.f32 %v262, %v207
    %295 = vrot.lane.b32.xlu0 %v293, 127
    %v296 = vpop.permute.xlu0 %295
    %v298 = vadd.f32 %v292, %v296
    %v299 = vmul.f32 %v265, %v208
    %301 = vrot.lane.b32.xlu0 %v299, 127
    %v302 = vpop.permute.xlu0 %301
    %v304 = vadd.f32 %v298, %v302
    %v305 = vadd.f32 %v304, %v268
    %v306 = vmax.f32 %v305, 0.0
    %v307 = vstv %s93
    %v308 = vmul.f32 %v307, %v207
    %v309 = vadd.f32 %v308, 0.0
    %v310 = vstv %s94
    %v311 = vmul.f32 %v310, %v208
    %v312 = vadd.f32 %v309, %v311
    %v313 = vstv %s95
    %v314 = vmul.f32 %v313, %v209
    %v315 = vadd.f32 %v312, %v314
    %v316 = vstv %s101
    %v317 = vadd.f32 %v315, %v316
    %v318 = vmax.f32 %v317, 0.0
    %v319 = vmul.f32 %v307, %v208
    %v320 = vadd.f32 %v319, 0.0
    %v321 = vmul.f32 %v310, %v209
    %v322 = vadd.f32 %v320, %v321
    %v323 = vmul.f32 %v313, %v210
    %v324 = vadd.f32 %v322, %v323
    %v325 = vadd.f32 %v324, %v316
    %v326 = vmax.f32 %v325, 0.0
    %v327 = vmul.f32 %v307, %v209
    %v328 = vadd.f32 %v327, 0.0
    %v329 = vmul.f32 %v310, %v210
    %v330 = vadd.f32 %v328, %v329
    %v331 = vmul.f32 %v313, %v207
    %333 = vrot.lane.b32.xlu0 %v331, 127
    %v334 = vpop.permute.xlu0 %333
    %v336 = vadd.f32 %v330, %v334
    %v337 = vadd.f32 %v336, %v316
    %v338 = vmax.f32 %v337, 0.0
    %v339 = vmul.f32 %v307, %v210
    %v340 = vadd.f32 %v339, 0.0
    %v341 = vmul.f32 %v310, %v207
    %343 = vrot.lane.b32.xlu0 %v341, 127
    %v344 = vpop.permute.xlu0 %343
    %v346 = vadd.f32 %v340, %v344
    %v347 = vmul.f32 %v313, %v208
    %349 = vrot.lane.b32.xlu0 %v347, 127
    %v350 = vpop.permute.xlu0 %349
    %v352 = vadd.f32 %v346, %v350
    %v353 = vadd.f32 %v352, %v316
    %v354 = vmax.f32 %v353, 0.0
    %v355 = vstv %s96
    %v356 = vmul.f32 %v355, %v207
    %v357 = vadd.f32 %v356, 0.0
    %v358 = vstv %s97
    %v359 = vmul.f32 %v358, %v208
    %v360 = vadd.f32 %v357, %v359
    %v361 = vstv %s98
    %v362 = vmul.f32 %v361, %v209
    %v363 = vadd.f32 %v360, %v362
    %v364 = vstv %s102
    %v365 = vadd.f32 %v363, %v364
    %v366 = vmax.f32 %v365, 0.0
    %v367 = vmul.f32 %v355, %v208
    %v368 = vadd.f32 %v367, 0.0
    %v369 = vmul.f32 %v358, %v209
    %v370 = vadd.f32 %v368, %v369
    %v371 = vmul.f32 %v361, %v210
    %v372 = vadd.f32 %v370, %v371
    %v373 = vadd.f32 %v372, %v364
    %v374 = vmax.f32 %v373, 0.0
    %v375 = vmul.f32 %v355, %v209
    %v376 = vadd.f32 %v375, 0.0
    %v377 = vmul.f32 %v358, %v210
    %v378 = vadd.f32 %v376, %v377
    %v379 = vmul.f32 %v361, %v207
    %381 = vrot.lane.b32.xlu0 %v379, 127
    %v382 = vpop.permute.xlu0 %381
    %v384 = vadd.f32 %v378, %v382
    %v385 = vadd.f32 %v384, %v364
    %v386 = vmax.f32 %v385, 0.0
    %v387 = vmul.f32 %v355, %v210
    %v388 = vadd.f32 %v387, 0.0
    %v389 = vmul.f32 %v358, %v207
    %391 = vrot.lane.b32.xlu0 %v389, 127
    %v392 = vpop.permute.xlu0 %391
    %v394 = vadd.f32 %v388, %v392
    %v395 = vmul.f32 %v361, %v208
    %397 = vrot.lane.b32.xlu0 %v395, 127
    %v398 = vpop.permute.xlu0 %397
    %v400 = vadd.f32 %v394, %v398
    %v401 = vadd.f32 %v400, %v364
    %v402 = vmax.f32 %v401, 0.0
    %v403 = vstv %s103
    %v404 = vmul.f32 %v403, %v222
    %v405 = vadd.f32 %v404, 0.0
    %v406 = vstv %s104
    %v407 = vmul.f32 %v406, %v230
    %v408 = vadd.f32 %v405, %v407
    %v409 = vstv %s105
    %v410 = vmul.f32 %v409, %v242
    %v411 = vadd.f32 %v408, %v410
    %v412 = vstv %s106
    %v413 = vmul.f32 %v412, %v270
    %v414 = vadd.f32 %v411, %v413
    %v415 = vstv %s107
    %v416 = vmul.f32 %v415, %v278
    %v417 = vadd.f32 %v414, %v416
    %v418 = vstv %s108
    %v419 = vmul.f32 %v418, %v290
    %v420 = vadd.f32 %v417, %v419
    %v421 = vstv %s109
    %v422 = vmul.f32 %v421, %v318
    %v423 = vadd.f32 %v420, %v422
    %v424 = vstv %s110
    %v425 = vmul.f32 %v424, %v326
    %v426 = vadd.f32 %v423, %v425
    %v427 = vstv %s111
    %v428 = vmul.f32 %v427, %v338
    %v429 = vadd.f32 %v426, %v428
    %v430 = vstv %s112
    %v431 = vmul.f32 %v430, %v366
    %v432 = vadd.f32 %v429, %v431
    %v433 = vstv %s113
    %v434 = vmul.f32 %v433, %v374
    %v435 = vadd.f32 %v432, %v434
    %v436 = vstv %s114
    %v437 = vmul.f32 %v436, %v386
    %v438 = vadd.f32 %v435, %v437
    %v439 = vstv %s199
    %v440 = vadd.f32 %v438, %v439
    %v441 = vmax.f32 %v440, 0.0
    %v442 = vmul.f32 %v403, %v230
    %v443 = vadd.f32 %v442, 0.0
    %v444 = vmul.f32 %v406, %v242
    %v445 = vadd.f32 %v443, %v444
    %v446 = vmul.f32 %v409, %v258
    %v447 = vadd.f32 %v445, %v446
    %v448 = vmul.f32 %v412, %v278
    %v449 = vadd.f32 %v447, %v448
    %v450 = vmul.f32 %v415, %v290
    %v451 = vadd.f32 %v449, %v450
    %v452 = vmul.f32 %v418, %v306
    %v453 = vadd.f32 %v451, %v452
    %v454 = vmul.f32 %v421, %v326
    %v455 = vadd.f32 %v453, %v454
    %v456 = vmul.f32 %v424, %v338
    %v457 = vadd.f32 %v455, %v456
    %v458 = vmul.f32 %v427, %v354
    %v459 = vadd.f32 %v457, %v458
    %v460 = vmul.f32 %v430, %v374
    %v461 = vadd.f32 %v459, %v460
    %v462 = vmul.f32 %v433, %v386
    %v463 = vadd.f32 %v461, %v462
    %v464 = vmul.f32 %v436, %v402
    %v465 = vadd.f32 %v463, %v464
    %v466 = vadd.f32 %v465, %v439
    %v467 = vmax.f32 %v466, 0.0
    %v468 = vmax.f32 %v441, %v467
    %v469 = vmul.f32 %v403, %v242
    %v470 = vadd.f32 %v469, 0.0
    %v471 = vmul.f32 %v406, %v258
    %v472 = vadd.f32 %v470, %v471
    %v473 = vmul.f32 %v409, %v222
    %475 = vrot.lane.b32.xlu0 %v473, 127
    %v476 = vpop.permute.xlu0 %475
    %v478 = vadd.f32 %v472, %v476
    %v479 = vmul.f32 %v412, %v290
    %v480 = vadd.f32 %v478, %v479
    %v481 = vmul.f32 %v415, %v306
    %v482 = vadd.f32 %v480, %v481
    %v483 = vmul.f32 %v418, %v270
    %485 = vrot.lane.b32.xlu0 %v483, 127
    %v486 = vpop.permute.xlu0 %485
    %v488 = vadd.f32 %v482, %v486
    %v489 = vmul.f32 %v421, %v338
    %v490 = vadd.f32 %v488, %v489
    %v491 = vmul.f32 %v424, %v354
    %v492 = vadd.f32 %v490, %v491
    %v493 = vmul.f32 %v427, %v318
    %495 = vrot.lane.b32.xlu0 %v493, 127
    %v496 = vpop.permute.xlu0 %495
    %v498 = vadd.f32 %v492, %v496
    %v499 = vmul.f32 %v430, %v386
    %v500 = vadd.f32 %v498, %v499
    %v501 = vmul.f32 %v433, %v402
    %v502 = vadd.f32 %v500, %v501
    %v503 = vmul.f32 %v436, %v366
    %505 = vrot.lane.b32.xlu0 %v503, 127
    %v506 = vpop.permute.xlu0 %505
    %v508 = vadd.f32 %v502, %v506
    %v509 = vadd.f32 %v508, %v439
    %v510 = vmax.f32 %v509, 0.0
    %v511 = vmax.f32 %v468, %v510
    %v512 = vmul.f32 %v403, %v258
    %v513 = vadd.f32 %v512, 0.0
    %v514 = vmul.f32 %v406, %v222
    %516 = vrot.lane.b32.xlu0 %v514, 127
    %v517 = vpop.permute.xlu0 %516
    %v519 = vadd.f32 %v513, %v517
    %v520 = vmul.f32 %v409, %v230
    %522 = vrot.lane.b32.xlu0 %v520, 127
    %v523 = vpop.permute.xlu0 %522
    %v525 = vadd.f32 %v519, %v523
    %v526 = vmul.f32 %v412, %v306
    %v527 = vadd.f32 %v525, %v526
    %v528 = vmul.f32 %v415, %v270
    %530 = vrot.lane.b32.xlu0 %v528, 127
    %v531 = vpop.permute.xlu0 %530
    %v533 = vadd.f32 %v527, %v531
    %v534 = vmul.f32 %v418, %v278
    %536 = vrot.lane.b32.xlu0 %v534, 127
    %v537 = vpop.permute.xlu0 %536
    %v539 = vadd.f32 %v533, %v537
    %v540 = vmul.f32 %v421, %v354
    %v541 = vadd.f32 %v539, %v540
    %v542 = vmul.f32 %v424, %v318
    %544 = vrot.lane.b32.xlu0 %v542, 127
    %v545 = vpop.permute.xlu0 %544
    %v547 = vadd.f32 %v541, %v545
    %v548 = vmul.f32 %v427, %v326
    %550 = vrot.lane.b32.xlu0 %v548, 127
    %v551 = vpop.permute.xlu0 %550
    %v553 = vadd.f32 %v547, %v551
    %v554 = vmul.f32 %v430, %v402
    %v555 = vadd.f32 %v553, %v554
    %v556 = vmul.f32 %v433, %v366
    %558 = vrot.lane.b32.xlu0 %v556, 127
    %v559 = vpop.permute.xlu0 %558
    %v561 = vadd.f32 %v555, %v559
    %v562 = vmul.f32 %v436, %v374
    %564 = vrot.lane.b32.xlu0 %v562, 127
    %v565 = vpop.permute.xlu0 %564
    %v567 = vadd.f32 %v561, %v565
    %v568 = vadd.f32 %v567, %v439
    %v569 = vmax.f32 %v568, 0.0
    %v570 = vmax.f32 %v511, %v569
    %vm571 = vcmask 115712
    %572 = vst.msk [vmem:[#allocation2] sm:$0x3] %vm571, %v570
    %v573 = vstv %s115
    %v574 = vmul.f32 %v573, %v222
    %v575 = vadd.f32 %v574, 0.0
    %v576 = vstv %s116
    %v577 = vmul.f32 %v576, %v230
    %v578 = vadd.f32 %v575, %v577
    %v579 = vstv %s117
    %v580 = vmul.f32 %v579, %v242
    %v581 = vadd.f32 %v578, %v580
    %v582 = vstv %s118
    %v583 = vmul.f32 %v582, %v270
    %v584 = vadd.f32 %v581, %v583
    %v585 = vstv %s119
    %v586 = vmul.f32 %v585, %v278
    %v587 = vadd.f32 %v584, %v586
    %v588 = vstv %s120
    %v589 = vmul.f32 %v588, %v290
    %v590 = vadd.f32 %v587, %v589
    %v591 = vstv %s121
    %v592 = vmul.f32 %v591, %v318
    %v593 = vadd.f32 %v590, %v592
    %v594 = vstv %s122
    %v595 = vmul.f32 %v594, %v326
    %v596 = vadd.f32 %v593, %v595
    %v597 = vstv %s123
    %v598 = vmul.f32 %v597, %v338
    %v599 = vadd.f32 %v596, %v598
    %v600 = vstv %s124
    %v601 = vmul.f32 %v600, %v366
    %v602 = vadd.f32 %v599, %v601
    %v603 = vstv %s125
    %v604 = vmul.f32 %v603, %v374
    %v605 = vadd.f32 %v602, %v604
    %v606 = vstv %s126
    %v607 = vmul.f32 %v606, %v386
    %v608 = vadd.f32 %v605, %v607
    %v609 = vstv %s200
    %v610 = vadd.f32 %v608, %v609
    %v611 = vmax.f32 %v610, 0.0
    %v612 = vmul.f32 %v573, %v230
    %v613 = vadd.f32 %v612, 0.0
    %v614 = vmul.f32 %v576, %v242
    %v615 = vadd.f32 %v613, %v614
    %v616 = vmul.f32 %v579, %v258
    %v617 = vadd.f32 %v615, %v616
    %v618 = vmul.f32 %v582, %v278
    %v619 = vadd.f32 %v617, %v618
    %v620 = vmul.f32 %v585, %v290
    %v621 = vadd.f32 %v619, %v620
    %v622 = vmul.f32 %v588, %v306
    %v623 = vadd.f32 %v621, %v622
    %v624 = vmul.f32 %v591, %v326
    %v625 = vadd.f32 %v623, %v624
    %v626 = vmul.f32 %v594, %v338
    %v627 = vadd.f32 %v625, %v626
    %v628 = vmul.f32 %v597, %v354
    %v629 = vadd.f32 %v627, %v628
    %v630 = vmul.f32 %v600, %v374
    %v631 = vadd.f32 %v629, %v630
    %v632 = vmul.f32 %v603, %v386
    %v633 = vadd.f32 %v631, %v632
    %v634 = vmul.f32 %v606, %v402
    %v635 = vadd.f32 %v633, %v634
    %v636 = vadd.f32 %v635, %v609
    %v637 = vmax.f32 %v636, 0.0
    %v638 = vmax.f32 %v611, %v637
    %v639 = vmul.f32 %v573, %v242
    %v640 = vadd.f32 %v639, 0.0
    %v641 = vmul.f32 %v576, %v258
    %v642 = vadd.f32 %v640, %v641
    %v643 = vmul.f32 %v579, %v222
    %645 = vrot.lane.b32.xlu0 %v643, 127
    %v646 = vpop.permute.xlu0 %645
    %v648 = vadd.f32 %v642, %v646
    %v649 = vmul.f32 %v582, %v290
    %v650 = vadd.f32 %v648, %v649
    %v651 = vmul.f32 %v585, %v306
    %v652 = vadd.f32 %v650, %v651
    %v653 = vmul.f32 %v588, %v270
    %655 = vrot.lane.b32.xlu0 %v653, 127
    %v656 = vpop.permute.xlu0 %655
    %v658 = vadd.f32 %v652, %v656
    %v659 = vmul.f32 %v591, %v338
    %v660 = vadd.f32 %v658, %v659
    %v661 = vmul.f32 %v594, %v354
    %v662 = vadd.f32 %v660, %v661
    %v663 = vmul.f32 %v597, %v318
    %665 = vrot.lane.b32.xlu0 %v663, 127
    %v666 = vpop.permute.xlu0 %665
    %v668 = vadd.f32 %v662, %v666
    %v669 = vmul.f32 %v600, %v386
    %v670 = vadd.f32 %v668, %v669
    %v671 = vmul.f32 %v603, %v402
    %v672 = vadd.f32 %v670, %v671
    %v673 = vmul.f32 %v606, %v366
    %675 = vrot.lane.b32.xlu0 %v673, 127
    %v676 = vpop.permute.xlu0 %675
    %v678 = vadd.f32 %v672, %v676
    %v679 = vadd.f32 %v678, %v609
    %v680 = vmax.f32 %v679, 0.0
    %v681 = vmax.f32 %v638, %v680
    %v682 = vmul.f32 %v573, %v258
    %v683 = vadd.f32 %v682, 0.0
    %v684 = vmul.f32 %v576, %v222
    %686 = vrot.lane.b32.xlu0 %v684, 127
    %v687 = vpop.permute.xlu0 %686
    %v689 = vadd.f32 %v683, %v687
    %v690 = vmul.f32 %v579, %v230
    %692 = vrot.lane.b32.xlu0 %v690, 127
    %v693 = vpop.permute.xlu0 %692
    %v695 = vadd.f32 %v689, %v693
    %v696 = vmul.f32 %v582, %v306
    %v697 = vadd.f32 %v695, %v696
    %v698 = vmul.f32 %v585, %v270
    %700 = vrot.lane.b32.xlu0 %v698, 127
    %v701 = vpop.permute.xlu0 %700
    %v703 = vadd.f32 %v697, %v701
    %v704 = vmul.f32 %v588, %v278
    %706 = vrot.lane.b32.xlu0 %v704, 127
    %v707 = vpop.permute.xlu0 %706
    %v709 = vadd.f32 %v703, %v707
    %v710 = vmul.f32 %v591, %v354
    %v711 = vadd.f32 %v709, %v710
    %v712 = vmul.f32 %v594, %v318
    %714 = vrot.lane.b32.xlu0 %v712, 127
    %v715 = vpop.permute.xlu0 %714
    %v717 = vadd.f32 %v711, %v715
    %v718 = vmul.f32 %v597, %v326
    %720 = vrot.lane.b32.xlu0 %v718, 127
    %v721 = vpop.permute.xlu0 %720
    %v723 = vadd.f32 %v717, %v721
    %v724 = vmul.f32 %v600, %v402
    %v725 = vadd.f32 %v723, %v724
    %v726 = vmul.f32 %v603, %v366
    %728 = vrot.lane.b32.xlu0 %v726, 127
    %v729 = vpop.permute.xlu0 %728
    %v731 = vadd.f32 %v725, %v729
    %v732 = vmul.f32 %v606, %v374
    %734 = vrot.lane.b32.xlu0 %v732, 127
    %v735 = vpop.permute.xlu0 %734
    %v737 = vadd.f32 %v731, %v735
    %v738 = vadd.f32 %v737, %v609
    %v739 = vmax.f32 %v738, 0.0
    %v740 = vmax.f32 %v681, %v739
    %742 = vrot.lane.b32.xlu0 %v740, 15
    %v743 = vpop.permute.xlu0 %742
    %vm745 = vcmask 238712
    %746 = vst.msk [vmem:[#allocation2] sm:$0x3] %vm745, %v743
    %v747 = vstv %s127
    %v748 = vmul.f32 %v747, %v222
    %v749 = vadd.f32 %v748, 0.0
    %v750 = vstv %s128
    %v751 = vmul.f32 %v750, %v230
    %v752 = vadd.f32 %v749, %v751
    %v753 = vstv %s129
    %v754 = vmul.f32 %v753, %v242
    %v755 = vadd.f32 %v752, %v754
    %v756 = vstv %s130
    %v757 = vmul.f32 %v756, %v270
    %v758 = vadd.f32 %v755, %v757
    %v759 = vstv %s131
    %v760 = vmul.f32 %v759, %v278
    %v761 = vadd.f32 %v758, %v760
    %v762 = vstv %s132
    %v763 = vmul.f32 %v762, %v290
    %v764 = vadd.f32 %v761, %v763
    %v765 = vstv %s133
    %v766 = vmul.f32 %v765, %v318
    %v767 = vadd.f32 %v764, %v766
    %v768 = vstv %s134
    %v769 = vmul.f32 %v768, %v326
    %v770 = vadd.f32 %v767, %v769
    %v771 = vstv %s135
    %v772 = vmul.f32 %v771, %v338
    %v773 = vadd.f32 %v770, %v772
    %v774 = vstv %s136
    %v775 = vmul.f32 %v774, %v366
    %v776 = vadd.f32 %v773, %v775
    %v777 = vstv %s137
    %v778 = vmul.f32 %v777, %v374
    %v779 = vadd.f32 %v776, %v778
    %v780 = vstv %s138
    %v781 = vmul.f32 %v780, %v386
    %v782 = vadd.f32 %v779, %v781
    %v783 = vstv %s201
    %v784 = vadd.f32 %v782, %v783
    %v785 = vmax.f32 %v784, 0.0
    %v786 = vmul.f32 %v747, %v230
    %v787 = vadd.f32 %v786, 0.0
    %v788 = vmul.f32 %v750, %v242
    %v789 = vadd.f32 %v787, %v788
    %v790 = vmul.f32 %v753, %v258
    %v791 = vadd.f32 %v789, %v790
    %v792 = vmul.f32 %v756, %v278
    %v793 = vadd.f32 %v791, %v792
    %v794 = vmul.f32 %v759, %v290
    %v795 = vadd.f32 %v793, %v794
    %v796 = vmul.f32 %v762, %v306
    %v797 = vadd.f32 %v795, %v796
    %v798 = vmul.f32 %v765, %v326
    %v799 = vadd.f32 %v797, %v798
    %v800 = vmul.f32 %v768, %v338
    %v801 = vadd.f32 %v799, %v800
    %v802 = vmul.f32 %v771, %v354
    %v803 = vadd.f32 %v801, %v802
    %v804 = vmul.f32 %v774, %v374
    %v805 = vadd.f32 %v803, %v804
    %v806 = vmul.f32 %v777, %v386
    %v807 = vadd.f32 %v805, %v806
    %v808 = vmul.f32 %v780, %v402
    %v809 = vadd.f32 %v807, %v808
    %v810 = vadd.f32 %v809, %v783
    %v811 = vmax.f32 %v810, 0.0
    %v812 = vmax.f32 %v785, %v811
    %v813 = vmul.f32 %v747, %v242
    %v814 = vadd.f32 %v813, 0.0
    %v815 = vmul.f32 %v750, %v258
    %v816 = vadd.f32 %v814, %v815
    %v817 = vmul.f32 %v753, %v222
    %819 = vrot.lane.b32.xlu0 %v817, 127
    %v820 = vpop.permute.xlu0 %819
    %v822 = vadd.f32 %v816, %v820
    %v823 = vmul.f32 %v756, %v290
    %v824 = vadd.f32 %v822, %v823
    %v825 = vmul.f32 %v759, %v306
    %v826 = vadd.f32 %v824, %v825
    %v827 = vmul.f32 %v762, %v270
    %829 = vrot.lane.b32.xlu0 %v827, 127
    %v830 = vpop.permute.xlu0 %829
    %v832 = vadd.f32 %v826, %v830
    %v833 = vmul.f32 %v765, %v338
    %v834 = vadd.f32 %v832, %v833
    %v835 = vmul.f32 %v768, %v354
    %v836 = vadd.f32 %v834, %v835
    %v837 = vmul.f32 %v771, %v318
    %839 = vrot.lane.b32.xlu0 %v837, 127
    %v840 = vpop.permute.xlu0 %839
    %v842 = vadd.f32 %v836, %v840
    %v843 = vmul.f32 %v774, %v386
    %v844 = vadd.f32 %v842, %v843
    %v845 = vmul.f32 %v777, %v402
    %v846 = vadd.f32 %v844, %v845
    %v847 = vmul.f32 %v780, %v366
    %849 = vrot.lane.b32.xlu0 %v847, 127
    %v850 = vpop.permute.xlu0 %849
    %v852 = vadd.f32 %v846, %v850
    %v853 = vadd.f32 %v852, %v783
    %v854 = vmax.f32 %v853, 0.0
    %v855 = vmax.f32 %v812, %v854
    %v856 = vmul.f32 %v747, %v258
    %v857 = vadd.f32 %v856, 0.0
    %v858 = vmul.f32 %v750, %v222
    %860 = vrot.lane.b32.xlu0 %v858, 127
    %v861 = vpop.permute.xlu0 %860
    %v863 = vadd.f32 %v857, %v861
    %v864 = vmul.f32 %v753, %v230
    %866 = vrot.lane.b32.xlu0 %v864, 127
    %v867 = vpop.permute.xlu0 %866
    %v869 = vadd.f32 %v863, %v867
    %v870 = vmul.f32 %v756, %v306
    %v871 = vadd.f32 %v869, %v870
    %v872 = vmul.f32 %v759, %v270
    %874 = vrot.lane.b32.xlu0 %v872, 127
    %v875 = vpop.permute.xlu0 %874
    %v877 = vadd.f32 %v871, %v875
    %v878 = vmul.f32 %v762, %v278
    %880 = vrot.lane.b32.xlu0 %v878, 127
    %v881 = vpop.permute.xlu0 %880
    %v883 = vadd.f32 %v877, %v881
    %v884 = vmul.f32 %v765, %v354
    %v885 = vadd.f32 %v883, %v884
    %v886 = vmul.f32 %v768, %v318
    %888 = vrot.lane.b32.xlu0 %v886, 127
    %v889 = vpop.permute.xlu0 %888
    %v891 = vadd.f32 %v885, %v889
    %v892 = vmul.f32 %v771, %v326
    %894 = vrot.lane.b32.xlu0 %v892, 127
    %v895 = vpop.permute.xlu0 %894
    %v897 = vadd.f32 %v891, %v895
    %v898 = vmul.f32 %v774, %v402
    %v899 = vadd.f32 %v897, %v898
    %v900 = vmul.f32 %v777, %v366
    %902 = vrot.lane.b32.xlu0 %v900, 127
    %v903 = vpop.permute.xlu0 %902
    %v905 = vadd.f32 %v899, %v903
    %v906 = vmul.f32 %v780, %v374
    %908 = vrot.lane.b32.xlu0 %v906, 127
    %v909 = vpop.permute.xlu0 %908
    %v911 = vadd.f32 %v905, %v909
    %v912 = vadd.f32 %v911, %v783
    %v913 = vmax.f32 %v912, 0.0
    %v914 = vmax.f32 %v855, %v913
    %916 = vrot.lane.b32.xlu0 %v914, 30
    %v917 = vpop.permute.xlu0 %916
    %vm919 = vcmask 361712
    %920 = vst.msk [vmem:[#allocation2] sm:$0x3] %vm919, %v917
    %v921 = vstv %s139
    %v922 = vmul.f32 %v921, %v222
    %v923 = vadd.f32 %v922, 0.0
    %v924 = vstv %s140
    %v925 = vmul.f32 %v924, %v230
    %v926 = vadd.f32 %v923, %v925
    %v927 = vstv %s141
    %v928 = vmul.f32 %v927, %v242
    %v929 = vadd.f32 %v926, %v928
    %v930 = vstv %s142
    %v931 = vmul.f32 %v930, %v270
    %v932 = vadd.f32 %v929, %v931
    %v933 = vstv %s143
    %v934 = vmul.f32 %v933, %v278
    %v935 = vadd.f32 %v932, %v934
    %v936 = vstv %s144
    %v937 = vmul.f32 %v936, %v290
    %v938 = vadd.f32 %v935, %v937
    %v939 = vstv %s145
    %v940 = vmul.f32 %v939, %v318
    %v941 = vadd.f32 %v938, %v940
    %v942 = vstv %s146
    %v943 = vmul.f32 %v942, %v326
    %v944 = vadd.f32 %v941, %v943
    %v945 = vstv %s147
    %v946 = vmul.f32 %v945, %v338
    %v947 = vadd.f32 %v944, %v946
    %v948 = vstv %s148
    %v949 = vmul.f32 %v948, %v366
    %v950 = vadd.f32 %v947, %v949
    %v951 = vstv %s149
    %v952 = vmul.f32 %v951, %v374
    %v953 = vadd.f32 %v950, %v952
    %v954 = vstv %s150
    %v955 = vmul.f32 %v954, %v386
    %v956 = vadd.f32 %v953, %v955
    %v957 = vstv %s202
    %v958 = vadd.f32 %v956, %v957
    %v959 = vmax.f32 %v958, 0.0
    %v960 = vmul.f32 %v921, %v230
    %v961 = vadd.f32 %v960, 0.0
    %v962 = vmul.f32 %v924, %v242
    %v963 = vadd.f32 %v961, %v962
    %v964 = vmul.f32 %v927, %v258
    %v965 = vadd.f32 %v963, %v964
    %v966 = vmul.f32 %v930, %v278
    %v967 = vadd.f32 %v965, %v966
    %v968 = vmul.f32 %v933, %v290
    %v969 = vadd.f32 %v967, %v968
    %v970 = vmul.f32 %v936, %v306
    %v971 = vadd.f32 %v969, %v970
    %v972 = vmul.f32 %v939, %v326
    %v973 = vadd.f32 %v971, %v972
    %v974 = vmul.f32 %v942, %v338
    %v975 = vadd.f32 %v973, %v974
    %v976 = vmul.f32 %v945, %v354
    %v977 = vadd.f32 %v975, %v976
    %v978 = vmul.f32 %v948, %v374
    %v979 = vadd.f32 %v977, %v978
    %v980 = vmul.f32 %v951, %v386
    %v981 = vadd.f32 %v979, %v980
    %v982 = vmul.f32 %v954, %v402
    %v983 = vadd.f32 %v981, %v982
    %v984 = vadd.f32 %v983, %v957
    %v985 = vmax.f32 %v984, 0.0
    %v986 = vmax.f32 %v959, %v985
    %v987 = vmul.f32 %v921, %v242
    %v988 = vadd.f32 %v987, 0.0
    %v989 = vmul.f32 %v924, %v258
    %v990 = vadd.f32 %v988, %v989
    %v991 = vmul.f32 %v927, %v222
    %993 = vrot.lane.b32.xlu0 %v991, 127
    %v994 = vpop.permute.xlu0 %993
    %v996 = vadd.f32 %v990, %v994
    %v997 = vmul.f32 %v930, %v290
    %v998 = vadd.f32 %v996, %v997
    %v999 = vmul.f32 %v933, %v306
    %v1000 = vadd.f32 %v998, %v999
    %v1001 = vmul.f32 %v936, %v270
    %1003 = vrot.lane.b32.xlu0 %v1001, 127
    %v1004 = vpop.permute.xlu0 %1003
    %v1006 = vadd.f32 %v1000, %v1004
    %v1007 = vmul.f32 %v939, %v338
    %v1008 = vadd.f32 %v1006, %v1007
    %v1009 = vmul.f32 %v942, %v354
    %v1010 = vadd.f32 %v1008, %v1009
    %v1011 = vmul.f32 %v945, %v318
    %1013 = vrot.lane.b32.xlu0 %v1011, 127
    %v1014 = vpop.permute.xlu0 %1013
    %v1016 = vadd.f32 %v1010, %v1014
    %v1017 = vmul.f32 %v948, %v386
    %v1018 = vadd.f32 %v1016, %v1017
    %v1019 = vmul.f32 %v951, %v402
    %v1020 = vadd.f32 %v1018, %v1019
    %v1021 = vmul.f32 %v954, %v366
    %1023 = vrot.lane.b32.xlu0 %v1021, 127
    %v1024 = vpop.permute.xlu0 %1023
    %v1026 = vadd.f32 %v1020, %v1024
    %v1027 = vadd.f32 %v1026, %v957
    %v1028 = vmax.f32 %v1027, 0.0
    %v1029 = vmax.f32 %v986, %v1028
    %v1030 = vmul.f32 %v921, %v258
    %v1031 = vadd.f32 %v1030, 0.0
    %v1032 = vmul.f32 %v924, %v222
    %1034 = vrot.lane.b32.xlu0 %v1032, 127
    %v1035 = vpop.permute.xlu0 %1034
    %v1037 = vadd.f32 %v1031, %v1035
    %v1038 = vmul.f32 %v927, %v230
    %1040 = vrot.lane.b32.xlu0 %v1038, 127
    %v1041 = vpop.permute.xlu0 %1040
    %v1043 = vadd.f32 %v1037, %v1041
    %v1044 = vmul.f32 %v930, %v306
    %v1045 = vadd.f32 %v1043, %v1044
    %v1046 = vmul.f32 %v933, %v270
    %1048 = vrot.lane.b32.xlu0 %v1046, 127
    %v1049 = vpop.permute.xlu0 %1048
    %v1051 = vadd.f32 %v1045, %v1049
    %v1052 = vmul.f32 %v936, %v278
    %1054 = vrot.lane.b32.xlu0 %v1052, 127
    %v1055 = vpop.permute.xlu0 %1054
    %v1057 = vadd.f32 %v1051, %v1055
    %v1058 = vmul.f32 %v939, %v354
    %v1059 = vadd.f32 %v1057, %v1058
    %v1060 = vmul.f32 %v942, %v318
    %1062 = vrot.lane.b32.xlu0 %v1060, 127
    %v1063 = vpop.permute.xlu0 %1062
    %v1065 = vadd.f32 %v1059, %v1063
    %v1066 = vmul.f32 %v945, %v326
    %1068 = vrot.lane.b32.xlu0 %v1066, 127
    %v1069 = vpop.permute.xlu0 %1068
    %v1071 = vadd.f32 %v1065, %v1069
    %v1072 = vmul.f32 %v948, %v402
    %v1073 = vadd.f32 %v1071, %v1072
    %v1074 = vmul.f32 %v951, %v366
    %1076 = vrot.lane.b32.xlu0 %v1074, 127
    %v1077 = vpop.permute.xlu0 %1076
    %v1079 = vadd.f32 %v1073, %v1077
    %v1080 = vmul.f32 %v954, %v374
    %1082 = vrot.lane.b32.xlu0 %v1080, 127
    %v1083 = vpop.permute.xlu0 %1082
    %v1085 = vadd.f32 %v1079, %v1083
    %v1086 = vadd.f32 %v1085, %v957
    %v1087 = vmax.f32 %v1086, 0.0
    %v1088 = vmax.f32 %v1029, %v1087
    %1090 = vrot.lane.b32.xlu0 %v1088, 45
    %v1091 = vpop.permute.xlu0 %1090
    %vm1093 = vcmask 484712
    %1094 = vst.msk [vmem:[#allocation2] sm:$0x3] %vm1093, %v1091
    %v1095 = vstv %s151
    %v1096 = vmul.f32 %v1095, %v222
    %v1097 = vadd.f32 %v1096, 0.0
    %v1098 = vstv %s152
    %v1099 = vmul.f32 %v1098, %v230
    %v1100 = vadd.f32 %v1097, %v1099
    %v1101 = vstv %s153
    %v1102 = vmul.f32 %v1101, %v242
    %v1103 = vadd.f32 %v1100, %v1102
    %v1104 = vstv %s154
    %v1105 = vmul.f32 %v1104, %v270
    %v1106 = vadd.f32 %v1103, %v1105
    %v1107 = vstv %s155
    %v1108 = vmul.f32 %v1107, %v278
    %v1109 = vadd.f32 %v1106, %v1108
    %v1110 = vstv %s156
    %v1111 = vmul.f32 %v1110, %v290
    %v1112 = vadd.f32 %v1109, %v1111
    %v1113 = vstv %s157
    %v1114 = vmul.f32 %v1113, %v318
    %v1115 = vadd.f32 %v1112, %v1114
    %v1116 = vstv %s158
    %v1117 = vmul.f32 %v1116, %v326
    %v1118 = vadd.f32 %v1115, %v1117
    %v1119 = vstv %s159
    %v1120 = vmul.f32 %v1119, %v338
    %v1121 = vadd.f32 %v1118, %v1120
    %v1122 = vstv %s160
    %v1123 = vmul.f32 %v1122, %v366
    %v1124 = vadd.f32 %v1121, %v1123
    %v1125 = vstv %s161
    %v1126 = vmul.f32 %v1125, %v374
    %v1127 = vadd.f32 %v1124, %v1126
    %v1128 = vstv %s162
    %v1129 = vmul.f32 %v1128, %v386
    %v1130 = vadd.f32 %v1127, %v1129
    %v1131 = vstv %s203
    %v1132 = vadd.f32 %v1130, %v1131
    %v1133 = vmax.f32 %v1132, 0.0
    %v1134 = vmul.f32 %v1095, %v230
    %v1135 = vadd.f32 %v1134, 0.0
    %v1136 = vmul.f32 %v1098, %v242
    %v1137 = vadd.f32 %v1135, %v1136
    %v1138 = vmul.f32 %v1101, %v258
    %v1139 = vadd.f32 %v1137, %v1138
    %v1140 = vmul.f32 %v1104, %v278
    %v1141 = vadd.f32 %v1139, %v1140
    %v1142 = vmul.f32 %v1107, %v290
    %v1143 = vadd.f32 %v1141, %v1142
    %v1144 = vmul.f32 %v1110, %v306
    %v1145 = vadd.f32 %v1143, %v1144
    %v1146 = vmul.f32 %v1113, %v326
    %v1147 = vadd.f32 %v1145, %v1146
    %v1148 = vmul.f32 %v1116, %v338
    %v1149 = vadd.f32 %v1147, %v1148
    %v1150 = vmul.f32 %v1119, %v354
    %v1151 = vadd.f32 %v1149, %v1150
    %v1152 = vmul.f32 %v1122, %v374
    %v1153 = vadd.f32 %v1151, %v1152
    %v1154 = vmul.f32 %v1125, %v386
    %v1155 = vadd.f32 %v1153, %v1154
    %v1156 = vmul.f32 %v1128, %v402
    %v1157 = vadd.f32 %v1155, %v1156
    %v1158 = vadd.f32 %v1157, %v1131
    %v1159 = vmax.f32 %v1158, 0.0
    %v1160 = vmax.f32 %v1133, %v1159
    %v1161 = vmul.f32 %v1095, %v242
    %v1162 = vadd.f32 %v1161, 0.0
    %v1163 = vmul.f32 %v1098, %v258
    %v1164 = vadd.f32 %v1162, %v1163
    %v1165 = vmul.f32 %v1101, %v222
    %1167 = vrot.lane.b32.xlu0 %v1165, 127
    %v1168 = vpop.permute.xlu0 %1167
    %v1170 = vadd.f32 %v1164, %v1168
    %v1171 = vmul.f32 %v1104, %v290
    %v1172 = vadd.f32 %v1170, %v1171
    %v1173 = vmul.f32 %v1107, %v306
    %v1174 = vadd.f32 %v1172, %v1173
    %v1175 = vmul.f32 %v1110, %v270
    %1177 = vrot.lane.b32.xlu0 %v1175, 127
    %v1178 = vpop.permute.xlu0 %1177
    %v1180 = vadd.f32 %v1174, %v1178
    %v1181 = vmul.f32 %v1113, %v338
    %v1182 = vadd.f32 %v1180, %v1181
    %v1183 = vmul.f32 %v1116, %v354
    %v1184 = vadd.f32 %v1182, %v1183
    %v1185 = vmul.f32 %v1119, %v318
    %1187 = vrot.lane.b32.xlu0 %v1185, 127
    %v1188 = vpop.permute.xlu0 %1187
    %v1190 = vadd.f32 %v1184, %v1188
    %v1191 = vmul.f32 %v1122, %v386
    %v1192 = vadd.f32 %v1190, %v1191
    %v1193 = vmul.f32 %v1125, %v402
    %v1194 = vadd.f32 %v1192, %v1193
    %v1195 = vmul.f32 %v1128, %v366
    %1197 = vrot.lane.b32.xlu0 %v1195, 127
    %v1198 = vpop.permute.xlu0 %1197
    %v1200 = vadd.f32 %v1194, %v1198
    %v1201 = vadd.f32 %v1200, %v1131
    %v1202 = vmax.f32 %v1201, 0.0
    %v1203 = vmax.f32 %v1160, %v1202
    %v1204 = vmul.f32 %v1095, %v258
    %v1205 = vadd.f32 %v1204, 0.0
    %v1206 = vmul.f32 %v1098, %v222
    %1208 = vrot.lane.b32.xlu0 %v1206, 127
    %v1209 = vpop.permute.xlu0 %1208
    %v1211 = vadd.f32 %v1205, %v1209
    %v1212 = vmul.f32 %v1101, %v230
    %1214 = vrot.lane.b32.xlu0 %v1212, 127
    %v1215 = vpop.permute.xlu0 %1214
    %v1217 = vadd.f32 %v1211, %v1215
    %v1218 = vmul.f32 %v1104, %v306
    %v1219 = vadd.f32 %v1217, %v1218
    %v1220 = vmul.f32 %v1107, %v270
    %1222 = vrot.lane.b32.xlu0 %v1220, 127
    %v1223 = vpop.permute.xlu0 %1222
    %v1225 = vadd.f32 %v1219, %v1223
    %v1226 = vmul.f32 %v1110, %v278
    %1228 = vrot.lane.b32.xlu0 %v1226, 127
    %v1229 = vpop.permute.xlu0 %1228
    %v1231 = vadd.f32 %v1225, %v1229
    %v1232 = vmul.f32 %v1113, %v354
    %v1233 = vadd.f32 %v1231, %v1232
    %v1234 = vmul.f32 %v1116, %v318
    %1236 = vrot.lane.b32.xlu0 %v1234, 127
    %v1237 = vpop.permute.xlu0 %1236
    %v1239 = vadd.f32 %v1233, %v1237
    %v1240 = vmul.f32 %v1119, %v326
    %1242 = vrot.lane.b32.xlu0 %v1240, 127
    %v1243 = vpop.permute.xlu0 %1242
    %v1245 = vadd.f32 %v1239, %v1243
    %v1246 = vmul.f32 %v1122, %v402
    %v1247 = vadd.f32 %v1245, %v1246
    %v1248 = vmul.f32 %v1125, %v366
    %1250 = vrot.lane.b32.xlu0 %v1248, 127
    %v1251 = vpop.permute.xlu0 %1250
    %v1253 = vadd.f32 %v1247, %v1251
    %v1254 = vmul.f32 %v1128, %v374
    %1256 = vrot.lane.b32.xlu0 %v1254, 127
    %v1257 = vpop.permute.xlu0 %1256
    %v1259 = vadd.f32 %v1253, %v1257
    %v1260 = vadd.f32 %v1259, %v1131
    %v1261 = vmax.f32 %v1260, 0.0
    %v1262 = vmax.f32 %v1203, %v1261
    %1264 = vrot.lane.b32.xlu0 %v1262, 60
    %v1265 = vpop.permute.xlu0 %1264
    %vm1267 = vcmask 607712
    %1268 = vst.msk [vmem:[#allocation2] sm:$0x3] %vm1267, %v1265
    %v1269 = vstv %s163
    %v1270 = vmul.f32 %v1269, %v222
    %v1271 = vadd.f32 %v1270, 0.0
    %v1272 = vstv %s164
    %v1273 = vmul.f32 %v1272, %v230
    %v1274 = vadd.f32 %v1271, %v1273
    %v1275 = vstv %s165
    %v1276 = vmul.f32 %v1275, %v242
    %v1277 = vadd.f32 %v1274, %v1276
    %v1278 = vstv %s166
    %v1279 = vmul.f32 %v1278, %v270
    %v1280 = vadd.f32 %v1277, %v1279
    %v1281 = vstv %s167
    %v1282 = vmul.f32 %v1281, %v278
    %v1283 = vadd.f32 %v1280, %v1282
    %v1284 = vstv %s168
    %v1285 = vmul.f32 %v1284, %v290
    %v1286 = vadd.f32 %v1283, %v1285
    %v1287 = vstv %s169
    %v1288 = vmul.f32 %v1287, %v318
    %v1289 = vadd.f32 %v1286, %v1288
    %v1290 = vstv %s170
    %v1291 = vmul.f32 %v1290, %v326
    %v1292 = vadd.f32 %v1289, %v1291
    %v1293 = vstv %s171
    %v1294 = vmul.f32 %v1293, %v338
    %v1295 = vadd.f32 %v1292, %v1294
    %v1296 = vstv %s172
    %v1297 = vmul.f32 %v1296, %v366
    %v1298 = vadd.f32 %v1295, %v1297
    %v1299 = vstv %s173
    %v1300 = vmul.f32 %v1299, %v374
    %v1301 = vadd.f32 %v1298, %v1300
    %v1302 = vstv %s174
    %v1303 = vmul.f32 %v1302, %v386
    %v1304 = vadd.f32 %v1301, %v1303
    %v1305 = vstv %s204
    %v1306 = vadd.f32 %v1304, %v1305
    %v1307 = vmax.f32 %v1306, 0.0
    %v1308 = vmul.f32 %v1269, %v230
    %v1309 = vadd.f32 %v1308, 0.0
    %v1310 = vmul.f32 %v1272, %v242
    %v1311 = vadd.f32 %v1309, %v1310
    %v1312 = vmul.f32 %v1275, %v258
    %v1313 = vadd.f32 %v1311, %v1312
    %v1314 = vmul.f32 %v1278, %v278
    %v1315 = vadd.f32 %v1313, %v1314
    %v1316 = vmul.f32 %v1281, %v290
    %v1317 = vadd.f32 %v1315, %v1316
    %v1318 = vmul.f32 %v1284, %v306
    %v1319 = vadd.f32 %v1317, %v1318
    %v1320 = vmul.f32 %v1287, %v326
    %v1321 = vadd.f32 %v1319, %v1320
    %v1322 = vmul.f32 %v1290, %v338
    %v1323 = vadd.f32 %v1321, %v1322
    %v1324 = vmul.f32 %v1293, %v354
    %v1325 = vadd.f32 %v1323, %v1324
    %v1326 = vmul.f32 %v1296, %v374
    %v1327 = vadd.f32 %v1325, %v1326
    %v1328 = vmul.f32 %v1299, %v386
    %v1329 = vadd.f32 %v1327, %v1328
    %v1330 = vmul.f32 %v1302, %v402
    %v1331 = vadd.f32 %v1329, %v1330
    %v1332 = vadd.f32 %v1331, %v1305
    %v1333 = vmax.f32 %v1332, 0.0
    %v1334 = vmax.f32 %v1307, %v1333
    %v1335 = vmul.f32 %v1269, %v242
    %v1336 = vadd.f32 %v1335, 0.0
    %v1337 = vmul.f32 %v1272, %v258
    %v1338 = vadd.f32 %v1336, %v1337
    %v1339 = vmul.f32 %v1275, %v222
    %1341 = vrot.lane.b32.xlu0 %v1339, 127
    %v1342 = vpop.permute.xlu0 %1341
    %v1344 = vadd.f32 %v1338, %v1342
    %v1345 = vmul.f32 %v1278, %v290
    %v1346 = vadd.f32 %v1344, %v1345
    %v1347 = vmul.f32 %v1281, %v306
    %v1348 = vadd.f32 %v1346, %v1347
    %v1349 = vmul.f32 %v1284, %v270
    %1351 = vrot.lane.b32.xlu0 %v1349, 127
    %v1352 = vpop.permute.xlu0 %1351
    %v1354 = vadd.f32 %v1348, %v1352
    %v1355 = vmul.f32 %v1287, %v338
    %v1356 = vadd.f32 %v1354, %v1355
    %v1357 = vmul.f32 %v1290, %v354
    %v1358 = vadd.f32 %v1356, %v1357
    %v1359 = vmul.f32 %v1293, %v318
    %1361 = vrot.lane.b32.xlu0 %v1359, 127
    %v1362 = vpop.permute.xlu0 %1361
    %v1364 = vadd.f32 %v1358, %v1362
    %v1365 = vmul.f32 %v1296, %v386
    %v1366 = vadd.f32 %v1364, %v1365
    %v1367 = vmul.f32 %v1299, %v402
    %v1368 = vadd.f32 %v1366, %v1367
    %v1369 = vmul.f32 %v1302, %v366
    %1371 = vrot.lane.b32.xlu0 %v1369, 127
    %v1372 = vpop.permute.xlu0 %1371
    %v1374 = vadd.f32 %v1368, %v1372
    %v1375 = vadd.f32 %v1374, %v1305
    %v1376 = vmax.f32 %v1375, 0.0
    %v1377 = vmax.f32 %v1334, %v1376
    %v1378 = vmul.f32 %v1269, %v258
    %v1379 = vadd.f32 %v1378, 0.0
    %v1380 = vmul.f32 %v1272, %v222
    %1382 = vrot.lane.b32.xlu0 %v1380, 127
    %v1383 = vpop.permute.xlu0 %1382
    %v1385 = vadd.f32 %v1379, %v1383
    %v1386 = vmul.f32 %v1275, %v230
    %1388 = vrot.lane.b32.xlu0 %v1386, 127
    %v1389 = vpop.permute.xlu0 %1388
    %v1391 = vadd.f32 %v1385, %v1389
    %v1392 = vmul.f32 %v1278, %v306
    %v1393 = vadd.f32 %v1391, %v1392
    %v1394 = vmul.f32 %v1281, %v270
    %1396 = vrot.lane.b32.xlu0 %v1394, 127
    %v1397 = vpop.permute.xlu0 %1396
    %v1399 = vadd.f32 %v1393, %v1397
    %v1400 = vmul.f32 %v1284, %v278
    %1402 = vrot.lane.b32.xlu0 %v1400, 127
    %v1403 = vpop.permute.xlu0 %1402
    %v1405 = vadd.f32 %v1399, %v1403
    %v1406 = vmul.f32 %v1287, %v354
    %v1407 = vadd.f32 %v1405, %v1406
    %v1408 = vmul.f32 %v1290, %v318
    %1410 = vrot.lane.b32.xlu0 %v1408, 127
    %v1411 = vpop.permute.xlu0 %1410
    %v1413 = vadd.f32 %v1407, %v1411
    %v1414 = vmul.f32 %v1293, %v326
    %1416 = vrot.lane.b32.xlu0 %v1414, 127
    %v1417 = vpop.permute.xlu0 %1416
    %v1419 = vadd.f32 %v1413, %v1417
    %v1420 = vmul.f32 %v1296, %v402
    %v1421 = vadd.f32 %v1419, %v1420
    %v1422 = vmul.f32 %v1299, %v366
    %1424 = vrot.lane.b32.xlu0 %v1422, 127
    %v1425 = vpop.permute.xlu0 %1424
    %v1427 = vadd.f32 %v1421, %v1425
    %v1428 = vmul.f32 %v1302, %v374
    %1430 = vrot.lane.b32.xlu0 %v1428, 127
    %v1431 = vpop.permute.xlu0 %1430
    %v1433 = vadd.f32 %v1427, %v1431
    %v1434 = vadd.f32 %v1433, %v1305
    %v1435 = vmax.f32 %v1434, 0.0
    %v1436 = vmax.f32 %v1377, %v1435
    %1438 = vrot.lane.b32.xlu0 %v1436, 75
    %v1439 = vpop.permute.xlu0 %1438
    %vm1441 = vcmask 730712
    %1442 = vst.msk [vmem:[#allocation2] sm:$0x3] %vm1441, %v1439
    %v1443 = vstv %s175
    %v1444 = vmul.f32 %v1443, %v222
    %v1445 = vadd.f32 %v1444, 0.0
    %v1446 = vstv %s176
    %v1447 = vmul.f32 %v1446, %v230
    %v1448 = vadd.f32 %v1445, %v1447
    %v1449 = vstv %s177
    %v1450 = vmul.f32 %v1449, %v242
    %v1451 = vadd.f32 %v1448, %v1450
    %v1452 = vstv %s178
    %v1453 = vmul.f32 %v1452, %v270
    %v1454 = vadd.f32 %v1451, %v1453
    %v1455 = vstv %s179
    %v1456 = vmul.f32 %v1455, %v278
    %v1457 = vadd.f32 %v1454, %v1456
    %v1458 = vstv %s180
    %v1459 = vmul.f32 %v1458, %v290
    %v1460 = vadd.f32 %v1457, %v1459
    %v1461 = vstv %s181
    %v1462 = vmul.f32 %v1461, %v318
    %v1463 = vadd.f32 %v1460, %v1462
    %v1464 = vstv %s182
    %v1465 = vmul.f32 %v1464, %v326
    %v1466 = vadd.f32 %v1463, %v1465
    %v1467 = vstv %s183
    %v1468 = vmul.f32 %v1467, %v338
    %v1469 = vadd.f32 %v1466, %v1468
    %v1470 = vstv %s184
    %v1471 = vmul.f32 %v1470, %v366
    %v1472 = vadd.f32 %v1469, %v1471
    %v1473 = vstv %s185
    %v1474 = vmul.f32 %v1473, %v374
    %v1475 = vadd.f32 %v1472, %v1474
    %v1476 = vstv %s186
    %v1477 = vmul.f32 %v1476, %v386
    %v1478 = vadd.f32 %v1475, %v1477
    %v1479 = vstv %s205
    %v1480 = vadd.f32 %v1478, %v1479
    %v1481 = vmax.f32 %v1480, 0.0
    %v1482 = vmul.f32 %v1443, %v230
    %v1483 = vadd.f32 %v1482, 0.0
    %v1484 = vmul.f32 %v1446, %v242
    %v1485 = vadd.f32 %v1483, %v1484
    %v1486 = vmul.f32 %v1449, %v258
    %v1487 = vadd.f32 %v1485, %v1486
    %v1488 = vmul.f32 %v1452, %v278
    %v1489 = vadd.f32 %v1487, %v1488
    %v1490 = vmul.f32 %v1455, %v290
    %v1491 = vadd.f32 %v1489, %v1490
    %v1492 = vmul.f32 %v1458, %v306
    %v1493 = vadd.f32 %v1491, %v1492
    %v1494 = vmul.f32 %v1461, %v326
    %v1495 = vadd.f32 %v1493, %v1494
    %v1496 = vmul.f32 %v1464, %v338
    %v1497 = vadd.f32 %v1495, %v1496
    %v1498 = vmul.f32 %v1467, %v354
    %v1499 = vadd.f32 %v1497, %v1498
    %v1500 = vmul.f32 %v1470, %v374
    %v1501 = vadd.f32 %v1499, %v1500
    %v1502 = vmul.f32 %v1473, %v386
    %v1503 = vadd.f32 %v1501, %v1502
    %v1504 = vmul.f32 %v1476, %v402
    %v1505 = vadd.f32 %v1503, %v1504
    %v1506 = vadd.f32 %v1505, %v1479
    %v1507 = vmax.f32 %v1506, 0.0
    %v1508 = vmax.f32 %v1481, %v1507
    %v1509 = vmul.f32 %v1443, %v242
    %v1510 = vadd.f32 %v1509, 0.0
    %v1511 = vmul.f32 %v1446, %v258
    %v1512 = vadd.f32 %v1510, %v1511
    %v1513 = vmul.f32 %v1449, %v222
    %1515 = vrot.lane.b32.xlu0 %v1513, 127
    %v1516 = vpop.permute.xlu0 %1515
    %v1518 = vadd.f32 %v1512, %v1516
    %v1519 = vmul.f32 %v1452, %v290
    %v1520 = vadd.f32 %v1518, %v1519
    %v1521 = vmul.f32 %v1455, %v306
    %v1522 = vadd.f32 %v1520, %v1521
    %v1523 = vmul.f32 %v1458, %v270
    %1525 = vrot.lane.b32.xlu0 %v1523, 127
    %v1526 = vpop.permute.xlu0 %1525
    %v1528 = vadd.f32 %v1522, %v1526
    %v1529 = vmul.f32 %v1461, %v338
    %v1530 = vadd.f32 %v1528, %v1529
    %v1531 = vmul.f32 %v1464, %v354
    %v1532 = vadd.f32 %v1530, %v1531
    %v1533 = vmul.f32 %v1467, %v318
    %1535 = vrot.lane.b32.xlu0 %v1533, 127
    %v1536 = vpop.permute.xlu0 %1535
    %v1538 = vadd.f32 %v1532, %v1536
    %v1539 = vmul.f32 %v1470, %v386
    %v1540 = vadd.f32 %v1538, %v1539
    %v1541 = vmul.f32 %v1473, %v402
    %v1542 = vadd.f32 %v1540, %v1541
    %v1543 = vmul.f32 %v1476, %v366
    %1545 = vrot.lane.b32.xlu0 %v1543, 127
    %v1546 = vpop.permute.xlu0 %1545
    %v1548 = vadd.f32 %v1542, %v1546
    %v1549 = vadd.f32 %v1548, %v1479
    %v1550 = vmax.f32 %v1549, 0.0
    %v1551 = vmax.f32 %v1508, %v1550
    %v1552 = vmul.f32 %v1443, %v258
    %v1553 = vadd.f32 %v1552, 0.0
    %v1554 = vmul.f32 %v1446, %v222
    %1556 = vrot.lane.b32.xlu0 %v1554, 127
    %v1557 = vpop.permute.xlu0 %1556
    %v1559 = vadd.f32 %v1553, %v1557
    %v1560 = vmul.f32 %v1449, %v230
    %1562 = vrot.lane.b32.xlu0 %v1560, 127
    %v1563 = vpop.permute.xlu0 %1562
    %v1565 = vadd.f32 %v1559, %v1563
    %v1566 = vmul.f32 %v1452, %v306
    %v1567 = vadd.f32 %v1565, %v1566
    %v1568 = vmul.f32 %v1455, %v270
    %1570 = vrot.lane.b32.xlu0 %v1568, 127
    %v1571 = vpop.permute.xlu0 %1570
    %v1573 = vadd.f32 %v1567, %v1571
    %v1574 = vmul.f32 %v1458, %v278
    %1576 = vrot.lane.b32.xlu0 %v1574, 127
    %v1577 = vpop.permute.xlu0 %1576
    %v1579 = vadd.f32 %v1573, %v1577
    %v1580 = vmul.f32 %v1461, %v354
    %v1581 = vadd.f32 %v1579, %v1580
    %v1582 = vmul.f32 %v1464, %v318
    %1584 = vrot.lane.b32.xlu0 %v1582, 127
    %v1585 = vpop.permute.xlu0 %1584
    %v1587 = vadd.f32 %v1581, %v1585
    %v1588 = vmul.f32 %v1467, %v326
    %1590 = vrot.lane.b32.xlu0 %v1588, 127
    %v1591 = vpop.permute.xlu0 %1590
    %v1593 = vadd.f32 %v1587, %v1591
    %v1594 = vmul.f32 %v1470, %v402
    %v1595 = vadd.f32 %v1593, %v1594
    %v1596 = vmul.f32 %v1473, %v366
    %1598 = vrot.lane.b32.xlu0 %v1596, 127
    %v1599 = vpop.permute.xlu0 %1598
    %v1601 = vadd.f32 %v1595, %v1599
    %v1602 = vmul.f32 %v1476, %v374
    %1604 = vrot.lane.b32.xlu0 %v1602, 127
    %v1605 = vpop.permute.xlu0 %1604
    %v1607 = vadd.f32 %v1601, %v1605
    %v1608 = vadd.f32 %v1607, %v1479
    %v1609 = vmax.f32 %v1608, 0.0
    %v1610 = vmax.f32 %v1551, %v1609
    %1612 = vrot.lane.b32.xlu0 %v1610, 90
    %v1613 = vpop.permute.xlu0 %1612
    %vm1615 = vcmask 853712
    %1616 = vst.msk [vmem:[#allocation2] sm:$0x3] %vm1615, %v1613
    %v1617 = vstv %s187
    %v1618 = vmul.f32 %v1617, %v222
    %v1619 = vadd.f32 %v1618, 0.0
    %v1620 = vstv %s188
    %v1621 = vmul.f32 %v1620, %v230
    %v1622 = vadd.f32 %v1619, %v1621
    %v1623 = vstv %s189
    %v1624 = vmul.f32 %v1623, %v242
    %v1625 = vadd.f32 %v1622, %v1624
    %v1626 = vstv %s190
    %v1627 = vmul.f32 %v1626, %v270
    %v1628 = vadd.f32 %v1625, %v1627
    %v1629 = vstv %s191
    %v1630 = vmul.f32 %v1629, %v278
    %v1631 = vadd.f32 %v1628, %v1630
    %v1632 = vstv %s192
    %v1633 = vmul.f32 %v1632, %v290
    %v1634 = vadd.f32 %v1631, %v1633
    %v1635 = vstv %s193
    %v1636 = vmul.f32 %v1635, %v318
    %v1637 = vadd.f32 %v1634, %v1636
    %v1638 = vstv %s194
    %v1639 = vmul.f32 %v1638, %v326
    %v1640 = vadd.f32 %v1637, %v1639
    %v1641 = vstv %s195
    %v1642 = vmul.f32 %v1641, %v338
    %v1643 = vadd.f32 %v1640, %v1642
    %v1644 = vstv %s196
    %v1645 = vmul.f32 %v1644, %v366
    %v1646 = vadd.f32 %v1643, %v1645
    %v1647 = vstv %s197
    %v1648 = vmul.f32 %v1647, %v374
    %v1649 = vadd.f32 %v1646, %v1648
    %v1650 = vstv %s198
    %v1651 = vmul.f32 %v1650, %v386
    %v1652 = vadd.f32 %v1649, %v1651
    %v1653 = vstv %s206
    %v1654 = vadd.f32 %v1652, %v1653
    %v1655 = vmax.f32 %v1654, 0.0
    %v1656 = vmul.f32 %v1617, %v230
    %v1657 = vadd.f32 %v1656, 0.0
    %v1658 = vmul.f32 %v1620, %v242
    %v1659 = vadd.f32 %v1657, %v1658
    %v1660 = vmul.f32 %v1623, %v258
    %v1661 = vadd.f32 %v1659, %v1660
    %v1662 = vmul.f32 %v1626, %v278
    %v1663 = vadd.f32 %v1661, %v1662
    %v1664 = vmul.f32 %v1629, %v290
    %v1665 = vadd.f32 %v1663, %v1664
    %v1666 = vmul.f32 %v1632, %v306
    %v1667 = vadd.f32 %v1665, %v1666
    %v1668 = vmul.f32 %v1635, %v326
    %v1669 = vadd.f32 %v1667, %v1668
    %v1670 = vmul.f32 %v1638, %v338
    %v1671 = vadd.f32 %v1669, %v1670
    %v1672 = vmul.f32 %v1641, %v354
    %v1673 = vadd.f32 %v1671, %v1672
    %v1674 = vmul.f32 %v1644, %v374
    %v1675 = vadd.f32 %v1673, %v1674
    %v1676 = vmul.f32 %v1647, %v386
    %v1677 = vadd.f32 %v1675, %v1676
    %v1678 = vmul.f32 %v1650, %v402
    %v1679 = vadd.f32 %v1677, %v1678
    %v1680 = vadd.f32 %v1679, %v1653
    %v1681 = vmax.f32 %v1680, 0.0
    %v1682 = vmax.f32 %v1655, %v1681
    %v1683 = vmul.f32 %v1617, %v242
    %v1684 = vadd.f32 %v1683, 0.0
    %v1685 = vmul.f32 %v1620, %v258
    %v1686 = vadd.f32 %v1684, %v1685
    %v1687 = vmul.f32 %v1623, %v222
    %1689 = vrot.lane.b32.xlu0 %v1687, 127
    %v1690 = vpop.permute.xlu0 %1689
    %v1692 = vadd.f32 %v1686, %v1690
    %v1693 = vmul.f32 %v1626, %v290
    %v1694 = vadd.f32 %v1692, %v1693
    %v1695 = vmul.f32 %v1629, %v306
    %v1696 = vadd.f32 %v1694, %v1695
    %v1697 = vmul.f32 %v1632, %v270
    %1699 = vrot.lane.b32.xlu0 %v1697, 127
    %v1700 = vpop.permute.xlu0 %1699
    %v1702 = vadd.f32 %v1696, %v1700
    %v1703 = vmul.f32 %v1635, %v338
    %v1704 = vadd.f32 %v1702, %v1703
    %v1705 = vmul.f32 %v1638, %v354
    %v1706 = vadd.f32 %v1704, %v1705
    %v1707 = vmul.f32 %v1641, %v318
    %1709 = vrot.lane.b32.xlu0 %v1707, 127
    %v1710 = vpop.permute.xlu0 %1709
    %v1712 = vadd.f32 %v1706, %v1710
    %v1713 = vmul.f32 %v1644, %v386
    %v1714 = vadd.f32 %v1712, %v1713
    %v1715 = vmul.f32 %v1647, %v402
    %v1716 = vadd.f32 %v1714, %v1715
    %v1717 = vmul.f32 %v1650, %v366
    %1719 = vrot.lane.b32.xlu0 %v1717, 127
    %v1720 = vpop.permute.xlu0 %1719
    %v1722 = vadd.f32 %v1716, %v1720
    %v1723 = vadd.f32 %v1722, %v1653
    %v1724 = vmax.f32 %v1723, 0.0
    %v1725 = vmax.f32 %v1682, %v1724
    %v1726 = vmul.f32 %v1617, %v258
    %v1727 = vadd.f32 %v1726, 0.0
    %v1728 = vmul.f32 %v1620, %v222
    %1730 = vrot.lane.b32.xlu0 %v1728, 127
    %v1731 = vpop.permute.xlu0 %1730
    %v1733 = vadd.f32 %v1727, %v1731
    %v1734 = vmul.f32 %v1623, %v230
    %1736 = vrot.lane.b32.xlu0 %v1734, 127
    %v1737 = vpop.permute.xlu0 %1736
    %v1739 = vadd.f32 %v1733, %v1737
    %v1740 = vmul.f32 %v1626, %v306
    %v1741 = vadd.f32 %v1739, %v1740
    %v1742 = vmul.f32 %v1629, %v270
    %1744 = vrot.lane.b32.xlu0 %v1742, 127
    %v1745 = vpop.permute.xlu0 %1744
    %v1747 = vadd.f32 %v1741, %v1745
    %v1748 = vmul.f32 %v1632, %v278
    %1750 = vrot.lane.b32.xlu0 %v1748, 127
    %v1751 = vpop.permute.xlu0 %1750
    %v1753 = vadd.f32 %v1747, %v1751
    %v1754 = vmul.f32 %v1635, %v354
    %v1755 = vadd.f32 %v1753, %v1754
    %v1756 = vmul.f32 %v1638, %v318
    %1758 = vrot.lane.b32.xlu0 %v1756, 127
    %v1759 = vpop.permute.xlu0 %1758
    %v1761 = vadd.f32 %v1755, %v1759
    %v1762 = vmul.f32 %v1641, %v326
    %1764 = vrot.lane.b32.xlu0 %v1762, 127
    %v1765 = vpop.permute.xlu0 %1764
    %v1767 = vadd.f32 %v1761, %v1765
    %v1768 = vmul.f32 %v1644, %v402
    %v1769 = vadd.f32 %v1767, %v1768
    %v1770 = vmul.f32 %v1647, %v366
    %1772 = vrot.lane.b32.xlu0 %v1770, 127
    %v1773 = vpop.permute.xlu0 %1772
    %v1775 = vadd.f32 %v1769, %v1773
    %v1776 = vmul.f32 %v1650, %v374
    %1778 = vrot.lane.b32.xlu0 %v1776, 127
    %v1779 = vpop.permute.xlu0 %1778
    %v1781 = vadd.f32 %v1775, %v1779
    %v1782 = vadd.f32 %v1781, %v1653
    %v1783 = vmax.f32 %v1782, 0.0
    %v1784 = vmax.f32 %v1725, %v1783
    %1786 = vrot.lane.b32.xlu0 %v1784, 105
    %v1787 = vpop.permute.xlu0 %1786
    %vm1789 = vcmask 976712
    %1790 = vst.msk [vmem:[#allocation2] sm:$0x3] %vm1789, %v1787
    %v1791 = vld [vmem:[#allocation2] sm:$0x3]
    %v1792 = vld [vmem:[%s5] sm:$0xff]
    %v1793 = vld [vmem:[%s5 + $0x8] sm:$0xff]
    %v1794 = vld [vmem:[%s5 + $0x10] sm:$0xff]
    %v1795 = vld [vmem:[%s5 + $0x18] sm:$0xff]
    %v1796 = vld [vmem:[%s5 + $0x20] sm:$0xff]
    %v1797 = vld [vmem:[%s5 + $0x28] sm:$0xff]
    %v1798 = vld [vmem:[%s5 + $0x30] sm:$0xff]
    %v1799 = vld [vmem:[%s5 + $0x38] sm:$0xff]
    %v1800 = vld [vmem:[%s5 + $0x40] sm:$0xff]
    %v1801 = vld [vmem:[%s5 + $0x48] sm:$0xff]
    %v1802 = vld [vmem:[%s5 + $0x50] sm:$0xff]
    %v1803 = vld [vmem:[%s5 + $0x58] sm:$0xff]
    %v1804 = vld [vmem:[%s5 + $0x60] sm:$0xff]
    %v1805 = vld [vmem:[%s5 + $0x68] sm:$0xff]
    %v1806 = vld [vmem:[%s5 + $0x70] sm:$0xff]
    %v1807 = vld [vmem:[%s6] sm:$0x1]
    %v1809 = vlaneseq
    %v1810 = vshrl.u32 %v1809, 7
    %v1811 = vsub.s32 0, %v1810
    %v1812 = vrot.slane %v1807, %v1811
    %vm1814 = vcmask 982016
    %v1816 = vsel %vm1814, %v1791, 0
    %1818 = vmatprep.subr.mxu0 0.0
    %1819 = vmatpush1.msra.mxu0 0.0
    %1820 = vmatprep.subr.mxu0 0.0
    %1821 = vmatpush1.msra.mxu0 %v1806
    %1822 = vmatprep.subr.mxu0 0.0
    %1823 = vmatpush1.msra.mxu0 %v1805
    %1824 = vmatprep.subr.mxu0 0.0
    %1825 = vmatpush1.msra.mxu0 %v1804
    %1826 = vmatprep.subr.mxu0 0.0
    %1827 = vmatpush1.msra.mxu0 %v1803
    %1828 = vmatprep.subr.mxu0 0.0
    %1829 = vmatpush1.msra.mxu0 %v1802
    %1830 = vmatprep.subr.mxu0 0.0
    %1831 = vmatpush1.msra.mxu0 %v1801
    %1832 = vmatprep.subr.mxu0 0.0
    %1833 = vmatpush1.msra.mxu0 %v1800
    %1834 = vmatprep.subr.mxu0 0.0
    %1835 = vmatpush1.msra.mxu0 %v1799
    %1836 = vmatprep.subr.mxu0 0.0
    %1837 = vmatpush1.msra.mxu0 %v1798
    %1838 = vmatprep.subr.mxu0 0.0
    %1839 = vmatpush1.msra.mxu0 %v1797
    %1840 = vmatprep.subr.mxu0 0.0
    %1841 = vmatpush1.msra.mxu0 %v1796
    %1842 = vmatprep.subr.mxu0 0.0
    %1843 = vmatpush1.msra.mxu0 %v1795
    %1844 = vmatprep.subr.mxu0 0.0
    %1845 = vmatpush1.msra.mxu0 %v1794
    %1846 = vmatprep.subr.mxu0 0.0
    %1847 = vmatpush1.msra.mxu0 %v1793
    %1848 = vmatprep.subr.mxu0 0.0
    %1849 = vmatpush1.msra.mxu0 %v1792
    %1850 = vmatprep.subr.mxu0 0.0
    %1851 = vmatpush2.msra.mxu0 0.0
    %1852 = vmatprep.subr.mxu0 0.0
    %1853 = vmatpush2.msra.mxu0 0.0
    %1854 = vmatprep.subr.mxu0 0.0
    %1855 = vmatpush2.msra.mxu0 0.0
    %1856 = vmatprep.subr.mxu0 0.0
    %1857 = vmatpush2.msra.mxu0 0.0
    %1858 = vmatprep.subr.mxu0 0.0
    %1859 = vmatpush2.msra.mxu0 0.0
    %1860 = vmatprep.subr.mxu0 0.0
    %1861 = vmatpush2.msra.mxu0 0.0
    %1862 = vmatprep.subr.mxu0 0.0
    %1863 = vmatpush2.msra.mxu0 0.0
    %1864 = vmatprep.subr.mxu0 0.0
    %1865 = vmatpush2.msra.mxu0 0.0
    %1866 = vmatprep.subr.mxu0 0.0
    %1867 = vmatpush2.msra.mxu0 0.0
    %1868 = vmatprep.subr.mxu0 0.0
    %1869 = vmatpush2.msra.mxu0 0.0
    %1870 = vmatprep.subr.mxu0 0.0
    %1871 = vmatpush2.msra.mxu0 0.0
    %1872 = vmatprep.subr.mxu0 0.0
    %1873 = vmatpush2.msra.mxu0 0.0
    %1874 = vmatprep.subr.mxu0 0.0
    %1875 = vmatpush2.msra.mxu0 0.0
    %1876 = vmatprep.subr.mxu0 0.0
    %1877 = vmatpush2.msra.mxu0 0.0
    %1878 = vmatprep.subr.mxu0 0.0
    %1879 = vmatpush2.msra.mxu0 0.0
    %1880 = vmatprep.subr.mxu0 0.0
    %1881 = vmatpush2.msra.mxu0 0.0
    %1882 = vmatprep.mubr.f32.mxu0 0.0
    %1883 = vmatmul.mubr.f32.gmra.mxu0 %v1816
    %v1884 = vpop.f32.mrf.mxu0
    %v1885 = vadd.f32 %v1812, %v1884
    %v1886 = vpop.f32.mrf.mxu0
    %1887 = vdwg.mxu0
    %v1888 = vmax.f32 %v1885, 0.0
    %v1889 = vld [vmem:[%s7] sm:$0xff]
    %v1890 = vld [vmem:[%s7 + $0x8] sm:$0xff]
    %v1891 = vld [vmem:[%s7 + $0x10] sm:$0xff]
    %v1892 = vld [vmem:[%s7 + $0x18] sm:$0xff]
    %v1893 = vld [vmem:[%s8] sm:$0x1]
    %v1895 = vlaneseq
    %v1896 = vshrl.u32 %v1895, 7
    %v1897 = vsub.s32 0, %v1896
    %v1898 = vrot.slane %v1893, %v1897
    %vm1900 = vcmask 261120
    %v1902 = vsel %vm1900, %v1888, 0
    %1904 = vmatprep.subr.mxu0 0.0
    %1905 = vmatpush1.msra.mxu0 0.0
    %1906 = vmatprep.subr.mxu0 0.0
    %1907 = vmatpush1.msra.mxu0 0.0
    %1908 = vmatprep.subr.mxu0 0.0
    %1909 = vmatpush1.msra.mxu0 0.0
    %1910 = vmatprep.subr.mxu0 0.0
    %1911 = vmatpush1.msra.mxu0 0.0
    %1912 = vmatprep.subr.mxu0 0.0
    %1913 = vmatpush1.msra.mxu0 0.0
    %1914 = vmatprep.subr.mxu0 0.0
    %1915 = vmatpush1.msra.mxu0 0.0
    %1916 = vmatprep.subr.mxu0 0.0
    %1917 = vmatpush1.msra.mxu0 0.0
    %1918 = vmatprep.subr.mxu0 0.0
    %1919 = vmatpush1.msra.mxu0 0.0
    %1920 = vmatprep.subr.mxu0 0.0
    %1921 = vmatpush1.msra.mxu0 0.0
    %1922 = vmatprep.subr.mxu0 0.0
    %1923 = vmatpush1.msra.mxu0 0.0
    %1924 = vmatprep.subr.mxu0 0.0
    %1925 = vmatpush1.msra.mxu0 0.0
    %1926 = vmatprep.subr.mxu0 0.0
    %1927 = vmatpush1.msra.mxu0 0.0
    %1928 = vmatprep.subr.mxu0 0.0
    %1929 = vmatpush1.msra.mxu0 %v1892
    %1930 = vmatprep.subr.mxu0 0.0
    %1931 = vmatpush1.msra.mxu0 %v1891
    %1932 = vmatprep.subr.mxu0 0.0
    %1933 = vmatpush1.msra.mxu0 %v1890
    %1934 = vmatprep.subr.mxu0 0.0
    %1935 = vmatpush1.msra.mxu0 %v1889
    %1936 = vmatprep.subr.mxu0 0.0
    %1937 = vmatpush2.msra.mxu0 0.0
    %1938 = vmatprep.subr.mxu0 0.0
    %1939 = vmatpush2.msra.mxu0 0.0
    %1940 = vmatprep.subr.mxu0 0.0
    %1941 = vmatpush2.msra.mxu0 0.0
    %1942 = vmatprep.subr.mxu0 0.0
    %1943 = vmatpush2.msra.mxu0 0.0
    %1944 = vmatprep.subr.mxu0 0.0
    %1945 = vmatpush2.msra.mxu0 0.0
    %1946 = vmatprep.subr.mxu0 0.0
    %1947 = vmatpush2.msra.mxu0 0.0
    %1948 = vmatprep.subr.mxu0 0.0
    %1949 = vmatpush2.msra.mxu0 0.0
    %1950 = vmatprep.subr.mxu0 0.0
    %1951 = vmatpush2.msra.mxu0 0.0
    %1952 = vmatprep.subr.mxu0 0.0
    %1953 = vmatpush2.msra.mxu0 0.0
    %1954 = vmatprep.subr.mxu0 0.0
    %1955 = vmatpush2.msra.mxu0 0.0
    %1956 = vmatprep.subr.mxu0 0.0
    %1957 = vmatpush2.msra.mxu0 0.0
    %1958 = vmatprep.subr.mxu0 0.0
    %1959 = vmatpush2.msra.mxu0 0.0
    %1960 = vmatprep.subr.mxu0 0.0
    %1961 = vmatpush2.msra.mxu0 0.0
    %1962 = vmatprep.subr.mxu0 0.0
    %1963 = vmatpush2.msra.mxu0 0.0
    %1964 = vmatprep.subr.mxu0 0.0
    %1965 = vmatpush2.msra.mxu0 0.0
    %1966 = vmatprep.subr.mxu0 0.0
    %1967 = vmatpush2.msra.mxu0 0.0
    %1968 = vmatprep.mubr.f32.mxu0 0.0
    %1969 = vmatmul.mubr.f32.gmra.mxu0 %v1902
    %v1970 = vpop.f32.mrf.mxu0
    %v1971 = vadd.f32 %v1898, %v1970
    %v1972 = vpop.f32.mrf.mxu0
    %1973 = vdwg.mxu0
    %v1974 = vmax.f32 %v1971, 0.0
    %v1975 = vld [vmem:[%s9] sm:$0xff]
    %v1976 = vld [vmem:[%s9 + $0x8] sm:$0xff]
    %v1977 = vld [vmem:[%s10] sm:$0x1]
    %v1979 = vlaneseq
    %v1980 = vshrl.u32 %v1979, 7
    %v1981 = vsub.s32 0, %v1980
    %v1982 = vrot.slane %v1977, %v1981
    %vm1984 = vcmask 130048
    %v1986 = vsel %vm1984, %v1974, 0
    %1988 = vmatprep.subr.mxu0 0.0
    %1989 = vmatpush1.msra.mxu0 0.0
    %1990 = vmatprep.subr.mxu0 0.0
    %1991 = vmatpush1.msra.mxu0 0.0
    %1992 = vmatprep.subr.mxu0 0.0
    %1993 = vmatpush1.msra.mxu0 0.0
    %1994 = vmatprep.subr.mxu0 0.0
    %1995 = vmatpush1.msra.mxu0 0.0
    %1996 = vmatprep.subr.mxu0 0.0
    %1997 = vmatpush1.msra.mxu0 0.0
    %1998 = vmatprep.subr.mxu0 0.0
    %1999 = vmatpush1.msra.mxu0 0.0
    %2000 = vmatprep.subr.mxu0 0.0
    %2001 = vmatpush1.msra.mxu0 0.0
    %2002 = vmatprep.subr.mxu0 0.0
    %2003 = vmatpush1.msra.mxu0 0.0
    %2004 = vmatprep.subr.mxu0 0.0
    %2005 = vmatpush1.msra.mxu0 0.0
    %2006 = vmatprep.subr.mxu0 0.0
    %2007 = vmatpush1.msra.mxu0 0.0
    %2008 = vmatprep.subr.mxu0 0.0
    %2009 = vmatpush1.msra.mxu0 0.0
    %2010 = vmatprep.subr.mxu0 0.0
    %2011 = vmatpush1.msra.mxu0 0.0
    %2012 = vmatprep.subr.mxu0 0.0
    %2013 = vmatpush1.msra.mxu0 0.0
    %2014 = vmatprep.subr.mxu0 0.0
    %2015 = vmatpush1.msra.mxu0 0.0
    %2016 = vmatprep.subr.mxu0 0.0
    %2017 = vmatpush1.msra.mxu0 %v1976
    %2018 = vmatprep.subr.mxu0 0.0
    %2019 = vmatpush1.msra.mxu0 %v1975
    %2020 = vmatprep.subr.mxu0 0.0
    %2021 = vmatpush2.msra.mxu0 0.0
    %2022 = vmatprep.subr.mxu0 0.0
    %2023 = vmatpush2.msra.mxu0 0.0
    %2024 = vmatprep.subr.mxu0 0.0
    %2025 = vmatpush2.msra.mxu0 0.0
    %2026 = vmatprep.subr.mxu0 0.0
    %2027 = vmatpush2.msra.mxu0 0.0
    %2028 = vmatprep.subr.mxu0 0.0
    %2029 = vmatpush2.msra.mxu0 0.0
    %2030 = vmatprep.subr.mxu0 0.0
    %2031 = vmatpush2.msra.mxu0 0.0
    %2032 = vmatprep.subr.mxu0 0.0
    %2033 = vmatpush2.msra.mxu0 0.0
    %2034 = vmatprep.subr.mxu0 0.0
    %2035 = vmatpush2.msra.mxu0 0.0
    %2036 = vmatprep.subr.mxu0 0.0
    %2037 = vmatpush2.msra.mxu0 0.0
    %2038 = vmatprep.subr.mxu0 0.0
    %2039 = vmatpush2.msra.mxu0 0.0
    %2040 = vmatprep.subr.mxu0 0.0
    %2041 = vmatpush2.msra.mxu0 0.0
    %2042 = vmatprep.subr.mxu0 0.0
    %2043 = vmatpush2.msra.mxu0 0.0
    %2044 = vmatprep.subr.mxu0 0.0
    %2045 = vmatpush2.msra.mxu0 0.0
    %2046 = vmatprep.subr.mxu0 0.0
    %2047 = vmatpush2.msra.mxu0 0.0
    %2048 = vmatprep.subr.mxu0 0.0
    %2049 = vmatpush2.msra.mxu0 0.0
    %2050 = vmatprep.subr.mxu0 0.0
    %2051 = vmatpush2.msra.mxu0 0.0
    %2052 = vmatprep.mubr.f32.mxu0 0.0
    %2053 = vmatmul.mubr.f32.gmra.mxu0 %v1986
    %v2054 = vpop.f32.mrf.mxu0
    %v2055 = vadd.f32 %v1982, %v2054
    %v2056 = vpop.f32.mrf.mxu0
    %2057 = vdwg.mxu0
    %2058 = vst [vmem:[#allocation11] sm:$0x3] %v2055
    // Predicated region
    $region62: #{tpu_custom_call.1} parent=1 // pred_check
      _
    $region63: #{tpu_custom_call.1} parent=1 // pred_check_branch
      %2060 = sbr.rel (0) target = $region65
    $region64: #{tpu_custom_call.1} parent=1 // pred_region
      %s2062 = ssub.s32 32, 32
      %2063 = vsyncadd [#allocation4], %s2062
      %s2065 = sshll.u32 [#allocation11], 4
      %s2066 = int_to_ptr.vmem [resolvable:$true] %s2065
      %2068 = dma.vmem_to_hbm [thread:$0]  %s2066, 32, %s11, [#allocation4]
    $region65: #{tpu_custom_call.1} parent=1 // pred_fallthru
      _
    // Predicated region
    $region66: #{tpu_custom_call.1} parent=1 // pred_check
      _
    $region67: #{tpu_custom_call.1} parent=1 // pred_check_branch
      %2070 = sbr.rel (0) target = $region69
    $region68: #{tpu_custom_call.1} parent=1 // pred_region
      %2071 = dma.done [#allocation4], 32
    $region69: #{tpu_custom_call.1} parent=1 // pred_fallthru
      _
    %2072 = vsyncpa [#allocation4], 1
    %2073 = vsyncpa [#allocation5], 1
    %2074 = vsyncpa [#allocation7], 1
    %2075 = vsyncpa [#allocation10], 1

// kernel: tpu_custom_call.1
$region0: #{tpu_custom_call.1}
  #allocation0 [shape = 'u32[]', space=smem, size = 0x4, offset = 0x4, fixed_abs, tag = 'smem constant byte address 0x4 - core index']
  #allocation1 [shape = 'u32[144,128]{1,0:T(1,128)}', space=vmem, size = 0x12000, scoped, tag = 'internal scratch']
  #allocation2 [shape = 'f32[2,120]{1,0:T(2,128)}', space=vmem, size = 0x400, scoped, tag = 'scratch operand']
  %s0 = inlined_call_operand.vmem [shape: f32[12], index: 0, kind: input, shape index: {}]
  %s1 = inlined_call_operand.vmem [shape: f32[4], index: 1, kind: input, shape index: {}]
  %s2 = inlined_call_operand.vmem [shape: f32[96], index: 2, kind: input, shape index: {}]
  %s3 = inlined_call_operand.vmem [shape: f32[8], index: 3, kind: input, shape index: {}]
  %s4 = inlined_call_operand.vmem [shape: f32[1,4,2,17], index: 4, kind: input, shape index: {}]
  %s5 = inlined_call_operand.vmem [shape: f32[1,120,32], index: 5, kind: input, shape index: {}]
  %s6 = inlined_call_operand.vmem [shape: f32[1,32], index: 6, kind: input, shape index: {}]
  %s7 = inlined_call_operand.vmem [shape: f32[32,16], index: 7, kind: input, shape index: {}]
  %s8 = inlined_call_operand.vmem [shape: f32[1,16], index: 8, kind: input, shape index: {}]
  %s9 = inlined_call_operand.vmem [shape: f32[16,128], index: 9, kind: input, shape index: {}]
  %s10 = inlined_call_operand.vmem [shape: f32[1,128], index: 10, kind: input, shape index: {}]
  %s11 = inlined_call_operand.hbm [shape: f32[2,128], index: 11, kind: output, shape index: {}]
  %s12 = sld [smem:[#allocation0]]
  $region70: #{tpu_custom_call.1} parent=0
    _
  %s14 = ssub.s32 1, %s12
  %s15 = scalar_select 0, %s14, %s12
  $region1: #{tpu_custom_call.1} parent=0
    #allocation3 [shape = 'u8[512]{0}', space=smem, size = 0x200, scoped, tag = 'input window, operand 0, single buffered']
    #allocation4 [shape = 's32[1]{0}', space=sflag, size = 0x4, scoped, tag = 'scoped memory for tpu_custom_call.1']
    #allocation5 [shape = 's32[1]{0}', space=sflag, size = 0x4, scoped, tag = 'scoped memory for tpu_custom_call.1']
    #allocation6 [shape = 'u8[512]{0}', space=smem, size = 0x200, scoped, tag = 'input window, operand 1, single buffered']
    #allocation7 [shape = 's32[1]{0}', space=sflag, size = 0x4, scoped, tag = 'scoped memory for tpu_custom_call.1']
    #allocation8 [shape = 'u8[512]{0}', space=smem, size = 0x200, scoped, tag = 'input window, operand 2, single buffered']
    #allocation9 [shape = 'u8[512]{0}', space=smem, size = 0x200, scoped, tag = 'input window, operand 3, single buffered']
    #allocation10 [shape = 's32[1]{0}', space=sflag, size = 0x4, scoped, tag = 'scoped memory for tpu_custom_call.1']
    #allocation11 [shape = 'u8[1024]{0}', space=vmem, size = 0x400, scoped, tag = 'output window, operand 0, single buffered']
    %16 = vsyncpa [#allocation5], 0
    %17 = vsyncpa [#allocation7], 0
    %18 = vsyncpa [#allocation10], 0
    %19 = vsyncpa [#allocation4], 0
    // Predicated region
    $region2: #{tpu_custom_call.1} parent=1 // pred_check
      _
    $region3: #{tpu_custom_call.1} parent=1 // pred_check_branch
      %21 = sbr.rel (0) target = $region5
    $region4: #{tpu_custom_call.1} parent=1 // pred_region
      %s23 = ssub.s32 16, 16
      %24 = vsyncadd [#allocation5], %s23
      %s26 = sshll.u32 %s0, 4
      %s27 = int_to_ptr.vmem [resolvable:$true] %s26
      %29 = dma.vmem_to_smem %s27, 16, [#allocation3], [#allocation5]
    $region5: #{tpu_custom_call.1} parent=1 // pred_fallthru
      _
    // Predicated region
    $region6: #{tpu_custom_call.1} parent=1 // pred_check
      _
    $region7: #{tpu_custom_call.1} parent=1 // pred_check_branch
      %31 = sbr.rel (0) target = $region9
    $region8: #{tpu_custom_call.1} parent=1 // pred_region
      %s33 = ssub.s32 16, 16
      %34 = vsyncadd [#allocation7], %s33
      %s36 = sshll.u32 %s1, 4
      %s37 = int_to_ptr.vmem [resolvable:$true] %s36
      %39 = dma.vmem_to_smem %s37, 16, [#allocation6], [#allocation7]
    $region9: #{tpu_custom_call.1} parent=1 // pred_fallthru
      _
    // Predicated region
    $region10: #{tpu_custom_call.1} parent=1 // pred_check
      _
    $region11: #{tpu_custom_call.1} parent=1 // pred_check_branch
      %41 = sbr.rel (0) target = $region13
    $region12: #{tpu_custom_call.1} parent=1 // pred_region
      %s43 = ssub.s32 16, 16
      %44 = vsyncadd [#allocation7], %s43
      %s46 = sshll.u32 %s2, 4
      %s47 = int_to_ptr.vmem [resolvable:$true] %s46
      %49 = dma.vmem_to_smem %s47, 16, [#allocation8], [#allocation7]
    $region13: #{tpu_custom_call.1} parent=1 // pred_fallthru
      _
    // Predicated region
    $region14: #{tpu_custom_call.1} parent=1 // pred_check
      _
    $region15: #{tpu_custom_call.1} parent=1 // pred_check_branch
      %51 = sbr.rel (0) target = $region17
    $region16: #{tpu_custom_call.1} parent=1 // pred_region
      %s53 = ssub.s32 16, 16
      %54 = vsyncadd [#allocation10], %s53
      %s56 = sshll.u32 %s3, 4
      %s57 = int_to_ptr.vmem [resolvable:$true] %s56
      %59 = dma.vmem_to_smem %s57, 16, [#allocation9], [#allocation10]
    $region17: #{tpu_custom_call.1} parent=1 // pred_fallthru
      _
    // Predicated region
    $region18: #{tpu_custom_call.1} parent=1 // pred_check
      _
    $region19: #{tpu_custom_call.1} parent=1 // pred_check_branch
      %61 = sbr.rel (0) target = $region21
    $region20: #{tpu_custom_call.1} parent=1 // pred_region
      _
    $region21: #{tpu_custom_call.1} parent=1 // pred_fallthru
      _
    // Predicated region
    $region22: #{tpu_custom_call.1} parent=1 // pred_check
      _
    $region23: #{tpu_custom_call.1} parent=1 // pred_check_branch
      %63 = sbr.rel (0) target = $region25
    $region24: #{tpu_custom_call.1} parent=1 // pred_region
      _
    $region25: #{tpu_custom_call.1} parent=1 // pred_fallthru
      _
    // Predicated region
    $region26: #{tpu_custom_call.1} parent=1 // pred_check
      _
    $region27: #{tpu_custom_call.1} parent=1 // pred_check_branch
      %65 = sbr.rel (0) target = $region29
    $region28: #{tpu_custom_call.1} parent=1 // pred_region
      _
    $region29: #{tpu_custom_call.1} parent=1 // pred_fallthru
      _
    // Predicated region
    $region30: #{tpu_custom_call.1} parent=1 // pred_check
      _
    $region31: #{tpu_custom_call.1} parent=1 // pred_check_branch
      %67 = sbr.rel (0) target = $region33
    $region32: #{tpu_custom_call.1} parent=1 // pred_region
      _
    $region33: #{tpu_custom_call.1} parent=1 // pred_fallthru
      _
    // Predicated region
    $region34: #{tpu_custom_call.1} parent=1 // pred_check
      _
    $region35: #{tpu_custom_call.1} parent=1 // pred_check_branch
      %69 = sbr.rel (0) target = $region37
    $region36: #{tpu_custom_call.1} parent=1 // pred_region
      _
    $region37: #{tpu_custom_call.1} parent=1 // pred_fallthru
      _
    // Predicated region
    $region38: #{tpu_custom_call.1} parent=1 // pred_check
      _
    $region39: #{tpu_custom_call.1} parent=1 // pred_check_branch
      %71 = sbr.rel (0) target = $region41
    $region40: #{tpu_custom_call.1} parent=1 // pred_region
      _
    $region41: #{tpu_custom_call.1} parent=1 // pred_fallthru
      _
    // Predicated region
    $region42: #{tpu_custom_call.1} parent=1 // pred_check
      _
    $region43: #{tpu_custom_call.1} parent=1 // pred_check_branch
      %73 = sbr.rel (0) target = $region45
    $region44: #{tpu_custom_call.1} parent=1 // pred_region
      _
    $region45: #{tpu_custom_call.1} parent=1 // pred_fallthru
      _
    // Predicated region
    $region46: #{tpu_custom_call.1} parent=1 // pred_check
      _
    $region47: #{tpu_custom_call.1} parent=1 // pred_check_branch
      %75 = sbr.rel (0) target = $region49
    $region48: #{tpu_custom_call.1} parent=1 // pred_region
      %76 = dma.done [#allocation5], 16
    $region49: #{tpu_custom_call.1} parent=1 // pred_fallthru
      _
    // Predicated region
    $region50: #{tpu_custom_call.1} parent=1 // pred_check
      _
    $region51: #{tpu_custom_call.1} parent=1 // pred_check_branch
      %78 = sbr.rel (0) target = $region53
    $region52: #{tpu_custom_call.1} parent=1 // pred_region
      %79 = dma.done [#allocation7], 16
    $region53: #{tpu_custom_call.1} parent=1 // pred_fallthru
      _
    // Predicated region
    $region54: #{tpu_custom_call.1} parent=1 // pred_check
      _
    $region55: #{tpu_custom_call.1} parent=1 // pred_check_branch
      %81 = sbr.rel (0) target = $region57
    $region56: #{tpu_custom_call.1} parent=1 // pred_region
      %82 = dma.done [#allocation7], 16
    $region57: #{tpu_custom_call.1} parent=1 // pred_fallthru
      _
    // Predicated region
    $region58: #{tpu_custom_call.1} parent=1 // pred_check
      _
    $region59: #{tpu_custom_call.1} parent=1 // pred_check_branch
      %84 = sbr.rel (0) target = $region61
    $region60: #{tpu_custom_call.1} parent=1 // pred_region
      %85 = dma.done [#allocation10], 16
    $region61: #{tpu_custom_call.1} parent=1 // pred_fallthru
      _
    %86 = sfence
    %s87 = sld [smem:[#allocation3]]
    %s88 = sld [smem:[#allocation3 + $0x1]]
    %s89 = sld [smem:[#allocation3 + $0x2]]
    %s90 = sld [smem:[#allocation3 + $0x3]]
    %s91 = sld [smem:[#allocation3 + $0x4]]
    %s92 = sld [smem:[#allocation3 + $0x5]]
    %s93 = sld [smem:[#allocation3 + $0x6]]
    %s94 = sld [smem:[#allocation3 + $0x7]]
    %s95 = sld [smem:[#allocation3 + $0x8]]
    %s96 = sld [smem:[#allocation3 + $0x9]]
    %s97 = sld [smem:[#allocation3 + $0xa]]
    %s98 = sld [smem:[#allocation3 + $0xb]]
    %s99 = sld [smem:[#allocation6]]
    %s100 = sld [smem:[#allocation6 + $0x1]]
    %s101 = sld [smem:[#allocation6 + $0x2]]
    %s102 = sld [smem:[#allocation6 + $0x3]]
    %s103 = sld [smem:[#allocation8]]
    %s104 = sld [smem:[#allocation8 + $0x1]]
    %s105 = sld [smem:[#allocation8 + $0x2]]
    %s106 = sld [smem:[#allocation8 + $0x3]]
    %s107 = sld [smem:[#allocation8 + $0x4]]
    %s108 = sld [smem:[#allocation8 + $0x5]]
    %s109 = sld [smem:[#allocation8 + $0x6]]
    %s110 = sld [smem:[#allocation8 + $0x7]]
    %s111 = sld [smem:[#allocation8 + $0x8]]
    %s112 = sld [smem:[#allocation8 + $0x9]]
    %s113 = sld [smem:[#allocation8 + $0xa]]
    %s114 = sld [smem:[#allocation8 + $0xb]]
    %s115 = sld [smem:[#allocation8 + $0xc]]
    %s116 = sld [smem:[#allocation8 + $0xd]]
    %s117 = sld [smem:[#allocation8 + $0xe]]
    %s118 = sld [smem:[#allocation8 + $0xf]]
    %s119 = sld [smem:[#allocation8 + $0x10]]
    %s120 = sld [smem:[#allocation8 + $0x11]]
    %s121 = sld [smem:[#allocation8 + $0x12]]
    %s122 = sld [smem:[#allocation8 + $0x13]]
    %s123 = sld [smem:[#allocation8 + $0x14]]
    %s124 = sld [smem:[#allocation8 + $0x15]]
    %s125 = sld [smem:[#allocation8 + $0x16]]
    %s126 = sld [smem:[#allocation8 + $0x17]]
    %s127 = sld [smem:[#allocation8 + $0x18]]
    %s128 = sld [smem:[#allocation8 + $0x19]]
    %s129 = sld [smem:[#allocation8 + $0x1a]]
    %s130 = sld [smem:[#allocation8 + $0x1b]]
    %s131 = sld [smem:[#allocation8 + $0x1c]]
    %s132 = sld [smem:[#allocation8 + $0x1d]]
    %s133 = sld [smem:[#allocation8 + $0x1e]]
    %s134 = sld [smem:[#allocation8 + $0x1f]]
    %s135 = sld [smem:[#allocation8 + $0x20]]
    %s136 = sld [smem:[#allocation8 + $0x21]]
    %s137 = sld [smem:[#allocation8 + $0x22]]
    %s138 = sld [smem:[#allocation8 + $0x23]]
    %s139 = sld [smem:[#allocation8 + $0x24]]
    %s140 = sld [smem:[#allocation8 + $0x25]]
    %s141 = sld [smem:[#allocation8 + $0x26]]
    %s142 = sld [smem:[#allocation8 + $0x27]]
    %s143 = sld [smem:[#allocation8 + $0x28]]
    %s144 = sld [smem:[#allocation8 + $0x29]]
    %s145 = sld [smem:[#allocation8 + $0x2a]]
    %s146 = sld [smem:[#allocation8 + $0x2b]]
    %s147 = sld [smem:[#allocation8 + $0x2c]]
    %s148 = sld [smem:[#allocation8 + $0x2d]]
    %s149 = sld [smem:[#allocation8 + $0x2e]]
    %s150 = sld [smem:[#allocation8 + $0x2f]]
    %s151 = sld [smem:[#allocation8 + $0x30]]
    %s152 = sld [smem:[#allocation8 + $0x31]]
    %s153 = sld [smem:[#allocation8 + $0x32]]
    %s154 = sld [smem:[#allocation8 + $0x33]]
    %s155 = sld [smem:[#allocation8 + $0x34]]
    %s156 = sld [smem:[#allocation8 + $0x35]]
    %s157 = sld [smem:[#allocation8 + $0x36]]
    %s158 = sld [smem:[#allocation8 + $0x37]]
    %s159 = sld [smem:[#allocation8 + $0x38]]
    %s160 = sld [smem:[#allocation8 + $0x39]]
    %s161 = sld [smem:[#allocation8 + $0x3a]]
    %s162 = sld [smem:[#allocation8 + $0x3b]]
    %s163 = sld [smem:[#allocation8 + $0x3c]]
    %s164 = sld [smem:[#allocation8 + $0x3d]]
    %s165 = sld [smem:[#allocation8 + $0x3e]]
    %s166 = sld [smem:[#allocation8 + $0x3f]]
    %s167 = sld [smem:[#allocation8 + $0x40]]
    %s168 = sld [smem:[#allocation8 + $0x41]]
    %s169 = sld [smem:[#allocation8 + $0x42]]
    %s170 = sld [smem:[#allocation8 + $0x43]]
    %s171 = sld [smem:[#allocation8 + $0x44]]
    %s172 = sld [smem:[#allocation8 + $0x45]]
    %s173 = sld [smem:[#allocation8 + $0x46]]
    %s174 = sld [smem:[#allocation8 + $0x47]]
    %s175 = sld [smem:[#allocation8 + $0x48]]
    %s176 = sld [smem:[#allocation8 + $0x49]]
    %s177 = sld [smem:[#allocation8 + $0x4a]]
    %s178 = sld [smem:[#allocation8 + $0x4b]]
    %s179 = sld [smem:[#allocation8 + $0x4c]]
    %s180 = sld [smem:[#allocation8 + $0x4d]]
    %s181 = sld [smem:[#allocation8 + $0x4e]]
    %s182 = sld [smem:[#allocation8 + $0x4f]]
    %s183 = sld [smem:[#allocation8 + $0x50]]
    %s184 = sld [smem:[#allocation8 + $0x51]]
    %s185 = sld [smem:[#allocation8 + $0x52]]
    %s186 = sld [smem:[#allocation8 + $0x53]]
    %s187 = sld [smem:[#allocation8 + $0x54]]
    %s188 = sld [smem:[#allocation8 + $0x55]]
    %s189 = sld [smem:[#allocation8 + $0x56]]
    %s190 = sld [smem:[#allocation8 + $0x57]]
    %s191 = sld [smem:[#allocation8 + $0x58]]
    %s192 = sld [smem:[#allocation8 + $0x59]]
    %s193 = sld [smem:[#allocation8 + $0x5a]]
    %s194 = sld [smem:[#allocation8 + $0x5b]]
    %s195 = sld [smem:[#allocation8 + $0x5c]]
    %s196 = sld [smem:[#allocation8 + $0x5d]]
    %s197 = sld [smem:[#allocation8 + $0x5e]]
    %s198 = sld [smem:[#allocation8 + $0x5f]]
    %s199 = sld [smem:[#allocation9]]
    %s200 = sld [smem:[#allocation9 + $0x1]]
    %s201 = sld [smem:[#allocation9 + $0x2]]
    %s202 = sld [smem:[#allocation9 + $0x3]]
    %s203 = sld [smem:[#allocation9 + $0x4]]
    %s204 = sld [smem:[#allocation9 + $0x5]]
    %s205 = sld [smem:[#allocation9 + $0x6]]
    %s206 = sld [smem:[#allocation9 + $0x7]]
    %v207 = vld [vmem:[%s4] sm:$0x3]
    %v208 = vld [vmem:[%s4 + $0x2] sm:$0x3]
    %v209 = vld [vmem:[%s4 + $0x4] sm:$0x3]
    %v210 = vld [vmem:[%s4 + $0x6] sm:$0x3]
    %v211 = vstv %s87
    %v212 = vmul.f32 %v211, %v207
    %v213 = vadd.f32 %v212, 0.0
    %v214 = vstv %s88
    %v215 = vmul.f32 %v214, %v208
    %v216 = vadd.f32 %v213, %v215
    %v217 = vstv %s89
    %v218 = vmul.f32 %v217, %v209
    %v219 = vadd.f32 %v216, %v218
    %v220 = vstv %s99
    %v221 = vadd.f32 %v219, %v220
    %v222 = vmax.f32 %v221, 0.0
    %v223 = vmul.f32 %v211, %v208
    %v224 = vadd.f32 %v223, 0.0
    %v225 = vmul.f32 %v214, %v209
    %v226 = vadd.f32 %v224, %v225
    %v227 = vmul.f32 %v217, %v210
    %v228 = vadd.f32 %v226, %v227
    %v229 = vadd.f32 %v228, %v220
    %v230 = vmax.f32 %v229, 0.0
    %v231 = vmul.f32 %v211, %v209
    %v232 = vadd.f32 %v231, 0.0
    %v233 = vmul.f32 %v214, %v210
    %v234 = vadd.f32 %v232, %v233
    %v235 = vmul.f32 %v217, %v207
    %237 = vrot.lane.b32.xlu0 %v235, 127
    %v238 = vpop.permute.xlu0 %237
    %v240 = vadd.f32 %v234, %v238
    %v241 = vadd.f32 %v240, %v220
    %v242 = vmax.f32 %v241, 0.0
    %v243 = vmul.f32 %v211, %v210
    %v244 = vadd.f32 %v243, 0.0
    %v245 = vmul.f32 %v214, %v207
    %247 = vrot.lane.b32.xlu0 %v245, 127
    %v248 = vpop.permute.xlu0 %247
    %v250 = vadd.f32 %v244, %v248
    %v251 = vmul.f32 %v217, %v208
    %253 = vrot.lane.b32.xlu0 %v251, 127
    %v254 = vpop.permute.xlu0 %253
    %v256 = vadd.f32 %v250, %v254
    %v257 = vadd.f32 %v256, %v220
    %v258 = vmax.f32 %v257, 0.0
    %v259 = vstv %s90
    %v260 = vmul.f32 %v259, %v207
    %v261 = vadd.f32 %v260, 0.0
    %v262 = vstv %s91
    %v263 = vmul.f32 %v262, %v208
    %v264 = vadd.f32 %v261, %v263
    %v265 = vstv %s92
    %v266 = vmul.f32 %v265, %v209
    %v267 = vadd.f32 %v264, %v266
    %v268 = vstv %s100
    %v269 = vadd.f32 %v267, %v268
    %v270 = vmax.f32 %v269, 0.0
    %v271 = vmul.f32 %v259, %v208
    %v272 = vadd.f32 %v271, 0.0
    %v273 = vmul.f32 %v262, %v209
    %v274 = vadd.f32 %v272, %v273
    %v275 = vmul.f32 %v265, %v210
    %v276 = vadd.f32 %v274, %v275
    %v277 = vadd.f32 %v276, %v268
    %v278 = vmax.f32 %v277, 0.0
    %v279 = vmul.f32 %v259, %v209
    %v280 = vadd.f32 %v279, 0.0
    %v281 = vmul.f32 %v262, %v210
    %v282 = vadd.f32 %v280, %v281
    %v283 = vmul.f32 %v265, %v207
    %285 = vrot.lane.b32.xlu0 %v283, 127
    %v286 = vpop.permute.xlu0 %285
    %v288 = vadd.f32 %v282, %v286
    %v289 = vadd.f32 %v288, %v268
    %v290 = vmax.f32 %v289, 0.0
    %v291 = vmul.f32 %v259, %v210
    %v292 = vadd.f32 %v291, 0.0
    %v293 = vmul.f32 %v262, %v207
    %295 = vrot.lane.b32.xlu0 %v293, 127
    %v296 = vpop.permute.xlu0 %295
    %v298 = vadd.f32 %v292, %v296
    %v299 = vmul.f32 %v265, %v208
    %301 = vrot.lane.b32.xlu0 %v299, 127
    %v302 = vpop.permute.xlu0 %301
    %v304 = vadd.f32 %v298, %v302
    %v305 = vadd.f32 %v304, %v268
    %v306 = vmax.f32 %v305, 0.0
    %v307 = vstv %s93
    %v308 = vmul.f32 %v307, %v207
    %v309 = vadd.f32 %v308, 0.0
    %v310 = vstv %s94
    %v311 = vmul.f32 %v310, %v208
    %v312 = vadd.f32 %v309, %v311
    %v313 = vstv %s95
    %v314 = vmul.f32 %v313, %v209
    %v315 = vadd.f32 %v312, %v314
    %v316 = vstv %s101
    %v317 = vadd.f32 %v315, %v316
    %v318 = vmax.f32 %v317, 0.0
    %v319 = vmul.f32 %v307, %v208
    %v320 = vadd.f32 %v319, 0.0
    %v321 = vmul.f32 %v310, %v209
    %v322 = vadd.f32 %v320, %v321
    %v323 = vmul.f32 %v313, %v210
    %v324 = vadd.f32 %v322, %v323
    %v325 = vadd.f32 %v324, %v316
    %v326 = vmax.f32 %v325, 0.0
    %v327 = vmul.f32 %v307, %v209
    %v328 = vadd.f32 %v327, 0.0
    %v329 = vmul.f32 %v310, %v210
    %v330 = vadd.f32 %v328, %v329
    %v331 = vmul.f32 %v313, %v207
    %333 = vrot.lane.b32.xlu0 %v331, 127
    %v334 = vpop.permute.xlu0 %333
    %v336 = vadd.f32 %v330, %v334
    %v337 = vadd.f32 %v336, %v316
    %v338 = vmax.f32 %v337, 0.0
    %v339 = vmul.f32 %v307, %v210
    %v340 = vadd.f32 %v339, 0.0
    %v341 = vmul.f32 %v310, %v207
    %343 = vrot.lane.b32.xlu0 %v341, 127
    %v344 = vpop.permute.xlu0 %343
    %v346 = vadd.f32 %v340, %v344
    %v347 = vmul.f32 %v313, %v208
    %349 = vrot.lane.b32.xlu0 %v347, 127
    %v350 = vpop.permute.xlu0 %349
    %v352 = vadd.f32 %v346, %v350
    %v353 = vadd.f32 %v352, %v316
    %v354 = vmax.f32 %v353, 0.0
    %v355 = vstv %s96
    %v356 = vmul.f32 %v355, %v207
    %v357 = vadd.f32 %v356, 0.0
    %v358 = vstv %s97
    %v359 = vmul.f32 %v358, %v208
    %v360 = vadd.f32 %v357, %v359
    %v361 = vstv %s98
    %v362 = vmul.f32 %v361, %v209
    %v363 = vadd.f32 %v360, %v362
    %v364 = vstv %s102
    %v365 = vadd.f32 %v363, %v364
    %v366 = vmax.f32 %v365, 0.0
    %v367 = vmul.f32 %v355, %v208
    %v368 = vadd.f32 %v367, 0.0
    %v369 = vmul.f32 %v358, %v209
    %v370 = vadd.f32 %v368, %v369
    %v371 = vmul.f32 %v361, %v210
    %v372 = vadd.f32 %v370, %v371
    %v373 = vadd.f32 %v372, %v364
    %v374 = vmax.f32 %v373, 0.0
    %v375 = vmul.f32 %v355, %v209
    %v376 = vadd.f32 %v375, 0.0
    %v377 = vmul.f32 %v358, %v210
    %v378 = vadd.f32 %v376, %v377
    %v379 = vmul.f32 %v361, %v207
    %381 = vrot.lane.b32.xlu0 %v379, 127
    %v382 = vpop.permute.xlu0 %381
    %v384 = vadd.f32 %v378, %v382
    %v385 = vadd.f32 %v384, %v364
    %v386 = vmax.f32 %v385, 0.0
    %v387 = vmul.f32 %v355, %v210
    %v388 = vadd.f32 %v387, 0.0
    %v389 = vmul.f32 %v358, %v207
    %391 = vrot.lane.b32.xlu0 %v389, 127
    %v392 = vpop.permute.xlu0 %391
    %v394 = vadd.f32 %v388, %v392
    %v395 = vmul.f32 %v361, %v208
    %397 = vrot.lane.b32.xlu0 %v395, 127
    %v398 = vpop.permute.xlu0 %397
    %v400 = vadd.f32 %v394, %v398
    %v401 = vadd.f32 %v400, %v364
    %v402 = vmax.f32 %v401, 0.0
    %v403 = vstv %s103
    %v404 = vmul.f32 %v403, %v222
    %v405 = vadd.f32 %v404, 0.0
    %v406 = vstv %s104
    %v407 = vmul.f32 %v406, %v230
    %v408 = vadd.f32 %v405, %v407
    %v409 = vstv %s105
    %v410 = vmul.f32 %v409, %v242
    %v411 = vadd.f32 %v408, %v410
    %v412 = vstv %s106
    %v413 = vmul.f32 %v412, %v270
    %v414 = vadd.f32 %v411, %v413
    %v415 = vstv %s107
    %v416 = vmul.f32 %v415, %v278
    %v417 = vadd.f32 %v414, %v416
    %v418 = vstv %s108
    %v419 = vmul.f32 %v418, %v290
    %v420 = vadd.f32 %v417, %v419
    %v421 = vstv %s109
    %v422 = vmul.f32 %v421, %v318
    %v423 = vadd.f32 %v420, %v422
    %v424 = vstv %s110
    %v425 = vmul.f32 %v424, %v326
    %v426 = vadd.f32 %v423, %v425
    %v427 = vstv %s111
    %v428 = vmul.f32 %v427, %v338
    %v429 = vadd.f32 %v426, %v428
    %v430 = vstv %s112
    %v431 = vmul.f32 %v430, %v366
    %v432 = vadd.f32 %v429, %v431
    %v433 = vstv %s113
    %v434 = vmul.f32 %v433, %v374
    %v435 = vadd.f32 %v432, %v434
    %v436 = vstv %s114
    %v437 = vmul.f32 %v436, %v386
    %v438 = vadd.f32 %v435, %v437
    %v439 = vstv %s199
    %v440 = vadd.f32 %v438, %v439
    %v441 = vmax.f32 %v440, 0.0
    %v442 = vmul.f32 %v403, %v230
    %v443 = vadd.f32 %v442, 0.0
    %v444 = vmul.f32 %v406, %v242
    %v445 = vadd.f32 %v443, %v444
    %v446 = vmul.f32 %v409, %v258
    %v447 = vadd.f32 %v445, %v446
    %v448 = vmul.f32 %v412, %v278
    %v449 = vadd.f32 %v447, %v448
    %v450 = vmul.f32 %v415, %v290
    %v451 = vadd.f32 %v449, %v450
    %v452 = vmul.f32 %v418, %v306
    %v453 = vadd.f32 %v451, %v452
    %v454 = vmul.f32 %v421, %v326
    %v455 = vadd.f32 %v453, %v454
    %v456 = vmul.f32 %v424, %v338
    %v457 = vadd.f32 %v455, %v456
    %v458 = vmul.f32 %v427, %v354
    %v459 = vadd.f32 %v457, %v458
    %v460 = vmul.f32 %v430, %v374
    %v461 = vadd.f32 %v459, %v460
    %v462 = vmul.f32 %v433, %v386
    %v463 = vadd.f32 %v461, %v462
    %v464 = vmul.f32 %v436, %v402
    %v465 = vadd.f32 %v463, %v464
    %v466 = vadd.f32 %v465, %v439
    %v467 = vmax.f32 %v466, 0.0
    %v468 = vmax.f32 %v441, %v467
    %v469 = vmul.f32 %v403, %v242
    %v470 = vadd.f32 %v469, 0.0
    %v471 = vmul.f32 %v406, %v258
    %v472 = vadd.f32 %v470, %v471
    %v473 = vmul.f32 %v409, %v222
    %475 = vrot.lane.b32.xlu0 %v473, 127
    %v476 = vpop.permute.xlu0 %475
    %v478 = vadd.f32 %v472, %v476
    %v479 = vmul.f32 %v412, %v290
    %v480 = vadd.f32 %v478, %v479
    %v481 = vmul.f32 %v415, %v306
    %v482 = vadd.f32 %v480, %v481
    %v483 = vmul.f32 %v418, %v270
    %485 = vrot.lane.b32.xlu0 %v483, 127
    %v486 = vpop.permute.xlu0 %485
    %v488 = vadd.f32 %v482, %v486
    %v489 = vmul.f32 %v421, %v338
    %v490 = vadd.f32 %v488, %v489
    %v491 = vmul.f32 %v424, %v354
    %v492 = vadd.f32 %v490, %v491
    %v493 = vmul.f32 %v427, %v318
    %495 = vrot.lane.b32.xlu0 %v493, 127
    %v496 = vpop.permute.xlu0 %495
    %v498 = vadd.f32 %v492, %v496
    %v499 = vmul.f32 %v430, %v386
    %v500 = vadd.f32 %v498, %v499
    %v501 = vmul.f32 %v433, %v402
    %v502 = vadd.f32 %v500, %v501
    %v503 = vmul.f32 %v436, %v366
    %505 = vrot.lane.b32.xlu0 %v503, 127
    %v506 = vpop.permute.xlu0 %505
    %v508 = vadd.f32 %v502, %v506
    %v509 = vadd.f32 %v508, %v439
    %v510 = vmax.f32 %v509, 0.0
    %v511 = vmax.f32 %v468, %v510
    %v512 = vmul.f32 %v403, %v258
    %v513 = vadd.f32 %v512, 0.0
    %v514 = vmul.f32 %v406, %v222
    %516 = vrot.lane.b32.xlu0 %v514, 127
    %v517 = vpop.permute.xlu0 %516
    %v519 = vadd.f32 %v513, %v517
    %v520 = vmul.f32 %v409, %v230
    %522 = vrot.lane.b32.xlu0 %v520, 127
    %v523 = vpop.permute.xlu0 %522
    %v525 = vadd.f32 %v519, %v523
    %v526 = vmul.f32 %v412, %v306
    %v527 = vadd.f32 %v525, %v526
    %v528 = vmul.f32 %v415, %v270
    %530 = vrot.lane.b32.xlu0 %v528, 127
    %v531 = vpop.permute.xlu0 %530
    %v533 = vadd.f32 %v527, %v531
    %v534 = vmul.f32 %v418, %v278
    %536 = vrot.lane.b32.xlu0 %v534, 127
    %v537 = vpop.permute.xlu0 %536
    %v539 = vadd.f32 %v533, %v537
    %v540 = vmul.f32 %v421, %v354
    %v541 = vadd.f32 %v539, %v540
    %v542 = vmul.f32 %v424, %v318
    %544 = vrot.lane.b32.xlu0 %v542, 127
    %v545 = vpop.permute.xlu0 %544
    %v547 = vadd.f32 %v541, %v545
    %v548 = vmul.f32 %v427, %v326
    %550 = vrot.lane.b32.xlu0 %v548, 127
    %v551 = vpop.permute.xlu0 %550
    %v553 = vadd.f32 %v547, %v551
    %v554 = vmul.f32 %v430, %v402
    %v555 = vadd.f32 %v553, %v554
    %v556 = vmul.f32 %v433, %v366
    %558 = vrot.lane.b32.xlu0 %v556, 127
    %v559 = vpop.permute.xlu0 %558
    %v561 = vadd.f32 %v555, %v559
    %v562 = vmul.f32 %v436, %v374
    %564 = vrot.lane.b32.xlu0 %v562, 127
    %v565 = vpop.permute.xlu0 %564
    %v567 = vadd.f32 %v561, %v565
    %v568 = vadd.f32 %v567, %v439
    %v569 = vmax.f32 %v568, 0.0
    %v570 = vmax.f32 %v511, %v569
    %vm571 = vcmask 115712
    %572 = vst.msk [vmem:[#allocation2] sm:$0x3] %vm571, %v570
    %v573 = vstv %s115
    %v574 = vmul.f32 %v573, %v222
    %v575 = vadd.f32 %v574, 0.0
    %v576 = vstv %s116
    %v577 = vmul.f32 %v576, %v230
    %v578 = vadd.f32 %v575, %v577
    %v579 = vstv %s117
    %v580 = vmul.f32 %v579, %v242
    %v581 = vadd.f32 %v578, %v580
    %v582 = vstv %s118
    %v583 = vmul.f32 %v582, %v270
    %v584 = vadd.f32 %v581, %v583
    %v585 = vstv %s119
    %v586 = vmul.f32 %v585, %v278
    %v587 = vadd.f32 %v584, %v586
    %v588 = vstv %s120
    %v589 = vmul.f32 %v588, %v290
    %v590 = vadd.f32 %v587, %v589
    %v591 = vstv %s121
    %v592 = vmul.f32 %v591, %v318
    %v593 = vadd.f32 %v590, %v592
    %v594 = vstv %s122
    %v595 = vmul.f32 %v594, %v326
    %v596 = vadd.f32 %v593, %v595
    %v597 = vstv %s123
    %v598 = vmul.f32 %v597, %v338
    %v599 = vadd.f32 %v596, %v598
    %v600 = vstv %s124
    %v601 = vmul.f32 %v600, %v366
    %v602 = vadd.f32 %v599, %v601
    %v603 = vstv %s125
    %v604 = vmul.f32 %v603, %v374
    %v605 = vadd.f32 %v602, %v604
    %v606 = vstv %s126
    %v607 = vmul.f32 %v606, %v386
    %v608 = vadd.f32 %v605, %v607
    %v609 = vstv %s200
    %v610 = vadd.f32 %v608, %v609
    %v611 = vmax.f32 %v610, 0.0
    %v612 = vmul.f32 %v573, %v230
    %v613 = vadd.f32 %v612, 0.0
    %v614 = vmul.f32 %v576, %v242
    %v615 = vadd.f32 %v613, %v614
    %v616 = vmul.f32 %v579, %v258
    %v617 = vadd.f32 %v615, %v616
    %v618 = vmul.f32 %v582, %v278
    %v619 = vadd.f32 %v617, %v618
    %v620 = vmul.f32 %v585, %v290
    %v621 = vadd.f32 %v619, %v620
    %v622 = vmul.f32 %v588, %v306
    %v623 = vadd.f32 %v621, %v622
    %v624 = vmul.f32 %v591, %v326
    %v625 = vadd.f32 %v623, %v624
    %v626 = vmul.f32 %v594, %v338
    %v627 = vadd.f32 %v625, %v626
    %v628 = vmul.f32 %v597, %v354
    %v629 = vadd.f32 %v627, %v628
    %v630 = vmul.f32 %v600, %v374
    %v631 = vadd.f32 %v629, %v630
    %v632 = vmul.f32 %v603, %v386
    %v633 = vadd.f32 %v631, %v632
    %v634 = vmul.f32 %v606, %v402
    %v635 = vadd.f32 %v633, %v634
    %v636 = vadd.f32 %v635, %v609
    %v637 = vmax.f32 %v636, 0.0
    %v638 = vmax.f32 %v611, %v637
    %v639 = vmul.f32 %v573, %v242
    %v640 = vadd.f32 %v639, 0.0
    %v641 = vmul.f32 %v576, %v258
    %v642 = vadd.f32 %v640, %v641
    %v643 = vmul.f32 %v579, %v222
    %645 = vrot.lane.b32.xlu0 %v643, 127
    %v646 = vpop.permute.xlu0 %645
    %v648 = vadd.f32 %v642, %v646
    %v649 = vmul.f32 %v582, %v290
    %v650 = vadd.f32 %v648, %v649
    %v651 = vmul.f32 %v585, %v306
    %v652 = vadd.f32 %v650, %v651
    %v653 = vmul.f32 %v588, %v270
    %655 = vrot.lane.b32.xlu0 %v653, 127
    %v656 = vpop.permute.xlu0 %655
    %v658 = vadd.f32 %v652, %v656
    %v659 = vmul.f32 %v591, %v338
    %v660 = vadd.f32 %v658, %v659
    %v661 = vmul.f32 %v594, %v354
    %v662 = vadd.f32 %v660, %v661
    %v663 = vmul.f32 %v597, %v318
    %665 = vrot.lane.b32.xlu0 %v663, 127
    %v666 = vpop.permute.xlu0 %665
    %v668 = vadd.f32 %v662, %v666
    %v669 = vmul.f32 %v600, %v386
    %v670 = vadd.f32 %v668, %v669
    %v671 = vmul.f32 %v603, %v402
    %v672 = vadd.f32 %v670, %v671
    %v673 = vmul.f32 %v606, %v366
    %675 = vrot.lane.b32.xlu0 %v673, 127
    %v676 = vpop.permute.xlu0 %675
    %v678 = vadd.f32 %v672, %v676
    %v679 = vadd.f32 %v678, %v609
    %v680 = vmax.f32 %v679, 0.0
    %v681 = vmax.f32 %v638, %v680
    %v682 = vmul.f32 %v573, %v258
    %v683 = vadd.f32 %v682, 0.0
    %v684 = vmul.f32 %v576, %v222
    %686 = vrot.lane.b32.xlu0 %v684, 127
    %v687 = vpop.permute.xlu0 %686
    %v689 = vadd.f32 %v683, %v687
    %v690 = vmul.f32 %v579, %v230
    %692 = vrot.lane.b32.xlu0 %v690, 127
    %v693 = vpop.permute.xlu0 %692
    %v695 = vadd.f32 %v689, %v693
    %v696 = vmul.f32 %v582, %v306
    %v697 = vadd.f32 %v695, %v696
    %v698 = vmul.f32 %v585, %v270
    %700 = vrot.lane.b32.xlu0 %v698, 127
    %v701 = vpop.permute.xlu0 %700
    %v703 = vadd.f32 %v697, %v701
    %v704 = vmul.f32 %v588, %v278
    %706 = vrot.lane.b32.xlu0 %v704, 127
    %v707 = vpop.permute.xlu0 %706
    %v709 = vadd.f32 %v703, %v707
    %v710 = vmul.f32 %v591, %v354
    %v711 = vadd.f32 %v709, %v710
    %v712 = vmul.f32 %v594, %v318
    %714 = vrot.lane.b32.xlu0 %v712, 127
    %v715 = vpop.permute.xlu0 %714
    %v717 = vadd.f32 %v711, %v715
    %v718 = vmul.f32 %v597, %v326
    %720 = vrot.lane.b32.xlu0 %v718, 127
    %v721 = vpop.permute.xlu0 %720
    %v723 = vadd.f32 %v717, %v721
    %v724 = vmul.f32 %v600, %v402
    %v725 = vadd.f32 %v723, %v724
    %v726 = vmul.f32 %v603, %v366
    %728 = vrot.lane.b32.xlu0 %v726, 127
    %v729 = vpop.permute.xlu0 %728
    %v731 = vadd.f32 %v725, %v729
    %v732 = vmul.f32 %v606, %v374
    %734 = vrot.lane.b32.xlu0 %v732, 127
    %v735 = vpop.permute.xlu0 %734
    %v737 = vadd.f32 %v731, %v735
    %v738 = vadd.f32 %v737, %v609
    %v739 = vmax.f32 %v738, 0.0
    %v740 = vmax.f32 %v681, %v739
    %742 = vrot.lane.b32.xlu0 %v740, 15
    %v743 = vpop.permute.xlu0 %742
    %vm745 = vcmask 238712
    %746 = vst.msk [vmem:[#allocation2] sm:$0x3] %vm745, %v743
    %v747 = vstv %s127
    %v748 = vmul.f32 %v747, %v222
    %v749 = vadd.f32 %v748, 0.0
    %v750 = vstv %s128
    %v751 = vmul.f32 %v750, %v230
    %v752 = vadd.f32 %v749, %v751
    %v753 = vstv %s129
    %v754 = vmul.f32 %v753, %v242
    %v755 = vadd.f32 %v752, %v754
    %v756 = vstv %s130
    %v757 = vmul.f32 %v756, %v270
    %v758 = vadd.f32 %v755, %v757
    %v759 = vstv %s131
    %v760 = vmul.f32 %v759, %v278
    %v761 = vadd.f32 %v758, %v760
    %v762 = vstv %s132
    %v763 = vmul.f32 %v762, %v290
    %v764 = vadd.f32 %v761, %v763
    %v765 = vstv %s133
    %v766 = vmul.f32 %v765, %v318
    %v767 = vadd.f32 %v764, %v766
    %v768 = vstv %s134
    %v769 = vmul.f32 %v768, %v326
    %v770 = vadd.f32 %v767, %v769
    %v771 = vstv %s135
    %v772 = vmul.f32 %v771, %v338
    %v773 = vadd.f32 %v770, %v772
    %v774 = vstv %s136
    %v775 = vmul.f32 %v774, %v366
    %v776 = vadd.f32 %v773, %v775
    %v777 = vstv %s137
    %v778 = vmul.f32 %v777, %v374
    %v779 = vadd.f32 %v776, %v778
    %v780 = vstv %s138
    %v781 = vmul.f32 %v780, %v386
    %v782 = vadd.f32 %v779, %v781
    %v783 = vstv %s201
    %v784 = vadd.f32 %v782, %v783
    %v785 = vmax.f32 %v784, 0.0
    %v786 = vmul.f32 %v747, %v230
    %v787 = vadd.f32 %v786, 0.0
    %v788 = vmul.f32 %v750, %v242
    %v789 = vadd.f32 %v787, %v788
    %v790 = vmul.f32 %v753, %v258
    %v791 = vadd.f32 %v789, %v790
    %v792 = vmul.f32 %v756, %v278
    %v793 = vadd.f32 %v791, %v792
    %v794 = vmul.f32 %v759, %v290
    %v795 = vadd.f32 %v793, %v794
    %v796 = vmul.f32 %v762, %v306
    %v797 = vadd.f32 %v795, %v796
    %v798 = vmul.f32 %v765, %v326
    %v799 = vadd.f32 %v797, %v798
    %v800 = vmul.f32 %v768, %v338
    %v801 = vadd.f32 %v799, %v800
    %v802 = vmul.f32 %v771, %v354
    %v803 = vadd.f32 %v801, %v802
    %v804 = vmul.f32 %v774, %v374
    %v805 = vadd.f32 %v803, %v804
    %v806 = vmul.f32 %v777, %v386
    %v807 = vadd.f32 %v805, %v806
    %v808 = vmul.f32 %v780, %v402
    %v809 = vadd.f32 %v807, %v808
    %v810 = vadd.f32 %v809, %v783
    %v811 = vmax.f32 %v810, 0.0
    %v812 = vmax.f32 %v785, %v811
    %v813 = vmul.f32 %v747, %v242
    %v814 = vadd.f32 %v813, 0.0
    %v815 = vmul.f32 %v750, %v258
    %v816 = vadd.f32 %v814, %v815
    %v817 = vmul.f32 %v753, %v222
    %819 = vrot.lane.b32.xlu0 %v817, 127
    %v820 = vpop.permute.xlu0 %819
    %v822 = vadd.f32 %v816, %v820
    %v823 = vmul.f32 %v756, %v290
    %v824 = vadd.f32 %v822, %v823
    %v825 = vmul.f32 %v759, %v306
    %v826 = vadd.f32 %v824, %v825
    %v827 = vmul.f32 %v762, %v270
    %829 = vrot.lane.b32.xlu0 %v827, 127
    %v830 = vpop.permute.xlu0 %829
    %v832 = vadd.f32 %v826, %v830
    %v833 = vmul.f32 %v765, %v338
    %v834 = vadd.f32 %v832, %v833
    %v835 = vmul.f32 %v768, %v354
    %v836 = vadd.f32 %v834, %v835
    %v837 = vmul.f32 %v771, %v318
    %839 = vrot.lane.b32.xlu0 %v837, 127
    %v840 = vpop.permute.xlu0 %839
    %v842 = vadd.f32 %v836, %v840
    %v843 = vmul.f32 %v774, %v386
    %v844 = vadd.f32 %v842, %v843
    %v845 = vmul.f32 %v777, %v402
    %v846 = vadd.f32 %v844, %v845
    %v847 = vmul.f32 %v780, %v366
    %849 = vrot.lane.b32.xlu0 %v847, 127
    %v850 = vpop.permute.xlu0 %849
    %v852 = vadd.f32 %v846, %v850
    %v853 = vadd.f32 %v852, %v783
    %v854 = vmax.f32 %v853, 0.0
    %v855 = vmax.f32 %v812, %v854
    %v856 = vmul.f32 %v747, %v258
    %v857 = vadd.f32 %v856, 0.0
    %v858 = vmul.f32 %v750, %v222
    %860 = vrot.lane.b32.xlu0 %v858, 127
    %v861 = vpop.permute.xlu0 %860
    %v863 = vadd.f32 %v857, %v861
    %v864 = vmul.f32 %v753, %v230
    %866 = vrot.lane.b32.xlu0 %v864, 127
    %v867 = vpop.permute.xlu0 %866
    %v869 = vadd.f32 %v863, %v867
    %v870 = vmul.f32 %v756, %v306
    %v871 = vadd.f32 %v869, %v870
    %v872 = vmul.f32 %v759, %v270
    %874 = vrot.lane.b32.xlu0 %v872, 127
    %v875 = vpop.permute.xlu0 %874
    %v877 = vadd.f32 %v871, %v875
    %v878 = vmul.f32 %v762, %v278
    %880 = vrot.lane.b32.xlu0 %v878, 127
    %v881 = vpop.permute.xlu0 %880
    %v883 = vadd.f32 %v877, %v881
    %v884 = vmul.f32 %v765, %v354
    %v885 = vadd.f32 %v883, %v884
    %v886 = vmul.f32 %v768, %v318
    %888 = vrot.lane.b32.xlu0 %v886, 127
    %v889 = vpop.permute.xlu0 %888
    %v891 = vadd.f32 %v885, %v889
    %v892 = vmul.f32 %v771, %v326
    %894 = vrot.lane.b32.xlu0 %v892, 127
    %v895 = vpop.permute.xlu0 %894
    %v897 = vadd.f32 %v891, %v895
    %v898 = vmul.f32 %v774, %v402
    %v899 = vadd.f32 %v897, %v898
    %v900 = vmul.f32 %v777, %v366
    %902 = vrot.lane.b32.xlu0 %v900, 127
    %v903 = vpop.permute.xlu0 %902
    %v905 = vadd.f32 %v899, %v903
    %v906 = vmul.f32 %v780, %v374
    %908 = vrot.lane.b32.xlu0 %v906, 127
    %v909 = vpop.permute.xlu0 %908
    %v911 = vadd.f32 %v905, %v909
    %v912 = vadd.f32 %v911, %v783
    %v913 = vmax.f32 %v912, 0.0
    %v914 = vmax.f32 %v855, %v913
    %916 = vrot.lane.b32.xlu0 %v914, 30
    %v917 = vpop.permute.xlu0 %916
    %vm919 = vcmask 361712
    %920 = vst.msk [vmem:[#allocation2] sm:$0x3] %vm919, %v917
    %v921 = vstv %s139
    %v922 = vmul.f32 %v921, %v222
    %v923 = vadd.f32 %v922, 0.0
    %v924 = vstv %s140
    %v925 = vmul.f32 %v924, %v230
    %v926 = vadd.f32 %v923, %v925
    %v927 = vstv %s141
    %v928 = vmul.f32 %v927, %v242
    %v929 = vadd.f32 %v926, %v928
    %v930 = vstv %s142
    %v931 = vmul.f32 %v930, %v270
    %v932 = vadd.f32 %v929, %v931
    %v933 = vstv %s143
    %v934 = vmul.f32 %v933, %v278
    %v935 = vadd.f32 %v932, %v934
    %v936 = vstv %s144
    %v937 = vmul.f32 %v936, %v290
    %v938 = vadd.f32 %v935, %v937
    %v939 = vstv %s145
    %v940 = vmul.f32 %v939, %v318
    %v941 = vadd.f32 %v938, %v940
    %v942 = vstv %s146
    %v943 = vmul.f32 %v942, %v326
    %v944 = vadd.f32 %v941, %v943
    %v945 = vstv %s147
    %v946 = vmul.f32 %v945, %v338
    %v947 = vadd.f32 %v944, %v946
    %v948 = vstv %s148
    %v949 = vmul.f32 %v948, %v366
    %v950 = vadd.f32 %v947, %v949
    %v951 = vstv %s149
    %v952 = vmul.f32 %v951, %v374
    %v953 = vadd.f32 %v950, %v952
    %v954 = vstv %s150
    %v955 = vmul.f32 %v954, %v386
    %v956 = vadd.f32 %v953, %v955
    %v957 = vstv %s202
    %v958 = vadd.f32 %v956, %v957
    %v959 = vmax.f32 %v958, 0.0
    %v960 = vmul.f32 %v921, %v230
    %v961 = vadd.f32 %v960, 0.0
    %v962 = vmul.f32 %v924, %v242
    %v963 = vadd.f32 %v961, %v962
    %v964 = vmul.f32 %v927, %v258
    %v965 = vadd.f32 %v963, %v964
    %v966 = vmul.f32 %v930, %v278
    %v967 = vadd.f32 %v965, %v966
    %v968 = vmul.f32 %v933, %v290
    %v969 = vadd.f32 %v967, %v968
    %v970 = vmul.f32 %v936, %v306
    %v971 = vadd.f32 %v969, %v970
    %v972 = vmul.f32 %v939, %v326
    %v973 = vadd.f32 %v971, %v972
    %v974 = vmul.f32 %v942, %v338
    %v975 = vadd.f32 %v973, %v974
    %v976 = vmul.f32 %v945, %v354
    %v977 = vadd.f32 %v975, %v976
    %v978 = vmul.f32 %v948, %v374
    %v979 = vadd.f32 %v977, %v978
    %v980 = vmul.f32 %v951, %v386
    %v981 = vadd.f32 %v979, %v980
    %v982 = vmul.f32 %v954, %v402
    %v983 = vadd.f32 %v981, %v982
    %v984 = vadd.f32 %v983, %v957
    %v985 = vmax.f32 %v984, 0.0
    %v986 = vmax.f32 %v959, %v985
    %v987 = vmul.f32 %v921, %v242
    %v988 = vadd.f32 %v987, 0.0
    %v989 = vmul.f32 %v924, %v258
    %v990 = vadd.f32 %v988, %v989
    %v991 = vmul.f32 %v927, %v222
    %993 = vrot.lane.b32.xlu0 %v991, 127
    %v994 = vpop.permute.xlu0 %993
    %v996 = vadd.f32 %v990, %v994
    %v997 = vmul.f32 %v930, %v290
    %v998 = vadd.f32 %v996, %v997
    %v999 = vmul.f32 %v933, %v306
    %v1000 = vadd.f32 %v998, %v999
    %v1001 = vmul.f32 %v936, %v270
    %1003 = vrot.lane.b32.xlu0 %v1001, 127
    %v1004 = vpop.permute.xlu0 %1003
    %v1006 = vadd.f32 %v1000, %v1004
    %v1007 = vmul.f32 %v939, %v338
    %v1008 = vadd.f32 %v1006, %v1007
    %v1009 = vmul.f32 %v942, %v354
    %v1010 = vadd.f32 %v1008, %v1009
    %v1011 = vmul.f32 %v945, %v318
    %1013 = vrot.lane.b32.xlu0 %v1011, 127
    %v1014 = vpop.permute.xlu0 %1013
    %v1016 = vadd.f32 %v1010, %v1014
    %v1017 = vmul.f32 %v948, %v386
    %v1018 = vadd.f32 %v1016, %v1017
    %v1019 = vmul.f32 %v951, %v402
    %v1020 = vadd.f32 %v1018, %v1019
    %v1021 = vmul.f32 %v954, %v366
    %1023 = vrot.lane.b32.xlu0 %v1021, 127
    %v1024 = vpop.permute.xlu0 %1023
    %v1026 = vadd.f32 %v1020, %v1024
    %v1027 = vadd.f32 %v1026, %v957
    %v1028 = vmax.f32 %v1027, 0.0
    %v1029 = vmax.f32 %v986, %v1028
    %v1030 = vmul.f32 %v921, %v258
    %v1031 = vadd.f32 %v1030, 0.0
    %v1032 = vmul.f32 %v924, %v222
    %1034 = vrot.lane.b32.xlu0 %v1032, 127
    %v1035 = vpop.permute.xlu0 %1034
    %v1037 = vadd.f32 %v1031, %v1035
    %v1038 = vmul.f32 %v927, %v230
    %1040 = vrot.lane.b32.xlu0 %v1038, 127
    %v1041 = vpop.permute.xlu0 %1040
    %v1043 = vadd.f32 %v1037, %v1041
    %v1044 = vmul.f32 %v930, %v306
    %v1045 = vadd.f32 %v1043, %v1044
    %v1046 = vmul.f32 %v933, %v270
    %1048 = vrot.lane.b32.xlu0 %v1046, 127
    %v1049 = vpop.permute.xlu0 %1048
    %v1051 = vadd.f32 %v1045, %v1049
    %v1052 = vmul.f32 %v936, %v278
    %1054 = vrot.lane.b32.xlu0 %v1052, 127
    %v1055 = vpop.permute.xlu0 %1054
    %v1057 = vadd.f32 %v1051, %v1055
    %v1058 = vmul.f32 %v939, %v354
    %v1059 = vadd.f32 %v1057, %v1058
    %v1060 = vmul.f32 %v942, %v318
    %1062 = vrot.lane.b32.xlu0 %v1060, 127
    %v1063 = vpop.permute.xlu0 %1062
    %v1065 = vadd.f32 %v1059, %v1063
    %v1066 = vmul.f32 %v945, %v326
    %1068 = vrot.lane.b32.xlu0 %v1066, 127
    %v1069 = vpop.permute.xlu0 %1068
    %v1071 = vadd.f32 %v1065, %v1069
    %v1072 = vmul.f32 %v948, %v402
    %v1073 = vadd.f32 %v1071, %v1072
    %v1074 = vmul.f32 %v951, %v366
    %1076 = vrot.lane.b32.xlu0 %v1074, 127
    %v1077 = vpop.permute.xlu0 %1076
    %v1079 = vadd.f32 %v1073, %v1077
    %v1080 = vmul.f32 %v954, %v374
    %1082 = vrot.lane.b32.xlu0 %v1080, 127
    %v1083 = vpop.permute.xlu0 %1082
    %v1085 = vadd.f32 %v1079, %v1083
    %v1086 = vadd.f32 %v1085, %v957
    %v1087 = vmax.f32 %v1086, 0.0
    %v1088 = vmax.f32 %v1029, %v1087
    %1090 = vrot.lane.b32.xlu0 %v1088, 45
    %v1091 = vpop.permute.xlu0 %1090
    %vm1093 = vcmask 484712
    %1094 = vst.msk [vmem:[#allocation2] sm:$0x3] %vm1093, %v1091
    %v1095 = vstv %s151
    %v1096 = vmul.f32 %v1095, %v222
    %v1097 = vadd.f32 %v1096, 0.0
    %v1098 = vstv %s152
    %v1099 = vmul.f32 %v1098, %v230
    %v1100 = vadd.f32 %v1097, %v1099
    %v1101 = vstv %s153
    %v1102 = vmul.f32 %v1101, %v242
    %v1103 = vadd.f32 %v1100, %v1102
    %v1104 = vstv %s154
    %v1105 = vmul.f32 %v1104, %v270
    %v1106 = vadd.f32 %v1103, %v1105
    %v1107 = vstv %s155
    %v1108 = vmul.f32 %v1107, %v278
    %v1109 = vadd.f32 %v1106, %v1108
    %v1110 = vstv %s156
    %v1111 = vmul.f32 %v1110, %v290
    %v1112 = vadd.f32 %v1109, %v1111
    %v1113 = vstv %s157
    %v1114 = vmul.f32 %v1113, %v318
    %v1115 = vadd.f32 %v1112, %v1114
    %v1116 = vstv %s158
    %v1117 = vmul.f32 %v1116, %v326
    %v1118 = vadd.f32 %v1115, %v1117
    %v1119 = vstv %s159
    %v1120 = vmul.f32 %v1119, %v338
    %v1121 = vadd.f32 %v1118, %v1120
    %v1122 = vstv %s160
    %v1123 = vmul.f32 %v1122, %v366
    %v1124 = vadd.f32 %v1121, %v1123
    %v1125 = vstv %s161
    %v1126 = vmul.f32 %v1125, %v374
    %v1127 = vadd.f32 %v1124, %v1126
    %v1128 = vstv %s162
    %v1129 = vmul.f32 %v1128, %v386
    %v1130 = vadd.f32 %v1127, %v1129
    %v1131 = vstv %s203
    %v1132 = vadd.f32 %v1130, %v1131
    %v1133 = vmax.f32 %v1132, 0.0
    %v1134 = vmul.f32 %v1095, %v230
    %v1135 = vadd.f32 %v1134, 0.0
    %v1136 = vmul.f32 %v1098, %v242
    %v1137 = vadd.f32 %v1135, %v1136
    %v1138 = vmul.f32 %v1101, %v258
    %v1139 = vadd.f32 %v1137, %v1138
    %v1140 = vmul.f32 %v1104, %v278
    %v1141 = vadd.f32 %v1139, %v1140
    %v1142 = vmul.f32 %v1107, %v290
    %v1143 = vadd.f32 %v1141, %v1142
    %v1144 = vmul.f32 %v1110, %v306
    %v1145 = vadd.f32 %v1143, %v1144
    %v1146 = vmul.f32 %v1113, %v326
    %v1147 = vadd.f32 %v1145, %v1146
    %v1148 = vmul.f32 %v1116, %v338
    %v1149 = vadd.f32 %v1147, %v1148
    %v1150 = vmul.f32 %v1119, %v354
    %v1151 = vadd.f32 %v1149, %v1150
    %v1152 = vmul.f32 %v1122, %v374
    %v1153 = vadd.f32 %v1151, %v1152
    %v1154 = vmul.f32 %v1125, %v386
    %v1155 = vadd.f32 %v1153, %v1154
    %v1156 = vmul.f32 %v1128, %v402
    %v1157 = vadd.f32 %v1155, %v1156
    %v1158 = vadd.f32 %v1157, %v1131
    %v1159 = vmax.f32 %v1158, 0.0
    %v1160 = vmax.f32 %v1133, %v1159
    %v1161 = vmul.f32 %v1095, %v242
    %v1162 = vadd.f32 %v1161, 0.0
    %v1163 = vmul.f32 %v1098, %v258
    %v1164 = vadd.f32 %v1162, %v1163
    %v1165 = vmul.f32 %v1101, %v222
    %1167 = vrot.lane.b32.xlu0 %v1165, 127
    %v1168 = vpop.permute.xlu0 %1167
    %v1170 = vadd.f32 %v1164, %v1168
    %v1171 = vmul.f32 %v1104, %v290
    %v1172 = vadd.f32 %v1170, %v1171
    %v1173 = vmul.f32 %v1107, %v306
    %v1174 = vadd.f32 %v1172, %v1173
    %v1175 = vmul.f32 %v1110, %v270
    %1177 = vrot.lane.b32.xlu0 %v1175, 127
    %v1178 = vpop.permute.xlu0 %1177
    %v1180 = vadd.f32 %v1174, %v1178
    %v1181 = vmul.f32 %v1113, %v338
    %v1182 = vadd.f32 %v1180, %v1181
    %v1183 = vmul.f32 %v1116, %v354
    %v1184 = vadd.f32 %v1182, %v1183
    %v1185 = vmul.f32 %v1119, %v318
    %1187 = vrot.lane.b32.xlu0 %v1185, 127
    %v1188 = vpop.permute.xlu0 %1187
    %v1190 = vadd.f32 %v1184, %v1188
    %v1191 = vmul.f32 %v1122, %v386
    %v1192 = vadd.f32 %v1190, %v1191
    %v1193 = vmul.f32 %v1125, %v402
    %v1194 = vadd.f32 %v1192, %v1193
    %v1195 = vmul.f32 %v1128, %v366
    %1197 = vrot.lane.b32.xlu0 %v1195, 127
    %v1198 = vpop.permute.xlu0 %1197
    %v1200 = vadd.f32 %v1194, %v1198
    %v1201 = vadd.f32 %v1200, %v1131
    %v1202 = vmax.f32 %v1201, 0.0
    %v1203 = vmax.f32 %v1160, %v1202
    %v1204 = vmul.f32 %v1095, %v258
    %v1205 = vadd.f32 %v1204, 0.0
    %v1206 = vmul.f32 %v1098, %v222
    %1208 = vrot.lane.b32.xlu0 %v1206, 127
    %v1209 = vpop.permute.xlu0 %1208
    %v1211 = vadd.f32 %v1205, %v1209
    %v1212 = vmul.f32 %v1101, %v230
    %1214 = vrot.lane.b32.xlu0 %v1212, 127
    %v1215 = vpop.permute.xlu0 %1214
    %v1217 = vadd.f32 %v1211, %v1215
    %v1218 = vmul.f32 %v1104, %v306
    %v1219 = vadd.f32 %v1217, %v1218
    %v1220 = vmul.f32 %v1107, %v270
    %1222 = vrot.lane.b32.xlu0 %v1220, 127
    %v1223 = vpop.permute.xlu0 %1222
    %v1225 = vadd.f32 %v1219, %v1223
    %v1226 = vmul.f32 %v1110, %v278
    %1228 = vrot.lane.b32.xlu0 %v1226, 127
    %v1229 = vpop.permute.xlu0 %1228
    %v1231 = vadd.f32 %v1225, %v1229
    %v1232 = vmul.f32 %v1113, %v354
    %v1233 = vadd.f32 %v1231, %v1232
    %v1234 = vmul.f32 %v1116, %v318
    %1236 = vrot.lane.b32.xlu0 %v1234, 127
    %v1237 = vpop.permute.xlu0 %1236
    %v1239 = vadd.f32 %v1233, %v1237
    %v1240 = vmul.f32 %v1119, %v326
    %1242 = vrot.lane.b32.xlu0 %v1240, 127
    %v1243 = vpop.permute.xlu0 %1242
    %v1245 = vadd.f32 %v1239, %v1243
    %v1246 = vmul.f32 %v1122, %v402
    %v1247 = vadd.f32 %v1245, %v1246
    %v1248 = vmul.f32 %v1125, %v366
    %1250 = vrot.lane.b32.xlu0 %v1248, 127
    %v1251 = vpop.permute.xlu0 %1250
    %v1253 = vadd.f32 %v1247, %v1251
    %v1254 = vmul.f32 %v1128, %v374
    %1256 = vrot.lane.b32.xlu0 %v1254, 127
    %v1257 = vpop.permute.xlu0 %1256
    %v1259 = vadd.f32 %v1253, %v1257
    %v1260 = vadd.f32 %v1259, %v1131
    %v1261 = vmax.f32 %v1260, 0.0
    %v1262 = vmax.f32 %v1203, %v1261
    %1264 = vrot.lane.b32.xlu0 %v1262, 60
    %v1265 = vpop.permute.xlu0 %1264
    %vm1267 = vcmask 607712
    %1268 = vst.msk [vmem:[#allocation2] sm:$0x3] %vm1267, %v1265
    %v1269 = vstv %s163
    %v1270 = vmul.f32 %v1269, %v222
    %v1271 = vadd.f32 %v1270, 0.0
    %v1272 = vstv %s164
    %v1273 = vmul.f32 %v1272, %v230
    %v1274 = vadd.f32 %v1271, %v1273
    %v1275 = vstv %s165
    %v1276 = vmul.f32 %v1275, %v242
    %v1277 = vadd.f32 %v1274, %v1276
    %v1278 = vstv %s166
    %v1279 = vmul.f32 %v1278, %v270
    %v1280 = vadd.f32 %v1277, %v1279
    %v1281 = vstv %s167
    %v1282 = vmul.f32 %v1281, %v278
    %v1283 = vadd.f32 %v1280, %v1282
    %v1284 = vstv %s168
    %v1285 = vmul.f32 %v1284, %v290
    %v1286 = vadd.f32 %v1283, %v1285
    %v1287 = vstv %s169
    %v1288 = vmul.f32 %v1287, %v318
    %v1289 = vadd.f32 %v1286, %v1288
    %v1290 = vstv %s170
    %v1291 = vmul.f32 %v1290, %v326
    %v1292 = vadd.f32 %v1289, %v1291
    %v1293 = vstv %s171
    %v1294 = vmul.f32 %v1293, %v338
    %v1295 = vadd.f32 %v1292, %v1294
    %v1296 = vstv %s172
    %v1297 = vmul.f32 %v1296, %v366
    %v1298 = vadd.f32 %v1295, %v1297
    %v1299 = vstv %s173
    %v1300 = vmul.f32 %v1299, %v374
    %v1301 = vadd.f32 %v1298, %v1300
    %v1302 = vstv %s174
    %v1303 = vmul.f32 %v1302, %v386
    %v1304 = vadd.f32 %v1301, %v1303
    %v1305 = vstv %s204
    %v1306 = vadd.f32 %v1304, %v1305
    %v1307 = vmax.f32 %v1306, 0.0
    %v1308 = vmul.f32 %v1269, %v230
    %v1309 = vadd.f32 %v1308, 0.0
    %v1310 = vmul.f32 %v1272, %v242
    %v1311 = vadd.f32 %v1309, %v1310
    %v1312 = vmul.f32 %v1275, %v258
    %v1313 = vadd.f32 %v1311, %v1312
    %v1314 = vmul.f32 %v1278, %v278
    %v1315 = vadd.f32 %v1313, %v1314
    %v1316 = vmul.f32 %v1281, %v290
    %v1317 = vadd.f32 %v1315, %v1316
    %v1318 = vmul.f32 %v1284, %v306
    %v1319 = vadd.f32 %v1317, %v1318
    %v1320 = vmul.f32 %v1287, %v326
    %v1321 = vadd.f32 %v1319, %v1320
    %v1322 = vmul.f32 %v1290, %v338
    %v1323 = vadd.f32 %v1321, %v1322
    %v1324 = vmul.f32 %v1293, %v354
    %v1325 = vadd.f32 %v1323, %v1324
    %v1326 = vmul.f32 %v1296, %v374
    %v1327 = vadd.f32 %v1325, %v1326
    %v1328 = vmul.f32 %v1299, %v386
    %v1329 = vadd.f32 %v1327, %v1328
    %v1330 = vmul.f32 %v1302, %v402
    %v1331 = vadd.f32 %v1329, %v1330
    %v1332 = vadd.f32 %v1331, %v1305
    %v1333 = vmax.f32 %v1332, 0.0
    %v1334 = vmax.f32 %v1307, %v1333
    %v1335 = vmul.f32 %v1269, %v242
    %v1336 = vadd.f32 %v1335, 0.0
    %v1337 = vmul.f32 %v1272, %v258
    %v1338 = vadd.f32 %v1336, %v1337
    %v1339 = vmul.f32 %v1275, %v222
    %1341 = vrot.lane.b32.xlu0 %v1339, 127
    %v1342 = vpop.permute.xlu0 %1341
    %v1344 = vadd.f32 %v1338, %v1342
    %v1345 = vmul.f32 %v1278, %v290
    %v1346 = vadd.f32 %v1344, %v1345
    %v1347 = vmul.f32 %v1281, %v306
    %v1348 = vadd.f32 %v1346, %v1347
    %v1349 = vmul.f32 %v1284, %v270
    %1351 = vrot.lane.b32.xlu0 %v1349, 127
    %v1352 = vpop.permute.xlu0 %1351
    %v1354 = vadd.f32 %v1348, %v1352
    %v1355 = vmul.f32 %v1287, %v338
    %v1356 = vadd.f32 %v1354, %v1355
    %v1357 = vmul.f32 %v1290, %v354
    %v1358 = vadd.f32 %v1356, %v1357
    %v1359 = vmul.f32 %v1293, %v318
    %1361 = vrot.lane.b32.xlu0 %v1359, 127
    %v1362 = vpop.permute.xlu0 %1361
    %v1364 = vadd.f32 %v1358, %v1362
    %v1365 = vmul.f32 %v1296, %v386
    %v1366 = vadd.f32 %v1364, %v1365
    %v1367 = vmul.f32 %v1299, %v402
    %v1368 = vadd.f32 %v1366, %v1367
    %v1369 = vmul.f32 %v1302, %v366
    %1371 = vrot.lane.b32.xlu0 %v1369, 127
    %v1372 = vpop.permute.xlu0 %1371
    %v1374 = vadd.f32 %v1368, %v1372
    %v1375 = vadd.f32 %v1374, %v1305
    %v1376 = vmax.f32 %v1375, 0.0
    %v1377 = vmax.f32 %v1334, %v1376
    %v1378 = vmul.f32 %v1269, %v258
    %v1379 = vadd.f32 %v1378, 0.0
    %v1380 = vmul.f32 %v1272, %v222
    %1382 = vrot.lane.b32.xlu0 %v1380, 127
    %v1383 = vpop.permute.xlu0 %1382
    %v1385 = vadd.f32 %v1379, %v1383
    %v1386 = vmul.f32 %v1275, %v230
    %1388 = vrot.lane.b32.xlu0 %v1386, 127
    %v1389 = vpop.permute.xlu0 %1388
    %v1391 = vadd.f32 %v1385, %v1389
    %v1392 = vmul.f32 %v1278, %v306
    %v1393 = vadd.f32 %v1391, %v1392
    %v1394 = vmul.f32 %v1281, %v270
    %1396 = vrot.lane.b32.xlu0 %v1394, 127
    %v1397 = vpop.permute.xlu0 %1396
    %v1399 = vadd.f32 %v1393, %v1397
    %v1400 = vmul.f32 %v1284, %v278
    %1402 = vrot.lane.b32.xlu0 %v1400, 127
    %v1403 = vpop.permute.xlu0 %1402
    %v1405 = vadd.f32 %v1399, %v1403
    %v1406 = vmul.f32 %v1287, %v354
    %v1407 = vadd.f32 %v1405, %v1406
    %v1408 = vmul.f32 %v1290, %v318
    %1410 = vrot.lane.b32.xlu0 %v1408, 127
    %v1411 = vpop.permute.xlu0 %1410
    %v1413 = vadd.f32 %v1407, %v1411
    %v1414 = vmul.f32 %v1293, %v326
    %1416 = vrot.lane.b32.xlu0 %v1414, 127
    %v1417 = vpop.permute.xlu0 %1416
    %v1419 = vadd.f32 %v1413, %v1417
    %v1420 = vmul.f32 %v1296, %v402
    %v1421 = vadd.f32 %v1419, %v1420
    %v1422 = vmul.f32 %v1299, %v366
    %1424 = vrot.lane.b32.xlu0 %v1422, 127
    %v1425 = vpop.permute.xlu0 %1424
    %v1427 = vadd.f32 %v1421, %v1425
    %v1428 = vmul.f32 %v1302, %v374
    %1430 = vrot.lane.b32.xlu0 %v1428, 127
    %v1431 = vpop.permute.xlu0 %1430
    %v1433 = vadd.f32 %v1427, %v1431
    %v1434 = vadd.f32 %v1433, %v1305
    %v1435 = vmax.f32 %v1434, 0.0
    %v1436 = vmax.f32 %v1377, %v1435
    %1438 = vrot.lane.b32.xlu0 %v1436, 75
    %v1439 = vpop.permute.xlu0 %1438
    %vm1441 = vcmask 730712
    %1442 = vst.msk [vmem:[#allocation2] sm:$0x3] %vm1441, %v1439
    %v1443 = vstv %s175
    %v1444 = vmul.f32 %v1443, %v222
    %v1445 = vadd.f32 %v1444, 0.0
    %v1446 = vstv %s176
    %v1447 = vmul.f32 %v1446, %v230
    %v1448 = vadd.f32 %v1445, %v1447
    %v1449 = vstv %s177
    %v1450 = vmul.f32 %v1449, %v242
    %v1451 = vadd.f32 %v1448, %v1450
    %v1452 = vstv %s178
    %v1453 = vmul.f32 %v1452, %v270
    %v1454 = vadd.f32 %v1451, %v1453
    %v1455 = vstv %s179
    %v1456 = vmul.f32 %v1455, %v278
    %v1457 = vadd.f32 %v1454, %v1456
    %v1458 = vstv %s180
    %v1459 = vmul.f32 %v1458, %v290
    %v1460 = vadd.f32 %v1457, %v1459
    %v1461 = vstv %s181
    %v1462 = vmul.f32 %v1461, %v318
    %v1463 = vadd.f32 %v1460, %v1462
    %v1464 = vstv %s182
    %v1465 = vmul.f32 %v1464, %v326
    %v1466 = vadd.f32 %v1463, %v1465
    %v1467 = vstv %s183
    %v1468 = vmul.f32 %v1467, %v338
    %v1469 = vadd.f32 %v1466, %v1468
    %v1470 = vstv %s184
    %v1471 = vmul.f32 %v1470, %v366
    %v1472 = vadd.f32 %v1469, %v1471
    %v1473 = vstv %s185
    %v1474 = vmul.f32 %v1473, %v374
    %v1475 = vadd.f32 %v1472, %v1474
    %v1476 = vstv %s186
    %v1477 = vmul.f32 %v1476, %v386
    %v1478 = vadd.f32 %v1475, %v1477
    %v1479 = vstv %s205
    %v1480 = vadd.f32 %v1478, %v1479
    %v1481 = vmax.f32 %v1480, 0.0
    %v1482 = vmul.f32 %v1443, %v230
    %v1483 = vadd.f32 %v1482, 0.0
    %v1484 = vmul.f32 %v1446, %v242
    %v1485 = vadd.f32 %v1483, %v1484
    %v1486 = vmul.f32 %v1449, %v258
    %v1487 = vadd.f32 %v1485, %v1486
    %v1488 = vmul.f32 %v1452, %v278
    %v1489 = vadd.f32 %v1487, %v1488
    %v1490 = vmul.f32 %v1455, %v290
    %v1491 = vadd.f32 %v1489, %v1490
    %v1492 = vmul.f32 %v1458, %v306
    %v1493 = vadd.f32 %v1491, %v1492
    %v1494 = vmul.f32 %v1461, %v326
    %v1495 = vadd.f32 %v1493, %v1494
    %v1496 = vmul.f32 %v1464, %v338
    %v1497 = vadd.f32 %v1495, %v1496
    %v1498 = vmul.f32 %v1467, %v354
    %v1499 = vadd.f32 %v1497, %v1498
    %v1500 = vmul.f32 %v1470, %v374
    %v1501 = vadd.f32 %v1499, %v1500
    %v1502 = vmul.f32 %v1473, %v386
    %v1503 = vadd.f32 %v1501, %v1502
    %v1504 = vmul.f32 %v1476, %v402
    %v1505 = vadd.f32 %v1503, %v1504
    %v1506 = vadd.f32 %v1505, %v1479
    %v1507 = vmax.f32 %v1506, 0.0
    %v1508 = vmax.f32 %v1481, %v1507
    %v1509 = vmul.f32 %v1443, %v242
    %v1510 = vadd.f32 %v1509, 0.0
    %v1511 = vmul.f32 %v1446, %v258
    %v1512 = vadd.f32 %v1510, %v1511
    %v1513 = vmul.f32 %v1449, %v222
    %1515 = vrot.lane.b32.xlu0 %v1513, 127
    %v1516 = vpop.permute.xlu0 %1515
    %v1518 = vadd.f32 %v1512, %v1516
    %v1519 = vmul.f32 %v1452, %v290
    %v1520 = vadd.f32 %v1518, %v1519
    %v1521 = vmul.f32 %v1455, %v306
    %v1522 = vadd.f32 %v1520, %v1521
    %v1523 = vmul.f32 %v1458, %v270
    %1525 = vrot.lane.b32.xlu0 %v1523, 127
    %v1526 = vpop.permute.xlu0 %1525
    %v1528 = vadd.f32 %v1522, %v1526
    %v1529 = vmul.f32 %v1461, %v338
    %v1530 = vadd.f32 %v1528, %v1529
    %v1531 = vmul.f32 %v1464, %v354
    %v1532 = vadd.f32 %v1530, %v1531
    %v1533 = vmul.f32 %v1467, %v318
    %1535 = vrot.lane.b32.xlu0 %v1533, 127
    %v1536 = vpop.permute.xlu0 %1535
    %v1538 = vadd.f32 %v1532, %v1536
    %v1539 = vmul.f32 %v1470, %v386
    %v1540 = vadd.f32 %v1538, %v1539
    %v1541 = vmul.f32 %v1473, %v402
    %v1542 = vadd.f32 %v1540, %v1541
    %v1543 = vmul.f32 %v1476, %v366
    %1545 = vrot.lane.b32.xlu0 %v1543, 127
    %v1546 = vpop.permute.xlu0 %1545
    %v1548 = vadd.f32 %v1542, %v1546
    %v1549 = vadd.f32 %v1548, %v1479
    %v1550 = vmax.f32 %v1549, 0.0
    %v1551 = vmax.f32 %v1508, %v1550
    %v1552 = vmul.f32 %v1443, %v258
    %v1553 = vadd.f32 %v1552, 0.0
    %v1554 = vmul.f32 %v1446, %v222
    %1556 = vrot.lane.b32.xlu0 %v1554, 127
    %v1557 = vpop.permute.xlu0 %1556
    %v1559 = vadd.f32 %v1553, %v1557
    %v1560 = vmul.f32 %v1449, %v230
    %1562 = vrot.lane.b32.xlu0 %v1560, 127
    %v1563 = vpop.permute.xlu0 %1562
    %v1565 = vadd.f32 %v1559, %v1563
    %v1566 = vmul.f32 %v1452, %v306
    %v1567 = vadd.f32 %v1565, %v1566
    %v1568 = vmul.f32 %v1455, %v270
    %1570 = vrot.lane.b32.xlu0 %v1568, 127
    %v1571 = vpop.permute.xlu0 %1570
    %v1573 = vadd.f32 %v1567, %v1571
    %v1574 = vmul.f32 %v1458, %v278
    %1576 = vrot.lane.b32.xlu0 %v1574, 127
    %v1577 = vpop.permute.xlu0 %1576
    %v1579 = vadd.f32 %v1573, %v1577
    %v1580 = vmul.f32 %v1461, %v354
    %v1581 = vadd.f32 %v1579, %v1580
    %v1582 = vmul.f32 %v1464, %v318
    %1584 = vrot.lane.b32.xlu0 %v1582, 127
    %v1585 = vpop.permute.xlu0 %1584
    %v1587 = vadd.f32 %v1581, %v1585
    %v1588 = vmul.f32 %v1467, %v326
    %1590 = vrot.lane.b32.xlu0 %v1588, 127
    %v1591 = vpop.permute.xlu0 %1590
    %v1593 = vadd.f32 %v1587, %v1591
    %v1594 = vmul.f32 %v1470, %v402
    %v1595 = vadd.f32 %v1593, %v1594
    %v1596 = vmul.f32 %v1473, %v366
    %1598 = vrot.lane.b32.xlu0 %v1596, 127
    %v1599 = vpop.permute.xlu0 %1598
    %v1601 = vadd.f32 %v1595, %v1599
    %v1602 = vmul.f32 %v1476, %v374
    %1604 = vrot.lane.b32.xlu0 %v1602, 127
    %v1605 = vpop.permute.xlu0 %1604
    %v1607 = vadd.f32 %v1601, %v1605
    %v1608 = vadd.f32 %v1607, %v1479
    %v1609 = vmax.f32 %v1608, 0.0
    %v1610 = vmax.f32 %v1551, %v1609
    %1612 = vrot.lane.b32.xlu0 %v1610, 90
    %v1613 = vpop.permute.xlu0 %1612
    %vm1615 = vcmask 853712
    %1616 = vst.msk [vmem:[#allocation2] sm:$0x3] %vm1615, %v1613
    %v1617 = vstv %s187
    %v1618 = vmul.f32 %v1617, %v222
    %v1619 = vadd.f32 %v1618, 0.0
    %v1620 = vstv %s188
    %v1621 = vmul.f32 %v1620, %v230
    %v1622 = vadd.f32 %v1619, %v1621
    %v1623 = vstv %s189
    %v1624 = vmul.f32 %v1623, %v242
    %v1625 = vadd.f32 %v1622, %v1624
    %v1626 = vstv %s190
    %v1627 = vmul.f32 %v1626, %v270
    %v1628 = vadd.f32 %v1625, %v1627
    %v1629 = vstv %s191
    %v1630 = vmul.f32 %v1629, %v278
    %v1631 = vadd.f32 %v1628, %v1630
    %v1632 = vstv %s192
    %v1633 = vmul.f32 %v1632, %v290
    %v1634 = vadd.f32 %v1631, %v1633
    %v1635 = vstv %s193
    %v1636 = vmul.f32 %v1635, %v318
    %v1637 = vadd.f32 %v1634, %v1636
    %v1638 = vstv %s194
    %v1639 = vmul.f32 %v1638, %v326
    %v1640 = vadd.f32 %v1637, %v1639
    %v1641 = vstv %s195
    %v1642 = vmul.f32 %v1641, %v338
    %v1643 = vadd.f32 %v1640, %v1642
    %v1644 = vstv %s196
    %v1645 = vmul.f32 %v1644, %v366
    %v1646 = vadd.f32 %v1643, %v1645
    %v1647 = vstv %s197
    %v1648 = vmul.f32 %v1647, %v374
    %v1649 = vadd.f32 %v1646, %v1648
    %v1650 = vstv %s198
    %v1651 = vmul.f32 %v1650, %v386
    %v1652 = vadd.f32 %v1649, %v1651
    %v1653 = vstv %s206
    %v1654 = vadd.f32 %v1652, %v1653
    %v1655 = vmax.f32 %v1654, 0.0
    %v1656 = vmul.f32 %v1617, %v230
    %v1657 = vadd.f32 %v1656, 0.0
    %v1658 = vmul.f32 %v1620, %v242
    %v1659 = vadd.f32 %v1657, %v1658
    %v1660 = vmul.f32 %v1623, %v258
    %v1661 = vadd.f32 %v1659, %v1660
    %v1662 = vmul.f32 %v1626, %v278
    %v1663 = vadd.f32 %v1661, %v1662
    %v1664 = vmul.f32 %v1629, %v290
    %v1665 = vadd.f32 %v1663, %v1664
    %v1666 = vmul.f32 %v1632, %v306
    %v1667 = vadd.f32 %v1665, %v1666
    %v1668 = vmul.f32 %v1635, %v326
    %v1669 = vadd.f32 %v1667, %v1668
    %v1670 = vmul.f32 %v1638, %v338
    %v1671 = vadd.f32 %v1669, %v1670
    %v1672 = vmul.f32 %v1641, %v354
    %v1673 = vadd.f32 %v1671, %v1672
    %v1674 = vmul.f32 %v1644, %v374
    %v1675 = vadd.f32 %v1673, %v1674
    %v1676 = vmul.f32 %v1647, %v386
    %v1677 = vadd.f32 %v1675, %v1676
    %v1678 = vmul.f32 %v1650, %v402
    %v1679 = vadd.f32 %v1677, %v1678
    %v1680 = vadd.f32 %v1679, %v1653
    %v1681 = vmax.f32 %v1680, 0.0
    %v1682 = vmax.f32 %v1655, %v1681
    %v1683 = vmul.f32 %v1617, %v242
    %v1684 = vadd.f32 %v1683, 0.0
    %v1685 = vmul.f32 %v1620, %v258
    %v1686 = vadd.f32 %v1684, %v1685
    %v1687 = vmul.f32 %v1623, %v222
    %1689 = vrot.lane.b32.xlu0 %v1687, 127
    %v1690 = vpop.permute.xlu0 %1689
    %v1692 = vadd.f32 %v1686, %v1690
    %v1693 = vmul.f32 %v1626, %v290
    %v1694 = vadd.f32 %v1692, %v1693
    %v1695 = vmul.f32 %v1629, %v306
    %v1696 = vadd.f32 %v1694, %v1695
    %v1697 = vmul.f32 %v1632, %v270
    %1699 = vrot.lane.b32.xlu0 %v1697, 127
    %v1700 = vpop.permute.xlu0 %1699
    %v1702 = vadd.f32 %v1696, %v1700
    %v1703 = vmul.f32 %v1635, %v338
    %v1704 = vadd.f32 %v1702, %v1703
    %v1705 = vmul.f32 %v1638, %v354
    %v1706 = vadd.f32 %v1704, %v1705
    %v1707 = vmul.f32 %v1641, %v318
    %1709 = vrot.lane.b32.xlu0 %v1707, 127
    %v1710 = vpop.permute.xlu0 %1709
    %v1712 = vadd.f32 %v1706, %v1710
    %v1713 = vmul.f32 %v1644, %v386
    %v1714 = vadd.f32 %v1712, %v1713
    %v1715 = vmul.f32 %v1647, %v402
    %v1716 = vadd.f32 %v1714, %v1715
    %v1717 = vmul.f32 %v1650, %v366
    %1719 = vrot.lane.b32.xlu0 %v1717, 127
    %v1720 = vpop.permute.xlu0 %1719
    %v1722 = vadd.f32 %v1716, %v1720
    %v1723 = vadd.f32 %v1722, %v1653
    %v1724 = vmax.f32 %v1723, 0.0
    %v1725 = vmax.f32 %v1682, %v1724
    %v1726 = vmul.f32 %v1617, %v258
    %v1727 = vadd.f32 %v1726, 0.0
    %v1728 = vmul.f32 %v1620, %v222
    %1730 = vrot.lane.b32.xlu0 %v1728, 127
    %v1731 = vpop.permute.xlu0 %1730
    %v1733 = vadd.f32 %v1727, %v1731
    %v1734 = vmul.f32 %v1623, %v230
    %1736 = vrot.lane.b32.xlu0 %v1734, 127
    %v1737 = vpop.permute.xlu0 %1736
    %v1739 = vadd.f32 %v1733, %v1737
    %v1740 = vmul.f32 %v1626, %v306
    %v1741 = vadd.f32 %v1739, %v1740
    %v1742 = vmul.f32 %v1629, %v270
    %1744 = vrot.lane.b32.xlu0 %v1742, 127
    %v1745 = vpop.permute.xlu0 %1744
    %v1747 = vadd.f32 %v1741, %v1745
    %v1748 = vmul.f32 %v1632, %v278
    %1750 = vrot.lane.b32.xlu0 %v1748, 127
    %v1751 = vpop.permute.xlu0 %1750
    %v1753 = vadd.f32 %v1747, %v1751
    %v1754 = vmul.f32 %v1635, %v354
    %v1755 = vadd.f32 %v1753, %v1754
    %v1756 = vmul.f32 %v1638, %v318
    %1758 = vrot.lane.b32.xlu0 %v1756, 127
    %v1759 = vpop.permute.xlu0 %1758
    %v1761 = vadd.f32 %v1755, %v1759
    %v1762 = vmul.f32 %v1641, %v326
    %1764 = vrot.lane.b32.xlu0 %v1762, 127
    %v1765 = vpop.permute.xlu0 %1764
    %v1767 = vadd.f32 %v1761, %v1765
    %v1768 = vmul.f32 %v1644, %v402
    %v1769 = vadd.f32 %v1767, %v1768
    %v1770 = vmul.f32 %v1647, %v366
    %1772 = vrot.lane.b32.xlu0 %v1770, 127
    %v1773 = vpop.permute.xlu0 %1772
    %v1775 = vadd.f32 %v1769, %v1773
    %v1776 = vmul.f32 %v1650, %v374
    %1778 = vrot.lane.b32.xlu0 %v1776, 127
    %v1779 = vpop.permute.xlu0 %1778
    %v1781 = vadd.f32 %v1775, %v1779
    %v1782 = vadd.f32 %v1781, %v1653
    %v1783 = vmax.f32 %v1782, 0.0
    %v1784 = vmax.f32 %v1725, %v1783
    %1786 = vrot.lane.b32.xlu0 %v1784, 105
    %v1787 = vpop.permute.xlu0 %1786
    %vm1789 = vcmask 976712
    %1790 = vst.msk [vmem:[#allocation2] sm:$0x3] %vm1789, %v1787
    %v1791 = vld [vmem:[#allocation2] sm:$0x3]
    %v1792 = vld [vmem:[%s5] sm:$0xff]
    %v1793 = vld [vmem:[%s5 + $0x8] sm:$0xff]
    %v1794 = vld [vmem:[%s5 + $0x10] sm:$0xff]
    %v1795 = vld [vmem:[%s5 + $0x18] sm:$0xff]
    %v1796 = vld [vmem:[%s5 + $0x20] sm:$0xff]
    %v1797 = vld [vmem:[%s5 + $0x28] sm:$0xff]
    %v1798 = vld [vmem:[%s5 + $0x30] sm:$0xff]
    %v1799 = vld [vmem:[%s5 + $0x38] sm:$0xff]
    %v1800 = vld [vmem:[%s5 + $0x40] sm:$0xff]
    %v1801 = vld [vmem:[%s5 + $0x48] sm:$0xff]
    %v1802 = vld [vmem:[%s5 + $0x50] sm:$0xff]
    %v1803 = vld [vmem:[%s5 + $0x58] sm:$0xff]
    %v1804 = vld [vmem:[%s5 + $0x60] sm:$0xff]
    %v1805 = vld [vmem:[%s5 + $0x68] sm:$0xff]
    %v1806 = vld [vmem:[%s5 + $0x70] sm:$0xff]
    %v1807 = vld [vmem:[%s6] sm:$0x1]
    %v1809 = vlaneseq
    %v1810 = vshrl.u32 %v1809, 7
    %v1811 = vsub.s32 0, %v1810
    %v1812 = vrot.slane %v1807, %v1811
    %vm1814 = vcmask 982016
    %v1816 = vsel %vm1814, %v1791, 0
    %1818 = vmatprep.subr.mxu0 0.0
    %1819 = vmatpush1.msra.mxu0 0.0
    %1820 = vmatprep.subr.mxu0 0.0
    %1821 = vmatpush1.msra.mxu0 %v1806
    %1822 = vmatprep.subr.mxu0 0.0
    %1823 = vmatpush1.msra.mxu0 %v1805
    %1824 = vmatprep.subr.mxu0 0.0
    %1825 = vmatpush1.msra.mxu0 %v1804
    %1826 = vmatprep.subr.mxu0 0.0
    %1827 = vmatpush1.msra.mxu0 %v1803
    %1828 = vmatprep.subr.mxu0 0.0
    %1829 = vmatpush1.msra.mxu0 %v1802
    %1830 = vmatprep.subr.mxu0 0.0
    %1831 = vmatpush1.msra.mxu0 %v1801
    %1832 = vmatprep.subr.mxu0 0.0
    %1833 = vmatpush1.msra.mxu0 %v1800
    %1834 = vmatprep.subr.mxu0 0.0
    %1835 = vmatpush1.msra.mxu0 %v1799
    %1836 = vmatprep.subr.mxu0 0.0
    %1837 = vmatpush1.msra.mxu0 %v1798
    %1838 = vmatprep.subr.mxu0 0.0
    %1839 = vmatpush1.msra.mxu0 %v1797
    %1840 = vmatprep.subr.mxu0 0.0
    %1841 = vmatpush1.msra.mxu0 %v1796
    %1842 = vmatprep.subr.mxu0 0.0
    %1843 = vmatpush1.msra.mxu0 %v1795
    %1844 = vmatprep.subr.mxu0 0.0
    %1845 = vmatpush1.msra.mxu0 %v1794
    %1846 = vmatprep.subr.mxu0 0.0
    %1847 = vmatpush1.msra.mxu0 %v1793
    %1848 = vmatprep.subr.mxu0 0.0
    %1849 = vmatpush1.msra.mxu0 %v1792
    %1850 = vmatprep.subr.mxu0 0.0
    %1851 = vmatpush2.msra.mxu0 0.0
    %1852 = vmatprep.subr.mxu0 0.0
    %1853 = vmatpush2.msra.mxu0 0.0
    %1854 = vmatprep.subr.mxu0 0.0
    %1855 = vmatpush2.msra.mxu0 0.0
    %1856 = vmatprep.subr.mxu0 0.0
    %1857 = vmatpush2.msra.mxu0 0.0
    %1858 = vmatprep.subr.mxu0 0.0
    %1859 = vmatpush2.msra.mxu0 0.0
    %1860 = vmatprep.subr.mxu0 0.0
    %1861 = vmatpush2.msra.mxu0 0.0
    %1862 = vmatprep.subr.mxu0 0.0
    %1863 = vmatpush2.msra.mxu0 0.0
    %1864 = vmatprep.subr.mxu0 0.0
    %1865 = vmatpush2.msra.mxu0 0.0
    %1866 = vmatprep.subr.mxu0 0.0
    %1867 = vmatpush2.msra.mxu0 0.0
    %1868 = vmatprep.subr.mxu0 0.0
    %1869 = vmatpush2.msra.mxu0 0.0
    %1870 = vmatprep.subr.mxu0 0.0
    %1871 = vmatpush2.msra.mxu0 0.0
    %1872 = vmatprep.subr.mxu0 0.0
    %1873 = vmatpush2.msra.mxu0 0.0
    %1874 = vmatprep.subr.mxu0 0.0
    %1875 = vmatpush2.msra.mxu0 0.0
    %1876 = vmatprep.subr.mxu0 0.0
    %1877 = vmatpush2.msra.mxu0 0.0
    %1878 = vmatprep.subr.mxu0 0.0
    %1879 = vmatpush2.msra.mxu0 0.0
    %1880 = vmatprep.subr.mxu0 0.0
    %1881 = vmatpush2.msra.mxu0 0.0
    %1882 = vmatprep.mubr.f32.mxu0 0.0
    %1883 = vmatmul.mubr.f32.gmra.mxu0 %v1816
    %v1884 = vpop.f32.mrf.mxu0
    %v1885 = vadd.f32 %v1812, %v1884
    %v1886 = vpop.f32.mrf.mxu0
    %1887 = vdwg.mxu0
    %v1888 = vmax.f32 %v1885, 0.0
    %v1889 = vld [vmem:[%s7] sm:$0xff]
    %v1890 = vld [vmem:[%s7 + $0x8] sm:$0xff]
    %v1891 = vld [vmem:[%s7 + $0x10] sm:$0xff]
    %v1892 = vld [vmem:[%s7 + $0x18] sm:$0xff]
    %v1893 = vld [vmem:[%s8] sm:$0x1]
    %v1895 = vlaneseq
    %v1896 = vshrl.u32 %v1895, 7
    %v1897 = vsub.s32 0, %v1896
    %v1898 = vrot.slane %v1893, %v1897
    %vm1900 = vcmask 261120
    %v1902 = vsel %vm1900, %v1888, 0
    %1904 = vmatprep.subr.mxu0 0.0
    %1905 = vmatpush1.msra.mxu0 0.0
    %1906 = vmatprep.subr.mxu0 0.0
    %1907 = vmatpush1.msra.mxu0 0.0
    %1908 = vmatprep.subr.mxu0 0.0
    %1909 = vmatpush1.msra.mxu0 0.0
    %1910 = vmatprep.subr.mxu0 0.0
    %1911 = vmatpush1.msra.mxu0 0.0
    %1912 = vmatprep.subr.mxu0 0.0
    %1913 = vmatpush1.msra.mxu0 0.0
    %1914 = vmatprep.subr.mxu0 0.0
    %1915 = vmatpush1.msra.mxu0 0.0
    %1916 = vmatprep.subr.mxu0 0.0
    %1917 = vmatpush1.msra.mxu0 0.0
    %1918 = vmatprep.subr.mxu0 0.0
    %1919 = vmatpush1.msra.mxu0 0.0
    %1920 = vmatprep.subr.mxu0 0.0
    %1921 = vmatpush1.msra.mxu0 0.0
    %1922 = vmatprep.subr.mxu0 0.0
    %1923 = vmatpush1.msra.mxu0 0.0
    %1924 = vmatprep.subr.mxu0 0.0
    %1925 = vmatpush1.msra.mxu0 0.0
    %1926 = vmatprep.subr.mxu0 0.0
    %1927 = vmatpush1.msra.mxu0 0.0
    %1928 = vmatprep.subr.mxu0 0.0
    %1929 = vmatpush1.msra.mxu0 %v1892
    %1930 = vmatprep.subr.mxu0 0.0
    %1931 = vmatpush1.msra.mxu0 %v1891
    %1932 = vmatprep.subr.mxu0 0.0
    %1933 = vmatpush1.msra.mxu0 %v1890
    %1934 = vmatprep.subr.mxu0 0.0
    %1935 = vmatpush1.msra.mxu0 %v1889
    %1936 = vmatprep.subr.mxu0 0.0
    %1937 = vmatpush2.msra.mxu0 0.0
    %1938 = vmatprep.subr.mxu0 0.0
    %1939 = vmatpush2.msra.mxu0 0.0
    %1940 = vmatprep.subr.mxu0 0.0
    %1941 = vmatpush2.msra.mxu0 0.0
    %1942 = vmatprep.subr.mxu0 0.0
    %1943 = vmatpush2.msra.mxu0 0.0
    %1944 = vmatprep.subr.mxu0 0.0
    %1945 = vmatpush2.msra.mxu0 0.0
    %1946 = vmatprep.subr.mxu0 0.0
    %1947 = vmatpush2.msra.mxu0 0.0
    %1948 = vmatprep.subr.mxu0 0.0
    %1949 = vmatpush2.msra.mxu0 0.0
    %1950 = vmatprep.subr.mxu0 0.0
    %1951 = vmatpush2.msra.mxu0 0.0
    %1952 = vmatprep.subr.mxu0 0.0
    %1953 = vmatpush2.msra.mxu0 0.0
    %1954 = vmatprep.subr.mxu0 0.0
    %1955 = vmatpush2.msra.mxu0 0.0
    %1956 = vmatprep.subr.mxu0 0.0
    %1957 = vmatpush2.msra.mxu0 0.0
    %1958 = vmatprep.subr.mxu0 0.0
    %1959 = vmatpush2.msra.mxu0 0.0
    %1960 = vmatprep.subr.mxu0 0.0
    %1961 = vmatpush2.msra.mxu0 0.0
    %1962 = vmatprep.subr.mxu0 0.0
    %1963 = vmatpush2.msra.mxu0 0.0
    %1964 = vmatprep.subr.mxu0 0.0
    %1965 = vmatpush2.msra.mxu0 0.0
    %1966 = vmatprep.subr.mxu0 0.0
    %1967 = vmatpush2.msra.mxu0 0.0
    %1968 = vmatprep.mubr.f32.mxu0 0.0
    %1969 = vmatmul.mubr.f32.gmra.mxu0 %v1902
    %v1970 = vpop.f32.mrf.mxu0
    %v1971 = vadd.f32 %v1898, %v1970
    %v1972 = vpop.f32.mrf.mxu0
    %1973 = vdwg.mxu0
    %v1974 = vmax.f32 %v1971, 0.0
    %v1975 = vld [vmem:[%s9] sm:$0xff]
    %v1976 = vld [vmem:[%s9 + $0x8] sm:$0xff]
    %v1977 = vld [vmem:[%s10] sm:$0x1]
    %v1979 = vlaneseq
    %v1980 = vshrl.u32 %v1979, 7
    %v1981 = vsub.s32 0, %v1980
    %v1982 = vrot.slane %v1977, %v1981
    %vm1984 = vcmask 130048
    %v1986 = vsel %vm1984, %v1974, 0
    %1988 = vmatprep.subr.mxu0 0.0
    %1989 = vmatpush1.msra.mxu0 0.0
    %1990 = vmatprep.subr.mxu0 0.0
    %1991 = vmatpush1.msra.mxu0 0.0
    %1992 = vmatprep.subr.mxu0 0.0
    %1993 = vmatpush1.msra.mxu0 0.0
    %1994 = vmatprep.subr.mxu0 0.0
    %1995 = vmatpush1.msra.mxu0 0.0
    %1996 = vmatprep.subr.mxu0 0.0
    %1997 = vmatpush1.msra.mxu0 0.0
    %1998 = vmatprep.subr.mxu0 0.0
    %1999 = vmatpush1.msra.mxu0 0.0
    %2000 = vmatprep.subr.mxu0 0.0
    %2001 = vmatpush1.msra.mxu0 0.0
    %2002 = vmatprep.subr.mxu0 0.0
    %2003 = vmatpush1.msra.mxu0 0.0
    %2004 = vmatprep.subr.mxu0 0.0
    %2005 = vmatpush1.msra.mxu0 0.0
    %2006 = vmatprep.subr.mxu0 0.0
    %2007 = vmatpush1.msra.mxu0 0.0
    %2008 = vmatprep.subr.mxu0 0.0
    %2009 = vmatpush1.msra.mxu0 0.0
    %2010 = vmatprep.subr.mxu0 0.0
    %2011 = vmatpush1.msra.mxu0 0.0
    %2012 = vmatprep.subr.mxu0 0.0
    %2013 = vmatpush1.msra.mxu0 0.0
    %2014 = vmatprep.subr.mxu0 0.0
    %2015 = vmatpush1.msra.mxu0 0.0
    %2016 = vmatprep.subr.mxu0 0.0
    %2017 = vmatpush1.msra.mxu0 %v1976
    %2018 = vmatprep.subr.mxu0 0.0
    %2019 = vmatpush1.msra.mxu0 %v1975
    %2020 = vmatprep.subr.mxu0 0.0
    %2021 = vmatpush2.msra.mxu0 0.0
    %2022 = vmatprep.subr.mxu0 0.0
    %2023 = vmatpush2.msra.mxu0 0.0
    %2024 = vmatprep.subr.mxu0 0.0
    %2025 = vmatpush2.msra.mxu0 0.0
    %2026 = vmatprep.subr.mxu0 0.0
    %2027 = vmatpush2.msra.mxu0 0.0
    %2028 = vmatprep.subr.mxu0 0.0
    %2029 = vmatpush2.msra.mxu0 0.0
    %2030 = vmatprep.subr.mxu0 0.0
    %2031 = vmatpush2.msra.mxu0 0.0
    %2032 = vmatprep.subr.mxu0 0.0
    %2033 = vmatpush2.msra.mxu0 0.0
    %2034 = vmatprep.subr.mxu0 0.0
    %2035 = vmatpush2.msra.mxu0 0.0
    %2036 = vmatprep.subr.mxu0 0.0
    %2037 = vmatpush2.msra.mxu0 0.0
    %2038 = vmatprep.subr.mxu0 0.0
    %2039 = vmatpush2.msra.mxu0 0.0
    %2040 = vmatprep.subr.mxu0 0.0
    %2041 = vmatpush2.msra.mxu0 0.0
    %2042 = vmatprep.subr.mxu0 0.0
    %2043 = vmatpush2.msra.mxu0 0.0
    %2044 = vmatprep.subr.mxu0 0.0
    %2045 = vmatpush2.msra.mxu0 0.0
    %2046 = vmatprep.subr.mxu0 0.0
    %2047 = vmatpush2.msra.mxu0 0.0
    %2048 = vmatprep.subr.mxu0 0.0
    %2049 = vmatpush2.msra.mxu0 0.0
    %2050 = vmatprep.subr.mxu0 0.0
    %2051 = vmatpush2.msra.mxu0 0.0
    %2052 = vmatprep.mubr.f32.mxu0 0.0
    %2053 = vmatmul.mubr.f32.gmra.mxu0 %v1986
    %v2054 = vpop.f32.mrf.mxu0
    %v2055 = vadd.f32 %v1982, %v2054
    %v2056 = vpop.f32.mrf.mxu0
    %2057 = vdwg.mxu0
    %2058 = vst [vmem:[#allocation11] sm:$0x3] %v2055
    // Predicated region
    $region62: #{tpu_custom_call.1} parent=1 // pred_check
      _
    $region63: #{tpu_custom_call.1} parent=1 // pred_check_branch
      %2060 = sbr.rel (0) target = $region65
    $region64: #{tpu_custom_call.1} parent=1 // pred_region
      %s2062 = ssub.s32 32, 32
      %2063 = vsyncadd [#allocation4], %s2062
      %s2065 = sshll.u32 [#allocation11], 4
      %s2066 = int_to_ptr.vmem [resolvable:$true] %s2065
      %2068 = dma.vmem_to_hbm [thread:$0]  %s2066, 32, %s11, [#allocation4]
    $region65: #{tpu_custom_call.1} parent=1 // pred_fallthru
      _
    // Predicated region
    $region66: #{tpu_custom_call.1} parent=1 // pred_check
      _
    $region67: #{tpu_custom_call.1} parent=1 // pred_check_branch
      %2070 = sbr.rel (0) target = $region69
    $region68: #{tpu_custom_call.1} parent=1 // pred_region
      %2071 = dma.done [#allocation4], 32
    $region69: #{tpu_custom_call.1} parent=1 // pred_fallthru
      _
    %2072 = vsyncpa [#allocation4], 1
    %2073 = vsyncpa [#allocation5], 1
    %2074 = vsyncpa [#allocation7], 1
    %2075 = vsyncpa [#allocation10], 1

</llo_original>
